<compile_context>
chip_gen: v5e
topology: v5e:2x2
jax: 0.10.0
libtpu: 0.0.40
codegen_flags: <defaults>
</compile_context>

<pallas_src>
import math

import jax
import jax.numpy as jnp
import numpy as np
from jax.experimental import pallas as pl
from jax.experimental.pallas import tpu as pltpu

# ----------------------------- KAN hyper-params ------------------------------
GRID_SIZE = 5
SPLINE_ORDER = 3
K_BASIS = GRID_SIZE + SPLINE_ORDER          # 8 spline basis functions / feature
GRID_RANGE = (-1.0, 1.0)
_H = (GRID_RANGE[1] - GRID_RANGE[0]) / GRID_SIZE
# knots: arange(-spline_order, grid_size + spline_order + 1) * h + grid_range[0]
GRID_PTS = tuple(float(t * _H + GRID_RANGE[0])
                 for t in range(-SPLINE_ORDER, GRID_SIZE + SPLINE_ORDER + 1))  # 12

MATMUL_DTYPE = jnp.bfloat16      # MXU operand dtype (accumulation stays f32)
LANE = 128


def _round_up(v, m):
    return ((v + m - 1) // m) * m


# ------------------------- chip-dependent knobs -------------------------------
def _device_kind():
    try:
        return jax.devices()[0].device_kind.lower()
    except Exception:
        return ""


_KIND = _device_kind()
# v6e / v7x have bf16 VALU + EUP -> run the basis recursion in bf16 there.
_HAS_BF16_VECTOR_UNITS = any(s in _KIND for s in ("v6", "v7", "7x"))
COMPUTE_DTYPE = jnp.bfloat16 if _HAS_BF16_VECTOR_UNITS else jnp.float32
CHUNK_LANES = 256 if _HAS_BF16_VECTOR_UNITS else 128   # Cin chunk width (lanes)


def _layer_chunk(cin_p, chunk):
    """Chunk width actually used for a layer with padded fan-in cin_p."""
    if cin_p <= chunk:
        return cin_p
    return chunk if cin_p % chunk == 0 else LANE


# ------------------------------ in-kernel math --------------------------------
def _silu(x):
    # x * sigmoid(x); sigmoid via tanh -> one EUP op, no divide / reciprocal.
    return x * (0.5 * jnp.tanh(0.5 * x) + 0.5)


def _spline_bases(x):
    """Cubic B-spline bases on the uniform knot grid, via hat functions.

    u = (x - g0)/h maps the knots to integers 0..len(g)-1.  Degree-1 bases are
    hat functions max(0, 1 - |u - (t+1)|) (mathematically identical to the
    half-open-interval mask construction on a uniform grid); degrees 2..3 use
    the Cox-de Boor recursion with constant 1/k denominators.  Stays in
    x.dtype (bf16 on v6e/v7x, f32 on v5e).  Returns K_BASIS arrays like x.
    """
    u = (x - GRID_PTS[0]) * (1.0 / _H)
    n1 = len(GRID_PTS) - 2                          # 10 degree-1 bases
    bases = [jnp.maximum(0.0, 1.0 - jnp.abs(u - float(t + 1))) for t in range(n1)]
    for k in range(2, SPLINE_ORDER + 1):
        inv_k = 1.0 / k
        bases = [((u - float(t)) * bases[t]
                  + (float(t + k + 1) - u) * bases[t + 1]) * inv_k
                 for t in range(len(bases) - 1)]
    return bases                                    # K_BASIS arrays


def _kan_layer(z, w_ref, chunk, compute_dtype):
    """One KANLinear layer: loop over Cin chunks, one MXU matmul + accumulate each.

    z     : (TB, cin_p) f32 activation, channel-padded to a multiple of 128.
    w_ref : ((K_BASIS+1)*cin_p, cout_p) packed bf16 weight, chunk-major rows:
            for chunk c the rows [c*9*CH, (c+1)*9*CH) hold
            [base | spline k=0 | ... | spline k=7] of that Cin chunk.
            Padded rows / cols are zero, so channel padding never changes math.
    """
    rows, _ = w_ref.shape
    cin_p = rows // (K_BASIS + 1)
    ch = _layer_chunk(cin_p, chunk)
    n_chunks = cin_p // ch
    blk = (K_BASIS + 1) * ch
    acc = None
    for c in range(n_chunks):                       # unrolled at trace time
        xc = z[:, c * ch:(c + 1) * ch].astype(compute_dtype)
        feats = [_silu(xc)] + _spline_bases(xc)     # K_BASIS+1 blocks, lane-aligned
        fmat = jnp.concatenate([f.astype(MATMUL_DTYPE) for f in feats], axis=-1)
        w_rows = w_ref[c * blk:(c + 1) * blk, :]
        part = jnp.dot(fmat, w_rows, preferred_element_type=jnp.float32)
        acc = part if acc is None else acc + part
    return acc


def _make_fused_kernel(num_layers, chunk, compute_dtype):
    def kernel(*refs):
        x_ref = refs[0]
        w_refs = refs[1:1 + num_layers]
        o_ref = refs[1 + num_layers]
        z = x_ref[...].astype(jnp.float32)
        for w_ref in w_refs:                        # unrolled at trace time
            z = _kan_layer(z, w_ref, chunk, compute_dtype)
        o_ref[...] = z.astype(o_ref.dtype)
    return kernel


# ------------------------- host-side weight packing ---------------------------
def pack_kan_layer(base_w, spline_w, spline_scaler, *, chunk=CHUNK_LANES):
    """Pack one KANLinear layer into a ((K+1)*cin_p, cout_p) chunk-major matrix.

    base_w        : (cout, cin)
    spline_w      : (cout, cin, K_BASIS)
    spline_scaler : (cout, cin)

    Row layout (matches the in-kernel per-chunk feature concat):
        chunk c, feature f (0=base, f=k+1 spline k), lane j
            row = c*(K+1)*CH + f*CH + j   <->  input feature  c*CH + j
    Padded rows / columns are zero, so 128-channel padding is exact.
    NOTE: must use the same `chunk` value as kan3_fused.
    """
    cout, cin = base_w.shape
    cin_p, cout_p = _round_up(cin, LANE), _round_up(cout, LANE)
    ch = _layer_chunk(cin_p, chunk)
    n_chunks = cin_p // ch

    base_t = np.asarray(base_w, np.float32).T                              # (cin, cout)
    scaled = (np.asarray(spline_w, np.float32)
              * np.asarray(spline_scaler, np.float32)[..., None])          # (cout, cin, K)
    spline_t = np.transpose(scaled, (2, 1, 0))                             # (K, cin, cout)

    w = np.zeros(((K_BASIS + 1) * cin_p, cout_p), np.float32)
    for c in range(n_chunks):
        lo = c * ch
        hi = min(cin, lo + ch)
        if hi <= lo:
            continue                                  # chunk entirely in pad region
        nreal = hi - lo
        row0 = c * (K_BASIS + 1) * ch
        w[row0:row0 + nreal, :cout] = base_t[lo:hi]
        for k in range(K_BASIS):
            r0 = row0 + (k + 1) * ch
            w[r0:r0 + nreal, :cout] = spline_t[k, lo:hi]
    return jnp.asarray(w, MATMUL_DTYPE)


# --------------------------------- wrapper -------------------------------------
def _choose_tile_n(n, *, max_tile=512, min_tile=8, target_steps=2):
    """>=2 grid steps when the batch allows (v7x has 2 TCs), bounded padding waste."""
    n8 = _round_up(max(int(n), 1), min_tile)
    if n8 <= min_tile * target_steps:
        return n8                                    # too small to split usefully
    tile = (n8 + target_steps - 1) // target_steps
    tile = min(tile, max_tile)
    return _round_up(tile, min_tile)


def _vmem_limit(tile_n, packed_ws, chunk, compute_dtype, cin_p0, cout_p_last,
                single_buffered_w):
    cbytes = jnp.dtype(compute_dtype).itemsize
    w_bytes = sum(int(w.size) * w.dtype.itemsize for w in packed_ws)
    w_bytes *= 1 if single_buffered_w else 2
    io_bytes = 2 * tile_n * cin_p0 * 4 + 2 * tile_n * cout_p_last * 4
    max_cin_p = max(int(w.shape[0]) // (K_BASIS + 1) for w in packed_ws)
    max_cout_p = max(int(w.shape[1]) for w in packed_ws)
    max_ch = max(_layer_chunk(int(w.shape[0]) // (K_BASIS + 1), chunk)
                 for w in packed_ws)
    # per-chunk working set: ~14 basis/temp arrays + fmat + partial + carried z/acc
    work = tile_n * (14 * max_ch * cbytes + (K_BASIS + 1) * max_ch * 2
                     + 2 * max_cout_p * 4 + max_cin_p * 4)
    need = w_bytes + io_bytes + work + (8 << 20)     # headroom for compiler scratch
    # Cap well below v7x's 64 MiB physical VMEM; also fine on v5e/v6e (128 MiB).
    return int(min(48 << 20, max(need, 16 << 20)))


def kan3_fused(x, packed_ws, *, chunk=CHUNK_LANES, compute_dtype=COMPUTE_DTYPE,
               max_tile_n=512):
    """Runs the fused KAN stack. Returns the real (N, 1) last-layer activations."""
    n, cin = x.shape
    cin_p = int(packed_ws[0].shape[0]) // (K_BASIS + 1)
    cout_p = int(packed_ws[-1].shape[1])
    assert cin <= cin_p

    tile_n = _choose_tile_n(n, max_tile=max_tile_n)
    n_pad = _round_up(n, tile_n)

    # zero-pad batch + channels (pad lanes stay exactly zero through the net
    # because the packed weights have zero rows/cols at padded positions).
    x_p = jnp.zeros((n_pad, cin_p), jnp.float32).at[:n, :cin].set(
        x.astype(jnp.float32))

    flops = int(2 * n_pad * sum(int(w.shape[0]) * int(w.shape[1]) for w in packed_ws))
    tanh_count = int(n_pad * sum(int(w.shape[0]) // (K_BASIS + 1) for w in packed_ws))
    bytes_accessed = int(x_p.size * 4
                         + sum(int(w.size) * w.dtype.itemsize for w in packed_ws)
                         + n_pad * cout_p * 4)

    def build(single_buf_w):
        in_specs = [pl.BlockSpec((tile_n, cin_p), lambda i: (i, 0))]
        for w in packed_ws:
            if single_buf_w:
                # Weights never change block index -> single-buffer them.
                in_specs.append(pl.BlockSpec(tuple(w.shape), lambda i: (0, 0),
                                             pipeline_mode=pl.Buffered(1)))
            else:
                in_specs.append(pl.BlockSpec(tuple(w.shape), lambda i: (0, 0)))
        out_specs = pl.BlockSpec((tile_n, cout_p), lambda i: (i, 0))
        return pl.pallas_call(
            _make_fused_kernel(len(packed_ws), chunk, compute_dtype),
            out_shape=jax.ShapeDtypeStruct((n_pad, cout_p), jnp.float32),
            grid_spec=pltpu.PrefetchScalarGridSpec(
                num_scalar_prefetch=0,
                grid=(n_pad // tile_n,),
                in_specs=in_specs,
                out_specs=out_specs,
            ),
            compiler_params=pltpu.CompilerParams(
                dimension_semantics=("parallel",),
                vmem_limit_bytes=_vmem_limit(tile_n, packed_ws, chunk,
                                             compute_dtype, cin_p, cout_p,
                                             single_buf_w),
            ),
            cost_estimate=pl.CostEstimate(
                flops=flops, transcendentals=tanh_count,
                bytes_accessed=bytes_accessed),
        )

    try:
        out = jax.block_until_ready(build(True)(x_p, *packed_ws))
    except Exception:
        # Older/newer JAX that rejects pipeline_mode=pl.Buffered(1): fall back
        # to default double-buffered weights (correctness unchanged).
        out = jax.block_until_ready(build(False)(x_p, *packed_ws))
    return out[:n, :1]


def kan3_libd_forward(packed_ws, coral_bias, inputs):
    """Mirrors KAN3_LIBD.forward: input is [x, levels]; returns [logits, logitWM, input]."""
    z = kan3_fused(inputs[0], packed_ws)    # (N, 1)
    logits = z[0, 0] + coral_bias           # (num_classes-1,)  (matches torch z[0,0] + bias)
    logit_wm = z[0, 0]                      # scalar
    return [logits, logit_wm, inputs]


# ------------------------ parameter init (synthetic) ---------------------------
def init_kan_layer_params(key, cin, cout):
    """Deterministic synthetic init (shapes match KANLinear.__init__)."""
    k1, k2, k3 = jax.random.split(key, 3)
    base_w = jax.random.uniform(k1, (cout, cin), jnp.float32, -1.0, 1.0) / math.sqrt(cin)
    spline_w = jax.random.uniform(k2, (cout, cin, K_BASIS), jnp.float32, -1.0, 1.0) * 0.1
    spline_scaler = jax.random.uniform(k3, (cout, cin), jnp.float32, -1.0, 1.0) / math.sqrt(cin)
    return base_w, spline_w, spline_scaler


# ----------------------------- numpy reference ---------------------------------
def _ref_forward(raw_params, coral_bias, x):
    """Float64 reference using the original masked Cox-de Boor formulation."""
    g = np.asarray(GRID_PTS, np.float64)
    z = np.asarray(x, np.float64)
    for base_w, spline_w, spline_scaler in raw_params:
        bw = np.asarray(base_w, np.float64)
        sw = (np.asarray(spline_w, np.float64)
              * np.asarray(spline_scaler, np.float64)[..., None])
        silu = z / (1.0 + np.exp(-z))
        out = silu @ bw.T
        xe = z[..., None]
        bases = ((xe >= g[:-1]) & (xe < g[1:])).astype(np.float64)
        for k in range(1, SPLINE_ORDER + 1):
            bases = ((xe - g[:-(k + 1)]) / (g[k:-1] - g[:-(k + 1)]) * bases[..., :-1]
                     + (g[k + 1:] - xe) / (g[k + 1:] - g[1:-k]) * bases[..., 1:])
        out = out + np.einsum('nik,oik->no', bases, sw)
        z = out
    logits = z[0, 0] + np.asarray(coral_bias, np.float64)
    return logits, z[0, 0]


# ---------------------------------- main --------------------------------------
if __name__ == "__main__":
    # small shapes consistent with the module: x (N, in_channels), 4 KAN layers -> 1
    N = 8
    IN_CHANNELS = 16
    HIDDEN = [32, 16, 8]        # stand-in for the default [500, 250, 100, ...]
    NUM_CLASSES = 7

    key = jax.random.PRNGKey(0)
    kx, klv, *wkeys = jax.random.split(key, 6)

    x = jax.random.normal(kx, (N, IN_CHANNELS), jnp.float32)
    levels = (jax.random.uniform(klv, (N, NUM_CLASSES)) > 0.5).astype(jnp.float32)
    inputs = [x, levels]        # module consumes a [features, levels] pair

    dims = [IN_CHANNELS] + HIDDEN + [1]
    raw_params = [init_kan_layer_params(k, cin, cout)
                  for k, cin, cout in zip(wkeys, dims[:-1], dims[1:])]
    packed_ws = [pack_kan_layer(*p, chunk=CHUNK_LANES) for p in raw_params]
    coral_bias = jnp.arange(NUM_CLASSES - 1, 0, -1, dtype=jnp.float32) / (NUM_CLASSES - 1)

    logits, logit_wm, _ = kan3_libd_forward(packed_ws, coral_bias, inputs)
    logits = jax.block_until_ready(logits)
    logit_wm = jax.block_until_ready(logit_wm)

    ref_logits, ref_wm = _ref_forward(raw_params, coral_bias, x)
    # bf16 MXU operands (+ bf16 basis recursion on v6e/v7x) -> modest tolerance.
    np.testing.assert_allclose(np.asarray(logits), ref_logits, rtol=5e-2, atol=5e-2)
    np.testing.assert_allclose(float(logit_wm), ref_wm, rtol=5e-2, atol=5e-2)

    print("KERNEL_OK")
</pallas_src>

<mosaic_0001>
module attributes {stable_mosaic.version = 11 : i64} {
  func.func @kernel(%arg0: i32, %arg1: memref<8x128xf32, #tpu.memory_space<vmem>>, %arg2: memref<1152x128xbf16, #tpu.memory_space<vmem>>, %arg3: memref<1152x128xbf16, #tpu.memory_space<vmem>>, %arg4: memref<1152x128xbf16, #tpu.memory_space<vmem>>, %arg5: memref<1152x128xbf16, #tpu.memory_space<vmem>>, %arg6: memref<8x128xf32, #tpu.memory_space<vmem>>) attributes {dimension_semantics = [#tpu.dimension_semantics<parallel>], iteration_bounds = array<i64: 1>, scalar_prefetch = 0 : i64, scratch_operands = 0 : i64, tpu.core_type = #tpu.core_type<tc>, window_params = [{transform_indices = @transform_0, window_bounds = array<i64: 8, 128>}, {pipeline_mode = #tpu.pipeline_mode<synchronous>, transform_indices = @transform_1, window_bounds = array<i64: 1152, 128>}, {pipeline_mode = #tpu.pipeline_mode<synchronous>, transform_indices = @transform_2, window_bounds = array<i64: 1152, 128>}, {pipeline_mode = #tpu.pipeline_mode<synchronous>, transform_indices = @transform_3, window_bounds = array<i64: 1152, 128>}, {pipeline_mode = #tpu.pipeline_mode<synchronous>, transform_indices = @transform_4, window_bounds = array<i64: 1152, 128>}, {transform_indices = @transform_5, window_bounds = array<i64: 8, 128>}]} {
    %c0 = arith.constant 0 : index
    %c0_0 = arith.constant 0 : index
    %0 = vector.load %arg1[%c0, %c0_0] : memref<8x128xf32, #tpu.memory_space<vmem>>, vector<8x128xf32>
    %cst = arith.constant 5.000000e-01 : f32
    %1 = vector.broadcast %cst : f32 to vector<8x128xf32>
    %2 = arith.mulf %1, %0 : vector<8x128xf32>
    %3 = math.tanh %2 : vector<8x128xf32>
    %cst_1 = arith.constant 5.000000e-01 : f32
    %4 = vector.broadcast %cst_1 : f32 to vector<8x128xf32>
    %5 = arith.mulf %4, %3 : vector<8x128xf32>
    %cst_2 = arith.constant 5.000000e-01 : f32
    %6 = vector.broadcast %cst_2 : f32 to vector<8x128xf32>
    %7 = arith.addf %5, %6 : vector<8x128xf32>
    %8 = arith.mulf %0, %7 : vector<8x128xf32>
    %cst_3 = arith.constant -2.200000e+00 : f32
    %9 = vector.broadcast %cst_3 : f32 to vector<8x128xf32>
    %10 = arith.subf %0, %9 : vector<8x128xf32>
    %cst_4 = arith.constant 2.500000e+00 : f32
    %11 = vector.broadcast %cst_4 : f32 to vector<8x128xf32>
    %12 = arith.mulf %10, %11 : vector<8x128xf32>
    %cst_5 = arith.constant 1.000000e+00 : f32
    %13 = vector.broadcast %cst_5 : f32 to vector<8x128xf32>
    %14 = arith.subf %12, %13 : vector<8x128xf32>
    %15 = math.absf %14 : vector<8x128xf32>
    %cst_6 = arith.constant 1.000000e+00 : f32
    %16 = vector.broadcast %cst_6 : f32 to vector<8x128xf32>
    %17 = arith.subf %16, %15 : vector<8x128xf32>
    %cst_7 = arith.constant 0.000000e+00 : f32
    %18 = vector.broadcast %cst_7 : f32 to vector<8x128xf32>
    %19 = arith.maximumf %18, %17 : vector<8x128xf32>
    %cst_8 = arith.constant 2.000000e+00 : f32
    %20 = vector.broadcast %cst_8 : f32 to vector<8x128xf32>
    %21 = arith.subf %12, %20 : vector<8x128xf32>
    %22 = math.absf %21 : vector<8x128xf32>
    %cst_9 = arith.constant 1.000000e+00 : f32
    %23 = vector.broadcast %cst_9 : f32 to vector<8x128xf32>
    %24 = arith.subf %23, %22 : vector<8x128xf32>
    %cst_10 = arith.constant 0.000000e+00 : f32
    %25 = vector.broadcast %cst_10 : f32 to vector<8x128xf32>
    %26 = arith.maximumf %25, %24 : vector<8x128xf32>
    %cst_11 = arith.constant 3.000000e+00 : f32
    %27 = vector.broadcast %cst_11 : f32 to vector<8x128xf32>
    %28 = arith.subf %12, %27 : vector<8x128xf32>
    %29 = math.absf %28 : vector<8x128xf32>
    %cst_12 = arith.constant 1.000000e+00 : f32
    %30 = vector.broadcast %cst_12 : f32 to vector<8x128xf32>
    %31 = arith.subf %30, %29 : vector<8x128xf32>
    %cst_13 = arith.constant 0.000000e+00 : f32
    %32 = vector.broadcast %cst_13 : f32 to vector<8x128xf32>
    %33 = arith.maximumf %32, %31 : vector<8x128xf32>
    %cst_14 = arith.constant 4.000000e+00 : f32
    %34 = vector.broadcast %cst_14 : f32 to vector<8x128xf32>
    %35 = arith.subf %12, %34 : vector<8x128xf32>
    %36 = math.absf %35 : vector<8x128xf32>
    %cst_15 = arith.constant 1.000000e+00 : f32
    %37 = vector.broadcast %cst_15 : f32 to vector<8x128xf32>
    %38 = arith.subf %37, %36 : vector<8x128xf32>
    %cst_16 = arith.constant 0.000000e+00 : f32
    %39 = vector.broadcast %cst_16 : f32 to vector<8x128xf32>
    %40 = arith.maximumf %39, %38 : vector<8x128xf32>
    %cst_17 = arith.constant 5.000000e+00 : f32
    %41 = vector.broadcast %cst_17 : f32 to vector<8x128xf32>
    %42 = arith.subf %12, %41 : vector<8x128xf32>
    %43 = math.absf %42 : vector<8x128xf32>
    %cst_18 = arith.constant 1.000000e+00 : f32
    %44 = vector.broadcast %cst_18 : f32 to vector<8x128xf32>
    %45 = arith.subf %44, %43 : vector<8x128xf32>
    %cst_19 = arith.constant 0.000000e+00 : f32
    %46 = vector.broadcast %cst_19 : f32 to vector<8x128xf32>
    %47 = arith.maximumf %46, %45 : vector<8x128xf32>
    %cst_20 = arith.constant 6.000000e+00 : f32
    %48 = vector.broadcast %cst_20 : f32 to vector<8x128xf32>
    %49 = arith.subf %12, %48 : vector<8x128xf32>
    %50 = math.absf %49 : vector<8x128xf32>
    %cst_21 = arith.constant 1.000000e+00 : f32
    %51 = vector.broadcast %cst_21 : f32 to vector<8x128xf32>
    %52 = arith.subf %51, %50 : vector<8x128xf32>
    %cst_22 = arith.constant 0.000000e+00 : f32
    %53 = vector.broadcast %cst_22 : f32 to vector<8x128xf32>
    %54 = arith.maximumf %53, %52 : vector<8x128xf32>
    %cst_23 = arith.constant 7.000000e+00 : f32
    %55 = vector.broadcast %cst_23 : f32 to vector<8x128xf32>
    %56 = arith.subf %12, %55 : vector<8x128xf32>
    %57 = math.absf %56 : vector<8x128xf32>
    %cst_24 = arith.constant 1.000000e+00 : f32
    %58 = vector.broadcast %cst_24 : f32 to vector<8x128xf32>
    %59 = arith.subf %58, %57 : vector<8x128xf32>
    %cst_25 = arith.constant 0.000000e+00 : f32
    %60 = vector.broadcast %cst_25 : f32 to vector<8x128xf32>
    %61 = arith.maximumf %60, %59 : vector<8x128xf32>
    %cst_26 = arith.constant 8.000000e+00 : f32
    %62 = vector.broadcast %cst_26 : f32 to vector<8x128xf32>
    %63 = arith.subf %12, %62 : vector<8x128xf32>
    %64 = math.absf %63 : vector<8x128xf32>
    %cst_27 = arith.constant 1.000000e+00 : f32
    %65 = vector.broadcast %cst_27 : f32 to vector<8x128xf32>
    %66 = arith.subf %65, %64 : vector<8x128xf32>
    %cst_28 = arith.constant 0.000000e+00 : f32
    %67 = vector.broadcast %cst_28 : f32 to vector<8x128xf32>
    %68 = arith.maximumf %67, %66 : vector<8x128xf32>
    %cst_29 = arith.constant 9.000000e+00 : f32
    %69 = vector.broadcast %cst_29 : f32 to vector<8x128xf32>
    %70 = arith.subf %12, %69 : vector<8x128xf32>
    %71 = math.absf %70 : vector<8x128xf32>
    %cst_30 = arith.constant 1.000000e+00 : f32
    %72 = vector.broadcast %cst_30 : f32 to vector<8x128xf32>
    %73 = arith.subf %72, %71 : vector<8x128xf32>
    %cst_31 = arith.constant 0.000000e+00 : f32
    %74 = vector.broadcast %cst_31 : f32 to vector<8x128xf32>
    %75 = arith.maximumf %74, %73 : vector<8x128xf32>
    %cst_32 = arith.constant 1.000000e+01 : f32
    %76 = vector.broadcast %cst_32 : f32 to vector<8x128xf32>
    %77 = arith.subf %12, %76 : vector<8x128xf32>
    %78 = math.absf %77 : vector<8x128xf32>
    %cst_33 = arith.constant 1.000000e+00 : f32
    %79 = vector.broadcast %cst_33 : f32 to vector<8x128xf32>
    %80 = arith.subf %79, %78 : vector<8x128xf32>
    %cst_34 = arith.constant 0.000000e+00 : f32
    %81 = vector.broadcast %cst_34 : f32 to vector<8x128xf32>
    %82 = arith.maximumf %81, %80 : vector<8x128xf32>
    %cst_35 = arith.constant 0.000000e+00 : f32
    %83 = vector.broadcast %cst_35 : f32 to vector<8x128xf32>
    %84 = arith.subf %12, %83 : vector<8x128xf32>
    %85 = arith.mulf %84, %19 : vector<8x128xf32>
    %cst_36 = arith.constant 3.000000e+00 : f32
    %86 = vector.broadcast %cst_36 : f32 to vector<8x128xf32>
    %87 = arith.subf %86, %12 : vector<8x128xf32>
    %88 = arith.mulf %87, %26 : vector<8x128xf32>
    %89 = arith.addf %85, %88 : vector<8x128xf32>
    %cst_37 = arith.constant 5.000000e-01 : f32
    %90 = vector.broadcast %cst_37 : f32 to vector<8x128xf32>
    %91 = arith.mulf %89, %90 : vector<8x128xf32>
    %cst_38 = arith.constant 1.000000e+00 : f32
    %92 = vector.broadcast %cst_38 : f32 to vector<8x128xf32>
    %93 = arith.subf %12, %92 : vector<8x128xf32>
    %94 = arith.mulf %93, %26 : vector<8x128xf32>
    %cst_39 = arith.constant 4.000000e+00 : f32
    %95 = vector.broadcast %cst_39 : f32 to vector<8x128xf32>
    %96 = arith.subf %95, %12 : vector<8x128xf32>
    %97 = arith.mulf %96, %33 : vector<8x128xf32>
    %98 = arith.addf %94, %97 : vector<8x128xf32>
    %cst_40 = arith.constant 5.000000e-01 : f32
    %99 = vector.broadcast %cst_40 : f32 to vector<8x128xf32>
    %100 = arith.mulf %98, %99 : vector<8x128xf32>
    %cst_41 = arith.constant 2.000000e+00 : f32
    %101 = vector.broadcast %cst_41 : f32 to vector<8x128xf32>
    %102 = arith.subf %12, %101 : vector<8x128xf32>
    %103 = arith.mulf %102, %33 : vector<8x128xf32>
    %cst_42 = arith.constant 5.000000e+00 : f32
    %104 = vector.broadcast %cst_42 : f32 to vector<8x128xf32>
    %105 = arith.subf %104, %12 : vector<8x128xf32>
    %106 = arith.mulf %105, %40 : vector<8x128xf32>
    %107 = arith.addf %103, %106 : vector<8x128xf32>
    %cst_43 = arith.constant 5.000000e-01 : f32
    %108 = vector.broadcast %cst_43 : f32 to vector<8x128xf32>
    %109 = arith.mulf %107, %108 : vector<8x128xf32>
    %cst_44 = arith.constant 3.000000e+00 : f32
    %110 = vector.broadcast %cst_44 : f32 to vector<8x128xf32>
    %111 = arith.subf %12, %110 : vector<8x128xf32>
    %112 = arith.mulf %111, %40 : vector<8x128xf32>
    %cst_45 = arith.constant 6.000000e+00 : f32
    %113 = vector.broadcast %cst_45 : f32 to vector<8x128xf32>
    %114 = arith.subf %113, %12 : vector<8x128xf32>
    %115 = arith.mulf %114, %47 : vector<8x128xf32>
    %116 = arith.addf %112, %115 : vector<8x128xf32>
    %cst_46 = arith.constant 5.000000e-01 : f32
    %117 = vector.broadcast %cst_46 : f32 to vector<8x128xf32>
    %118 = arith.mulf %116, %117 : vector<8x128xf32>
    %cst_47 = arith.constant 4.000000e+00 : f32
    %119 = vector.broadcast %cst_47 : f32 to vector<8x128xf32>
    %120 = arith.subf %12, %119 : vector<8x128xf32>
    %121 = arith.mulf %120, %47 : vector<8x128xf32>
    %cst_48 = arith.constant 7.000000e+00 : f32
    %122 = vector.broadcast %cst_48 : f32 to vector<8x128xf32>
    %123 = arith.subf %122, %12 : vector<8x128xf32>
    %124 = arith.mulf %123, %54 : vector<8x128xf32>
    %125 = arith.addf %121, %124 : vector<8x128xf32>
    %cst_49 = arith.constant 5.000000e-01 : f32
    %126 = vector.broadcast %cst_49 : f32 to vector<8x128xf32>
    %127 = arith.mulf %125, %126 : vector<8x128xf32>
    %cst_50 = arith.constant 5.000000e+00 : f32
    %128 = vector.broadcast %cst_50 : f32 to vector<8x128xf32>
    %129 = arith.subf %12, %128 : vector<8x128xf32>
    %130 = arith.mulf %129, %54 : vector<8x128xf32>
    %cst_51 = arith.constant 8.000000e+00 : f32
    %131 = vector.broadcast %cst_51 : f32 to vector<8x128xf32>
    %132 = arith.subf %131, %12 : vector<8x128xf32>
    %133 = arith.mulf %132, %61 : vector<8x128xf32>
    %134 = arith.addf %130, %133 : vector<8x128xf32>
    %cst_52 = arith.constant 5.000000e-01 : f32
    %135 = vector.broadcast %cst_52 : f32 to vector<8x128xf32>
    %136 = arith.mulf %134, %135 : vector<8x128xf32>
    %cst_53 = arith.constant 6.000000e+00 : f32
    %137 = vector.broadcast %cst_53 : f32 to vector<8x128xf32>
    %138 = arith.subf %12, %137 : vector<8x128xf32>
    %139 = arith.mulf %138, %61 : vector<8x128xf32>
    %cst_54 = arith.constant 9.000000e+00 : f32
    %140 = vector.broadcast %cst_54 : f32 to vector<8x128xf32>
    %141 = arith.subf %140, %12 : vector<8x128xf32>
    %142 = arith.mulf %141, %68 : vector<8x128xf32>
    %143 = arith.addf %139, %142 : vector<8x128xf32>
    %cst_55 = arith.constant 5.000000e-01 : f32
    %144 = vector.broadcast %cst_55 : f32 to vector<8x128xf32>
    %145 = arith.mulf %143, %144 : vector<8x128xf32>
    %cst_56 = arith.constant 7.000000e+00 : f32
    %146 = vector.broadcast %cst_56 : f32 to vector<8x128xf32>
    %147 = arith.subf %12, %146 : vector<8x128xf32>
    %148 = arith.mulf %147, %68 : vector<8x128xf32>
    %cst_57 = arith.constant 1.000000e+01 : f32
    %149 = vector.broadcast %cst_57 : f32 to vector<8x128xf32>
    %150 = arith.subf %149, %12 : vector<8x128xf32>
    %151 = arith.mulf %150, %75 : vector<8x128xf32>
    %152 = arith.addf %148, %151 : vector<8x128xf32>
    %cst_58 = arith.constant 5.000000e-01 : f32
    %153 = vector.broadcast %cst_58 : f32 to vector<8x128xf32>
    %154 = arith.mulf %152, %153 : vector<8x128xf32>
    %cst_59 = arith.constant 8.000000e+00 : f32
    %155 = vector.broadcast %cst_59 : f32 to vector<8x128xf32>
    %156 = arith.subf %12, %155 : vector<8x128xf32>
    %157 = arith.mulf %156, %75 : vector<8x128xf32>
    %cst_60 = arith.constant 1.100000e+01 : f32
    %158 = vector.broadcast %cst_60 : f32 to vector<8x128xf32>
    %159 = arith.subf %158, %12 : vector<8x128xf32>
    %160 = arith.mulf %159, %82 : vector<8x128xf32>
    %161 = arith.addf %157, %160 : vector<8x128xf32>
    %cst_61 = arith.constant 5.000000e-01 : f32
    %162 = vector.broadcast %cst_61 : f32 to vector<8x128xf32>
    %163 = arith.mulf %161, %162 : vector<8x128xf32>
    %cst_62 = arith.constant 0.000000e+00 : f32
    %164 = vector.broadcast %cst_62 : f32 to vector<8x128xf32>
    %165 = arith.subf %12, %164 : vector<8x128xf32>
    %166 = arith.mulf %165, %91 : vector<8x128xf32>
    %cst_63 = arith.constant 4.000000e+00 : f32
    %167 = vector.broadcast %cst_63 : f32 to vector<8x128xf32>
    %168 = arith.subf %167, %12 : vector<8x128xf32>
    %169 = arith.mulf %168, %100 : vector<8x128xf32>
    %170 = arith.addf %166, %169 : vector<8x128xf32>
    %cst_64 = arith.constant 0.333333343 : f32
    %171 = vector.broadcast %cst_64 : f32 to vector<8x128xf32>
    %172 = arith.mulf %170, %171 : vector<8x128xf32>
    %cst_65 = arith.constant 1.000000e+00 : f32
    %173 = vector.broadcast %cst_65 : f32 to vector<8x128xf32>
    %174 = arith.subf %12, %173 : vector<8x128xf32>
    %175 = arith.mulf %174, %100 : vector<8x128xf32>
    %cst_66 = arith.constant 5.000000e+00 : f32
    %176 = vector.broadcast %cst_66 : f32 to vector<8x128xf32>
    %177 = arith.subf %176, %12 : vector<8x128xf32>
    %178 = arith.mulf %177, %109 : vector<8x128xf32>
    %179 = arith.addf %175, %178 : vector<8x128xf32>
    %cst_67 = arith.constant 0.333333343 : f32
    %180 = vector.broadcast %cst_67 : f32 to vector<8x128xf32>
    %181 = arith.mulf %179, %180 : vector<8x128xf32>
    %cst_68 = arith.constant 2.000000e+00 : f32
    %182 = vector.broadcast %cst_68 : f32 to vector<8x128xf32>
    %183 = arith.subf %12, %182 : vector<8x128xf32>
    %184 = arith.mulf %183, %109 : vector<8x128xf32>
    %cst_69 = arith.constant 6.000000e+00 : f32
    %185 = vector.broadcast %cst_69 : f32 to vector<8x128xf32>
    %186 = arith.subf %185, %12 : vector<8x128xf32>
    %187 = arith.mulf %186, %118 : vector<8x128xf32>
    %188 = arith.addf %184, %187 : vector<8x128xf32>
    %cst_70 = arith.constant 0.333333343 : f32
    %189 = vector.broadcast %cst_70 : f32 to vector<8x128xf32>
    %190 = arith.mulf %188, %189 : vector<8x128xf32>
    %cst_71 = arith.constant 3.000000e+00 : f32
    %191 = vector.broadcast %cst_71 : f32 to vector<8x128xf32>
    %192 = arith.subf %12, %191 : vector<8x128xf32>
    %193 = arith.mulf %192, %118 : vector<8x128xf32>
    %cst_72 = arith.constant 7.000000e+00 : f32
    %194 = vector.broadcast %cst_72 : f32 to vector<8x128xf32>
    %195 = arith.subf %194, %12 : vector<8x128xf32>
    %196 = arith.mulf %195, %127 : vector<8x128xf32>
    %197 = arith.addf %193, %196 : vector<8x128xf32>
    %cst_73 = arith.constant 0.333333343 : f32
    %198 = vector.broadcast %cst_73 : f32 to vector<8x128xf32>
    %199 = arith.mulf %197, %198 : vector<8x128xf32>
    %cst_74 = arith.constant 4.000000e+00 : f32
    %200 = vector.broadcast %cst_74 : f32 to vector<8x128xf32>
    %201 = arith.subf %12, %200 : vector<8x128xf32>
    %202 = arith.mulf %201, %127 : vector<8x128xf32>
    %cst_75 = arith.constant 8.000000e+00 : f32
    %203 = vector.broadcast %cst_75 : f32 to vector<8x128xf32>
    %204 = arith.subf %203, %12 : vector<8x128xf32>
    %205 = arith.mulf %204, %136 : vector<8x128xf32>
    %206 = arith.addf %202, %205 : vector<8x128xf32>
    %cst_76 = arith.constant 0.333333343 : f32
    %207 = vector.broadcast %cst_76 : f32 to vector<8x128xf32>
    %208 = arith.mulf %206, %207 : vector<8x128xf32>
    %cst_77 = arith.constant 5.000000e+00 : f32
    %209 = vector.broadcast %cst_77 : f32 to vector<8x128xf32>
    %210 = arith.subf %12, %209 : vector<8x128xf32>
    %211 = arith.mulf %210, %136 : vector<8x128xf32>
    %cst_78 = arith.constant 9.000000e+00 : f32
    %212 = vector.broadcast %cst_78 : f32 to vector<8x128xf32>
    %213 = arith.subf %212, %12 : vector<8x128xf32>
    %214 = arith.mulf %213, %145 : vector<8x128xf32>
    %215 = arith.addf %211, %214 : vector<8x128xf32>
    %cst_79 = arith.constant 0.333333343 : f32
    %216 = vector.broadcast %cst_79 : f32 to vector<8x128xf32>
    %217 = arith.mulf %215, %216 : vector<8x128xf32>
    %cst_80 = arith.constant 6.000000e+00 : f32
    %218 = vector.broadcast %cst_80 : f32 to vector<8x128xf32>
    %219 = arith.subf %12, %218 : vector<8x128xf32>
    %220 = arith.mulf %219, %145 : vector<8x128xf32>
    %cst_81 = arith.constant 1.000000e+01 : f32
    %221 = vector.broadcast %cst_81 : f32 to vector<8x128xf32>
    %222 = arith.subf %221, %12 : vector<8x128xf32>
    %223 = arith.mulf %222, %154 : vector<8x128xf32>
    %224 = arith.addf %220, %223 : vector<8x128xf32>
    %cst_82 = arith.constant 0.333333343 : f32
    %225 = vector.broadcast %cst_82 : f32 to vector<8x128xf32>
    %226 = arith.mulf %224, %225 : vector<8x128xf32>
    %cst_83 = arith.constant 7.000000e+00 : f32
    %227 = vector.broadcast %cst_83 : f32 to vector<8x128xf32>
    %228 = arith.subf %12, %227 : vector<8x128xf32>
    %229 = arith.mulf %228, %154 : vector<8x128xf32>
    %cst_84 = arith.constant 1.100000e+01 : f32
    %230 = vector.broadcast %cst_84 : f32 to vector<8x128xf32>
    %231 = arith.subf %230, %12 : vector<8x128xf32>
    %232 = arith.mulf %231, %163 : vector<8x128xf32>
    %233 = arith.addf %229, %232 : vector<8x128xf32>
    %cst_85 = arith.constant 0.333333343 : f32
    %234 = vector.broadcast %cst_85 : f32 to vector<8x128xf32>
    %235 = arith.mulf %233, %234 : vector<8x128xf32>
    %236 = arith.truncf %8 : vector<8x128xf32> to vector<8x128xbf16>
    %237 = arith.truncf %172 : vector<8x128xf32> to vector<8x128xbf16>
    %238 = arith.truncf %181 : vector<8x128xf32> to vector<8x128xbf16>
    %239 = arith.truncf %190 : vector<8x128xf32> to vector<8x128xbf16>
    %240 = arith.truncf %199 : vector<8x128xf32> to vector<8x128xbf16>
    %241 = arith.truncf %208 : vector<8x128xf32> to vector<8x128xbf16>
    %242 = arith.truncf %217 : vector<8x128xf32> to vector<8x128xbf16>
    %243 = arith.truncf %226 : vector<8x128xf32> to vector<8x128xbf16>
    %244 = arith.truncf %235 : vector<8x128xf32> to vector<8x128xbf16>
    %245 = tpu.concatenate %236, %237, %238, %239, %240, %241, %242, %243, %244 in 1 : vector<8x128xbf16>, vector<8x128xbf16>, vector<8x128xbf16>, vector<8x128xbf16>, vector<8x128xbf16>, vector<8x128xbf16>, vector<8x128xbf16>, vector<8x128xbf16>, vector<8x128xbf16> -> vector<8x1152xbf16>
    %c0_86 = arith.constant 0 : index
    %c0_87 = arith.constant 0 : index
    %246 = vector.load %arg2[%c0_86, %c0_87] : memref<1152x128xbf16, #tpu.memory_space<vmem>>, vector<1152x128xbf16>
    %cst_88 = arith.constant dense<0.000000e+00> : vector<8x128xf32>
    %247 = tpu.matmul %245, %246, %cst_88 {dimension_numbers = #tpu.dot_dimension_numbers<[1], [0], [0], [1], [0, 0, 1, 1], [], []>} : vector<8x1152xbf16>, vector<1152x128xbf16>, vector<8x128xf32> -> vector<8x128xf32>
    %cst_89 = arith.constant 5.000000e-01 : f32
    %248 = vector.broadcast %cst_89 : f32 to vector<8x128xf32>
    %249 = arith.mulf %248, %247 : vector<8x128xf32>
    %250 = math.tanh %249 : vector<8x128xf32>
    %cst_90 = arith.constant 5.000000e-01 : f32
    %251 = vector.broadcast %cst_90 : f32 to vector<8x128xf32>
    %252 = arith.mulf %251, %250 : vector<8x128xf32>
    %cst_91 = arith.constant 5.000000e-01 : f32
    %253 = vector.broadcast %cst_91 : f32 to vector<8x128xf32>
    %254 = arith.addf %252, %253 : vector<8x128xf32>
    %255 = arith.mulf %247, %254 : vector<8x128xf32>
    %cst_92 = arith.constant -2.200000e+00 : f32
    %256 = vector.broadcast %cst_92 : f32 to vector<8x128xf32>
    %257 = arith.subf %247, %256 : vector<8x128xf32>
    %cst_93 = arith.constant 2.500000e+00 : f32
    %258 = vector.broadcast %cst_93 : f32 to vector<8x128xf32>
    %259 = arith.mulf %257, %258 : vector<8x128xf32>
    %cst_94 = arith.constant 1.000000e+00 : f32
    %260 = vector.broadcast %cst_94 : f32 to vector<8x128xf32>
    %261 = arith.subf %259, %260 : vector<8x128xf32>
    %262 = math.absf %261 : vector<8x128xf32>
    %cst_95 = arith.constant 1.000000e+00 : f32
    %263 = vector.broadcast %cst_95 : f32 to vector<8x128xf32>
    %264 = arith.subf %263, %262 : vector<8x128xf32>
    %cst_96 = arith.constant 0.000000e+00 : f32
    %265 = vector.broadcast %cst_96 : f32 to vector<8x128xf32>
    %266 = arith.maximumf %265, %264 : vector<8x128xf32>
    %cst_97 = arith.constant 2.000000e+00 : f32
    %267 = vector.broadcast %cst_97 : f32 to vector<8x128xf32>
    %268 = arith.subf %259, %267 : vector<8x128xf32>
    %269 = math.absf %268 : vector<8x128xf32>
    %cst_98 = arith.constant 1.000000e+00 : f32
    %270 = vector.broadcast %cst_98 : f32 to vector<8x128xf32>
    %271 = arith.subf %270, %269 : vector<8x128xf32>
    %cst_99 = arith.constant 0.000000e+00 : f32
    %272 = vector.broadcast %cst_99 : f32 to vector<8x128xf32>
    %273 = arith.maximumf %272, %271 : vector<8x128xf32>
    %cst_100 = arith.constant 3.000000e+00 : f32
    %274 = vector.broadcast %cst_100 : f32 to vector<8x128xf32>
    %275 = arith.subf %259, %274 : vector<8x128xf32>
    %276 = math.absf %275 : vector<8x128xf32>
    %cst_101 = arith.constant 1.000000e+00 : f32
    %277 = vector.broadcast %cst_101 : f32 to vector<8x128xf32>
    %278 = arith.subf %277, %276 : vector<8x128xf32>
    %cst_102 = arith.constant 0.000000e+00 : f32
    %279 = vector.broadcast %cst_102 : f32 to vector<8x128xf32>
    %280 = arith.maximumf %279, %278 : vector<8x128xf32>
    %cst_103 = arith.constant 4.000000e+00 : f32
    %281 = vector.broadcast %cst_103 : f32 to vector<8x128xf32>
    %282 = arith.subf %259, %281 : vector<8x128xf32>
    %283 = math.absf %282 : vector<8x128xf32>
    %cst_104 = arith.constant 1.000000e+00 : f32
    %284 = vector.broadcast %cst_104 : f32 to vector<8x128xf32>
    %285 = arith.subf %284, %283 : vector<8x128xf32>
    %cst_105 = arith.constant 0.000000e+00 : f32
    %286 = vector.broadcast %cst_105 : f32 to vector<8x128xf32>
    %287 = arith.maximumf %286, %285 : vector<8x128xf32>
    %cst_106 = arith.constant 5.000000e+00 : f32
    %288 = vector.broadcast %cst_106 : f32 to vector<8x128xf32>
    %289 = arith.subf %259, %288 : vector<8x128xf32>
    %290 = math.absf %289 : vector<8x128xf32>
    %cst_107 = arith.constant 1.000000e+00 : f32
    %291 = vector.broadcast %cst_107 : f32 to vector<8x128xf32>
    %292 = arith.subf %291, %290 : vector<8x128xf32>
    %cst_108 = arith.constant 0.000000e+00 : f32
    %293 = vector.broadcast %cst_108 : f32 to vector<8x128xf32>
    %294 = arith.maximumf %293, %292 : vector<8x128xf32>
    %cst_109 = arith.constant 6.000000e+00 : f32
    %295 = vector.broadcast %cst_109 : f32 to vector<8x128xf32>
    %296 = arith.subf %259, %295 : vector<8x128xf32>
    %297 = math.absf %296 : vector<8x128xf32>
    %cst_110 = arith.constant 1.000000e+00 : f32
    %298 = vector.broadcast %cst_110 : f32 to vector<8x128xf32>
    %299 = arith.subf %298, %297 : vector<8x128xf32>
    %cst_111 = arith.constant 0.000000e+00 : f32
    %300 = vector.broadcast %cst_111 : f32 to vector<8x128xf32>
    %301 = arith.maximumf %300, %299 : vector<8x128xf32>
    %cst_112 = arith.constant 7.000000e+00 : f32
    %302 = vector.broadcast %cst_112 : f32 to vector<8x128xf32>
    %303 = arith.subf %259, %302 : vector<8x128xf32>
    %304 = math.absf %303 : vector<8x128xf32>
    %cst_113 = arith.constant 1.000000e+00 : f32
    %305 = vector.broadcast %cst_113 : f32 to vector<8x128xf32>
    %306 = arith.subf %305, %304 : vector<8x128xf32>
    %cst_114 = arith.constant 0.000000e+00 : f32
    %307 = vector.broadcast %cst_114 : f32 to vector<8x128xf32>
    %308 = arith.maximumf %307, %306 : vector<8x128xf32>
    %cst_115 = arith.constant 8.000000e+00 : f32
    %309 = vector.broadcast %cst_115 : f32 to vector<8x128xf32>
    %310 = arith.subf %259, %309 : vector<8x128xf32>
    %311 = math.absf %310 : vector<8x128xf32>
    %cst_116 = arith.constant 1.000000e+00 : f32
    %312 = vector.broadcast %cst_116 : f32 to vector<8x128xf32>
    %313 = arith.subf %312, %311 : vector<8x128xf32>
    %cst_117 = arith.constant 0.000000e+00 : f32
    %314 = vector.broadcast %cst_117 : f32 to vector<8x128xf32>
    %315 = arith.maximumf %314, %313 : vector<8x128xf32>
    %cst_118 = arith.constant 9.000000e+00 : f32
    %316 = vector.broadcast %cst_118 : f32 to vector<8x128xf32>
    %317 = arith.subf %259, %316 : vector<8x128xf32>
    %318 = math.absf %317 : vector<8x128xf32>
    %cst_119 = arith.constant 1.000000e+00 : f32
    %319 = vector.broadcast %cst_119 : f32 to vector<8x128xf32>
    %320 = arith.subf %319, %318 : vector<8x128xf32>
    %cst_120 = arith.constant 0.000000e+00 : f32
    %321 = vector.broadcast %cst_120 : f32 to vector<8x128xf32>
    %322 = arith.maximumf %321, %320 : vector<8x128xf32>
    %cst_121 = arith.constant 1.000000e+01 : f32
    %323 = vector.broadcast %cst_121 : f32 to vector<8x128xf32>
    %324 = arith.subf %259, %323 : vector<8x128xf32>
    %325 = math.absf %324 : vector<8x128xf32>
    %cst_122 = arith.constant 1.000000e+00 : f32
    %326 = vector.broadcast %cst_122 : f32 to vector<8x128xf32>
    %327 = arith.subf %326, %325 : vector<8x128xf32>
    %cst_123 = arith.constant 0.000000e+00 : f32
    %328 = vector.broadcast %cst_123 : f32 to vector<8x128xf32>
    %329 = arith.maximumf %328, %327 : vector<8x128xf32>
    %cst_124 = arith.constant 0.000000e+00 : f32
    %330 = vector.broadcast %cst_124 : f32 to vector<8x128xf32>
    %331 = arith.subf %259, %330 : vector<8x128xf32>
    %332 = arith.mulf %331, %266 : vector<8x128xf32>
    %cst_125 = arith.constant 3.000000e+00 : f32
    %333 = vector.broadcast %cst_125 : f32 to vector<8x128xf32>
    %334 = arith.subf %333, %259 : vector<8x128xf32>
    %335 = arith.mulf %334, %273 : vector<8x128xf32>
    %336 = arith.addf %332, %335 : vector<8x128xf32>
    %cst_126 = arith.constant 5.000000e-01 : f32
    %337 = vector.broadcast %cst_126 : f32 to vector<8x128xf32>
    %338 = arith.mulf %336, %337 : vector<8x128xf32>
    %cst_127 = arith.constant 1.000000e+00 : f32
    %339 = vector.broadcast %cst_127 : f32 to vector<8x128xf32>
    %340 = arith.subf %259, %339 : vector<8x128xf32>
    %341 = arith.mulf %340, %273 : vector<8x128xf32>
    %cst_128 = arith.constant 4.000000e+00 : f32
    %342 = vector.broadcast %cst_128 : f32 to vector<8x128xf32>
    %343 = arith.subf %342, %259 : vector<8x128xf32>
    %344 = arith.mulf %343, %280 : vector<8x128xf32>
    %345 = arith.addf %341, %344 : vector<8x128xf32>
    %cst_129 = arith.constant 5.000000e-01 : f32
    %346 = vector.broadcast %cst_129 : f32 to vector<8x128xf32>
    %347 = arith.mulf %345, %346 : vector<8x128xf32>
    %cst_130 = arith.constant 2.000000e+00 : f32
    %348 = vector.broadcast %cst_130 : f32 to vector<8x128xf32>
    %349 = arith.subf %259, %348 : vector<8x128xf32>
    %350 = arith.mulf %349, %280 : vector<8x128xf32>
    %cst_131 = arith.constant 5.000000e+00 : f32
    %351 = vector.broadcast %cst_131 : f32 to vector<8x128xf32>
    %352 = arith.subf %351, %259 : vector<8x128xf32>
    %353 = arith.mulf %352, %287 : vector<8x128xf32>
    %354 = arith.addf %350, %353 : vector<8x128xf32>
    %cst_132 = arith.constant 5.000000e-01 : f32
    %355 = vector.broadcast %cst_132 : f32 to vector<8x128xf32>
    %356 = arith.mulf %354, %355 : vector<8x128xf32>
    %cst_133 = arith.constant 3.000000e+00 : f32
    %357 = vector.broadcast %cst_133 : f32 to vector<8x128xf32>
    %358 = arith.subf %259, %357 : vector<8x128xf32>
    %359 = arith.mulf %358, %287 : vector<8x128xf32>
    %cst_134 = arith.constant 6.000000e+00 : f32
    %360 = vector.broadcast %cst_134 : f32 to vector<8x128xf32>
    %361 = arith.subf %360, %259 : vector<8x128xf32>
    %362 = arith.mulf %361, %294 : vector<8x128xf32>
    %363 = arith.addf %359, %362 : vector<8x128xf32>
    %cst_135 = arith.constant 5.000000e-01 : f32
    %364 = vector.broadcast %cst_135 : f32 to vector<8x128xf32>
    %365 = arith.mulf %363, %364 : vector<8x128xf32>
    %cst_136 = arith.constant 4.000000e+00 : f32
    %366 = vector.broadcast %cst_136 : f32 to vector<8x128xf32>
    %367 = arith.subf %259, %366 : vector<8x128xf32>
    %368 = arith.mulf %367, %294 : vector<8x128xf32>
    %cst_137 = arith.constant 7.000000e+00 : f32
    %369 = vector.broadcast %cst_137 : f32 to vector<8x128xf32>
    %370 = arith.subf %369, %259 : vector<8x128xf32>
    %371 = arith.mulf %370, %301 : vector<8x128xf32>
    %372 = arith.addf %368, %371 : vector<8x128xf32>
    %cst_138 = arith.constant 5.000000e-01 : f32
    %373 = vector.broadcast %cst_138 : f32 to vector<8x128xf32>
    %374 = arith.mulf %372, %373 : vector<8x128xf32>
    %cst_139 = arith.constant 5.000000e+00 : f32
    %375 = vector.broadcast %cst_139 : f32 to vector<8x128xf32>
    %376 = arith.subf %259, %375 : vector<8x128xf32>
    %377 = arith.mulf %376, %301 : vector<8x128xf32>
    %cst_140 = arith.constant 8.000000e+00 : f32
    %378 = vector.broadcast %cst_140 : f32 to vector<8x128xf32>
    %379 = arith.subf %378, %259 : vector<8x128xf32>
    %380 = arith.mulf %379, %308 : vector<8x128xf32>
    %381 = arith.addf %377, %380 : vector<8x128xf32>
    %cst_141 = arith.constant 5.000000e-01 : f32
    %382 = vector.broadcast %cst_141 : f32 to vector<8x128xf32>
    %383 = arith.mulf %381, %382 : vector<8x128xf32>
    %cst_142 = arith.constant 6.000000e+00 : f32
    %384 = vector.broadcast %cst_142 : f32 to vector<8x128xf32>
    %385 = arith.subf %259, %384 : vector<8x128xf32>
    %386 = arith.mulf %385, %308 : vector<8x128xf32>
    %cst_143 = arith.constant 9.000000e+00 : f32
    %387 = vector.broadcast %cst_143 : f32 to vector<8x128xf32>
    %388 = arith.subf %387, %259 : vector<8x128xf32>
    %389 = arith.mulf %388, %315 : vector<8x128xf32>
    %390 = arith.addf %386, %389 : vector<8x128xf32>
    %cst_144 = arith.constant 5.000000e-01 : f32
    %391 = vector.broadcast %cst_144 : f32 to vector<8x128xf32>
    %392 = arith.mulf %390, %391 : vector<8x128xf32>
    %cst_145 = arith.constant 7.000000e+00 : f32
    %393 = vector.broadcast %cst_145 : f32 to vector<8x128xf32>
    %394 = arith.subf %259, %393 : vector<8x128xf32>
    %395 = arith.mulf %394, %315 : vector<8x128xf32>
    %cst_146 = arith.constant 1.000000e+01 : f32
    %396 = vector.broadcast %cst_146 : f32 to vector<8x128xf32>
    %397 = arith.subf %396, %259 : vector<8x128xf32>
    %398 = arith.mulf %397, %322 : vector<8x128xf32>
    %399 = arith.addf %395, %398 : vector<8x128xf32>
    %cst_147 = arith.constant 5.000000e-01 : f32
    %400 = vector.broadcast %cst_147 : f32 to vector<8x128xf32>
    %401 = arith.mulf %399, %400 : vector<8x128xf32>
    %cst_148 = arith.constant 8.000000e+00 : f32
    %402 = vector.broadcast %cst_148 : f32 to vector<8x128xf32>
    %403 = arith.subf %259, %402 : vector<8x128xf32>
    %404 = arith.mulf %403, %322 : vector<8x128xf32>
    %cst_149 = arith.constant 1.100000e+01 : f32
    %405 = vector.broadcast %cst_149 : f32 to vector<8x128xf32>
    %406 = arith.subf %405, %259 : vector<8x128xf32>
    %407 = arith.mulf %406, %329 : vector<8x128xf32>
    %408 = arith.addf %404, %407 : vector<8x128xf32>
    %cst_150 = arith.constant 5.000000e-01 : f32
    %409 = vector.broadcast %cst_150 : f32 to vector<8x128xf32>
    %410 = arith.mulf %408, %409 : vector<8x128xf32>
    %cst_151 = arith.constant 0.000000e+00 : f32
    %411 = vector.broadcast %cst_151 : f32 to vector<8x128xf32>
    %412 = arith.subf %259, %411 : vector<8x128xf32>
    %413 = arith.mulf %412, %338 : vector<8x128xf32>
    %cst_152 = arith.constant 4.000000e+00 : f32
    %414 = vector.broadcast %cst_152 : f32 to vector<8x128xf32>
    %415 = arith.subf %414, %259 : vector<8x128xf32>
    %416 = arith.mulf %415, %347 : vector<8x128xf32>
    %417 = arith.addf %413, %416 : vector<8x128xf32>
    %cst_153 = arith.constant 0.333333343 : f32
    %418 = vector.broadcast %cst_153 : f32 to vector<8x128xf32>
    %419 = arith.mulf %417, %418 : vector<8x128xf32>
    %cst_154 = arith.constant 1.000000e+00 : f32
    %420 = vector.broadcast %cst_154 : f32 to vector<8x128xf32>
    %421 = arith.subf %259, %420 : vector<8x128xf32>
    %422 = arith.mulf %421, %347 : vector<8x128xf32>
    %cst_155 = arith.constant 5.000000e+00 : f32
    %423 = vector.broadcast %cst_155 : f32 to vector<8x128xf32>
    %424 = arith.subf %423, %259 : vector<8x128xf32>
    %425 = arith.mulf %424, %356 : vector<8x128xf32>
    %426 = arith.addf %422, %425 : vector<8x128xf32>
    %cst_156 = arith.constant 0.333333343 : f32
    %427 = vector.broadcast %cst_156 : f32 to vector<8x128xf32>
    %428 = arith.mulf %426, %427 : vector<8x128xf32>
    %cst_157 = arith.constant 2.000000e+00 : f32
    %429 = vector.broadcast %cst_157 : f32 to vector<8x128xf32>
    %430 = arith.subf %259, %429 : vector<8x128xf32>
    %431 = arith.mulf %430, %356 : vector<8x128xf32>
    %cst_158 = arith.constant 6.000000e+00 : f32
    %432 = vector.broadcast %cst_158 : f32 to vector<8x128xf32>
    %433 = arith.subf %432, %259 : vector<8x128xf32>
    %434 = arith.mulf %433, %365 : vector<8x128xf32>
    %435 = arith.addf %431, %434 : vector<8x128xf32>
    %cst_159 = arith.constant 0.333333343 : f32
    %436 = vector.broadcast %cst_159 : f32 to vector<8x128xf32>
    %437 = arith.mulf %435, %436 : vector<8x128xf32>
    %cst_160 = arith.constant 3.000000e+00 : f32
    %438 = vector.broadcast %cst_160 : f32 to vector<8x128xf32>
    %439 = arith.subf %259, %438 : vector<8x128xf32>
    %440 = arith.mulf %439, %365 : vector<8x128xf32>
    %cst_161 = arith.constant 7.000000e+00 : f32
    %441 = vector.broadcast %cst_161 : f32 to vector<8x128xf32>
    %442 = arith.subf %441, %259 : vector<8x128xf32>
    %443 = arith.mulf %442, %374 : vector<8x128xf32>
    %444 = arith.addf %440, %443 : vector<8x128xf32>
    %cst_162 = arith.constant 0.333333343 : f32
    %445 = vector.broadcast %cst_162 : f32 to vector<8x128xf32>
    %446 = arith.mulf %444, %445 : vector<8x128xf32>
    %cst_163 = arith.constant 4.000000e+00 : f32
    %447 = vector.broadcast %cst_163 : f32 to vector<8x128xf32>
    %448 = arith.subf %259, %447 : vector<8x128xf32>
    %449 = arith.mulf %448, %374 : vector<8x128xf32>
    %cst_164 = arith.constant 8.000000e+00 : f32
    %450 = vector.broadcast %cst_164 : f32 to vector<8x128xf32>
    %451 = arith.subf %450, %259 : vector<8x128xf32>
    %452 = arith.mulf %451, %383 : vector<8x128xf32>
    %453 = arith.addf %449, %452 : vector<8x128xf32>
    %cst_165 = arith.constant 0.333333343 : f32
    %454 = vector.broadcast %cst_165 : f32 to vector<8x128xf32>
    %455 = arith.mulf %453, %454 : vector<8x128xf32>
    %cst_166 = arith.constant 5.000000e+00 : f32
    %456 = vector.broadcast %cst_166 : f32 to vector<8x128xf32>
    %457 = arith.subf %259, %456 : vector<8x128xf32>
    %458 = arith.mulf %457, %383 : vector<8x128xf32>
    %cst_167 = arith.constant 9.000000e+00 : f32
    %459 = vector.broadcast %cst_167 : f32 to vector<8x128xf32>
    %460 = arith.subf %459, %259 : vector<8x128xf32>
    %461 = arith.mulf %460, %392 : vector<8x128xf32>
    %462 = arith.addf %458, %461 : vector<8x128xf32>
    %cst_168 = arith.constant 0.333333343 : f32
    %463 = vector.broadcast %cst_168 : f32 to vector<8x128xf32>
    %464 = arith.mulf %462, %463 : vector<8x128xf32>
    %cst_169 = arith.constant 6.000000e+00 : f32
    %465 = vector.broadcast %cst_169 : f32 to vector<8x128xf32>
    %466 = arith.subf %259, %465 : vector<8x128xf32>
    %467 = arith.mulf %466, %392 : vector<8x128xf32>
    %cst_170 = arith.constant 1.000000e+01 : f32
    %468 = vector.broadcast %cst_170 : f32 to vector<8x128xf32>
    %469 = arith.subf %468, %259 : vector<8x128xf32>
    %470 = arith.mulf %469, %401 : vector<8x128xf32>
    %471 = arith.addf %467, %470 : vector<8x128xf32>
    %cst_171 = arith.constant 0.333333343 : f32
    %472 = vector.broadcast %cst_171 : f32 to vector<8x128xf32>
    %473 = arith.mulf %471, %472 : vector<8x128xf32>
    %cst_172 = arith.constant 7.000000e+00 : f32
    %474 = vector.broadcast %cst_172 : f32 to vector<8x128xf32>
    %475 = arith.subf %259, %474 : vector<8x128xf32>
    %476 = arith.mulf %475, %401 : vector<8x128xf32>
    %cst_173 = arith.constant 1.100000e+01 : f32
    %477 = vector.broadcast %cst_173 : f32 to vector<8x128xf32>
    %478 = arith.subf %477, %259 : vector<8x128xf32>
    %479 = arith.mulf %478, %410 : vector<8x128xf32>
    %480 = arith.addf %476, %479 : vector<8x128xf32>
    %cst_174 = arith.constant 0.333333343 : f32
    %481 = vector.broadcast %cst_174 : f32 to vector<8x128xf32>
    %482 = arith.mulf %480, %481 : vector<8x128xf32>
    %483 = arith.truncf %255 : vector<8x128xf32> to vector<8x128xbf16>
    %484 = arith.truncf %419 : vector<8x128xf32> to vector<8x128xbf16>
    %485 = arith.truncf %428 : vector<8x128xf32> to vector<8x128xbf16>
    %486 = arith.truncf %437 : vector<8x128xf32> to vector<8x128xbf16>
    %487 = arith.truncf %446 : vector<8x128xf32> to vector<8x128xbf16>
    %488 = arith.truncf %455 : vector<8x128xf32> to vector<8x128xbf16>
    %489 = arith.truncf %464 : vector<8x128xf32> to vector<8x128xbf16>
    %490 = arith.truncf %473 : vector<8x128xf32> to vector<8x128xbf16>
    %491 = arith.truncf %482 : vector<8x128xf32> to vector<8x128xbf16>
    %492 = tpu.concatenate %483, %484, %485, %486, %487, %488, %489, %490, %491 in 1 : vector<8x128xbf16>, vector<8x128xbf16>, vector<8x128xbf16>, vector<8x128xbf16>, vector<8x128xbf16>, vector<8x128xbf16>, vector<8x128xbf16>, vector<8x128xbf16>, vector<8x128xbf16> -> vector<8x1152xbf16>
    %c0_175 = arith.constant 0 : index
    %c0_176 = arith.constant 0 : index
    %493 = vector.load %arg3[%c0_175, %c0_176] : memref<1152x128xbf16, #tpu.memory_space<vmem>>, vector<1152x128xbf16>
    %cst_177 = arith.constant dense<0.000000e+00> : vector<8x128xf32>
    %494 = tpu.matmul %492, %493, %cst_177 {dimension_numbers = #tpu.dot_dimension_numbers<[1], [0], [0], [1], [0, 0, 1, 1], [], []>} : vector<8x1152xbf16>, vector<1152x128xbf16>, vector<8x128xf32> -> vector<8x128xf32>
    %cst_178 = arith.constant 5.000000e-01 : f32
    %495 = vector.broadcast %cst_178 : f32 to vector<8x128xf32>
    %496 = arith.mulf %495, %494 : vector<8x128xf32>
    %497 = math.tanh %496 : vector<8x128xf32>
    %cst_179 = arith.constant 5.000000e-01 : f32
    %498 = vector.broadcast %cst_179 : f32 to vector<8x128xf32>
    %499 = arith.mulf %498, %497 : vector<8x128xf32>
    %cst_180 = arith.constant 5.000000e-01 : f32
    %500 = vector.broadcast %cst_180 : f32 to vector<8x128xf32>
    %501 = arith.addf %499, %500 : vector<8x128xf32>
    %502 = arith.mulf %494, %501 : vector<8x128xf32>
    %cst_181 = arith.constant -2.200000e+00 : f32
    %503 = vector.broadcast %cst_181 : f32 to vector<8x128xf32>
    %504 = arith.subf %494, %503 : vector<8x128xf32>
    %cst_182 = arith.constant 2.500000e+00 : f32
    %505 = vector.broadcast %cst_182 : f32 to vector<8x128xf32>
    %506 = arith.mulf %504, %505 : vector<8x128xf32>
    %cst_183 = arith.constant 1.000000e+00 : f32
    %507 = vector.broadcast %cst_183 : f32 to vector<8x128xf32>
    %508 = arith.subf %506, %507 : vector<8x128xf32>
    %509 = math.absf %508 : vector<8x128xf32>
    %cst_184 = arith.constant 1.000000e+00 : f32
    %510 = vector.broadcast %cst_184 : f32 to vector<8x128xf32>
    %511 = arith.subf %510, %509 : vector<8x128xf32>
    %cst_185 = arith.constant 0.000000e+00 : f32
    %512 = vector.broadcast %cst_185 : f32 to vector<8x128xf32>
    %513 = arith.maximumf %512, %511 : vector<8x128xf32>
    %cst_186 = arith.constant 2.000000e+00 : f32
    %514 = vector.broadcast %cst_186 : f32 to vector<8x128xf32>
    %515 = arith.subf %506, %514 : vector<8x128xf32>
    %516 = math.absf %515 : vector<8x128xf32>
    %cst_187 = arith.constant 1.000000e+00 : f32
    %517 = vector.broadcast %cst_187 : f32 to vector<8x128xf32>
    %518 = arith.subf %517, %516 : vector<8x128xf32>
    %cst_188 = arith.constant 0.000000e+00 : f32
    %519 = vector.broadcast %cst_188 : f32 to vector<8x128xf32>
    %520 = arith.maximumf %519, %518 : vector<8x128xf32>
    %cst_189 = arith.constant 3.000000e+00 : f32
    %521 = vector.broadcast %cst_189 : f32 to vector<8x128xf32>
    %522 = arith.subf %506, %521 : vector<8x128xf32>
    %523 = math.absf %522 : vector<8x128xf32>
    %cst_190 = arith.constant 1.000000e+00 : f32
    %524 = vector.broadcast %cst_190 : f32 to vector<8x128xf32>
    %525 = arith.subf %524, %523 : vector<8x128xf32>
    %cst_191 = arith.constant 0.000000e+00 : f32
    %526 = vector.broadcast %cst_191 : f32 to vector<8x128xf32>
    %527 = arith.maximumf %526, %525 : vector<8x128xf32>
    %cst_192 = arith.constant 4.000000e+00 : f32
    %528 = vector.broadcast %cst_192 : f32 to vector<8x128xf32>
    %529 = arith.subf %506, %528 : vector<8x128xf32>
    %530 = math.absf %529 : vector<8x128xf32>
    %cst_193 = arith.constant 1.000000e+00 : f32
    %531 = vector.broadcast %cst_193 : f32 to vector<8x128xf32>
    %532 = arith.subf %531, %530 : vector<8x128xf32>
    %cst_194 = arith.constant 0.000000e+00 : f32
    %533 = vector.broadcast %cst_194 : f32 to vector<8x128xf32>
    %534 = arith.maximumf %533, %532 : vector<8x128xf32>
    %cst_195 = arith.constant 5.000000e+00 : f32
    %535 = vector.broadcast %cst_195 : f32 to vector<8x128xf32>
    %536 = arith.subf %506, %535 : vector<8x128xf32>
    %537 = math.absf %536 : vector<8x128xf32>
    %cst_196 = arith.constant 1.000000e+00 : f32
    %538 = vector.broadcast %cst_196 : f32 to vector<8x128xf32>
    %539 = arith.subf %538, %537 : vector<8x128xf32>
    %cst_197 = arith.constant 0.000000e+00 : f32
    %540 = vector.broadcast %cst_197 : f32 to vector<8x128xf32>
    %541 = arith.maximumf %540, %539 : vector<8x128xf32>
    %cst_198 = arith.constant 6.000000e+00 : f32
    %542 = vector.broadcast %cst_198 : f32 to vector<8x128xf32>
    %543 = arith.subf %506, %542 : vector<8x128xf32>
    %544 = math.absf %543 : vector<8x128xf32>
    %cst_199 = arith.constant 1.000000e+00 : f32
    %545 = vector.broadcast %cst_199 : f32 to vector<8x128xf32>
    %546 = arith.subf %545, %544 : vector<8x128xf32>
    %cst_200 = arith.constant 0.000000e+00 : f32
    %547 = vector.broadcast %cst_200 : f32 to vector<8x128xf32>
    %548 = arith.maximumf %547, %546 : vector<8x128xf32>
    %cst_201 = arith.constant 7.000000e+00 : f32
    %549 = vector.broadcast %cst_201 : f32 to vector<8x128xf32>
    %550 = arith.subf %506, %549 : vector<8x128xf32>
    %551 = math.absf %550 : vector<8x128xf32>
    %cst_202 = arith.constant 1.000000e+00 : f32
    %552 = vector.broadcast %cst_202 : f32 to vector<8x128xf32>
    %553 = arith.subf %552, %551 : vector<8x128xf32>
    %cst_203 = arith.constant 0.000000e+00 : f32
    %554 = vector.broadcast %cst_203 : f32 to vector<8x128xf32>
    %555 = arith.maximumf %554, %553 : vector<8x128xf32>
    %cst_204 = arith.constant 8.000000e+00 : f32
    %556 = vector.broadcast %cst_204 : f32 to vector<8x128xf32>
    %557 = arith.subf %506, %556 : vector<8x128xf32>
    %558 = math.absf %557 : vector<8x128xf32>
    %cst_205 = arith.constant 1.000000e+00 : f32
    %559 = vector.broadcast %cst_205 : f32 to vector<8x128xf32>
    %560 = arith.subf %559, %558 : vector<8x128xf32>
    %cst_206 = arith.constant 0.000000e+00 : f32
    %561 = vector.broadcast %cst_206 : f32 to vector<8x128xf32>
    %562 = arith.maximumf %561, %560 : vector<8x128xf32>
    %cst_207 = arith.constant 9.000000e+00 : f32
    %563 = vector.broadcast %cst_207 : f32 to vector<8x128xf32>
    %564 = arith.subf %506, %563 : vector<8x128xf32>
    %565 = math.absf %564 : vector<8x128xf32>
    %cst_208 = arith.constant 1.000000e+00 : f32
    %566 = vector.broadcast %cst_208 : f32 to vector<8x128xf32>
    %567 = arith.subf %566, %565 : vector<8x128xf32>
    %cst_209 = arith.constant 0.000000e+00 : f32
    %568 = vector.broadcast %cst_209 : f32 to vector<8x128xf32>
    %569 = arith.maximumf %568, %567 : vector<8x128xf32>
    %cst_210 = arith.constant 1.000000e+01 : f32
    %570 = vector.broadcast %cst_210 : f32 to vector<8x128xf32>
    %571 = arith.subf %506, %570 : vector<8x128xf32>
    %572 = math.absf %571 : vector<8x128xf32>
    %cst_211 = arith.constant 1.000000e+00 : f32
    %573 = vector.broadcast %cst_211 : f32 to vector<8x128xf32>
    %574 = arith.subf %573, %572 : vector<8x128xf32>
    %cst_212 = arith.constant 0.000000e+00 : f32
    %575 = vector.broadcast %cst_212 : f32 to vector<8x128xf32>
    %576 = arith.maximumf %575, %574 : vector<8x128xf32>
    %cst_213 = arith.constant 0.000000e+00 : f32
    %577 = vector.broadcast %cst_213 : f32 to vector<8x128xf32>
    %578 = arith.subf %506, %577 : vector<8x128xf32>
    %579 = arith.mulf %578, %513 : vector<8x128xf32>
    %cst_214 = arith.constant 3.000000e+00 : f32
    %580 = vector.broadcast %cst_214 : f32 to vector<8x128xf32>
    %581 = arith.subf %580, %506 : vector<8x128xf32>
    %582 = arith.mulf %581, %520 : vector<8x128xf32>
    %583 = arith.addf %579, %582 : vector<8x128xf32>
    %cst_215 = arith.constant 5.000000e-01 : f32
    %584 = vector.broadcast %cst_215 : f32 to vector<8x128xf32>
    %585 = arith.mulf %583, %584 : vector<8x128xf32>
    %cst_216 = arith.constant 1.000000e+00 : f32
    %586 = vector.broadcast %cst_216 : f32 to vector<8x128xf32>
    %587 = arith.subf %506, %586 : vector<8x128xf32>
    %588 = arith.mulf %587, %520 : vector<8x128xf32>
    %cst_217 = arith.constant 4.000000e+00 : f32
    %589 = vector.broadcast %cst_217 : f32 to vector<8x128xf32>
    %590 = arith.subf %589, %506 : vector<8x128xf32>
    %591 = arith.mulf %590, %527 : vector<8x128xf32>
    %592 = arith.addf %588, %591 : vector<8x128xf32>
    %cst_218 = arith.constant 5.000000e-01 : f32
    %593 = vector.broadcast %cst_218 : f32 to vector<8x128xf32>
    %594 = arith.mulf %592, %593 : vector<8x128xf32>
    %cst_219 = arith.constant 2.000000e+00 : f32
    %595 = vector.broadcast %cst_219 : f32 to vector<8x128xf32>
    %596 = arith.subf %506, %595 : vector<8x128xf32>
    %597 = arith.mulf %596, %527 : vector<8x128xf32>
    %cst_220 = arith.constant 5.000000e+00 : f32
    %598 = vector.broadcast %cst_220 : f32 to vector<8x128xf32>
    %599 = arith.subf %598, %506 : vector<8x128xf32>
    %600 = arith.mulf %599, %534 : vector<8x128xf32>
    %601 = arith.addf %597, %600 : vector<8x128xf32>
    %cst_221 = arith.constant 5.000000e-01 : f32
    %602 = vector.broadcast %cst_221 : f32 to vector<8x128xf32>
    %603 = arith.mulf %601, %602 : vector<8x128xf32>
    %cst_222 = arith.constant 3.000000e+00 : f32
    %604 = vector.broadcast %cst_222 : f32 to vector<8x128xf32>
    %605 = arith.subf %506, %604 : vector<8x128xf32>
    %606 = arith.mulf %605, %534 : vector<8x128xf32>
    %cst_223 = arith.constant 6.000000e+00 : f32
    %607 = vector.broadcast %cst_223 : f32 to vector<8x128xf32>
    %608 = arith.subf %607, %506 : vector<8x128xf32>
    %609 = arith.mulf %608, %541 : vector<8x128xf32>
    %610 = arith.addf %606, %609 : vector<8x128xf32>
    %cst_224 = arith.constant 5.000000e-01 : f32
    %611 = vector.broadcast %cst_224 : f32 to vector<8x128xf32>
    %612 = arith.mulf %610, %611 : vector<8x128xf32>
    %cst_225 = arith.constant 4.000000e+00 : f32
    %613 = vector.broadcast %cst_225 : f32 to vector<8x128xf32>
    %614 = arith.subf %506, %613 : vector<8x128xf32>
    %615 = arith.mulf %614, %541 : vector<8x128xf32>
    %cst_226 = arith.constant 7.000000e+00 : f32
    %616 = vector.broadcast %cst_226 : f32 to vector<8x128xf32>
    %617 = arith.subf %616, %506 : vector<8x128xf32>
    %618 = arith.mulf %617, %548 : vector<8x128xf32>
    %619 = arith.addf %615, %618 : vector<8x128xf32>
    %cst_227 = arith.constant 5.000000e-01 : f32
    %620 = vector.broadcast %cst_227 : f32 to vector<8x128xf32>
    %621 = arith.mulf %619, %620 : vector<8x128xf32>
    %cst_228 = arith.constant 5.000000e+00 : f32
    %622 = vector.broadcast %cst_228 : f32 to vector<8x128xf32>
    %623 = arith.subf %506, %622 : vector<8x128xf32>
    %624 = arith.mulf %623, %548 : vector<8x128xf32>
    %cst_229 = arith.constant 8.000000e+00 : f32
    %625 = vector.broadcast %cst_229 : f32 to vector<8x128xf32>
    %626 = arith.subf %625, %506 : vector<8x128xf32>
    %627 = arith.mulf %626, %555 : vector<8x128xf32>
    %628 = arith.addf %624, %627 : vector<8x128xf32>
    %cst_230 = arith.constant 5.000000e-01 : f32
    %629 = vector.broadcast %cst_230 : f32 to vector<8x128xf32>
    %630 = arith.mulf %628, %629 : vector<8x128xf32>
    %cst_231 = arith.constant 6.000000e+00 : f32
    %631 = vector.broadcast %cst_231 : f32 to vector<8x128xf32>
    %632 = arith.subf %506, %631 : vector<8x128xf32>
    %633 = arith.mulf %632, %555 : vector<8x128xf32>
    %cst_232 = arith.constant 9.000000e+00 : f32
    %634 = vector.broadcast %cst_232 : f32 to vector<8x128xf32>
    %635 = arith.subf %634, %506 : vector<8x128xf32>
    %636 = arith.mulf %635, %562 : vector<8x128xf32>
    %637 = arith.addf %633, %636 : vector<8x128xf32>
    %cst_233 = arith.constant 5.000000e-01 : f32
    %638 = vector.broadcast %cst_233 : f32 to vector<8x128xf32>
    %639 = arith.mulf %637, %638 : vector<8x128xf32>
    %cst_234 = arith.constant 7.000000e+00 : f32
    %640 = vector.broadcast %cst_234 : f32 to vector<8x128xf32>
    %641 = arith.subf %506, %640 : vector<8x128xf32>
    %642 = arith.mulf %641, %562 : vector<8x128xf32>
    %cst_235 = arith.constant 1.000000e+01 : f32
    %643 = vector.broadcast %cst_235 : f32 to vector<8x128xf32>
    %644 = arith.subf %643, %506 : vector<8x128xf32>
    %645 = arith.mulf %644, %569 : vector<8x128xf32>
    %646 = arith.addf %642, %645 : vector<8x128xf32>
    %cst_236 = arith.constant 5.000000e-01 : f32
    %647 = vector.broadcast %cst_236 : f32 to vector<8x128xf32>
    %648 = arith.mulf %646, %647 : vector<8x128xf32>
    %cst_237 = arith.constant 8.000000e+00 : f32
    %649 = vector.broadcast %cst_237 : f32 to vector<8x128xf32>
    %650 = arith.subf %506, %649 : vector<8x128xf32>
    %651 = arith.mulf %650, %569 : vector<8x128xf32>
    %cst_238 = arith.constant 1.100000e+01 : f32
    %652 = vector.broadcast %cst_238 : f32 to vector<8x128xf32>
    %653 = arith.subf %652, %506 : vector<8x128xf32>
    %654 = arith.mulf %653, %576 : vector<8x128xf32>
    %655 = arith.addf %651, %654 : vector<8x128xf32>
    %cst_239 = arith.constant 5.000000e-01 : f32
    %656 = vector.broadcast %cst_239 : f32 to vector<8x128xf32>
    %657 = arith.mulf %655, %656 : vector<8x128xf32>
    %cst_240 = arith.constant 0.000000e+00 : f32
    %658 = vector.broadcast %cst_240 : f32 to vector<8x128xf32>
    %659 = arith.subf %506, %658 : vector<8x128xf32>
    %660 = arith.mulf %659, %585 : vector<8x128xf32>
    %cst_241 = arith.constant 4.000000e+00 : f32
    %661 = vector.broadcast %cst_241 : f32 to vector<8x128xf32>
    %662 = arith.subf %661, %506 : vector<8x128xf32>
    %663 = arith.mulf %662, %594 : vector<8x128xf32>
    %664 = arith.addf %660, %663 : vector<8x128xf32>
    %cst_242 = arith.constant 0.333333343 : f32
    %665 = vector.broadcast %cst_242 : f32 to vector<8x128xf32>
    %666 = arith.mulf %664, %665 : vector<8x128xf32>
    %cst_243 = arith.constant 1.000000e+00 : f32
    %667 = vector.broadcast %cst_243 : f32 to vector<8x128xf32>
    %668 = arith.subf %506, %667 : vector<8x128xf32>
    %669 = arith.mulf %668, %594 : vector<8x128xf32>
    %cst_244 = arith.constant 5.000000e+00 : f32
    %670 = vector.broadcast %cst_244 : f32 to vector<8x128xf32>
    %671 = arith.subf %670, %506 : vector<8x128xf32>
    %672 = arith.mulf %671, %603 : vector<8x128xf32>
    %673 = arith.addf %669, %672 : vector<8x128xf32>
    %cst_245 = arith.constant 0.333333343 : f32
    %674 = vector.broadcast %cst_245 : f32 to vector<8x128xf32>
    %675 = arith.mulf %673, %674 : vector<8x128xf32>
    %cst_246 = arith.constant 2.000000e+00 : f32
    %676 = vector.broadcast %cst_246 : f32 to vector<8x128xf32>
    %677 = arith.subf %506, %676 : vector<8x128xf32>
    %678 = arith.mulf %677, %603 : vector<8x128xf32>
    %cst_247 = arith.constant 6.000000e+00 : f32
    %679 = vector.broadcast %cst_247 : f32 to vector<8x128xf32>
    %680 = arith.subf %679, %506 : vector<8x128xf32>
    %681 = arith.mulf %680, %612 : vector<8x128xf32>
    %682 = arith.addf %678, %681 : vector<8x128xf32>
    %cst_248 = arith.constant 0.333333343 : f32
    %683 = vector.broadcast %cst_248 : f32 to vector<8x128xf32>
    %684 = arith.mulf %682, %683 : vector<8x128xf32>
    %cst_249 = arith.constant 3.000000e+00 : f32
    %685 = vector.broadcast %cst_249 : f32 to vector<8x128xf32>
    %686 = arith.subf %506, %685 : vector<8x128xf32>
    %687 = arith.mulf %686, %612 : vector<8x128xf32>
    %cst_250 = arith.constant 7.000000e+00 : f32
    %688 = vector.broadcast %cst_250 : f32 to vector<8x128xf32>
    %689 = arith.subf %688, %506 : vector<8x128xf32>
    %690 = arith.mulf %689, %621 : vector<8x128xf32>
    %691 = arith.addf %687, %690 : vector<8x128xf32>
    %cst_251 = arith.constant 0.333333343 : f32
    %692 = vector.broadcast %cst_251 : f32 to vector<8x128xf32>
    %693 = arith.mulf %691, %692 : vector<8x128xf32>
    %cst_252 = arith.constant 4.000000e+00 : f32
    %694 = vector.broadcast %cst_252 : f32 to vector<8x128xf32>
    %695 = arith.subf %506, %694 : vector<8x128xf32>
    %696 = arith.mulf %695, %621 : vector<8x128xf32>
    %cst_253 = arith.constant 8.000000e+00 : f32
    %697 = vector.broadcast %cst_253 : f32 to vector<8x128xf32>
    %698 = arith.subf %697, %506 : vector<8x128xf32>
    %699 = arith.mulf %698, %630 : vector<8x128xf32>
    %700 = arith.addf %696, %699 : vector<8x128xf32>
    %cst_254 = arith.constant 0.333333343 : f32
    %701 = vector.broadcast %cst_254 : f32 to vector<8x128xf32>
    %702 = arith.mulf %700, %701 : vector<8x128xf32>
    %cst_255 = arith.constant 5.000000e+00 : f32
    %703 = vector.broadcast %cst_255 : f32 to vector<8x128xf32>
    %704 = arith.subf %506, %703 : vector<8x128xf32>
    %705 = arith.mulf %704, %630 : vector<8x128xf32>
    %cst_256 = arith.constant 9.000000e+00 : f32
    %706 = vector.broadcast %cst_256 : f32 to vector<8x128xf32>
    %707 = arith.subf %706, %506 : vector<8x128xf32>
    %708 = arith.mulf %707, %639 : vector<8x128xf32>
    %709 = arith.addf %705, %708 : vector<8x128xf32>
    %cst_257 = arith.constant 0.333333343 : f32
    %710 = vector.broadcast %cst_257 : f32 to vector<8x128xf32>
    %711 = arith.mulf %709, %710 : vector<8x128xf32>
    %cst_258 = arith.constant 6.000000e+00 : f32
    %712 = vector.broadcast %cst_258 : f32 to vector<8x128xf32>
    %713 = arith.subf %506, %712 : vector<8x128xf32>
    %714 = arith.mulf %713, %639 : vector<8x128xf32>
    %cst_259 = arith.constant 1.000000e+01 : f32
    %715 = vector.broadcast %cst_259 : f32 to vector<8x128xf32>
    %716 = arith.subf %715, %506 : vector<8x128xf32>
    %717 = arith.mulf %716, %648 : vector<8x128xf32>
    %718 = arith.addf %714, %717 : vector<8x128xf32>
    %cst_260 = arith.constant 0.333333343 : f32
    %719 = vector.broadcast %cst_260 : f32 to vector<8x128xf32>
    %720 = arith.mulf %718, %719 : vector<8x128xf32>
    %cst_261 = arith.constant 7.000000e+00 : f32
    %721 = vector.broadcast %cst_261 : f32 to vector<8x128xf32>
    %722 = arith.subf %506, %721 : vector<8x128xf32>
    %723 = arith.mulf %722, %648 : vector<8x128xf32>
    %cst_262 = arith.constant 1.100000e+01 : f32
    %724 = vector.broadcast %cst_262 : f32 to vector<8x128xf32>
    %725 = arith.subf %724, %506 : vector<8x128xf32>
    %726 = arith.mulf %725, %657 : vector<8x128xf32>
    %727 = arith.addf %723, %726 : vector<8x128xf32>
    %cst_263 = arith.constant 0.333333343 : f32
    %728 = vector.broadcast %cst_263 : f32 to vector<8x128xf32>
    %729 = arith.mulf %727, %728 : vector<8x128xf32>
    %730 = arith.truncf %502 : vector<8x128xf32> to vector<8x128xbf16>
    %731 = arith.truncf %666 : vector<8x128xf32> to vector<8x128xbf16>
    %732 = arith.truncf %675 : vector<8x128xf32> to vector<8x128xbf16>
    %733 = arith.truncf %684 : vector<8x128xf32> to vector<8x128xbf16>
    %734 = arith.truncf %693 : vector<8x128xf32> to vector<8x128xbf16>
    %735 = arith.truncf %702 : vector<8x128xf32> to vector<8x128xbf16>
    %736 = arith.truncf %711 : vector<8x128xf32> to vector<8x128xbf16>
    %737 = arith.truncf %720 : vector<8x128xf32> to vector<8x128xbf16>
    %738 = arith.truncf %729 : vector<8x128xf32> to vector<8x128xbf16>
    %739 = tpu.concatenate %730, %731, %732, %733, %734, %735, %736, %737, %738 in 1 : vector<8x128xbf16>, vector<8x128xbf16>, vector<8x128xbf16>, vector<8x128xbf16>, vector<8x128xbf16>, vector<8x128xbf16>, vector<8x128xbf16>, vector<8x128xbf16>, vector<8x128xbf16> -> vector<8x1152xbf16>
    %c0_264 = arith.constant 0 : index
    %c0_265 = arith.constant 0 : index
    %740 = vector.load %arg4[%c0_264, %c0_265] : memref<1152x128xbf16, #tpu.memory_space<vmem>>, vector<1152x128xbf16>
    %cst_266 = arith.constant dense<0.000000e+00> : vector<8x128xf32>
    %741 = tpu.matmul %739, %740, %cst_266 {dimension_numbers = #tpu.dot_dimension_numbers<[1], [0], [0], [1], [0, 0, 1, 1], [], []>} : vector<8x1152xbf16>, vector<1152x128xbf16>, vector<8x128xf32> -> vector<8x128xf32>
    %cst_267 = arith.constant 5.000000e-01 : f32
    %742 = vector.broadcast %cst_267 : f32 to vector<8x128xf32>
    %743 = arith.mulf %742, %741 : vector<8x128xf32>
    %744 = math.tanh %743 : vector<8x128xf32>
    %cst_268 = arith.constant 5.000000e-01 : f32
    %745 = vector.broadcast %cst_268 : f32 to vector<8x128xf32>
    %746 = arith.mulf %745, %744 : vector<8x128xf32>
    %cst_269 = arith.constant 5.000000e-01 : f32
    %747 = vector.broadcast %cst_269 : f32 to vector<8x128xf32>
    %748 = arith.addf %746, %747 : vector<8x128xf32>
    %749 = arith.mulf %741, %748 : vector<8x128xf32>
    %cst_270 = arith.constant -2.200000e+00 : f32
    %750 = vector.broadcast %cst_270 : f32 to vector<8x128xf32>
    %751 = arith.subf %741, %750 : vector<8x128xf32>
    %cst_271 = arith.constant 2.500000e+00 : f32
    %752 = vector.broadcast %cst_271 : f32 to vector<8x128xf32>
    %753 = arith.mulf %751, %752 : vector<8x128xf32>
    %cst_272 = arith.constant 1.000000e+00 : f32
    %754 = vector.broadcast %cst_272 : f32 to vector<8x128xf32>
    %755 = arith.subf %753, %754 : vector<8x128xf32>
    %756 = math.absf %755 : vector<8x128xf32>
    %cst_273 = arith.constant 1.000000e+00 : f32
    %757 = vector.broadcast %cst_273 : f32 to vector<8x128xf32>
    %758 = arith.subf %757, %756 : vector<8x128xf32>
    %cst_274 = arith.constant 0.000000e+00 : f32
    %759 = vector.broadcast %cst_274 : f32 to vector<8x128xf32>
    %760 = arith.maximumf %759, %758 : vector<8x128xf32>
    %cst_275 = arith.constant 2.000000e+00 : f32
    %761 = vector.broadcast %cst_275 : f32 to vector<8x128xf32>
    %762 = arith.subf %753, %761 : vector<8x128xf32>
    %763 = math.absf %762 : vector<8x128xf32>
    %cst_276 = arith.constant 1.000000e+00 : f32
    %764 = vector.broadcast %cst_276 : f32 to vector<8x128xf32>
    %765 = arith.subf %764, %763 : vector<8x128xf32>
    %cst_277 = arith.constant 0.000000e+00 : f32
    %766 = vector.broadcast %cst_277 : f32 to vector<8x128xf32>
    %767 = arith.maximumf %766, %765 : vector<8x128xf32>
    %cst_278 = arith.constant 3.000000e+00 : f32
    %768 = vector.broadcast %cst_278 : f32 to vector<8x128xf32>
    %769 = arith.subf %753, %768 : vector<8x128xf32>
    %770 = math.absf %769 : vector<8x128xf32>
    %cst_279 = arith.constant 1.000000e+00 : f32
    %771 = vector.broadcast %cst_279 : f32 to vector<8x128xf32>
    %772 = arith.subf %771, %770 : vector<8x128xf32>
    %cst_280 = arith.constant 0.000000e+00 : f32
    %773 = vector.broadcast %cst_280 : f32 to vector<8x128xf32>
    %774 = arith.maximumf %773, %772 : vector<8x128xf32>
    %cst_281 = arith.constant 4.000000e+00 : f32
    %775 = vector.broadcast %cst_281 : f32 to vector<8x128xf32>
    %776 = arith.subf %753, %775 : vector<8x128xf32>
    %777 = math.absf %776 : vector<8x128xf32>
    %cst_282 = arith.constant 1.000000e+00 : f32
    %778 = vector.broadcast %cst_282 : f32 to vector<8x128xf32>
    %779 = arith.subf %778, %777 : vector<8x128xf32>
    %cst_283 = arith.constant 0.000000e+00 : f32
    %780 = vector.broadcast %cst_283 : f32 to vector<8x128xf32>
    %781 = arith.maximumf %780, %779 : vector<8x128xf32>
    %cst_284 = arith.constant 5.000000e+00 : f32
    %782 = vector.broadcast %cst_284 : f32 to vector<8x128xf32>
    %783 = arith.subf %753, %782 : vector<8x128xf32>
    %784 = math.absf %783 : vector<8x128xf32>
    %cst_285 = arith.constant 1.000000e+00 : f32
    %785 = vector.broadcast %cst_285 : f32 to vector<8x128xf32>
    %786 = arith.subf %785, %784 : vector<8x128xf32>
    %cst_286 = arith.constant 0.000000e+00 : f32
    %787 = vector.broadcast %cst_286 : f32 to vector<8x128xf32>
    %788 = arith.maximumf %787, %786 : vector<8x128xf32>
    %cst_287 = arith.constant 6.000000e+00 : f32
    %789 = vector.broadcast %cst_287 : f32 to vector<8x128xf32>
    %790 = arith.subf %753, %789 : vector<8x128xf32>
    %791 = math.absf %790 : vector<8x128xf32>
    %cst_288 = arith.constant 1.000000e+00 : f32
    %792 = vector.broadcast %cst_288 : f32 to vector<8x128xf32>
    %793 = arith.subf %792, %791 : vector<8x128xf32>
    %cst_289 = arith.constant 0.000000e+00 : f32
    %794 = vector.broadcast %cst_289 : f32 to vector<8x128xf32>
    %795 = arith.maximumf %794, %793 : vector<8x128xf32>
    %cst_290 = arith.constant 7.000000e+00 : f32
    %796 = vector.broadcast %cst_290 : f32 to vector<8x128xf32>
    %797 = arith.subf %753, %796 : vector<8x128xf32>
    %798 = math.absf %797 : vector<8x128xf32>
    %cst_291 = arith.constant 1.000000e+00 : f32
    %799 = vector.broadcast %cst_291 : f32 to vector<8x128xf32>
    %800 = arith.subf %799, %798 : vector<8x128xf32>
    %cst_292 = arith.constant 0.000000e+00 : f32
    %801 = vector.broadcast %cst_292 : f32 to vector<8x128xf32>
    %802 = arith.maximumf %801, %800 : vector<8x128xf32>
    %cst_293 = arith.constant 8.000000e+00 : f32
    %803 = vector.broadcast %cst_293 : f32 to vector<8x128xf32>
    %804 = arith.subf %753, %803 : vector<8x128xf32>
    %805 = math.absf %804 : vector<8x128xf32>
    %cst_294 = arith.constant 1.000000e+00 : f32
    %806 = vector.broadcast %cst_294 : f32 to vector<8x128xf32>
    %807 = arith.subf %806, %805 : vector<8x128xf32>
    %cst_295 = arith.constant 0.000000e+00 : f32
    %808 = vector.broadcast %cst_295 : f32 to vector<8x128xf32>
    %809 = arith.maximumf %808, %807 : vector<8x128xf32>
    %cst_296 = arith.constant 9.000000e+00 : f32
    %810 = vector.broadcast %cst_296 : f32 to vector<8x128xf32>
    %811 = arith.subf %753, %810 : vector<8x128xf32>
    %812 = math.absf %811 : vector<8x128xf32>
    %cst_297 = arith.constant 1.000000e+00 : f32
    %813 = vector.broadcast %cst_297 : f32 to vector<8x128xf32>
    %814 = arith.subf %813, %812 : vector<8x128xf32>
    %cst_298 = arith.constant 0.000000e+00 : f32
    %815 = vector.broadcast %cst_298 : f32 to vector<8x128xf32>
    %816 = arith.maximumf %815, %814 : vector<8x128xf32>
    %cst_299 = arith.constant 1.000000e+01 : f32
    %817 = vector.broadcast %cst_299 : f32 to vector<8x128xf32>
    %818 = arith.subf %753, %817 : vector<8x128xf32>
    %819 = math.absf %818 : vector<8x128xf32>
    %cst_300 = arith.constant 1.000000e+00 : f32
    %820 = vector.broadcast %cst_300 : f32 to vector<8x128xf32>
    %821 = arith.subf %820, %819 : vector<8x128xf32>
    %cst_301 = arith.constant 0.000000e+00 : f32
    %822 = vector.broadcast %cst_301 : f32 to vector<8x128xf32>
    %823 = arith.maximumf %822, %821 : vector<8x128xf32>
    %cst_302 = arith.constant 0.000000e+00 : f32
    %824 = vector.broadcast %cst_302 : f32 to vector<8x128xf32>
    %825 = arith.subf %753, %824 : vector<8x128xf32>
    %826 = arith.mulf %825, %760 : vector<8x128xf32>
    %cst_303 = arith.constant 3.000000e+00 : f32
    %827 = vector.broadcast %cst_303 : f32 to vector<8x128xf32>
    %828 = arith.subf %827, %753 : vector<8x128xf32>
    %829 = arith.mulf %828, %767 : vector<8x128xf32>
    %830 = arith.addf %826, %829 : vector<8x128xf32>
    %cst_304 = arith.constant 5.000000e-01 : f32
    %831 = vector.broadcast %cst_304 : f32 to vector<8x128xf32>
    %832 = arith.mulf %830, %831 : vector<8x128xf32>
    %cst_305 = arith.constant 1.000000e+00 : f32
    %833 = vector.broadcast %cst_305 : f32 to vector<8x128xf32>
    %834 = arith.subf %753, %833 : vector<8x128xf32>
    %835 = arith.mulf %834, %767 : vector<8x128xf32>
    %cst_306 = arith.constant 4.000000e+00 : f32
    %836 = vector.broadcast %cst_306 : f32 to vector<8x128xf32>
    %837 = arith.subf %836, %753 : vector<8x128xf32>
    %838 = arith.mulf %837, %774 : vector<8x128xf32>
    %839 = arith.addf %835, %838 : vector<8x128xf32>
    %cst_307 = arith.constant 5.000000e-01 : f32
    %840 = vector.broadcast %cst_307 : f32 to vector<8x128xf32>
    %841 = arith.mulf %839, %840 : vector<8x128xf32>
    %cst_308 = arith.constant 2.000000e+00 : f32
    %842 = vector.broadcast %cst_308 : f32 to vector<8x128xf32>
    %843 = arith.subf %753, %842 : vector<8x128xf32>
    %844 = arith.mulf %843, %774 : vector<8x128xf32>
    %cst_309 = arith.constant 5.000000e+00 : f32
    %845 = vector.broadcast %cst_309 : f32 to vector<8x128xf32>
    %846 = arith.subf %845, %753 : vector<8x128xf32>
    %847 = arith.mulf %846, %781 : vector<8x128xf32>
    %848 = arith.addf %844, %847 : vector<8x128xf32>
    %cst_310 = arith.constant 5.000000e-01 : f32
    %849 = vector.broadcast %cst_310 : f32 to vector<8x128xf32>
    %850 = arith.mulf %848, %849 : vector<8x128xf32>
    %cst_311 = arith.constant 3.000000e+00 : f32
    %851 = vector.broadcast %cst_311 : f32 to vector<8x128xf32>
    %852 = arith.subf %753, %851 : vector<8x128xf32>
    %853 = arith.mulf %852, %781 : vector<8x128xf32>
    %cst_312 = arith.constant 6.000000e+00 : f32
    %854 = vector.broadcast %cst_312 : f32 to vector<8x128xf32>
    %855 = arith.subf %854, %753 : vector<8x128xf32>
    %856 = arith.mulf %855, %788 : vector<8x128xf32>
    %857 = arith.addf %853, %856 : vector<8x128xf32>
    %cst_313 = arith.constant 5.000000e-01 : f32
    %858 = vector.broadcast %cst_313 : f32 to vector<8x128xf32>
    %859 = arith.mulf %857, %858 : vector<8x128xf32>
    %cst_314 = arith.constant 4.000000e+00 : f32
    %860 = vector.broadcast %cst_314 : f32 to vector<8x128xf32>
    %861 = arith.subf %753, %860 : vector<8x128xf32>
    %862 = arith.mulf %861, %788 : vector<8x128xf32>
    %cst_315 = arith.constant 7.000000e+00 : f32
    %863 = vector.broadcast %cst_315 : f32 to vector<8x128xf32>
    %864 = arith.subf %863, %753 : vector<8x128xf32>
    %865 = arith.mulf %864, %795 : vector<8x128xf32>
    %866 = arith.addf %862, %865 : vector<8x128xf32>
    %cst_316 = arith.constant 5.000000e-01 : f32
    %867 = vector.broadcast %cst_316 : f32 to vector<8x128xf32>
    %868 = arith.mulf %866, %867 : vector<8x128xf32>
    %cst_317 = arith.constant 5.000000e+00 : f32
    %869 = vector.broadcast %cst_317 : f32 to vector<8x128xf32>
    %870 = arith.subf %753, %869 : vector<8x128xf32>
    %871 = arith.mulf %870, %795 : vector<8x128xf32>
    %cst_318 = arith.constant 8.000000e+00 : f32
    %872 = vector.broadcast %cst_318 : f32 to vector<8x128xf32>
    %873 = arith.subf %872, %753 : vector<8x128xf32>
    %874 = arith.mulf %873, %802 : vector<8x128xf32>
    %875 = arith.addf %871, %874 : vector<8x128xf32>
    %cst_319 = arith.constant 5.000000e-01 : f32
    %876 = vector.broadcast %cst_319 : f32 to vector<8x128xf32>
    %877 = arith.mulf %875, %876 : vector<8x128xf32>
    %cst_320 = arith.constant 6.000000e+00 : f32
    %878 = vector.broadcast %cst_320 : f32 to vector<8x128xf32>
    %879 = arith.subf %753, %878 : vector<8x128xf32>
    %880 = arith.mulf %879, %802 : vector<8x128xf32>
    %cst_321 = arith.constant 9.000000e+00 : f32
    %881 = vector.broadcast %cst_321 : f32 to vector<8x128xf32>
    %882 = arith.subf %881, %753 : vector<8x128xf32>
    %883 = arith.mulf %882, %809 : vector<8x128xf32>
    %884 = arith.addf %880, %883 : vector<8x128xf32>
    %cst_322 = arith.constant 5.000000e-01 : f32
    %885 = vector.broadcast %cst_322 : f32 to vector<8x128xf32>
    %886 = arith.mulf %884, %885 : vector<8x128xf32>
    %cst_323 = arith.constant 7.000000e+00 : f32
    %887 = vector.broadcast %cst_323 : f32 to vector<8x128xf32>
    %888 = arith.subf %753, %887 : vector<8x128xf32>
    %889 = arith.mulf %888, %809 : vector<8x128xf32>
    %cst_324 = arith.constant 1.000000e+01 : f32
    %890 = vector.broadcast %cst_324 : f32 to vector<8x128xf32>
    %891 = arith.subf %890, %753 : vector<8x128xf32>
    %892 = arith.mulf %891, %816 : vector<8x128xf32>
    %893 = arith.addf %889, %892 : vector<8x128xf32>
    %cst_325 = arith.constant 5.000000e-01 : f32
    %894 = vector.broadcast %cst_325 : f32 to vector<8x128xf32>
    %895 = arith.mulf %893, %894 : vector<8x128xf32>
    %cst_326 = arith.constant 8.000000e+00 : f32
    %896 = vector.broadcast %cst_326 : f32 to vector<8x128xf32>
    %897 = arith.subf %753, %896 : vector<8x128xf32>
    %898 = arith.mulf %897, %816 : vector<8x128xf32>
    %cst_327 = arith.constant 1.100000e+01 : f32
    %899 = vector.broadcast %cst_327 : f32 to vector<8x128xf32>
    %900 = arith.subf %899, %753 : vector<8x128xf32>
    %901 = arith.mulf %900, %823 : vector<8x128xf32>
    %902 = arith.addf %898, %901 : vector<8x128xf32>
    %cst_328 = arith.constant 5.000000e-01 : f32
    %903 = vector.broadcast %cst_328 : f32 to vector<8x128xf32>
    %904 = arith.mulf %902, %903 : vector<8x128xf32>
    %cst_329 = arith.constant 0.000000e+00 : f32
    %905 = vector.broadcast %cst_329 : f32 to vector<8x128xf32>
    %906 = arith.subf %753, %905 : vector<8x128xf32>
    %907 = arith.mulf %906, %832 : vector<8x128xf32>
    %cst_330 = arith.constant 4.000000e+00 : f32
    %908 = vector.broadcast %cst_330 : f32 to vector<8x128xf32>
    %909 = arith.subf %908, %753 : vector<8x128xf32>
    %910 = arith.mulf %909, %841 : vector<8x128xf32>
    %911 = arith.addf %907, %910 : vector<8x128xf32>
    %cst_331 = arith.constant 0.333333343 : f32
    %912 = vector.broadcast %cst_331 : f32 to vector<8x128xf32>
    %913 = arith.mulf %911, %912 : vector<8x128xf32>
    %cst_332 = arith.constant 1.000000e+00 : f32
    %914 = vector.broadcast %cst_332 : f32 to vector<8x128xf32>
    %915 = arith.subf %753, %914 : vector<8x128xf32>
    %916 = arith.mulf %915, %841 : vector<8x128xf32>
    %cst_333 = arith.constant 5.000000e+00 : f32
    %917 = vector.broadcast %cst_333 : f32 to vector<8x128xf32>
    %918 = arith.subf %917, %753 : vector<8x128xf32>
    %919 = arith.mulf %918, %850 : vector<8x128xf32>
    %920 = arith.addf %916, %919 : vector<8x128xf32>
    %cst_334 = arith.constant 0.333333343 : f32
    %921 = vector.broadcast %cst_334 : f32 to vector<8x128xf32>
    %922 = arith.mulf %920, %921 : vector<8x128xf32>
    %cst_335 = arith.constant 2.000000e+00 : f32
    %923 = vector.broadcast %cst_335 : f32 to vector<8x128xf32>
    %924 = arith.subf %753, %923 : vector<8x128xf32>
    %925 = arith.mulf %924, %850 : vector<8x128xf32>
    %cst_336 = arith.constant 6.000000e+00 : f32
    %926 = vector.broadcast %cst_336 : f32 to vector<8x128xf32>
    %927 = arith.subf %926, %753 : vector<8x128xf32>
    %928 = arith.mulf %927, %859 : vector<8x128xf32>
    %929 = arith.addf %925, %928 : vector<8x128xf32>
    %cst_337 = arith.constant 0.333333343 : f32
    %930 = vector.broadcast %cst_337 : f32 to vector<8x128xf32>
    %931 = arith.mulf %929, %930 : vector<8x128xf32>
    %cst_338 = arith.constant 3.000000e+00 : f32
    %932 = vector.broadcast %cst_338 : f32 to vector<8x128xf32>
    %933 = arith.subf %753, %932 : vector<8x128xf32>
    %934 = arith.mulf %933, %859 : vector<8x128xf32>
    %cst_339 = arith.constant 7.000000e+00 : f32
    %935 = vector.broadcast %cst_339 : f32 to vector<8x128xf32>
    %936 = arith.subf %935, %753 : vector<8x128xf32>
    %937 = arith.mulf %936, %868 : vector<8x128xf32>
    %938 = arith.addf %934, %937 : vector<8x128xf32>
    %cst_340 = arith.constant 0.333333343 : f32
    %939 = vector.broadcast %cst_340 : f32 to vector<8x128xf32>
    %940 = arith.mulf %938, %939 : vector<8x128xf32>
    %cst_341 = arith.constant 4.000000e+00 : f32
    %941 = vector.broadcast %cst_341 : f32 to vector<8x128xf32>
    %942 = arith.subf %753, %941 : vector<8x128xf32>
    %943 = arith.mulf %942, %868 : vector<8x128xf32>
    %cst_342 = arith.constant 8.000000e+00 : f32
    %944 = vector.broadcast %cst_342 : f32 to vector<8x128xf32>
    %945 = arith.subf %944, %753 : vector<8x128xf32>
    %946 = arith.mulf %945, %877 : vector<8x128xf32>
    %947 = arith.addf %943, %946 : vector<8x128xf32>
    %cst_343 = arith.constant 0.333333343 : f32
    %948 = vector.broadcast %cst_343 : f32 to vector<8x128xf32>
    %949 = arith.mulf %947, %948 : vector<8x128xf32>
    %cst_344 = arith.constant 5.000000e+00 : f32
    %950 = vector.broadcast %cst_344 : f32 to vector<8x128xf32>
    %951 = arith.subf %753, %950 : vector<8x128xf32>
    %952 = arith.mulf %951, %877 : vector<8x128xf32>
    %cst_345 = arith.constant 9.000000e+00 : f32
    %953 = vector.broadcast %cst_345 : f32 to vector<8x128xf32>
    %954 = arith.subf %953, %753 : vector<8x128xf32>
    %955 = arith.mulf %954, %886 : vector<8x128xf32>
    %956 = arith.addf %952, %955 : vector<8x128xf32>
    %cst_346 = arith.constant 0.333333343 : f32
    %957 = vector.broadcast %cst_346 : f32 to vector<8x128xf32>
    %958 = arith.mulf %956, %957 : vector<8x128xf32>
    %cst_347 = arith.constant 6.000000e+00 : f32
    %959 = vector.broadcast %cst_347 : f32 to vector<8x128xf32>
    %960 = arith.subf %753, %959 : vector<8x128xf32>
    %961 = arith.mulf %960, %886 : vector<8x128xf32>
    %cst_348 = arith.constant 1.000000e+01 : f32
    %962 = vector.broadcast %cst_348 : f32 to vector<8x128xf32>
    %963 = arith.subf %962, %753 : vector<8x128xf32>
    %964 = arith.mulf %963, %895 : vector<8x128xf32>
    %965 = arith.addf %961, %964 : vector<8x128xf32>
    %cst_349 = arith.constant 0.333333343 : f32
    %966 = vector.broadcast %cst_349 : f32 to vector<8x128xf32>
    %967 = arith.mulf %965, %966 : vector<8x128xf32>
    %cst_350 = arith.constant 7.000000e+00 : f32
    %968 = vector.broadcast %cst_350 : f32 to vector<8x128xf32>
    %969 = arith.subf %753, %968 : vector<8x128xf32>
    %970 = arith.mulf %969, %895 : vector<8x128xf32>
    %cst_351 = arith.constant 1.100000e+01 : f32
    %971 = vector.broadcast %cst_351 : f32 to vector<8x128xf32>
    %972 = arith.subf %971, %753 : vector<8x128xf32>
    %973 = arith.mulf %972, %904 : vector<8x128xf32>
    %974 = arith.addf %970, %973 : vector<8x128xf32>
    %cst_352 = arith.constant 0.333333343 : f32
    %975 = vector.broadcast %cst_352 : f32 to vector<8x128xf32>
    %976 = arith.mulf %974, %975 : vector<8x128xf32>
    %977 = arith.truncf %749 : vector<8x128xf32> to vector<8x128xbf16>
    %978 = arith.truncf %913 : vector<8x128xf32> to vector<8x128xbf16>
    %979 = arith.truncf %922 : vector<8x128xf32> to vector<8x128xbf16>
    %980 = arith.truncf %931 : vector<8x128xf32> to vector<8x128xbf16>
    %981 = arith.truncf %940 : vector<8x128xf32> to vector<8x128xbf16>
    %982 = arith.truncf %949 : vector<8x128xf32> to vector<8x128xbf16>
    %983 = arith.truncf %958 : vector<8x128xf32> to vector<8x128xbf16>
    %984 = arith.truncf %967 : vector<8x128xf32> to vector<8x128xbf16>
    %985 = arith.truncf %976 : vector<8x128xf32> to vector<8x128xbf16>
    %986 = tpu.concatenate %977, %978, %979, %980, %981, %982, %983, %984, %985 in 1 : vector<8x128xbf16>, vector<8x128xbf16>, vector<8x128xbf16>, vector<8x128xbf16>, vector<8x128xbf16>, vector<8x128xbf16>, vector<8x128xbf16>, vector<8x128xbf16>, vector<8x128xbf16> -> vector<8x1152xbf16>
    %c0_353 = arith.constant 0 : index
    %c0_354 = arith.constant 0 : index
    %987 = vector.load %arg5[%c0_353, %c0_354] : memref<1152x128xbf16, #tpu.memory_space<vmem>>, vector<1152x128xbf16>
    %cst_355 = arith.constant dense<0.000000e+00> : vector<8x128xf32>
    %988 = tpu.matmul %986, %987, %cst_355 {dimension_numbers = #tpu.dot_dimension_numbers<[1], [0], [0], [1], [0, 0, 1, 1], [], []>} : vector<8x1152xbf16>, vector<1152x128xbf16>, vector<8x128xf32> -> vector<8x128xf32>
    %c0_356 = arith.constant 0 : index
    %c0_357 = arith.constant 0 : index
    %989 = vector.load %arg6[%c0_356, %c0_357] : memref<8x128xf32, #tpu.memory_space<vmem>>, vector<8x128xf32>
    tpu.vector_store %arg6[%c0_356, %c0_357], %988 {strides = array<i32>} : memref<8x128xf32, #tpu.memory_space<vmem>>, vector<8x128xf32>,
    return
  }
  func.func @transform_0(%arg0: i32) -> (i32, i32) {
    %c0_i32 = arith.constant 0 : i32
    %c0_i32_0 = arith.constant 0 : i32
    return %arg0, %c0_i32 : i32, i32
  }
  func.func @transform_1(%arg0: i32) -> (i32, i32) {
    %c0_i32 = arith.constant 0 : i32
    %c0_i32_0 = arith.constant 0 : i32
    %c0_i32_1 = arith.constant 0 : i32
    return %c0_i32, %c0_i32_0 : i32, i32
  }
  func.func @transform_2(%arg0: i32) -> (i32, i32) {
    %c0_i32 = arith.constant 0 : i32
    %c0_i32_0 = arith.constant 0 : i32
    %c0_i32_1 = arith.constant 0 : i32
    return %c0_i32, %c0_i32_0 : i32, i32
  }
  func.func @transform_3(%arg0: i32) -> (i32, i32) {
    %c0_i32 = arith.constant 0 : i32
    %c0_i32_0 = arith.constant 0 : i32
    %c0_i32_1 = arith.constant 0 : i32
    return %c0_i32, %c0_i32_0 : i32, i32
  }
  func.func @transform_4(%arg0: i32) -> (i32, i32) {
    %c0_i32 = arith.constant 0 : i32
    %c0_i32_0 = arith.constant 0 : i32
    %c0_i32_1 = arith.constant 0 : i32
    return %c0_i32, %c0_i32_0 : i32, i32
  }
  func.func @transform_5(%arg0: i32) -> (i32, i32) {
    %c0_i32 = arith.constant 0 : i32
    %c0_i32_0 = arith.constant 0 : i32
    return %arg0, %c0_i32 : i32, i32
  }
}

module attributes {stable_mosaic.version = 11 : i64} {
  func.func @kernel(%arg0: i32, %arg1: memref<8x128xf32, #tpu.memory_space<vmem>>, %arg2: memref<1152x128xbf16, #tpu.memory_space<vmem>>, %arg3: memref<1152x128xbf16, #tpu.memory_space<vmem>>, %arg4: memref<1152x128xbf16, #tpu.memory_space<vmem>>, %arg5: memref<1152x128xbf16, #tpu.memory_space<vmem>>, %arg6: memref<8x128xf32, #tpu.memory_space<vmem>>) attributes {dimension_semantics = [#tpu.dimension_semantics<parallel>], iteration_bounds = array<i64: 1>, scalar_prefetch = 0 : i64, scratch_operands = 0 : i64, tpu.core_type = #tpu.core_type<tc>, window_params = [{transform_indices = @transform_0, window_bounds = array<i64: 8, 128>}, {pipeline_mode = #tpu.pipeline_mode<synchronous>, transform_indices = @transform_1, window_bounds = array<i64: 1152, 128>}, {pipeline_mode = #tpu.pipeline_mode<synchronous>, transform_indices = @transform_2, window_bounds = array<i64: 1152, 128>}, {pipeline_mode = #tpu.pipeline_mode<synchronous>, transform_indices = @transform_3, window_bounds = array<i64: 1152, 128>}, {pipeline_mode = #tpu.pipeline_mode<synchronous>, transform_indices = @transform_4, window_bounds = array<i64: 1152, 128>}, {transform_indices = @transform_5, window_bounds = array<i64: 8, 128>}]} {
    %c0 = arith.constant 0 : index
    %c0_0 = arith.constant 0 : index
    %0 = vector.load %arg1[%c0, %c0_0] : memref<8x128xf32, #tpu.memory_space<vmem>>, vector<8x128xf32>
    %cst = arith.constant 5.000000e-01 : f32
    %1 = vector.broadcast %cst : f32 to vector<8x128xf32>
    %2 = arith.mulf %1, %0 : vector<8x128xf32>
    %3 = math.tanh %2 : vector<8x128xf32>
    %cst_1 = arith.constant 5.000000e-01 : f32
    %4 = vector.broadcast %cst_1 : f32 to vector<8x128xf32>
    %5 = arith.mulf %4, %3 : vector<8x128xf32>
    %cst_2 = arith.constant 5.000000e-01 : f32
    %6 = vector.broadcast %cst_2 : f32 to vector<8x128xf32>
    %7 = arith.addf %5, %6 : vector<8x128xf32>
    %8 = arith.mulf %0, %7 : vector<8x128xf32>
    %cst_3 = arith.constant -2.200000e+00 : f32
    %9 = vector.broadcast %cst_3 : f32 to vector<8x128xf32>
    %10 = arith.subf %0, %9 : vector<8x128xf32>
    %cst_4 = arith.constant 2.500000e+00 : f32
    %11 = vector.broadcast %cst_4 : f32 to vector<8x128xf32>
    %12 = arith.mulf %10, %11 : vector<8x128xf32>
    %cst_5 = arith.constant 1.000000e+00 : f32
    %13 = vector.broadcast %cst_5 : f32 to vector<8x128xf32>
    %14 = arith.subf %12, %13 : vector<8x128xf32>
    %15 = math.absf %14 : vector<8x128xf32>
    %cst_6 = arith.constant 1.000000e+00 : f32
    %16 = vector.broadcast %cst_6 : f32 to vector<8x128xf32>
    %17 = arith.subf %16, %15 : vector<8x128xf32>
    %cst_7 = arith.constant 0.000000e+00 : f32
    %18 = vector.broadcast %cst_7 : f32 to vector<8x128xf32>
    %19 = arith.maximumf %18, %17 : vector<8x128xf32>
    %cst_8 = arith.constant 2.000000e+00 : f32
    %20 = vector.broadcast %cst_8 : f32 to vector<8x128xf32>
    %21 = arith.subf %12, %20 : vector<8x128xf32>
    %22 = math.absf %21 : vector<8x128xf32>
    %cst_9 = arith.constant 1.000000e+00 : f32
    %23 = vector.broadcast %cst_9 : f32 to vector<8x128xf32>
    %24 = arith.subf %23, %22 : vector<8x128xf32>
    %cst_10 = arith.constant 0.000000e+00 : f32
    %25 = vector.broadcast %cst_10 : f32 to vector<8x128xf32>
    %26 = arith.maximumf %25, %24 : vector<8x128xf32>
    %cst_11 = arith.constant 3.000000e+00 : f32
    %27 = vector.broadcast %cst_11 : f32 to vector<8x128xf32>
    %28 = arith.subf %12, %27 : vector<8x128xf32>
    %29 = math.absf %28 : vector<8x128xf32>
    %cst_12 = arith.constant 1.000000e+00 : f32
    %30 = vector.broadcast %cst_12 : f32 to vector<8x128xf32>
    %31 = arith.subf %30, %29 : vector<8x128xf32>
    %cst_13 = arith.constant 0.000000e+00 : f32
    %32 = vector.broadcast %cst_13 : f32 to vector<8x128xf32>
    %33 = arith.maximumf %32, %31 : vector<8x128xf32>
    %cst_14 = arith.constant 4.000000e+00 : f32
    %34 = vector.broadcast %cst_14 : f32 to vector<8x128xf32>
    %35 = arith.subf %12, %34 : vector<8x128xf32>
    %36 = math.absf %35 : vector<8x128xf32>
    %cst_15 = arith.constant 1.000000e+00 : f32
    %37 = vector.broadcast %cst_15 : f32 to vector<8x128xf32>
    %38 = arith.subf %37, %36 : vector<8x128xf32>
    %cst_16 = arith.constant 0.000000e+00 : f32
    %39 = vector.broadcast %cst_16 : f32 to vector<8x128xf32>
    %40 = arith.maximumf %39, %38 : vector<8x128xf32>
    %cst_17 = arith.constant 5.000000e+00 : f32
    %41 = vector.broadcast %cst_17 : f32 to vector<8x128xf32>
    %42 = arith.subf %12, %41 : vector<8x128xf32>
    %43 = math.absf %42 : vector<8x128xf32>
    %cst_18 = arith.constant 1.000000e+00 : f32
    %44 = vector.broadcast %cst_18 : f32 to vector<8x128xf32>
    %45 = arith.subf %44, %43 : vector<8x128xf32>
    %cst_19 = arith.constant 0.000000e+00 : f32
    %46 = vector.broadcast %cst_19 : f32 to vector<8x128xf32>
    %47 = arith.maximumf %46, %45 : vector<8x128xf32>
    %cst_20 = arith.constant 6.000000e+00 : f32
    %48 = vector.broadcast %cst_20 : f32 to vector<8x128xf32>
    %49 = arith.subf %12, %48 : vector<8x128xf32>
    %50 = math.absf %49 : vector<8x128xf32>
    %cst_21 = arith.constant 1.000000e+00 : f32
    %51 = vector.broadcast %cst_21 : f32 to vector<8x128xf32>
    %52 = arith.subf %51, %50 : vector<8x128xf32>
    %cst_22 = arith.constant 0.000000e+00 : f32
    %53 = vector.broadcast %cst_22 : f32 to vector<8x128xf32>
    %54 = arith.maximumf %53, %52 : vector<8x128xf32>
    %cst_23 = arith.constant 7.000000e+00 : f32
    %55 = vector.broadcast %cst_23 : f32 to vector<8x128xf32>
    %56 = arith.subf %12, %55 : vector<8x128xf32>
    %57 = math.absf %56 : vector<8x128xf32>
    %cst_24 = arith.constant 1.000000e+00 : f32
    %58 = vector.broadcast %cst_24 : f32 to vector<8x128xf32>
    %59 = arith.subf %58, %57 : vector<8x128xf32>
    %cst_25 = arith.constant 0.000000e+00 : f32
    %60 = vector.broadcast %cst_25 : f32 to vector<8x128xf32>
    %61 = arith.maximumf %60, %59 : vector<8x128xf32>
    %cst_26 = arith.constant 8.000000e+00 : f32
    %62 = vector.broadcast %cst_26 : f32 to vector<8x128xf32>
    %63 = arith.subf %12, %62 : vector<8x128xf32>
    %64 = math.absf %63 : vector<8x128xf32>
    %cst_27 = arith.constant 1.000000e+00 : f32
    %65 = vector.broadcast %cst_27 : f32 to vector<8x128xf32>
    %66 = arith.subf %65, %64 : vector<8x128xf32>
    %cst_28 = arith.constant 0.000000e+00 : f32
    %67 = vector.broadcast %cst_28 : f32 to vector<8x128xf32>
    %68 = arith.maximumf %67, %66 : vector<8x128xf32>
    %cst_29 = arith.constant 9.000000e+00 : f32
    %69 = vector.broadcast %cst_29 : f32 to vector<8x128xf32>
    %70 = arith.subf %12, %69 : vector<8x128xf32>
    %71 = math.absf %70 : vector<8x128xf32>
    %cst_30 = arith.constant 1.000000e+00 : f32
    %72 = vector.broadcast %cst_30 : f32 to vector<8x128xf32>
    %73 = arith.subf %72, %71 : vector<8x128xf32>
    %cst_31 = arith.constant 0.000000e+00 : f32
    %74 = vector.broadcast %cst_31 : f32 to vector<8x128xf32>
    %75 = arith.maximumf %74, %73 : vector<8x128xf32>
    %cst_32 = arith.constant 1.000000e+01 : f32
    %76 = vector.broadcast %cst_32 : f32 to vector<8x128xf32>
    %77 = arith.subf %12, %76 : vector<8x128xf32>
    %78 = math.absf %77 : vector<8x128xf32>
    %cst_33 = arith.constant 1.000000e+00 : f32
    %79 = vector.broadcast %cst_33 : f32 to vector<8x128xf32>
    %80 = arith.subf %79, %78 : vector<8x128xf32>
    %cst_34 = arith.constant 0.000000e+00 : f32
    %81 = vector.broadcast %cst_34 : f32 to vector<8x128xf32>
    %82 = arith.maximumf %81, %80 : vector<8x128xf32>
    %cst_35 = arith.constant 0.000000e+00 : f32
    %83 = vector.broadcast %cst_35 : f32 to vector<8x128xf32>
    %84 = arith.subf %12, %83 : vector<8x128xf32>
    %85 = arith.mulf %84, %19 : vector<8x128xf32>
    %cst_36 = arith.constant 3.000000e+00 : f32
    %86 = vector.broadcast %cst_36 : f32 to vector<8x128xf32>
    %87 = arith.subf %86, %12 : vector<8x128xf32>
    %88 = arith.mulf %87, %26 : vector<8x128xf32>
    %89 = arith.addf %85, %88 : vector<8x128xf32>
    %cst_37 = arith.constant 5.000000e-01 : f32
    %90 = vector.broadcast %cst_37 : f32 to vector<8x128xf32>
    %91 = arith.mulf %89, %90 : vector<8x128xf32>
    %cst_38 = arith.constant 1.000000e+00 : f32
    %92 = vector.broadcast %cst_38 : f32 to vector<8x128xf32>
    %93 = arith.subf %12, %92 : vector<8x128xf32>
    %94 = arith.mulf %93, %26 : vector<8x128xf32>
    %cst_39 = arith.constant 4.000000e+00 : f32
    %95 = vector.broadcast %cst_39 : f32 to vector<8x128xf32>
    %96 = arith.subf %95, %12 : vector<8x128xf32>
    %97 = arith.mulf %96, %33 : vector<8x128xf32>
    %98 = arith.addf %94, %97 : vector<8x128xf32>
    %cst_40 = arith.constant 5.000000e-01 : f32
    %99 = vector.broadcast %cst_40 : f32 to vector<8x128xf32>
    %100 = arith.mulf %98, %99 : vector<8x128xf32>
    %cst_41 = arith.constant 2.000000e+00 : f32
    %101 = vector.broadcast %cst_41 : f32 to vector<8x128xf32>
    %102 = arith.subf %12, %101 : vector<8x128xf32>
    %103 = arith.mulf %102, %33 : vector<8x128xf32>
    %cst_42 = arith.constant 5.000000e+00 : f32
    %104 = vector.broadcast %cst_42 : f32 to vector<8x128xf32>
    %105 = arith.subf %104, %12 : vector<8x128xf32>
    %106 = arith.mulf %105, %40 : vector<8x128xf32>
    %107 = arith.addf %103, %106 : vector<8x128xf32>
    %cst_43 = arith.constant 5.000000e-01 : f32
    %108 = vector.broadcast %cst_43 : f32 to vector<8x128xf32>
    %109 = arith.mulf %107, %108 : vector<8x128xf32>
    %cst_44 = arith.constant 3.000000e+00 : f32
    %110 = vector.broadcast %cst_44 : f32 to vector<8x128xf32>
    %111 = arith.subf %12, %110 : vector<8x128xf32>
    %112 = arith.mulf %111, %40 : vector<8x128xf32>
    %cst_45 = arith.constant 6.000000e+00 : f32
    %113 = vector.broadcast %cst_45 : f32 to vector<8x128xf32>
    %114 = arith.subf %113, %12 : vector<8x128xf32>
    %115 = arith.mulf %114, %47 : vector<8x128xf32>
    %116 = arith.addf %112, %115 : vector<8x128xf32>
    %cst_46 = arith.constant 5.000000e-01 : f32
    %117 = vector.broadcast %cst_46 : f32 to vector<8x128xf32>
    %118 = arith.mulf %116, %117 : vector<8x128xf32>
    %cst_47 = arith.constant 4.000000e+00 : f32
    %119 = vector.broadcast %cst_47 : f32 to vector<8x128xf32>
    %120 = arith.subf %12, %119 : vector<8x128xf32>
    %121 = arith.mulf %120, %47 : vector<8x128xf32>
    %cst_48 = arith.constant 7.000000e+00 : f32
    %122 = vector.broadcast %cst_48 : f32 to vector<8x128xf32>
    %123 = arith.subf %122, %12 : vector<8x128xf32>
    %124 = arith.mulf %123, %54 : vector<8x128xf32>
    %125 = arith.addf %121, %124 : vector<8x128xf32>
    %cst_49 = arith.constant 5.000000e-01 : f32
    %126 = vector.broadcast %cst_49 : f32 to vector<8x128xf32>
    %127 = arith.mulf %125, %126 : vector<8x128xf32>
    %cst_50 = arith.constant 5.000000e+00 : f32
    %128 = vector.broadcast %cst_50 : f32 to vector<8x128xf32>
    %129 = arith.subf %12, %128 : vector<8x128xf32>
    %130 = arith.mulf %129, %54 : vector<8x128xf32>
    %cst_51 = arith.constant 8.000000e+00 : f32
    %131 = vector.broadcast %cst_51 : f32 to vector<8x128xf32>
    %132 = arith.subf %131, %12 : vector<8x128xf32>
    %133 = arith.mulf %132, %61 : vector<8x128xf32>
    %134 = arith.addf %130, %133 : vector<8x128xf32>
    %cst_52 = arith.constant 5.000000e-01 : f32
    %135 = vector.broadcast %cst_52 : f32 to vector<8x128xf32>
    %136 = arith.mulf %134, %135 : vector<8x128xf32>
    %cst_53 = arith.constant 6.000000e+00 : f32
    %137 = vector.broadcast %cst_53 : f32 to vector<8x128xf32>
    %138 = arith.subf %12, %137 : vector<8x128xf32>
    %139 = arith.mulf %138, %61 : vector<8x128xf32>
    %cst_54 = arith.constant 9.000000e+00 : f32
    %140 = vector.broadcast %cst_54 : f32 to vector<8x128xf32>
    %141 = arith.subf %140, %12 : vector<8x128xf32>
    %142 = arith.mulf %141, %68 : vector<8x128xf32>
    %143 = arith.addf %139, %142 : vector<8x128xf32>
    %cst_55 = arith.constant 5.000000e-01 : f32
    %144 = vector.broadcast %cst_55 : f32 to vector<8x128xf32>
    %145 = arith.mulf %143, %144 : vector<8x128xf32>
    %cst_56 = arith.constant 7.000000e+00 : f32
    %146 = vector.broadcast %cst_56 : f32 to vector<8x128xf32>
    %147 = arith.subf %12, %146 : vector<8x128xf32>
    %148 = arith.mulf %147, %68 : vector<8x128xf32>
    %cst_57 = arith.constant 1.000000e+01 : f32
    %149 = vector.broadcast %cst_57 : f32 to vector<8x128xf32>
    %150 = arith.subf %149, %12 : vector<8x128xf32>
    %151 = arith.mulf %150, %75 : vector<8x128xf32>
    %152 = arith.addf %148, %151 : vector<8x128xf32>
    %cst_58 = arith.constant 5.000000e-01 : f32
    %153 = vector.broadcast %cst_58 : f32 to vector<8x128xf32>
    %154 = arith.mulf %152, %153 : vector<8x128xf32>
    %cst_59 = arith.constant 8.000000e+00 : f32
    %155 = vector.broadcast %cst_59 : f32 to vector<8x128xf32>
    %156 = arith.subf %12, %155 : vector<8x128xf32>
    %157 = arith.mulf %156, %75 : vector<8x128xf32>
    %cst_60 = arith.constant 1.100000e+01 : f32
    %158 = vector.broadcast %cst_60 : f32 to vector<8x128xf32>
    %159 = arith.subf %158, %12 : vector<8x128xf32>
    %160 = arith.mulf %159, %82 : vector<8x128xf32>
    %161 = arith.addf %157, %160 : vector<8x128xf32>
    %cst_61 = arith.constant 5.000000e-01 : f32
    %162 = vector.broadcast %cst_61 : f32 to vector<8x128xf32>
    %163 = arith.mulf %161, %162 : vector<8x128xf32>
    %cst_62 = arith.constant 0.000000e+00 : f32
    %164 = vector.broadcast %cst_62 : f32 to vector<8x128xf32>
    %165 = arith.subf %12, %164 : vector<8x128xf32>
    %166 = arith.mulf %165, %91 : vector<8x128xf32>
    %cst_63 = arith.constant 4.000000e+00 : f32
    %167 = vector.broadcast %cst_63 : f32 to vector<8x128xf32>
    %168 = arith.subf %167, %12 : vector<8x128xf32>
    %169 = arith.mulf %168, %100 : vector<8x128xf32>
    %170 = arith.addf %166, %169 : vector<8x128xf32>
    %cst_64 = arith.constant 0.333333343 : f32
    %171 = vector.broadcast %cst_64 : f32 to vector<8x128xf32>
    %172 = arith.mulf %170, %171 : vector<8x128xf32>
    %cst_65 = arith.constant 1.000000e+00 : f32
    %173 = vector.broadcast %cst_65 : f32 to vector<8x128xf32>
    %174 = arith.subf %12, %173 : vector<8x128xf32>
    %175 = arith.mulf %174, %100 : vector<8x128xf32>
    %cst_66 = arith.constant 5.000000e+00 : f32
    %176 = vector.broadcast %cst_66 : f32 to vector<8x128xf32>
    %177 = arith.subf %176, %12 : vector<8x128xf32>
    %178 = arith.mulf %177, %109 : vector<8x128xf32>
    %179 = arith.addf %175, %178 : vector<8x128xf32>
    %cst_67 = arith.constant 0.333333343 : f32
    %180 = vector.broadcast %cst_67 : f32 to vector<8x128xf32>
    %181 = arith.mulf %179, %180 : vector<8x128xf32>
    %cst_68 = arith.constant 2.000000e+00 : f32
    %182 = vector.broadcast %cst_68 : f32 to vector<8x128xf32>
    %183 = arith.subf %12, %182 : vector<8x128xf32>
    %184 = arith.mulf %183, %109 : vector<8x128xf32>
    %cst_69 = arith.constant 6.000000e+00 : f32
    %185 = vector.broadcast %cst_69 : f32 to vector<8x128xf32>
    %186 = arith.subf %185, %12 : vector<8x128xf32>
    %187 = arith.mulf %186, %118 : vector<8x128xf32>
    %188 = arith.addf %184, %187 : vector<8x128xf32>
    %cst_70 = arith.constant 0.333333343 : f32
    %189 = vector.broadcast %cst_70 : f32 to vector<8x128xf32>
    %190 = arith.mulf %188, %189 : vector<8x128xf32>
    %cst_71 = arith.constant 3.000000e+00 : f32
    %191 = vector.broadcast %cst_71 : f32 to vector<8x128xf32>
    %192 = arith.subf %12, %191 : vector<8x128xf32>
    %193 = arith.mulf %192, %118 : vector<8x128xf32>
    %cst_72 = arith.constant 7.000000e+00 : f32
    %194 = vector.broadcast %cst_72 : f32 to vector<8x128xf32>
    %195 = arith.subf %194, %12 : vector<8x128xf32>
    %196 = arith.mulf %195, %127 : vector<8x128xf32>
    %197 = arith.addf %193, %196 : vector<8x128xf32>
    %cst_73 = arith.constant 0.333333343 : f32
    %198 = vector.broadcast %cst_73 : f32 to vector<8x128xf32>
    %199 = arith.mulf %197, %198 : vector<8x128xf32>
    %cst_74 = arith.constant 4.000000e+00 : f32
    %200 = vector.broadcast %cst_74 : f32 to vector<8x128xf32>
    %201 = arith.subf %12, %200 : vector<8x128xf32>
    %202 = arith.mulf %201, %127 : vector<8x128xf32>
    %cst_75 = arith.constant 8.000000e+00 : f32
    %203 = vector.broadcast %cst_75 : f32 to vector<8x128xf32>
    %204 = arith.subf %203, %12 : vector<8x128xf32>
    %205 = arith.mulf %204, %136 : vector<8x128xf32>
    %206 = arith.addf %202, %205 : vector<8x128xf32>
    %cst_76 = arith.constant 0.333333343 : f32
    %207 = vector.broadcast %cst_76 : f32 to vector<8x128xf32>
    %208 = arith.mulf %206, %207 : vector<8x128xf32>
    %cst_77 = arith.constant 5.000000e+00 : f32
    %209 = vector.broadcast %cst_77 : f32 to vector<8x128xf32>
    %210 = arith.subf %12, %209 : vector<8x128xf32>
    %211 = arith.mulf %210, %136 : vector<8x128xf32>
    %cst_78 = arith.constant 9.000000e+00 : f32
    %212 = vector.broadcast %cst_78 : f32 to vector<8x128xf32>
    %213 = arith.subf %212, %12 : vector<8x128xf32>
    %214 = arith.mulf %213, %145 : vector<8x128xf32>
    %215 = arith.addf %211, %214 : vector<8x128xf32>
    %cst_79 = arith.constant 0.333333343 : f32
    %216 = vector.broadcast %cst_79 : f32 to vector<8x128xf32>
    %217 = arith.mulf %215, %216 : vector<8x128xf32>
    %cst_80 = arith.constant 6.000000e+00 : f32
    %218 = vector.broadcast %cst_80 : f32 to vector<8x128xf32>
    %219 = arith.subf %12, %218 : vector<8x128xf32>
    %220 = arith.mulf %219, %145 : vector<8x128xf32>
    %cst_81 = arith.constant 1.000000e+01 : f32
    %221 = vector.broadcast %cst_81 : f32 to vector<8x128xf32>
    %222 = arith.subf %221, %12 : vector<8x128xf32>
    %223 = arith.mulf %222, %154 : vector<8x128xf32>
    %224 = arith.addf %220, %223 : vector<8x128xf32>
    %cst_82 = arith.constant 0.333333343 : f32
    %225 = vector.broadcast %cst_82 : f32 to vector<8x128xf32>
    %226 = arith.mulf %224, %225 : vector<8x128xf32>
    %cst_83 = arith.constant 7.000000e+00 : f32
    %227 = vector.broadcast %cst_83 : f32 to vector<8x128xf32>
    %228 = arith.subf %12, %227 : vector<8x128xf32>
    %229 = arith.mulf %228, %154 : vector<8x128xf32>
    %cst_84 = arith.constant 1.100000e+01 : f32
    %230 = vector.broadcast %cst_84 : f32 to vector<8x128xf32>
    %231 = arith.subf %230, %12 : vector<8x128xf32>
    %232 = arith.mulf %231, %163 : vector<8x128xf32>
    %233 = arith.addf %229, %232 : vector<8x128xf32>
    %cst_85 = arith.constant 0.333333343 : f32
    %234 = vector.broadcast %cst_85 : f32 to vector<8x128xf32>
    %235 = arith.mulf %233, %234 : vector<8x128xf32>
    %236 = arith.truncf %8 : vector<8x128xf32> to vector<8x128xbf16>
    %237 = arith.truncf %172 : vector<8x128xf32> to vector<8x128xbf16>
    %238 = arith.truncf %181 : vector<8x128xf32> to vector<8x128xbf16>
    %239 = arith.truncf %190 : vector<8x128xf32> to vector<8x128xbf16>
    %240 = arith.truncf %199 : vector<8x128xf32> to vector<8x128xbf16>
    %241 = arith.truncf %208 : vector<8x128xf32> to vector<8x128xbf16>
    %242 = arith.truncf %217 : vector<8x128xf32> to vector<8x128xbf16>
    %243 = arith.truncf %226 : vector<8x128xf32> to vector<8x128xbf16>
    %244 = arith.truncf %235 : vector<8x128xf32> to vector<8x128xbf16>
    %245 = tpu.concatenate %236, %237, %238, %239, %240, %241, %242, %243, %244 in 1 : vector<8x128xbf16>, vector<8x128xbf16>, vector<8x128xbf16>, vector<8x128xbf16>, vector<8x128xbf16>, vector<8x128xbf16>, vector<8x128xbf16>, vector<8x128xbf16>, vector<8x128xbf16> -> vector<8x1152xbf16>
    %c0_86 = arith.constant 0 : index
    %c0_87 = arith.constant 0 : index
    %246 = vector.load %arg2[%c0_86, %c0_87] : memref<1152x128xbf16, #tpu.memory_space<vmem>>, vector<1152x128xbf16>
    %cst_88 = arith.constant dense<0.000000e+00> : vector<8x128xf32>
    %247 = tpu.matmul %245, %246, %cst_88 {dimension_numbers = #tpu.dot_dimension_numbers<[1], [0], [0], [1], [0, 0, 1, 1], [], []>} : vector<8x1152xbf16>, vector<1152x128xbf16>, vector<8x128xf32> -> vector<8x128xf32>
    %cst_89 = arith.constant 5.000000e-01 : f32
    %248 = vector.broadcast %cst_89 : f32 to vector<8x128xf32>
    %249 = arith.mulf %248, %247 : vector<8x128xf32>
    %250 = math.tanh %249 : vector<8x128xf32>
    %cst_90 = arith.constant 5.000000e-01 : f32
    %251 = vector.broadcast %cst_90 : f32 to vector<8x128xf32>
    %252 = arith.mulf %251, %250 : vector<8x128xf32>
    %cst_91 = arith.constant 5.000000e-01 : f32
    %253 = vector.broadcast %cst_91 : f32 to vector<8x128xf32>
    %254 = arith.addf %252, %253 : vector<8x128xf32>
    %255 = arith.mulf %247, %254 : vector<8x128xf32>
    %cst_92 = arith.constant -2.200000e+00 : f32
    %256 = vector.broadcast %cst_92 : f32 to vector<8x128xf32>
    %257 = arith.subf %247, %256 : vector<8x128xf32>
    %cst_93 = arith.constant 2.500000e+00 : f32
    %258 = vector.broadcast %cst_93 : f32 to vector<8x128xf32>
    %259 = arith.mulf %257, %258 : vector<8x128xf32>
    %cst_94 = arith.constant 1.000000e+00 : f32
    %260 = vector.broadcast %cst_94 : f32 to vector<8x128xf32>
    %261 = arith.subf %259, %260 : vector<8x128xf32>
    %262 = math.absf %261 : vector<8x128xf32>
    %cst_95 = arith.constant 1.000000e+00 : f32
    %263 = vector.broadcast %cst_95 : f32 to vector<8x128xf32>
    %264 = arith.subf %263, %262 : vector<8x128xf32>
    %cst_96 = arith.constant 0.000000e+00 : f32
    %265 = vector.broadcast %cst_96 : f32 to vector<8x128xf32>
    %266 = arith.maximumf %265, %264 : vector<8x128xf32>
    %cst_97 = arith.constant 2.000000e+00 : f32
    %267 = vector.broadcast %cst_97 : f32 to vector<8x128xf32>
    %268 = arith.subf %259, %267 : vector<8x128xf32>
    %269 = math.absf %268 : vector<8x128xf32>
    %cst_98 = arith.constant 1.000000e+00 : f32
    %270 = vector.broadcast %cst_98 : f32 to vector<8x128xf32>
    %271 = arith.subf %270, %269 : vector<8x128xf32>
    %cst_99 = arith.constant 0.000000e+00 : f32
    %272 = vector.broadcast %cst_99 : f32 to vector<8x128xf32>
    %273 = arith.maximumf %272, %271 : vector<8x128xf32>
    %cst_100 = arith.constant 3.000000e+00 : f32
    %274 = vector.broadcast %cst_100 : f32 to vector<8x128xf32>
    %275 = arith.subf %259, %274 : vector<8x128xf32>
    %276 = math.absf %275 : vector<8x128xf32>
    %cst_101 = arith.constant 1.000000e+00 : f32
    %277 = vector.broadcast %cst_101 : f32 to vector<8x128xf32>
    %278 = arith.subf %277, %276 : vector<8x128xf32>
    %cst_102 = arith.constant 0.000000e+00 : f32
    %279 = vector.broadcast %cst_102 : f32 to vector<8x128xf32>
    %280 = arith.maximumf %279, %278 : vector<8x128xf32>
    %cst_103 = arith.constant 4.000000e+00 : f32
    %281 = vector.broadcast %cst_103 : f32 to vector<8x128xf32>
    %282 = arith.subf %259, %281 : vector<8x128xf32>
    %283 = math.absf %282 : vector<8x128xf32>
    %cst_104 = arith.constant 1.000000e+00 : f32
    %284 = vector.broadcast %cst_104 : f32 to vector<8x128xf32>
    %285 = arith.subf %284, %283 : vector<8x128xf32>
    %cst_105 = arith.constant 0.000000e+00 : f32
    %286 = vector.broadcast %cst_105 : f32 to vector<8x128xf32>
    %287 = arith.maximumf %286, %285 : vector<8x128xf32>
    %cst_106 = arith.constant 5.000000e+00 : f32
    %288 = vector.broadcast %cst_106 : f32 to vector<8x128xf32>
    %289 = arith.subf %259, %288 : vector<8x128xf32>
    %290 = math.absf %289 : vector<8x128xf32>
    %cst_107 = arith.constant 1.000000e+00 : f32
    %291 = vector.broadcast %cst_107 : f32 to vector<8x128xf32>
    %292 = arith.subf %291, %290 : vector<8x128xf32>
    %cst_108 = arith.constant 0.000000e+00 : f32
    %293 = vector.broadcast %cst_108 : f32 to vector<8x128xf32>
    %294 = arith.maximumf %293, %292 : vector<8x128xf32>
    %cst_109 = arith.constant 6.000000e+00 : f32
    %295 = vector.broadcast %cst_109 : f32 to vector<8x128xf32>
    %296 = arith.subf %259, %295 : vector<8x128xf32>
    %297 = math.absf %296 : vector<8x128xf32>
    %cst_110 = arith.constant 1.000000e+00 : f32
    %298 = vector.broadcast %cst_110 : f32 to vector<8x128xf32>
    %299 = arith.subf %298, %297 : vector<8x128xf32>
    %cst_111 = arith.constant 0.000000e+00 : f32
    %300 = vector.broadcast %cst_111 : f32 to vector<8x128xf32>
    %301 = arith.maximumf %300, %299 : vector<8x128xf32>
    %cst_112 = arith.constant 7.000000e+00 : f32
    %302 = vector.broadcast %cst_112 : f32 to vector<8x128xf32>
    %303 = arith.subf %259, %302 : vector<8x128xf32>
    %304 = math.absf %303 : vector<8x128xf32>
    %cst_113 = arith.constant 1.000000e+00 : f32
    %305 = vector.broadcast %cst_113 : f32 to vector<8x128xf32>
    %306 = arith.subf %305, %304 : vector<8x128xf32>
    %cst_114 = arith.constant 0.000000e+00 : f32
    %307 = vector.broadcast %cst_114 : f32 to vector<8x128xf32>
    %308 = arith.maximumf %307, %306 : vector<8x128xf32>
    %cst_115 = arith.constant 8.000000e+00 : f32
    %309 = vector.broadcast %cst_115 : f32 to vector<8x128xf32>
    %310 = arith.subf %259, %309 : vector<8x128xf32>
    %311 = math.absf %310 : vector<8x128xf32>
    %cst_116 = arith.constant 1.000000e+00 : f32
    %312 = vector.broadcast %cst_116 : f32 to vector<8x128xf32>
    %313 = arith.subf %312, %311 : vector<8x128xf32>
    %cst_117 = arith.constant 0.000000e+00 : f32
    %314 = vector.broadcast %cst_117 : f32 to vector<8x128xf32>
    %315 = arith.maximumf %314, %313 : vector<8x128xf32>
    %cst_118 = arith.constant 9.000000e+00 : f32
    %316 = vector.broadcast %cst_118 : f32 to vector<8x128xf32>
    %317 = arith.subf %259, %316 : vector<8x128xf32>
    %318 = math.absf %317 : vector<8x128xf32>
    %cst_119 = arith.constant 1.000000e+00 : f32
    %319 = vector.broadcast %cst_119 : f32 to vector<8x128xf32>
    %320 = arith.subf %319, %318 : vector<8x128xf32>
    %cst_120 = arith.constant 0.000000e+00 : f32
    %321 = vector.broadcast %cst_120 : f32 to vector<8x128xf32>
    %322 = arith.maximumf %321, %320 : vector<8x128xf32>
    %cst_121 = arith.constant 1.000000e+01 : f32
    %323 = vector.broadcast %cst_121 : f32 to vector<8x128xf32>
    %324 = arith.subf %259, %323 : vector<8x128xf32>
    %325 = math.absf %324 : vector<8x128xf32>
    %cst_122 = arith.constant 1.000000e+00 : f32
    %326 = vector.broadcast %cst_122 : f32 to vector<8x128xf32>
    %327 = arith.subf %326, %325 : vector<8x128xf32>
    %cst_123 = arith.constant 0.000000e+00 : f32
    %328 = vector.broadcast %cst_123 : f32 to vector<8x128xf32>
    %329 = arith.maximumf %328, %327 : vector<8x128xf32>
    %cst_124 = arith.constant 0.000000e+00 : f32
    %330 = vector.broadcast %cst_124 : f32 to vector<8x128xf32>
    %331 = arith.subf %259, %330 : vector<8x128xf32>
    %332 = arith.mulf %331, %266 : vector<8x128xf32>
    %cst_125 = arith.constant 3.000000e+00 : f32
    %333 = vector.broadcast %cst_125 : f32 to vector<8x128xf32>
    %334 = arith.subf %333, %259 : vector<8x128xf32>
    %335 = arith.mulf %334, %273 : vector<8x128xf32>
    %336 = arith.addf %332, %335 : vector<8x128xf32>
    %cst_126 = arith.constant 5.000000e-01 : f32
    %337 = vector.broadcast %cst_126 : f32 to vector<8x128xf32>
    %338 = arith.mulf %336, %337 : vector<8x128xf32>
    %cst_127 = arith.constant 1.000000e+00 : f32
    %339 = vector.broadcast %cst_127 : f32 to vector<8x128xf32>
    %340 = arith.subf %259, %339 : vector<8x128xf32>
    %341 = arith.mulf %340, %273 : vector<8x128xf32>
    %cst_128 = arith.constant 4.000000e+00 : f32
    %342 = vector.broadcast %cst_128 : f32 to vector<8x128xf32>
    %343 = arith.subf %342, %259 : vector<8x128xf32>
    %344 = arith.mulf %343, %280 : vector<8x128xf32>
    %345 = arith.addf %341, %344 : vector<8x128xf32>
    %cst_129 = arith.constant 5.000000e-01 : f32
    %346 = vector.broadcast %cst_129 : f32 to vector<8x128xf32>
    %347 = arith.mulf %345, %346 : vector<8x128xf32>
    %cst_130 = arith.constant 2.000000e+00 : f32
    %348 = vector.broadcast %cst_130 : f32 to vector<8x128xf32>
    %349 = arith.subf %259, %348 : vector<8x128xf32>
    %350 = arith.mulf %349, %280 : vector<8x128xf32>
    %cst_131 = arith.constant 5.000000e+00 : f32
    %351 = vector.broadcast %cst_131 : f32 to vector<8x128xf32>
    %352 = arith.subf %351, %259 : vector<8x128xf32>
    %353 = arith.mulf %352, %287 : vector<8x128xf32>
    %354 = arith.addf %350, %353 : vector<8x128xf32>
    %cst_132 = arith.constant 5.000000e-01 : f32
    %355 = vector.broadcast %cst_132 : f32 to vector<8x128xf32>
    %356 = arith.mulf %354, %355 : vector<8x128xf32>
    %cst_133 = arith.constant 3.000000e+00 : f32
    %357 = vector.broadcast %cst_133 : f32 to vector<8x128xf32>
    %358 = arith.subf %259, %357 : vector<8x128xf32>
    %359 = arith.mulf %358, %287 : vector<8x128xf32>
    %cst_134 = arith.constant 6.000000e+00 : f32
    %360 = vector.broadcast %cst_134 : f32 to vector<8x128xf32>
    %361 = arith.subf %360, %259 : vector<8x128xf32>
    %362 = arith.mulf %361, %294 : vector<8x128xf32>
    %363 = arith.addf %359, %362 : vector<8x128xf32>
    %cst_135 = arith.constant 5.000000e-01 : f32
    %364 = vector.broadcast %cst_135 : f32 to vector<8x128xf32>
    %365 = arith.mulf %363, %364 : vector<8x128xf32>
    %cst_136 = arith.constant 4.000000e+00 : f32
    %366 = vector.broadcast %cst_136 : f32 to vector<8x128xf32>
    %367 = arith.subf %259, %366 : vector<8x128xf32>
    %368 = arith.mulf %367, %294 : vector<8x128xf32>
    %cst_137 = arith.constant 7.000000e+00 : f32
    %369 = vector.broadcast %cst_137 : f32 to vector<8x128xf32>
    %370 = arith.subf %369, %259 : vector<8x128xf32>
    %371 = arith.mulf %370, %301 : vector<8x128xf32>
    %372 = arith.addf %368, %371 : vector<8x128xf32>
    %cst_138 = arith.constant 5.000000e-01 : f32
    %373 = vector.broadcast %cst_138 : f32 to vector<8x128xf32>
    %374 = arith.mulf %372, %373 : vector<8x128xf32>
    %cst_139 = arith.constant 5.000000e+00 : f32
    %375 = vector.broadcast %cst_139 : f32 to vector<8x128xf32>
    %376 = arith.subf %259, %375 : vector<8x128xf32>
    %377 = arith.mulf %376, %301 : vector<8x128xf32>
    %cst_140 = arith.constant 8.000000e+00 : f32
    %378 = vector.broadcast %cst_140 : f32 to vector<8x128xf32>
    %379 = arith.subf %378, %259 : vector<8x128xf32>
    %380 = arith.mulf %379, %308 : vector<8x128xf32>
    %381 = arith.addf %377, %380 : vector<8x128xf32>
    %cst_141 = arith.constant 5.000000e-01 : f32
    %382 = vector.broadcast %cst_141 : f32 to vector<8x128xf32>
    %383 = arith.mulf %381, %382 : vector<8x128xf32>
    %cst_142 = arith.constant 6.000000e+00 : f32
    %384 = vector.broadcast %cst_142 : f32 to vector<8x128xf32>
    %385 = arith.subf %259, %384 : vector<8x128xf32>
    %386 = arith.mulf %385, %308 : vector<8x128xf32>
    %cst_143 = arith.constant 9.000000e+00 : f32
    %387 = vector.broadcast %cst_143 : f32 to vector<8x128xf32>
    %388 = arith.subf %387, %259 : vector<8x128xf32>
    %389 = arith.mulf %388, %315 : vector<8x128xf32>
    %390 = arith.addf %386, %389 : vector<8x128xf32>
    %cst_144 = arith.constant 5.000000e-01 : f32
    %391 = vector.broadcast %cst_144 : f32 to vector<8x128xf32>
    %392 = arith.mulf %390, %391 : vector<8x128xf32>
    %cst_145 = arith.constant 7.000000e+00 : f32
    %393 = vector.broadcast %cst_145 : f32 to vector<8x128xf32>
    %394 = arith.subf %259, %393 : vector<8x128xf32>
    %395 = arith.mulf %394, %315 : vector<8x128xf32>
    %cst_146 = arith.constant 1.000000e+01 : f32
    %396 = vector.broadcast %cst_146 : f32 to vector<8x128xf32>
    %397 = arith.subf %396, %259 : vector<8x128xf32>
    %398 = arith.mulf %397, %322 : vector<8x128xf32>
    %399 = arith.addf %395, %398 : vector<8x128xf32>
    %cst_147 = arith.constant 5.000000e-01 : f32
    %400 = vector.broadcast %cst_147 : f32 to vector<8x128xf32>
    %401 = arith.mulf %399, %400 : vector<8x128xf32>
    %cst_148 = arith.constant 8.000000e+00 : f32
    %402 = vector.broadcast %cst_148 : f32 to vector<8x128xf32>
    %403 = arith.subf %259, %402 : vector<8x128xf32>
    %404 = arith.mulf %403, %322 : vector<8x128xf32>
    %cst_149 = arith.constant 1.100000e+01 : f32
    %405 = vector.broadcast %cst_149 : f32 to vector<8x128xf32>
    %406 = arith.subf %405, %259 : vector<8x128xf32>
    %407 = arith.mulf %406, %329 : vector<8x128xf32>
    %408 = arith.addf %404, %407 : vector<8x128xf32>
    %cst_150 = arith.constant 5.000000e-01 : f32
    %409 = vector.broadcast %cst_150 : f32 to vector<8x128xf32>
    %410 = arith.mulf %408, %409 : vector<8x128xf32>
    %cst_151 = arith.constant 0.000000e+00 : f32
    %411 = vector.broadcast %cst_151 : f32 to vector<8x128xf32>
    %412 = arith.subf %259, %411 : vector<8x128xf32>
    %413 = arith.mulf %412, %338 : vector<8x128xf32>
    %cst_152 = arith.constant 4.000000e+00 : f32
    %414 = vector.broadcast %cst_152 : f32 to vector<8x128xf32>
    %415 = arith.subf %414, %259 : vector<8x128xf32>
    %416 = arith.mulf %415, %347 : vector<8x128xf32>
    %417 = arith.addf %413, %416 : vector<8x128xf32>
    %cst_153 = arith.constant 0.333333343 : f32
    %418 = vector.broadcast %cst_153 : f32 to vector<8x128xf32>
    %419 = arith.mulf %417, %418 : vector<8x128xf32>
    %cst_154 = arith.constant 1.000000e+00 : f32
    %420 = vector.broadcast %cst_154 : f32 to vector<8x128xf32>
    %421 = arith.subf %259, %420 : vector<8x128xf32>
    %422 = arith.mulf %421, %347 : vector<8x128xf32>
    %cst_155 = arith.constant 5.000000e+00 : f32
    %423 = vector.broadcast %cst_155 : f32 to vector<8x128xf32>
    %424 = arith.subf %423, %259 : vector<8x128xf32>
    %425 = arith.mulf %424, %356 : vector<8x128xf32>
    %426 = arith.addf %422, %425 : vector<8x128xf32>
    %cst_156 = arith.constant 0.333333343 : f32
    %427 = vector.broadcast %cst_156 : f32 to vector<8x128xf32>
    %428 = arith.mulf %426, %427 : vector<8x128xf32>
    %cst_157 = arith.constant 2.000000e+00 : f32
    %429 = vector.broadcast %cst_157 : f32 to vector<8x128xf32>
    %430 = arith.subf %259, %429 : vector<8x128xf32>
    %431 = arith.mulf %430, %356 : vector<8x128xf32>
    %cst_158 = arith.constant 6.000000e+00 : f32
    %432 = vector.broadcast %cst_158 : f32 to vector<8x128xf32>
    %433 = arith.subf %432, %259 : vector<8x128xf32>
    %434 = arith.mulf %433, %365 : vector<8x128xf32>
    %435 = arith.addf %431, %434 : vector<8x128xf32>
    %cst_159 = arith.constant 0.333333343 : f32
    %436 = vector.broadcast %cst_159 : f32 to vector<8x128xf32>
    %437 = arith.mulf %435, %436 : vector<8x128xf32>
    %cst_160 = arith.constant 3.000000e+00 : f32
    %438 = vector.broadcast %cst_160 : f32 to vector<8x128xf32>
    %439 = arith.subf %259, %438 : vector<8x128xf32>
    %440 = arith.mulf %439, %365 : vector<8x128xf32>
    %cst_161 = arith.constant 7.000000e+00 : f32
    %441 = vector.broadcast %cst_161 : f32 to vector<8x128xf32>
    %442 = arith.subf %441, %259 : vector<8x128xf32>
    %443 = arith.mulf %442, %374 : vector<8x128xf32>
    %444 = arith.addf %440, %443 : vector<8x128xf32>
    %cst_162 = arith.constant 0.333333343 : f32
    %445 = vector.broadcast %cst_162 : f32 to vector<8x128xf32>
    %446 = arith.mulf %444, %445 : vector<8x128xf32>
    %cst_163 = arith.constant 4.000000e+00 : f32
    %447 = vector.broadcast %cst_163 : f32 to vector<8x128xf32>
    %448 = arith.subf %259, %447 : vector<8x128xf32>
    %449 = arith.mulf %448, %374 : vector<8x128xf32>
    %cst_164 = arith.constant 8.000000e+00 : f32
    %450 = vector.broadcast %cst_164 : f32 to vector<8x128xf32>
    %451 = arith.subf %450, %259 : vector<8x128xf32>
    %452 = arith.mulf %451, %383 : vector<8x128xf32>
    %453 = arith.addf %449, %452 : vector<8x128xf32>
    %cst_165 = arith.constant 0.333333343 : f32
    %454 = vector.broadcast %cst_165 : f32 to vector<8x128xf32>
    %455 = arith.mulf %453, %454 : vector<8x128xf32>
    %cst_166 = arith.constant 5.000000e+00 : f32
    %456 = vector.broadcast %cst_166 : f32 to vector<8x128xf32>
    %457 = arith.subf %259, %456 : vector<8x128xf32>
    %458 = arith.mulf %457, %383 : vector<8x128xf32>
    %cst_167 = arith.constant 9.000000e+00 : f32
    %459 = vector.broadcast %cst_167 : f32 to vector<8x128xf32>
    %460 = arith.subf %459, %259 : vector<8x128xf32>
    %461 = arith.mulf %460, %392 : vector<8x128xf32>
    %462 = arith.addf %458, %461 : vector<8x128xf32>
    %cst_168 = arith.constant 0.333333343 : f32
    %463 = vector.broadcast %cst_168 : f32 to vector<8x128xf32>
    %464 = arith.mulf %462, %463 : vector<8x128xf32>
    %cst_169 = arith.constant 6.000000e+00 : f32
    %465 = vector.broadcast %cst_169 : f32 to vector<8x128xf32>
    %466 = arith.subf %259, %465 : vector<8x128xf32>
    %467 = arith.mulf %466, %392 : vector<8x128xf32>
    %cst_170 = arith.constant 1.000000e+01 : f32
    %468 = vector.broadcast %cst_170 : f32 to vector<8x128xf32>
    %469 = arith.subf %468, %259 : vector<8x128xf32>
    %470 = arith.mulf %469, %401 : vector<8x128xf32>
    %471 = arith.addf %467, %470 : vector<8x128xf32>
    %cst_171 = arith.constant 0.333333343 : f32
    %472 = vector.broadcast %cst_171 : f32 to vector<8x128xf32>
    %473 = arith.mulf %471, %472 : vector<8x128xf32>
    %cst_172 = arith.constant 7.000000e+00 : f32
    %474 = vector.broadcast %cst_172 : f32 to vector<8x128xf32>
    %475 = arith.subf %259, %474 : vector<8x128xf32>
    %476 = arith.mulf %475, %401 : vector<8x128xf32>
    %cst_173 = arith.constant 1.100000e+01 : f32
    %477 = vector.broadcast %cst_173 : f32 to vector<8x128xf32>
    %478 = arith.subf %477, %259 : vector<8x128xf32>
    %479 = arith.mulf %478, %410 : vector<8x128xf32>
    %480 = arith.addf %476, %479 : vector<8x128xf32>
    %cst_174 = arith.constant 0.333333343 : f32
    %481 = vector.broadcast %cst_174 : f32 to vector<8x128xf32>
    %482 = arith.mulf %480, %481 : vector<8x128xf32>
    %483 = arith.truncf %255 : vector<8x128xf32> to vector<8x128xbf16>
    %484 = arith.truncf %419 : vector<8x128xf32> to vector<8x128xbf16>
    %485 = arith.truncf %428 : vector<8x128xf32> to vector<8x128xbf16>
    %486 = arith.truncf %437 : vector<8x128xf32> to vector<8x128xbf16>
    %487 = arith.truncf %446 : vector<8x128xf32> to vector<8x128xbf16>
    %488 = arith.truncf %455 : vector<8x128xf32> to vector<8x128xbf16>
    %489 = arith.truncf %464 : vector<8x128xf32> to vector<8x128xbf16>
    %490 = arith.truncf %473 : vector<8x128xf32> to vector<8x128xbf16>
    %491 = arith.truncf %482 : vector<8x128xf32> to vector<8x128xbf16>
    %492 = tpu.concatenate %483, %484, %485, %486, %487, %488, %489, %490, %491 in 1 : vector<8x128xbf16>, vector<8x128xbf16>, vector<8x128xbf16>, vector<8x128xbf16>, vector<8x128xbf16>, vector<8x128xbf16>, vector<8x128xbf16>, vector<8x128xbf16>, vector<8x128xbf16> -> vector<8x1152xbf16>
    %c0_175 = arith.constant 0 : index
    %c0_176 = arith.constant 0 : index
    %493 = vector.load %arg3[%c0_175, %c0_176] : memref<1152x128xbf16, #tpu.memory_space<vmem>>, vector<1152x128xbf16>
    %cst_177 = arith.constant dense<0.000000e+00> : vector<8x128xf32>
    %494 = tpu.matmul %492, %493, %cst_177 {dimension_numbers = #tpu.dot_dimension_numbers<[1], [0], [0], [1], [0, 0, 1, 1], [], []>} : vector<8x1152xbf16>, vector<1152x128xbf16>, vector<8x128xf32> -> vector<8x128xf32>
    %cst_178 = arith.constant 5.000000e-01 : f32
    %495 = vector.broadcast %cst_178 : f32 to vector<8x128xf32>
    %496 = arith.mulf %495, %494 : vector<8x128xf32>
    %497 = math.tanh %496 : vector<8x128xf32>
    %cst_179 = arith.constant 5.000000e-01 : f32
    %498 = vector.broadcast %cst_179 : f32 to vector<8x128xf32>
    %499 = arith.mulf %498, %497 : vector<8x128xf32>
    %cst_180 = arith.constant 5.000000e-01 : f32
    %500 = vector.broadcast %cst_180 : f32 to vector<8x128xf32>
    %501 = arith.addf %499, %500 : vector<8x128xf32>
    %502 = arith.mulf %494, %501 : vector<8x128xf32>
    %cst_181 = arith.constant -2.200000e+00 : f32
    %503 = vector.broadcast %cst_181 : f32 to vector<8x128xf32>
    %504 = arith.subf %494, %503 : vector<8x128xf32>
    %cst_182 = arith.constant 2.500000e+00 : f32
    %505 = vector.broadcast %cst_182 : f32 to vector<8x128xf32>
    %506 = arith.mulf %504, %505 : vector<8x128xf32>
    %cst_183 = arith.constant 1.000000e+00 : f32
    %507 = vector.broadcast %cst_183 : f32 to vector<8x128xf32>
    %508 = arith.subf %506, %507 : vector<8x128xf32>
    %509 = math.absf %508 : vector<8x128xf32>
    %cst_184 = arith.constant 1.000000e+00 : f32
    %510 = vector.broadcast %cst_184 : f32 to vector<8x128xf32>
    %511 = arith.subf %510, %509 : vector<8x128xf32>
    %cst_185 = arith.constant 0.000000e+00 : f32
    %512 = vector.broadcast %cst_185 : f32 to vector<8x128xf32>
    %513 = arith.maximumf %512, %511 : vector<8x128xf32>
    %cst_186 = arith.constant 2.000000e+00 : f32
    %514 = vector.broadcast %cst_186 : f32 to vector<8x128xf32>
    %515 = arith.subf %506, %514 : vector<8x128xf32>
    %516 = math.absf %515 : vector<8x128xf32>
    %cst_187 = arith.constant 1.000000e+00 : f32
    %517 = vector.broadcast %cst_187 : f32 to vector<8x128xf32>
    %518 = arith.subf %517, %516 : vector<8x128xf32>
    %cst_188 = arith.constant 0.000000e+00 : f32
    %519 = vector.broadcast %cst_188 : f32 to vector<8x128xf32>
    %520 = arith.maximumf %519, %518 : vector<8x128xf32>
    %cst_189 = arith.constant 3.000000e+00 : f32
    %521 = vector.broadcast %cst_189 : f32 to vector<8x128xf32>
    %522 = arith.subf %506, %521 : vector<8x128xf32>
    %523 = math.absf %522 : vector<8x128xf32>
    %cst_190 = arith.constant 1.000000e+00 : f32
    %524 = vector.broadcast %cst_190 : f32 to vector<8x128xf32>
    %525 = arith.subf %524, %523 : vector<8x128xf32>
    %cst_191 = arith.constant 0.000000e+00 : f32
    %526 = vector.broadcast %cst_191 : f32 to vector<8x128xf32>
    %527 = arith.maximumf %526, %525 : vector<8x128xf32>
    %cst_192 = arith.constant 4.000000e+00 : f32
    %528 = vector.broadcast %cst_192 : f32 to vector<8x128xf32>
    %529 = arith.subf %506, %528 : vector<8x128xf32>
    %530 = math.absf %529 : vector<8x128xf32>
    %cst_193 = arith.constant 1.000000e+00 : f32
    %531 = vector.broadcast %cst_193 : f32 to vector<8x128xf32>
    %532 = arith.subf %531, %530 : vector<8x128xf32>
    %cst_194 = arith.constant 0.000000e+00 : f32
    %533 = vector.broadcast %cst_194 : f32 to vector<8x128xf32>
    %534 = arith.maximumf %533, %532 : vector<8x128xf32>
    %cst_195 = arith.constant 5.000000e+00 : f32
    %535 = vector.broadcast %cst_195 : f32 to vector<8x128xf32>
    %536 = arith.subf %506, %535 : vector<8x128xf32>
    %537 = math.absf %536 : vector<8x128xf32>
    %cst_196 = arith.constant 1.000000e+00 : f32
    %538 = vector.broadcast %cst_196 : f32 to vector<8x128xf32>
    %539 = arith.subf %538, %537 : vector<8x128xf32>
    %cst_197 = arith.constant 0.000000e+00 : f32
    %540 = vector.broadcast %cst_197 : f32 to vector<8x128xf32>
    %541 = arith.maximumf %540, %539 : vector<8x128xf32>
    %cst_198 = arith.constant 6.000000e+00 : f32
    %542 = vector.broadcast %cst_198 : f32 to vector<8x128xf32>
    %543 = arith.subf %506, %542 : vector<8x128xf32>
    %544 = math.absf %543 : vector<8x128xf32>
    %cst_199 = arith.constant 1.000000e+00 : f32
    %545 = vector.broadcast %cst_199 : f32 to vector<8x128xf32>
    %546 = arith.subf %545, %544 : vector<8x128xf32>
    %cst_200 = arith.constant 0.000000e+00 : f32
    %547 = vector.broadcast %cst_200 : f32 to vector<8x128xf32>
    %548 = arith.maximumf %547, %546 : vector<8x128xf32>
    %cst_201 = arith.constant 7.000000e+00 : f32
    %549 = vector.broadcast %cst_201 : f32 to vector<8x128xf32>
    %550 = arith.subf %506, %549 : vector<8x128xf32>
    %551 = math.absf %550 : vector<8x128xf32>
    %cst_202 = arith.constant 1.000000e+00 : f32
    %552 = vector.broadcast %cst_202 : f32 to vector<8x128xf32>
    %553 = arith.subf %552, %551 : vector<8x128xf32>
    %cst_203 = arith.constant 0.000000e+00 : f32
    %554 = vector.broadcast %cst_203 : f32 to vector<8x128xf32>
    %555 = arith.maximumf %554, %553 : vector<8x128xf32>
    %cst_204 = arith.constant 8.000000e+00 : f32
    %556 = vector.broadcast %cst_204 : f32 to vector<8x128xf32>
    %557 = arith.subf %506, %556 : vector<8x128xf32>
    %558 = math.absf %557 : vector<8x128xf32>
    %cst_205 = arith.constant 1.000000e+00 : f32
    %559 = vector.broadcast %cst_205 : f32 to vector<8x128xf32>
    %560 = arith.subf %559, %558 : vector<8x128xf32>
    %cst_206 = arith.constant 0.000000e+00 : f32
    %561 = vector.broadcast %cst_206 : f32 to vector<8x128xf32>
    %562 = arith.maximumf %561, %560 : vector<8x128xf32>
    %cst_207 = arith.constant 9.000000e+00 : f32
    %563 = vector.broadcast %cst_207 : f32 to vector<8x128xf32>
    %564 = arith.subf %506, %563 : vector<8x128xf32>
    %565 = math.absf %564 : vector<8x128xf32>
    %cst_208 = arith.constant 1.000000e+00 : f32
    %566 = vector.broadcast %cst_208 : f32 to vector<8x128xf32>
    %567 = arith.subf %566, %565 : vector<8x128xf32>
    %cst_209 = arith.constant 0.000000e+00 : f32
    %568 = vector.broadcast %cst_209 : f32 to vector<8x128xf32>
    %569 = arith.maximumf %568, %567 : vector<8x128xf32>
    %cst_210 = arith.constant 1.000000e+01 : f32
    %570 = vector.broadcast %cst_210 : f32 to vector<8x128xf32>
    %571 = arith.subf %506, %570 : vector<8x128xf32>
    %572 = math.absf %571 : vector<8x128xf32>
    %cst_211 = arith.constant 1.000000e+00 : f32
    %573 = vector.broadcast %cst_211 : f32 to vector<8x128xf32>
    %574 = arith.subf %573, %572 : vector<8x128xf32>
    %cst_212 = arith.constant 0.000000e+00 : f32
    %575 = vector.broadcast %cst_212 : f32 to vector<8x128xf32>
    %576 = arith.maximumf %575, %574 : vector<8x128xf32>
    %cst_213 = arith.constant 0.000000e+00 : f32
    %577 = vector.broadcast %cst_213 : f32 to vector<8x128xf32>
    %578 = arith.subf %506, %577 : vector<8x128xf32>
    %579 = arith.mulf %578, %513 : vector<8x128xf32>
    %cst_214 = arith.constant 3.000000e+00 : f32
    %580 = vector.broadcast %cst_214 : f32 to vector<8x128xf32>
    %581 = arith.subf %580, %506 : vector<8x128xf32>
    %582 = arith.mulf %581, %520 : vector<8x128xf32>
    %583 = arith.addf %579, %582 : vector<8x128xf32>
    %cst_215 = arith.constant 5.000000e-01 : f32
    %584 = vector.broadcast %cst_215 : f32 to vector<8x128xf32>
    %585 = arith.mulf %583, %584 : vector<8x128xf32>
    %cst_216 = arith.constant 1.000000e+00 : f32
    %586 = vector.broadcast %cst_216 : f32 to vector<8x128xf32>
    %587 = arith.subf %506, %586 : vector<8x128xf32>
    %588 = arith.mulf %587, %520 : vector<8x128xf32>
    %cst_217 = arith.constant 4.000000e+00 : f32
    %589 = vector.broadcast %cst_217 : f32 to vector<8x128xf32>
    %590 = arith.subf %589, %506 : vector<8x128xf32>
    %591 = arith.mulf %590, %527 : vector<8x128xf32>
    %592 = arith.addf %588, %591 : vector<8x128xf32>
    %cst_218 = arith.constant 5.000000e-01 : f32
    %593 = vector.broadcast %cst_218 : f32 to vector<8x128xf32>
    %594 = arith.mulf %592, %593 : vector<8x128xf32>
    %cst_219 = arith.constant 2.000000e+00 : f32
    %595 = vector.broadcast %cst_219 : f32 to vector<8x128xf32>
    %596 = arith.subf %506, %595 : vector<8x128xf32>
    %597 = arith.mulf %596, %527 : vector<8x128xf32>
    %cst_220 = arith.constant 5.000000e+00 : f32
    %598 = vector.broadcast %cst_220 : f32 to vector<8x128xf32>
    %599 = arith.subf %598, %506 : vector<8x128xf32>
    %600 = arith.mulf %599, %534 : vector<8x128xf32>
    %601 = arith.addf %597, %600 : vector<8x128xf32>
    %cst_221 = arith.constant 5.000000e-01 : f32
    %602 = vector.broadcast %cst_221 : f32 to vector<8x128xf32>
    %603 = arith.mulf %601, %602 : vector<8x128xf32>
    %cst_222 = arith.constant 3.000000e+00 : f32
    %604 = vector.broadcast %cst_222 : f32 to vector<8x128xf32>
    %605 = arith.subf %506, %604 : vector<8x128xf32>
    %606 = arith.mulf %605, %534 : vector<8x128xf32>
    %cst_223 = arith.constant 6.000000e+00 : f32
    %607 = vector.broadcast %cst_223 : f32 to vector<8x128xf32>
    %608 = arith.subf %607, %506 : vector<8x128xf32>
    %609 = arith.mulf %608, %541 : vector<8x128xf32>
    %610 = arith.addf %606, %609 : vector<8x128xf32>
    %cst_224 = arith.constant 5.000000e-01 : f32
    %611 = vector.broadcast %cst_224 : f32 to vector<8x128xf32>
    %612 = arith.mulf %610, %611 : vector<8x128xf32>
    %cst_225 = arith.constant 4.000000e+00 : f32
    %613 = vector.broadcast %cst_225 : f32 to vector<8x128xf32>
    %614 = arith.subf %506, %613 : vector<8x128xf32>
    %615 = arith.mulf %614, %541 : vector<8x128xf32>
    %cst_226 = arith.constant 7.000000e+00 : f32
    %616 = vector.broadcast %cst_226 : f32 to vector<8x128xf32>
    %617 = arith.subf %616, %506 : vector<8x128xf32>
    %618 = arith.mulf %617, %548 : vector<8x128xf32>
    %619 = arith.addf %615, %618 : vector<8x128xf32>
    %cst_227 = arith.constant 5.000000e-01 : f32
    %620 = vector.broadcast %cst_227 : f32 to vector<8x128xf32>
    %621 = arith.mulf %619, %620 : vector<8x128xf32>
    %cst_228 = arith.constant 5.000000e+00 : f32
    %622 = vector.broadcast %cst_228 : f32 to vector<8x128xf32>
    %623 = arith.subf %506, %622 : vector<8x128xf32>
    %624 = arith.mulf %623, %548 : vector<8x128xf32>
    %cst_229 = arith.constant 8.000000e+00 : f32
    %625 = vector.broadcast %cst_229 : f32 to vector<8x128xf32>
    %626 = arith.subf %625, %506 : vector<8x128xf32>
    %627 = arith.mulf %626, %555 : vector<8x128xf32>
    %628 = arith.addf %624, %627 : vector<8x128xf32>
    %cst_230 = arith.constant 5.000000e-01 : f32
    %629 = vector.broadcast %cst_230 : f32 to vector<8x128xf32>
    %630 = arith.mulf %628, %629 : vector<8x128xf32>
    %cst_231 = arith.constant 6.000000e+00 : f32
    %631 = vector.broadcast %cst_231 : f32 to vector<8x128xf32>
    %632 = arith.subf %506, %631 : vector<8x128xf32>
    %633 = arith.mulf %632, %555 : vector<8x128xf32>
    %cst_232 = arith.constant 9.000000e+00 : f32
    %634 = vector.broadcast %cst_232 : f32 to vector<8x128xf32>
    %635 = arith.subf %634, %506 : vector<8x128xf32>
    %636 = arith.mulf %635, %562 : vector<8x128xf32>
    %637 = arith.addf %633, %636 : vector<8x128xf32>
    %cst_233 = arith.constant 5.000000e-01 : f32
    %638 = vector.broadcast %cst_233 : f32 to vector<8x128xf32>
    %639 = arith.mulf %637, %638 : vector<8x128xf32>
    %cst_234 = arith.constant 7.000000e+00 : f32
    %640 = vector.broadcast %cst_234 : f32 to vector<8x128xf32>
    %641 = arith.subf %506, %640 : vector<8x128xf32>
    %642 = arith.mulf %641, %562 : vector<8x128xf32>
    %cst_235 = arith.constant 1.000000e+01 : f32
    %643 = vector.broadcast %cst_235 : f32 to vector<8x128xf32>
    %644 = arith.subf %643, %506 : vector<8x128xf32>
    %645 = arith.mulf %644, %569 : vector<8x128xf32>
    %646 = arith.addf %642, %645 : vector<8x128xf32>
    %cst_236 = arith.constant 5.000000e-01 : f32
    %647 = vector.broadcast %cst_236 : f32 to vector<8x128xf32>
    %648 = arith.mulf %646, %647 : vector<8x128xf32>
    %cst_237 = arith.constant 8.000000e+00 : f32
    %649 = vector.broadcast %cst_237 : f32 to vector<8x128xf32>
    %650 = arith.subf %506, %649 : vector<8x128xf32>
    %651 = arith.mulf %650, %569 : vector<8x128xf32>
    %cst_238 = arith.constant 1.100000e+01 : f32
    %652 = vector.broadcast %cst_238 : f32 to vector<8x128xf32>
    %653 = arith.subf %652, %506 : vector<8x128xf32>
    %654 = arith.mulf %653, %576 : vector<8x128xf32>
    %655 = arith.addf %651, %654 : vector<8x128xf32>
    %cst_239 = arith.constant 5.000000e-01 : f32
    %656 = vector.broadcast %cst_239 : f32 to vector<8x128xf32>
    %657 = arith.mulf %655, %656 : vector<8x128xf32>
    %cst_240 = arith.constant 0.000000e+00 : f32
    %658 = vector.broadcast %cst_240 : f32 to vector<8x128xf32>
    %659 = arith.subf %506, %658 : vector<8x128xf32>
    %660 = arith.mulf %659, %585 : vector<8x128xf32>
    %cst_241 = arith.constant 4.000000e+00 : f32
    %661 = vector.broadcast %cst_241 : f32 to vector<8x128xf32>
    %662 = arith.subf %661, %506 : vector<8x128xf32>
    %663 = arith.mulf %662, %594 : vector<8x128xf32>
    %664 = arith.addf %660, %663 : vector<8x128xf32>
    %cst_242 = arith.constant 0.333333343 : f32
    %665 = vector.broadcast %cst_242 : f32 to vector<8x128xf32>
    %666 = arith.mulf %664, %665 : vector<8x128xf32>
    %cst_243 = arith.constant 1.000000e+00 : f32
    %667 = vector.broadcast %cst_243 : f32 to vector<8x128xf32>
    %668 = arith.subf %506, %667 : vector<8x128xf32>
    %669 = arith.mulf %668, %594 : vector<8x128xf32>
    %cst_244 = arith.constant 5.000000e+00 : f32
    %670 = vector.broadcast %cst_244 : f32 to vector<8x128xf32>
    %671 = arith.subf %670, %506 : vector<8x128xf32>
    %672 = arith.mulf %671, %603 : vector<8x128xf32>
    %673 = arith.addf %669, %672 : vector<8x128xf32>
    %cst_245 = arith.constant 0.333333343 : f32
    %674 = vector.broadcast %cst_245 : f32 to vector<8x128xf32>
    %675 = arith.mulf %673, %674 : vector<8x128xf32>
    %cst_246 = arith.constant 2.000000e+00 : f32
    %676 = vector.broadcast %cst_246 : f32 to vector<8x128xf32>
    %677 = arith.subf %506, %676 : vector<8x128xf32>
    %678 = arith.mulf %677, %603 : vector<8x128xf32>
    %cst_247 = arith.constant 6.000000e+00 : f32
    %679 = vector.broadcast %cst_247 : f32 to vector<8x128xf32>
    %680 = arith.subf %679, %506 : vector<8x128xf32>
    %681 = arith.mulf %680, %612 : vector<8x128xf32>
    %682 = arith.addf %678, %681 : vector<8x128xf32>
    %cst_248 = arith.constant 0.333333343 : f32
    %683 = vector.broadcast %cst_248 : f32 to vector<8x128xf32>
    %684 = arith.mulf %682, %683 : vector<8x128xf32>
    %cst_249 = arith.constant 3.000000e+00 : f32
    %685 = vector.broadcast %cst_249 : f32 to vector<8x128xf32>
    %686 = arith.subf %506, %685 : vector<8x128xf32>
    %687 = arith.mulf %686, %612 : vector<8x128xf32>
    %cst_250 = arith.constant 7.000000e+00 : f32
    %688 = vector.broadcast %cst_250 : f32 to vector<8x128xf32>
    %689 = arith.subf %688, %506 : vector<8x128xf32>
    %690 = arith.mulf %689, %621 : vector<8x128xf32>
    %691 = arith.addf %687, %690 : vector<8x128xf32>
    %cst_251 = arith.constant 0.333333343 : f32
    %692 = vector.broadcast %cst_251 : f32 to vector<8x128xf32>
    %693 = arith.mulf %691, %692 : vector<8x128xf32>
    %cst_252 = arith.constant 4.000000e+00 : f32
    %694 = vector.broadcast %cst_252 : f32 to vector<8x128xf32>
    %695 = arith.subf %506, %694 : vector<8x128xf32>
    %696 = arith.mulf %695, %621 : vector<8x128xf32>
    %cst_253 = arith.constant 8.000000e+00 : f32
    %697 = vector.broadcast %cst_253 : f32 to vector<8x128xf32>
    %698 = arith.subf %697, %506 : vector<8x128xf32>
    %699 = arith.mulf %698, %630 : vector<8x128xf32>
    %700 = arith.addf %696, %699 : vector<8x128xf32>
    %cst_254 = arith.constant 0.333333343 : f32
    %701 = vector.broadcast %cst_254 : f32 to vector<8x128xf32>
    %702 = arith.mulf %700, %701 : vector<8x128xf32>
    %cst_255 = arith.constant 5.000000e+00 : f32
    %703 = vector.broadcast %cst_255 : f32 to vector<8x128xf32>
    %704 = arith.subf %506, %703 : vector<8x128xf32>
    %705 = arith.mulf %704, %630 : vector<8x128xf32>
    %cst_256 = arith.constant 9.000000e+00 : f32
    %706 = vector.broadcast %cst_256 : f32 to vector<8x128xf32>
    %707 = arith.subf %706, %506 : vector<8x128xf32>
    %708 = arith.mulf %707, %639 : vector<8x128xf32>
    %709 = arith.addf %705, %708 : vector<8x128xf32>
    %cst_257 = arith.constant 0.333333343 : f32
    %710 = vector.broadcast %cst_257 : f32 to vector<8x128xf32>
    %711 = arith.mulf %709, %710 : vector<8x128xf32>
    %cst_258 = arith.constant 6.000000e+00 : f32
    %712 = vector.broadcast %cst_258 : f32 to vector<8x128xf32>
    %713 = arith.subf %506, %712 : vector<8x128xf32>
    %714 = arith.mulf %713, %639 : vector<8x128xf32>
    %cst_259 = arith.constant 1.000000e+01 : f32
    %715 = vector.broadcast %cst_259 : f32 to vector<8x128xf32>
    %716 = arith.subf %715, %506 : vector<8x128xf32>
    %717 = arith.mulf %716, %648 : vector<8x128xf32>
    %718 = arith.addf %714, %717 : vector<8x128xf32>
    %cst_260 = arith.constant 0.333333343 : f32
    %719 = vector.broadcast %cst_260 : f32 to vector<8x128xf32>
    %720 = arith.mulf %718, %719 : vector<8x128xf32>
    %cst_261 = arith.constant 7.000000e+00 : f32
    %721 = vector.broadcast %cst_261 : f32 to vector<8x128xf32>
    %722 = arith.subf %506, %721 : vector<8x128xf32>
    %723 = arith.mulf %722, %648 : vector<8x128xf32>
    %cst_262 = arith.constant 1.100000e+01 : f32
    %724 = vector.broadcast %cst_262 : f32 to vector<8x128xf32>
    %725 = arith.subf %724, %506 : vector<8x128xf32>
    %726 = arith.mulf %725, %657 : vector<8x128xf32>
    %727 = arith.addf %723, %726 : vector<8x128xf32>
    %cst_263 = arith.constant 0.333333343 : f32
    %728 = vector.broadcast %cst_263 : f32 to vector<8x128xf32>
    %729 = arith.mulf %727, %728 : vector<8x128xf32>
    %730 = arith.truncf %502 : vector<8x128xf32> to vector<8x128xbf16>
    %731 = arith.truncf %666 : vector<8x128xf32> to vector<8x128xbf16>
    %732 = arith.truncf %675 : vector<8x128xf32> to vector<8x128xbf16>
    %733 = arith.truncf %684 : vector<8x128xf32> to vector<8x128xbf16>
    %734 = arith.truncf %693 : vector<8x128xf32> to vector<8x128xbf16>
    %735 = arith.truncf %702 : vector<8x128xf32> to vector<8x128xbf16>
    %736 = arith.truncf %711 : vector<8x128xf32> to vector<8x128xbf16>
    %737 = arith.truncf %720 : vector<8x128xf32> to vector<8x128xbf16>
    %738 = arith.truncf %729 : vector<8x128xf32> to vector<8x128xbf16>
    %739 = tpu.concatenate %730, %731, %732, %733, %734, %735, %736, %737, %738 in 1 : vector<8x128xbf16>, vector<8x128xbf16>, vector<8x128xbf16>, vector<8x128xbf16>, vector<8x128xbf16>, vector<8x128xbf16>, vector<8x128xbf16>, vector<8x128xbf16>, vector<8x128xbf16> -> vector<8x1152xbf16>
    %c0_264 = arith.constant 0 : index
    %c0_265 = arith.constant 0 : index
    %740 = vector.load %arg4[%c0_264, %c0_265] : memref<1152x128xbf16, #tpu.memory_space<vmem>>, vector<1152x128xbf16>
    %cst_266 = arith.constant dense<0.000000e+00> : vector<8x128xf32>
    %741 = tpu.matmul %739, %740, %cst_266 {dimension_numbers = #tpu.dot_dimension_numbers<[1], [0], [0], [1], [0, 0, 1, 1], [], []>} : vector<8x1152xbf16>, vector<1152x128xbf16>, vector<8x128xf32> -> vector<8x128xf32>
    %cst_267 = arith.constant 5.000000e-01 : f32
    %742 = vector.broadcast %cst_267 : f32 to vector<8x128xf32>
    %743 = arith.mulf %742, %741 : vector<8x128xf32>
    %744 = math.tanh %743 : vector<8x128xf32>
    %cst_268 = arith.constant 5.000000e-01 : f32
    %745 = vector.broadcast %cst_268 : f32 to vector<8x128xf32>
    %746 = arith.mulf %745, %744 : vector<8x128xf32>
    %cst_269 = arith.constant 5.000000e-01 : f32
    %747 = vector.broadcast %cst_269 : f32 to vector<8x128xf32>
    %748 = arith.addf %746, %747 : vector<8x128xf32>
    %749 = arith.mulf %741, %748 : vector<8x128xf32>
    %cst_270 = arith.constant -2.200000e+00 : f32
    %750 = vector.broadcast %cst_270 : f32 to vector<8x128xf32>
    %751 = arith.subf %741, %750 : vector<8x128xf32>
    %cst_271 = arith.constant 2.500000e+00 : f32
    %752 = vector.broadcast %cst_271 : f32 to vector<8x128xf32>
    %753 = arith.mulf %751, %752 : vector<8x128xf32>
    %cst_272 = arith.constant 1.000000e+00 : f32
    %754 = vector.broadcast %cst_272 : f32 to vector<8x128xf32>
    %755 = arith.subf %753, %754 : vector<8x128xf32>
    %756 = math.absf %755 : vector<8x128xf32>
    %cst_273 = arith.constant 1.000000e+00 : f32
    %757 = vector.broadcast %cst_273 : f32 to vector<8x128xf32>
    %758 = arith.subf %757, %756 : vector<8x128xf32>
    %cst_274 = arith.constant 0.000000e+00 : f32
    %759 = vector.broadcast %cst_274 : f32 to vector<8x128xf32>
    %760 = arith.maximumf %759, %758 : vector<8x128xf32>
    %cst_275 = arith.constant 2.000000e+00 : f32
    %761 = vector.broadcast %cst_275 : f32 to vector<8x128xf32>
    %762 = arith.subf %753, %761 : vector<8x128xf32>
    %763 = math.absf %762 : vector<8x128xf32>
    %cst_276 = arith.constant 1.000000e+00 : f32
    %764 = vector.broadcast %cst_276 : f32 to vector<8x128xf32>
    %765 = arith.subf %764, %763 : vector<8x128xf32>
    %cst_277 = arith.constant 0.000000e+00 : f32
    %766 = vector.broadcast %cst_277 : f32 to vector<8x128xf32>
    %767 = arith.maximumf %766, %765 : vector<8x128xf32>
    %cst_278 = arith.constant 3.000000e+00 : f32
    %768 = vector.broadcast %cst_278 : f32 to vector<8x128xf32>
    %769 = arith.subf %753, %768 : vector<8x128xf32>
    %770 = math.absf %769 : vector<8x128xf32>
    %cst_279 = arith.constant 1.000000e+00 : f32
    %771 = vector.broadcast %cst_279 : f32 to vector<8x128xf32>
    %772 = arith.subf %771, %770 : vector<8x128xf32>
    %cst_280 = arith.constant 0.000000e+00 : f32
    %773 = vector.broadcast %cst_280 : f32 to vector<8x128xf32>
    %774 = arith.maximumf %773, %772 : vector<8x128xf32>
    %cst_281 = arith.constant 4.000000e+00 : f32
    %775 = vector.broadcast %cst_281 : f32 to vector<8x128xf32>
    %776 = arith.subf %753, %775 : vector<8x128xf32>
    %777 = math.absf %776 : vector<8x128xf32>
    %cst_282 = arith.constant 1.000000e+00 : f32
    %778 = vector.broadcast %cst_282 : f32 to vector<8x128xf32>
    %779 = arith.subf %778, %777 : vector<8x128xf32>
    %cst_283 = arith.constant 0.000000e+00 : f32
    %780 = vector.broadcast %cst_283 : f32 to vector<8x128xf32>
    %781 = arith.maximumf %780, %779 : vector<8x128xf32>
    %cst_284 = arith.constant 5.000000e+00 : f32
    %782 = vector.broadcast %cst_284 : f32 to vector<8x128xf32>
    %783 = arith.subf %753, %782 : vector<8x128xf32>
    %784 = math.absf %783 : vector<8x128xf32>
    %cst_285 = arith.constant 1.000000e+00 : f32
    %785 = vector.broadcast %cst_285 : f32 to vector<8x128xf32>
    %786 = arith.subf %785, %784 : vector<8x128xf32>
    %cst_286 = arith.constant 0.000000e+00 : f32
    %787 = vector.broadcast %cst_286 : f32 to vector<8x128xf32>
    %788 = arith.maximumf %787, %786 : vector<8x128xf32>
    %cst_287 = arith.constant 6.000000e+00 : f32
    %789 = vector.broadcast %cst_287 : f32 to vector<8x128xf32>
    %790 = arith.subf %753, %789 : vector<8x128xf32>
    %791 = math.absf %790 : vector<8x128xf32>
    %cst_288 = arith.constant 1.000000e+00 : f32
    %792 = vector.broadcast %cst_288 : f32 to vector<8x128xf32>
    %793 = arith.subf %792, %791 : vector<8x128xf32>
    %cst_289 = arith.constant 0.000000e+00 : f32
    %794 = vector.broadcast %cst_289 : f32 to vector<8x128xf32>
    %795 = arith.maximumf %794, %793 : vector<8x128xf32>
    %cst_290 = arith.constant 7.000000e+00 : f32
    %796 = vector.broadcast %cst_290 : f32 to vector<8x128xf32>
    %797 = arith.subf %753, %796 : vector<8x128xf32>
    %798 = math.absf %797 : vector<8x128xf32>
    %cst_291 = arith.constant 1.000000e+00 : f32
    %799 = vector.broadcast %cst_291 : f32 to vector<8x128xf32>
    %800 = arith.subf %799, %798 : vector<8x128xf32>
    %cst_292 = arith.constant 0.000000e+00 : f32
    %801 = vector.broadcast %cst_292 : f32 to vector<8x128xf32>
    %802 = arith.maximumf %801, %800 : vector<8x128xf32>
    %cst_293 = arith.constant 8.000000e+00 : f32
    %803 = vector.broadcast %cst_293 : f32 to vector<8x128xf32>
    %804 = arith.subf %753, %803 : vector<8x128xf32>
    %805 = math.absf %804 : vector<8x128xf32>
    %cst_294 = arith.constant 1.000000e+00 : f32
    %806 = vector.broadcast %cst_294 : f32 to vector<8x128xf32>
    %807 = arith.subf %806, %805 : vector<8x128xf32>
    %cst_295 = arith.constant 0.000000e+00 : f32
    %808 = vector.broadcast %cst_295 : f32 to vector<8x128xf32>
    %809 = arith.maximumf %808, %807 : vector<8x128xf32>
    %cst_296 = arith.constant 9.000000e+00 : f32
    %810 = vector.broadcast %cst_296 : f32 to vector<8x128xf32>
    %811 = arith.subf %753, %810 : vector<8x128xf32>
    %812 = math.absf %811 : vector<8x128xf32>
    %cst_297 = arith.constant 1.000000e+00 : f32
    %813 = vector.broadcast %cst_297 : f32 to vector<8x128xf32>
    %814 = arith.subf %813, %812 : vector<8x128xf32>
    %cst_298 = arith.constant 0.000000e+00 : f32
    %815 = vector.broadcast %cst_298 : f32 to vector<8x128xf32>
    %816 = arith.maximumf %815, %814 : vector<8x128xf32>
    %cst_299 = arith.constant 1.000000e+01 : f32
    %817 = vector.broadcast %cst_299 : f32 to vector<8x128xf32>
    %818 = arith.subf %753, %817 : vector<8x128xf32>
    %819 = math.absf %818 : vector<8x128xf32>
    %cst_300 = arith.constant 1.000000e+00 : f32
    %820 = vector.broadcast %cst_300 : f32 to vector<8x128xf32>
    %821 = arith.subf %820, %819 : vector<8x128xf32>
    %cst_301 = arith.constant 0.000000e+00 : f32
    %822 = vector.broadcast %cst_301 : f32 to vector<8x128xf32>
    %823 = arith.maximumf %822, %821 : vector<8x128xf32>
    %cst_302 = arith.constant 0.000000e+00 : f32
    %824 = vector.broadcast %cst_302 : f32 to vector<8x128xf32>
    %825 = arith.subf %753, %824 : vector<8x128xf32>
    %826 = arith.mulf %825, %760 : vector<8x128xf32>
    %cst_303 = arith.constant 3.000000e+00 : f32
    %827 = vector.broadcast %cst_303 : f32 to vector<8x128xf32>
    %828 = arith.subf %827, %753 : vector<8x128xf32>
    %829 = arith.mulf %828, %767 : vector<8x128xf32>
    %830 = arith.addf %826, %829 : vector<8x128xf32>
    %cst_304 = arith.constant 5.000000e-01 : f32
    %831 = vector.broadcast %cst_304 : f32 to vector<8x128xf32>
    %832 = arith.mulf %830, %831 : vector<8x128xf32>
    %cst_305 = arith.constant 1.000000e+00 : f32
    %833 = vector.broadcast %cst_305 : f32 to vector<8x128xf32>
    %834 = arith.subf %753, %833 : vector<8x128xf32>
    %835 = arith.mulf %834, %767 : vector<8x128xf32>
    %cst_306 = arith.constant 4.000000e+00 : f32
    %836 = vector.broadcast %cst_306 : f32 to vector<8x128xf32>
    %837 = arith.subf %836, %753 : vector<8x128xf32>
    %838 = arith.mulf %837, %774 : vector<8x128xf32>
    %839 = arith.addf %835, %838 : vector<8x128xf32>
    %cst_307 = arith.constant 5.000000e-01 : f32
    %840 = vector.broadcast %cst_307 : f32 to vector<8x128xf32>
    %841 = arith.mulf %839, %840 : vector<8x128xf32>
    %cst_308 = arith.constant 2.000000e+00 : f32
    %842 = vector.broadcast %cst_308 : f32 to vector<8x128xf32>
    %843 = arith.subf %753, %842 : vector<8x128xf32>
    %844 = arith.mulf %843, %774 : vector<8x128xf32>
    %cst_309 = arith.constant 5.000000e+00 : f32
    %845 = vector.broadcast %cst_309 : f32 to vector<8x128xf32>
    %846 = arith.subf %845, %753 : vector<8x128xf32>
    %847 = arith.mulf %846, %781 : vector<8x128xf32>
    %848 = arith.addf %844, %847 : vector<8x128xf32>
    %cst_310 = arith.constant 5.000000e-01 : f32
    %849 = vector.broadcast %cst_310 : f32 to vector<8x128xf32>
    %850 = arith.mulf %848, %849 : vector<8x128xf32>
    %cst_311 = arith.constant 3.000000e+00 : f32
    %851 = vector.broadcast %cst_311 : f32 to vector<8x128xf32>
    %852 = arith.subf %753, %851 : vector<8x128xf32>
    %853 = arith.mulf %852, %781 : vector<8x128xf32>
    %cst_312 = arith.constant 6.000000e+00 : f32
    %854 = vector.broadcast %cst_312 : f32 to vector<8x128xf32>
    %855 = arith.subf %854, %753 : vector<8x128xf32>
    %856 = arith.mulf %855, %788 : vector<8x128xf32>
    %857 = arith.addf %853, %856 : vector<8x128xf32>
    %cst_313 = arith.constant 5.000000e-01 : f32
    %858 = vector.broadcast %cst_313 : f32 to vector<8x128xf32>
    %859 = arith.mulf %857, %858 : vector<8x128xf32>
    %cst_314 = arith.constant 4.000000e+00 : f32
    %860 = vector.broadcast %cst_314 : f32 to vector<8x128xf32>
    %861 = arith.subf %753, %860 : vector<8x128xf32>
    %862 = arith.mulf %861, %788 : vector<8x128xf32>
    %cst_315 = arith.constant 7.000000e+00 : f32
    %863 = vector.broadcast %cst_315 : f32 to vector<8x128xf32>
    %864 = arith.subf %863, %753 : vector<8x128xf32>
    %865 = arith.mulf %864, %795 : vector<8x128xf32>
    %866 = arith.addf %862, %865 : vector<8x128xf32>
    %cst_316 = arith.constant 5.000000e-01 : f32
    %867 = vector.broadcast %cst_316 : f32 to vector<8x128xf32>
    %868 = arith.mulf %866, %867 : vector<8x128xf32>
    %cst_317 = arith.constant 5.000000e+00 : f32
    %869 = vector.broadcast %cst_317 : f32 to vector<8x128xf32>
    %870 = arith.subf %753, %869 : vector<8x128xf32>
    %871 = arith.mulf %870, %795 : vector<8x128xf32>
    %cst_318 = arith.constant 8.000000e+00 : f32
    %872 = vector.broadcast %cst_318 : f32 to vector<8x128xf32>
    %873 = arith.subf %872, %753 : vector<8x128xf32>
    %874 = arith.mulf %873, %802 : vector<8x128xf32>
    %875 = arith.addf %871, %874 : vector<8x128xf32>
    %cst_319 = arith.constant 5.000000e-01 : f32
    %876 = vector.broadcast %cst_319 : f32 to vector<8x128xf32>
    %877 = arith.mulf %875, %876 : vector<8x128xf32>
    %cst_320 = arith.constant 6.000000e+00 : f32
    %878 = vector.broadcast %cst_320 : f32 to vector<8x128xf32>
    %879 = arith.subf %753, %878 : vector<8x128xf32>
    %880 = arith.mulf %879, %802 : vector<8x128xf32>
    %cst_321 = arith.constant 9.000000e+00 : f32
    %881 = vector.broadcast %cst_321 : f32 to vector<8x128xf32>
    %882 = arith.subf %881, %753 : vector<8x128xf32>
    %883 = arith.mulf %882, %809 : vector<8x128xf32>
    %884 = arith.addf %880, %883 : vector<8x128xf32>
    %cst_322 = arith.constant 5.000000e-01 : f32
    %885 = vector.broadcast %cst_322 : f32 to vector<8x128xf32>
    %886 = arith.mulf %884, %885 : vector<8x128xf32>
    %cst_323 = arith.constant 7.000000e+00 : f32
    %887 = vector.broadcast %cst_323 : f32 to vector<8x128xf32>
    %888 = arith.subf %753, %887 : vector<8x128xf32>
    %889 = arith.mulf %888, %809 : vector<8x128xf32>
    %cst_324 = arith.constant 1.000000e+01 : f32
    %890 = vector.broadcast %cst_324 : f32 to vector<8x128xf32>
    %891 = arith.subf %890, %753 : vector<8x128xf32>
    %892 = arith.mulf %891, %816 : vector<8x128xf32>
    %893 = arith.addf %889, %892 : vector<8x128xf32>
    %cst_325 = arith.constant 5.000000e-01 : f32
    %894 = vector.broadcast %cst_325 : f32 to vector<8x128xf32>
    %895 = arith.mulf %893, %894 : vector<8x128xf32>
    %cst_326 = arith.constant 8.000000e+00 : f32
    %896 = vector.broadcast %cst_326 : f32 to vector<8x128xf32>
    %897 = arith.subf %753, %896 : vector<8x128xf32>
    %898 = arith.mulf %897, %816 : vector<8x128xf32>
    %cst_327 = arith.constant 1.100000e+01 : f32
    %899 = vector.broadcast %cst_327 : f32 to vector<8x128xf32>
    %900 = arith.subf %899, %753 : vector<8x128xf32>
    %901 = arith.mulf %900, %823 : vector<8x128xf32>
    %902 = arith.addf %898, %901 : vector<8x128xf32>
    %cst_328 = arith.constant 5.000000e-01 : f32
    %903 = vector.broadcast %cst_328 : f32 to vector<8x128xf32>
    %904 = arith.mulf %902, %903 : vector<8x128xf32>
    %cst_329 = arith.constant 0.000000e+00 : f32
    %905 = vector.broadcast %cst_329 : f32 to vector<8x128xf32>
    %906 = arith.subf %753, %905 : vector<8x128xf32>
    %907 = arith.mulf %906, %832 : vector<8x128xf32>
    %cst_330 = arith.constant 4.000000e+00 : f32
    %908 = vector.broadcast %cst_330 : f32 to vector<8x128xf32>
    %909 = arith.subf %908, %753 : vector<8x128xf32>
    %910 = arith.mulf %909, %841 : vector<8x128xf32>
    %911 = arith.addf %907, %910 : vector<8x128xf32>
    %cst_331 = arith.constant 0.333333343 : f32
    %912 = vector.broadcast %cst_331 : f32 to vector<8x128xf32>
    %913 = arith.mulf %911, %912 : vector<8x128xf32>
    %cst_332 = arith.constant 1.000000e+00 : f32
    %914 = vector.broadcast %cst_332 : f32 to vector<8x128xf32>
    %915 = arith.subf %753, %914 : vector<8x128xf32>
    %916 = arith.mulf %915, %841 : vector<8x128xf32>
    %cst_333 = arith.constant 5.000000e+00 : f32
    %917 = vector.broadcast %cst_333 : f32 to vector<8x128xf32>
    %918 = arith.subf %917, %753 : vector<8x128xf32>
    %919 = arith.mulf %918, %850 : vector<8x128xf32>
    %920 = arith.addf %916, %919 : vector<8x128xf32>
    %cst_334 = arith.constant 0.333333343 : f32
    %921 = vector.broadcast %cst_334 : f32 to vector<8x128xf32>
    %922 = arith.mulf %920, %921 : vector<8x128xf32>
    %cst_335 = arith.constant 2.000000e+00 : f32
    %923 = vector.broadcast %cst_335 : f32 to vector<8x128xf32>
    %924 = arith.subf %753, %923 : vector<8x128xf32>
    %925 = arith.mulf %924, %850 : vector<8x128xf32>
    %cst_336 = arith.constant 6.000000e+00 : f32
    %926 = vector.broadcast %cst_336 : f32 to vector<8x128xf32>
    %927 = arith.subf %926, %753 : vector<8x128xf32>
    %928 = arith.mulf %927, %859 : vector<8x128xf32>
    %929 = arith.addf %925, %928 : vector<8x128xf32>
    %cst_337 = arith.constant 0.333333343 : f32
    %930 = vector.broadcast %cst_337 : f32 to vector<8x128xf32>
    %931 = arith.mulf %929, %930 : vector<8x128xf32>
    %cst_338 = arith.constant 3.000000e+00 : f32
    %932 = vector.broadcast %cst_338 : f32 to vector<8x128xf32>
    %933 = arith.subf %753, %932 : vector<8x128xf32>
    %934 = arith.mulf %933, %859 : vector<8x128xf32>
    %cst_339 = arith.constant 7.000000e+00 : f32
    %935 = vector.broadcast %cst_339 : f32 to vector<8x128xf32>
    %936 = arith.subf %935, %753 : vector<8x128xf32>
    %937 = arith.mulf %936, %868 : vector<8x128xf32>
    %938 = arith.addf %934, %937 : vector<8x128xf32>
    %cst_340 = arith.constant 0.333333343 : f32
    %939 = vector.broadcast %cst_340 : f32 to vector<8x128xf32>
    %940 = arith.mulf %938, %939 : vector<8x128xf32>
    %cst_341 = arith.constant 4.000000e+00 : f32
    %941 = vector.broadcast %cst_341 : f32 to vector<8x128xf32>
    %942 = arith.subf %753, %941 : vector<8x128xf32>
    %943 = arith.mulf %942, %868 : vector<8x128xf32>
    %cst_342 = arith.constant 8.000000e+00 : f32
    %944 = vector.broadcast %cst_342 : f32 to vector<8x128xf32>
    %945 = arith.subf %944, %753 : vector<8x128xf32>
    %946 = arith.mulf %945, %877 : vector<8x128xf32>
    %947 = arith.addf %943, %946 : vector<8x128xf32>
    %cst_343 = arith.constant 0.333333343 : f32
    %948 = vector.broadcast %cst_343 : f32 to vector<8x128xf32>
    %949 = arith.mulf %947, %948 : vector<8x128xf32>
    %cst_344 = arith.constant 5.000000e+00 : f32
    %950 = vector.broadcast %cst_344 : f32 to vector<8x128xf32>
    %951 = arith.subf %753, %950 : vector<8x128xf32>
    %952 = arith.mulf %951, %877 : vector<8x128xf32>
    %cst_345 = arith.constant 9.000000e+00 : f32
    %953 = vector.broadcast %cst_345 : f32 to vector<8x128xf32>
    %954 = arith.subf %953, %753 : vector<8x128xf32>
    %955 = arith.mulf %954, %886 : vector<8x128xf32>
    %956 = arith.addf %952, %955 : vector<8x128xf32>
    %cst_346 = arith.constant 0.333333343 : f32
    %957 = vector.broadcast %cst_346 : f32 to vector<8x128xf32>
    %958 = arith.mulf %956, %957 : vector<8x128xf32>
    %cst_347 = arith.constant 6.000000e+00 : f32
    %959 = vector.broadcast %cst_347 : f32 to vector<8x128xf32>
    %960 = arith.subf %753, %959 : vector<8x128xf32>
    %961 = arith.mulf %960, %886 : vector<8x128xf32>
    %cst_348 = arith.constant 1.000000e+01 : f32
    %962 = vector.broadcast %cst_348 : f32 to vector<8x128xf32>
    %963 = arith.subf %962, %753 : vector<8x128xf32>
    %964 = arith.mulf %963, %895 : vector<8x128xf32>
    %965 = arith.addf %961, %964 : vector<8x128xf32>
    %cst_349 = arith.constant 0.333333343 : f32
    %966 = vector.broadcast %cst_349 : f32 to vector<8x128xf32>
    %967 = arith.mulf %965, %966 : vector<8x128xf32>
    %cst_350 = arith.constant 7.000000e+00 : f32
    %968 = vector.broadcast %cst_350 : f32 to vector<8x128xf32>
    %969 = arith.subf %753, %968 : vector<8x128xf32>
    %970 = arith.mulf %969, %895 : vector<8x128xf32>
    %cst_351 = arith.constant 1.100000e+01 : f32
    %971 = vector.broadcast %cst_351 : f32 to vector<8x128xf32>
    %972 = arith.subf %971, %753 : vector<8x128xf32>
    %973 = arith.mulf %972, %904 : vector<8x128xf32>
    %974 = arith.addf %970, %973 : vector<8x128xf32>
    %cst_352 = arith.constant 0.333333343 : f32
    %975 = vector.broadcast %cst_352 : f32 to vector<8x128xf32>
    %976 = arith.mulf %974, %975 : vector<8x128xf32>
    %977 = arith.truncf %749 : vector<8x128xf32> to vector<8x128xbf16>
    %978 = arith.truncf %913 : vector<8x128xf32> to vector<8x128xbf16>
    %979 = arith.truncf %922 : vector<8x128xf32> to vector<8x128xbf16>
    %980 = arith.truncf %931 : vector<8x128xf32> to vector<8x128xbf16>
    %981 = arith.truncf %940 : vector<8x128xf32> to vector<8x128xbf16>
    %982 = arith.truncf %949 : vector<8x128xf32> to vector<8x128xbf16>
    %983 = arith.truncf %958 : vector<8x128xf32> to vector<8x128xbf16>
    %984 = arith.truncf %967 : vector<8x128xf32> to vector<8x128xbf16>
    %985 = arith.truncf %976 : vector<8x128xf32> to vector<8x128xbf16>
    %986 = tpu.concatenate %977, %978, %979, %980, %981, %982, %983, %984, %985 in 1 : vector<8x128xbf16>, vector<8x128xbf16>, vector<8x128xbf16>, vector<8x128xbf16>, vector<8x128xbf16>, vector<8x128xbf16>, vector<8x128xbf16>, vector<8x128xbf16>, vector<8x128xbf16> -> vector<8x1152xbf16>
    %c0_353 = arith.constant 0 : index
    %c0_354 = arith.constant 0 : index
    %987 = vector.load %arg5[%c0_353, %c0_354] : memref<1152x128xbf16, #tpu.memory_space<vmem>>, vector<1152x128xbf16>
    %cst_355 = arith.constant dense<0.000000e+00> : vector<8x128xf32>
    %988 = tpu.matmul %986, %987, %cst_355 {dimension_numbers = #tpu.dot_dimension_numbers<[1], [0], [0], [1], [0, 0, 1, 1], [], []>} : vector<8x1152xbf16>, vector<1152x128xbf16>, vector<8x128xf32> -> vector<8x128xf32>
    %c0_356 = arith.constant 0 : index
    %c0_357 = arith.constant 0 : index
    %989 = vector.load %arg6[%c0_356, %c0_357] : memref<8x128xf32, #tpu.memory_space<vmem>>, vector<8x128xf32>
    tpu.vector_store %arg6[%c0_356, %c0_357], %988 {strides = array<i32>} : memref<8x128xf32, #tpu.memory_space<vmem>>, vector<8x128xf32>,
    return
  }
  func.func @transform_0(%arg0: i32) -> (i32, i32) {
    %c0_i32 = arith.constant 0 : i32
    %c0_i32_0 = arith.constant 0 : i32
    return %arg0, %c0_i32 : i32, i32
  }
  func.func @transform_1(%arg0: i32) -> (i32, i32) {
    %c0_i32 = arith.constant 0 : i32
    %c0_i32_0 = arith.constant 0 : i32
    %c0_i32_1 = arith.constant 0 : i32
    return %c0_i32, %c0_i32_0 : i32, i32
  }
  func.func @transform_2(%arg0: i32) -> (i32, i32) {
    %c0_i32 = arith.constant 0 : i32
    %c0_i32_0 = arith.constant 0 : i32
    %c0_i32_1 = arith.constant 0 : i32
    return %c0_i32, %c0_i32_0 : i32, i32
  }
  func.func @transform_3(%arg0: i32) -> (i32, i32) {
    %c0_i32 = arith.constant 0 : i32
    %c0_i32_0 = arith.constant 0 : i32
    %c0_i32_1 = arith.constant 0 : i32
    return %c0_i32, %c0_i32_0 : i32, i32
  }
  func.func @transform_4(%arg0: i32) -> (i32, i32) {
    %c0_i32 = arith.constant 0 : i32
    %c0_i32_0 = arith.constant 0 : i32
    %c0_i32_1 = arith.constant 0 : i32
    return %c0_i32, %c0_i32_0 : i32, i32
  }
  func.func @transform_5(%arg0: i32) -> (i32, i32) {
    %c0_i32 = arith.constant 0 : i32
    %c0_i32_0 = arith.constant 0 : i32
    return %arg0, %c0_i32 : i32, i32
  }
}

</mosaic_0001>

<llo_original>
// kernel: tpu_custom_call.1
$region0: #{tpu_custom_call.1}
  #allocation0 [shape = 'u32[]', space=smem, size = 0x4, offset = 0x4, fixed_abs, tag = 'smem constant byte address 0x4 - core index']
  #allocation1 [shape = 'u32[72,128]{1,0:T(1,128)}', space=vmem, size = 0x9000, scoped, tag = 'internal scratch']
  %s0 = inlined_call_operand.hbm [shape: f32[8,128], index: 0, kind: input, shape index: {}]
  %s1 = inlined_call_operand.hbm [shape: bf16[1152,128], index: 1, kind: input, shape index: {}]
  %s2 = inlined_call_operand.hbm [shape: bf16[1152,128], index: 2, kind: input, shape index: {}]
  %s3 = inlined_call_operand.hbm [shape: bf16[1152,128], index: 3, kind: input, shape index: {}]
  %s4 = inlined_call_operand.hbm [shape: bf16[1152,128], index: 4, kind: input, shape index: {}]
  %s5 = inlined_call_operand.hbm [shape: f32[8,128], index: 5, kind: output, shape index: {}]
  %s6 = sld [smem:[#allocation0]]
  $region50: #{tpu_custom_call.1} parent=0
    _
  %s8 = ssub.s32 1, %s6
  %s9 = scalar_select 0, %s8, %s6
  $region1: #{tpu_custom_call.1} parent=0
    #allocation2 [shape = 'u8[4096]{0}', space=vmem, size = 0x1000, scoped, tag = 'input window, operand 0, single buffered']
    #allocation3 [shape = 's32[1]{0}', space=sflag, size = 0x4, scoped, tag = 'scoped memory for tpu_custom_call.1']
    #allocation4 [shape = 's32[1]{0}', space=sflag, size = 0x4, scoped, tag = 'scoped memory for tpu_custom_call.1']
    #allocation5 [shape = 'u8[294912]{0}', space=vmem, size = 0x48000, scoped, tag = 'input window, operand 1, single buffered']
    #allocation6 [shape = 's32[1]{0}', space=sflag, size = 0x4, scoped, tag = 'scoped memory for tpu_custom_call.1']
    #allocation7 [shape = 'u8[294912]{0}', space=vmem, size = 0x48000, scoped, tag = 'input window, operand 2, single buffered']
    #allocation8 [shape = 'u8[294912]{0}', space=vmem, size = 0x48000, scoped, tag = 'input window, operand 3, single buffered']
    #allocation9 [shape = 's32[1]{0}', space=sflag, size = 0x4, scoped, tag = 'scoped memory for tpu_custom_call.1']
    #allocation10 [shape = 'u8[294912]{0}', space=vmem, size = 0x48000, scoped, tag = 'input window, operand 4, single buffered']
    #allocation11 [shape = 'u8[4096]{0}', space=vmem, size = 0x1000, scoped, tag = 'output window, operand 0, single buffered']
    %10 = vsyncpa [#allocation3], 0
    %11 = vsyncpa [#allocation6], 0
    %12 = vsyncpa [#allocation9], 0
    %13 = vsyncpa [#allocation4], 0
    // Predicated region
    $region2: #{tpu_custom_call.1} parent=1 // pred_check
      _
    $region3: #{tpu_custom_call.1} parent=1 // pred_check_branch
      %15 = sbr.rel (0) target = $region5
    $region4: #{tpu_custom_call.1} parent=1 // pred_region
      %17 = vsyncadd [#allocation3], 0
      %s19 = sshll.u32 %s0, 4
      %s20 = int_to_ptr.hbm [resolvable:$true] %s19
      %s21 = sshll.u32 [#allocation2], 4
      %s22 = int_to_ptr.vmem [resolvable:$true] %s21
      %24 = dma.hbm_to_vmem [thread:$0]  %s20, 128, %s22, [#allocation3]
    $region5: #{tpu_custom_call.1} parent=1 // pred_fallthru
      _
    // Predicated region
    $region6: #{tpu_custom_call.1} parent=1 // pred_check
      _
    $region7: #{tpu_custom_call.1} parent=1 // pred_check_branch
      %26 = sbr.rel (0) target = $region9
    $region8: #{tpu_custom_call.1} parent=1 // pred_region
      %28 = vsyncadd [#allocation6], 0
      %s29 = sshll.u32 %s1, 4
      %s30 = int_to_ptr.hbm [resolvable:$true] %s29
      %s31 = sshll.u32 [#allocation5], 4
      %s32 = int_to_ptr.vmem [resolvable:$true] %s31
      %37 = dma.hbm_to_vmem [thread:$0]  %s30, 9216, %s32, [#allocation6], 64, 64, 4
    $region9: #{tpu_custom_call.1} parent=1 // pred_fallthru
      _
    // Predicated region
    $region10: #{tpu_custom_call.1} parent=1 // pred_check
      _
    $region11: #{tpu_custom_call.1} parent=1 // pred_check_branch
      %39 = sbr.rel (0) target = $region13
    $region12: #{tpu_custom_call.1} parent=1 // pred_region
      %41 = vsyncadd [#allocation6], 0
      %s42 = sshll.u32 %s2, 4
      %s43 = int_to_ptr.hbm [resolvable:$true] %s42
      %s44 = sshll.u32 [#allocation7], 4
      %s45 = int_to_ptr.vmem [resolvable:$true] %s44
      %50 = dma.hbm_to_vmem [thread:$0]  %s43, 9216, %s45, [#allocation6], 64, 64, 4
    $region13: #{tpu_custom_call.1} parent=1 // pred_fallthru
      _
    // Predicated region
    $region14: #{tpu_custom_call.1} parent=1 // pred_check
      _
    $region15: #{tpu_custom_call.1} parent=1 // pred_check_branch
      %52 = sbr.rel (0) target = $region17
    $region16: #{tpu_custom_call.1} parent=1 // pred_region
      %54 = vsyncadd [#allocation9], 0
      %s55 = sshll.u32 %s3, 4
      %s56 = int_to_ptr.hbm [resolvable:$true] %s55
      %s57 = sshll.u32 [#allocation8], 4
      %s58 = int_to_ptr.vmem [resolvable:$true] %s57
      %63 = dma.hbm_to_vmem [thread:$0]  %s56, 9216, %s58, [#allocation9], 64, 64, 4
    $region17: #{tpu_custom_call.1} parent=1 // pred_fallthru
      _
    // Predicated region
    $region18: #{tpu_custom_call.1} parent=1 // pred_check
      _
    $region19: #{tpu_custom_call.1} parent=1 // pred_check_branch
      %65 = sbr.rel (0) target = $region21
    $region20: #{tpu_custom_call.1} parent=1 // pred_region
      %67 = vsyncadd [#allocation9], 0
      %s68 = sshll.u32 %s4, 4
      %s69 = int_to_ptr.hbm [resolvable:$true] %s68
      %s70 = sshll.u32 [#allocation10], 4
      %s71 = int_to_ptr.vmem [resolvable:$true] %s70
      %76 = dma.hbm_to_vmem [thread:$0]  %s69, 9216, %s71, [#allocation9], 64, 64, 4
    $region21: #{tpu_custom_call.1} parent=1 // pred_fallthru
      _
    // Predicated region
    $region22: #{tpu_custom_call.1} parent=1 // pred_check
      _
    $region23: #{tpu_custom_call.1} parent=1 // pred_check_branch
      %78 = sbr.rel (0) target = $region25
    $region24: #{tpu_custom_call.1} parent=1 // pred_region
      %80 = dma.done [#allocation3], 128
    $region25: #{tpu_custom_call.1} parent=1 // pred_fallthru
      _
    // Predicated region
    $region26: #{tpu_custom_call.1} parent=1 // pred_check
      _
    $region27: #{tpu_custom_call.1} parent=1 // pred_check_branch
      %82 = sbr.rel (0) target = $region29
    $region28: #{tpu_custom_call.1} parent=1 // pred_region
      %84 = dma.done [#allocation6], 9216
    $region29: #{tpu_custom_call.1} parent=1 // pred_fallthru
      _
    // Predicated region
    $region30: #{tpu_custom_call.1} parent=1 // pred_check
      _
    $region31: #{tpu_custom_call.1} parent=1 // pred_check_branch
      %86 = sbr.rel (0) target = $region33
    $region32: #{tpu_custom_call.1} parent=1 // pred_region
      %88 = dma.done [#allocation6], 9216
    $region33: #{tpu_custom_call.1} parent=1 // pred_fallthru
      _
    // Predicated region
    $region34: #{tpu_custom_call.1} parent=1 // pred_check
      _
    $region35: #{tpu_custom_call.1} parent=1 // pred_check_branch
      %90 = sbr.rel (0) target = $region37
    $region36: #{tpu_custom_call.1} parent=1 // pred_region
      %92 = dma.done [#allocation9], 9216
    $region37: #{tpu_custom_call.1} parent=1 // pred_fallthru
      _
    // Predicated region
    $region38: #{tpu_custom_call.1} parent=1 // pred_check
      _
    $region39: #{tpu_custom_call.1} parent=1 // pred_check_branch
      %94 = sbr.rel (0) target = $region41
    $region40: #{tpu_custom_call.1} parent=1 // pred_region
      %96 = dma.done [#allocation9], 9216
    $region41: #{tpu_custom_call.1} parent=1 // pred_fallthru
      _
    %v97 = vld [vmem:[#allocation2] sm:$0xff]
    %v98 = vmul.f32 %v97, 0.5
    %v99 = vtanh.pop %v98
    %v100 = vmul.f32 %v99, 0.5
    %v101 = vadd.f32 %v100, 0.5
    %v102 = vmul.f32 %v97, %v101
    %v103 = vsub.f32 %v97, -2.2
    %v104 = vmul.f32 %v103, 2.5
    %v105 = vsub.f32 %v104, 1.0
    %v106 = vand.u32 2147483647, %v105
    %v107 = vsub.f32 1.0, %v106
    %v108 = vmax.f32 %v107, 0.0
    %v109 = vsub.f32 %v104, 2.0
    %v110 = vand.u32 2147483647, %v109
    %v111 = vsub.f32 1.0, %v110
    %v112 = vmax.f32 %v111, 0.0
    %v113 = vsub.f32 %v104, 3.0
    %v114 = vand.u32 2147483647, %v113
    %v115 = vsub.f32 1.0, %v114
    %v116 = vmax.f32 %v115, 0.0
    %v117 = vsub.f32 %v104, 4.0
    %v118 = vand.u32 2147483647, %v117
    %v119 = vsub.f32 1.0, %v118
    %v120 = vmax.f32 %v119, 0.0
    %v121 = vsub.f32 %v104, 5.0
    %v122 = vand.u32 2147483647, %v121
    %v123 = vsub.f32 1.0, %v122
    %v124 = vmax.f32 %v123, 0.0
    %v125 = vsub.f32 %v104, 6.0
    %v126 = vand.u32 2147483647, %v125
    %v127 = vsub.f32 1.0, %v126
    %v128 = vmax.f32 %v127, 0.0
    %v129 = vsub.f32 %v104, 7.0
    %v130 = vand.u32 2147483647, %v129
    %v131 = vsub.f32 1.0, %v130
    %v132 = vmax.f32 %v131, 0.0
    %v133 = vsub.f32 %v104, 8.0
    %v134 = vand.u32 2147483647, %v133
    %v135 = vsub.f32 1.0, %v134
    %v136 = vmax.f32 %v135, 0.0
    %v137 = vsub.f32 %v104, 9.0
    %v138 = vand.u32 2147483647, %v137
    %v139 = vsub.f32 1.0, %v138
    %v140 = vmax.f32 %v139, 0.0
    %v141 = vsub.f32 %v104, 10.0
    %v142 = vand.u32 2147483647, %v141
    %v143 = vsub.f32 1.0, %v142
    %v144 = vmax.f32 %v143, 0.0
    %v145 = vmul.f32 %v104, %v108
    %v146 = vsub.f32 3.0, %v104
    %v147 = vmul.f32 %v146, %v112
    %v148 = vadd.f32 %v145, %v147
    %v149 = vmul.f32 %v148, 0.5
    %v150 = vmul.f32 %v105, %v112
    %v151 = vsub.f32 4.0, %v104
    %v152 = vmul.f32 %v151, %v116
    %v153 = vadd.f32 %v150, %v152
    %v154 = vmul.f32 %v153, 0.5
    %v155 = vmul.f32 %v109, %v116
    %v156 = vsub.f32 5.0, %v104
    %v157 = vmul.f32 %v156, %v120
    %v158 = vadd.f32 %v155, %v157
    %v159 = vmul.f32 %v158, 0.5
    %v160 = vmul.f32 %v113, %v120
    %v161 = vsub.f32 6.0, %v104
    %v162 = vmul.f32 %v161, %v124
    %v163 = vadd.f32 %v160, %v162
    %v164 = vmul.f32 %v163, 0.5
    %v165 = vmul.f32 %v117, %v124
    %v166 = vsub.f32 7.0, %v104
    %v167 = vmul.f32 %v166, %v128
    %v168 = vadd.f32 %v165, %v167
    %v169 = vmul.f32 %v168, 0.5
    %v170 = vmul.f32 %v121, %v128
    %v171 = vsub.f32 8.0, %v104
    %v172 = vmul.f32 %v171, %v132
    %v173 = vadd.f32 %v170, %v172
    %v174 = vmul.f32 %v173, 0.5
    %v175 = vmul.f32 %v125, %v132
    %v176 = vsub.f32 9.0, %v104
    %v177 = vmul.f32 %v176, %v136
    %v178 = vadd.f32 %v175, %v177
    %v179 = vmul.f32 %v178, 0.5
    %v180 = vmul.f32 %v129, %v136
    %v181 = vsub.f32 10.0, %v104
    %v182 = vmul.f32 %v181, %v140
    %v183 = vadd.f32 %v180, %v182
    %v184 = vmul.f32 %v183, 0.5
    %v185 = vmul.f32 %v133, %v140
    %v186 = vsub.f32 11.0, %v104
    %v187 = vmul.f32 %v186, %v144
    %v188 = vadd.f32 %v185, %v187
    %v189 = vmul.f32 %v188, 0.5
    %v190 = vmul.f32 %v104, %v149
    %v191 = vmul.f32 %v151, %v154
    %v192 = vadd.f32 %v190, %v191
    %v193 = vmul.f32 %v192, 0.33333334
    %v194 = vmul.f32 %v105, %v154
    %v195 = vmul.f32 %v156, %v159
    %v196 = vadd.f32 %v194, %v195
    %v197 = vmul.f32 %v196, 0.33333334
    %v198 = vmul.f32 %v109, %v159
    %v199 = vmul.f32 %v161, %v164
    %v200 = vadd.f32 %v198, %v199
    %v201 = vmul.f32 %v200, 0.33333334
    %v202 = vmul.f32 %v113, %v164
    %v203 = vmul.f32 %v166, %v169
    %v204 = vadd.f32 %v202, %v203
    %v205 = vmul.f32 %v204, 0.33333334
    %v206 = vmul.f32 %v117, %v169
    %v207 = vmul.f32 %v171, %v174
    %v208 = vadd.f32 %v206, %v207
    %v209 = vmul.f32 %v208, 0.33333334
    %v210 = vmul.f32 %v121, %v174
    %v211 = vmul.f32 %v176, %v179
    %v212 = vadd.f32 %v210, %v211
    %v213 = vmul.f32 %v212, 0.33333334
    %v214 = vmul.f32 %v125, %v179
    %v215 = vmul.f32 %v181, %v184
    %v216 = vadd.f32 %v214, %v215
    %v217 = vmul.f32 %v216, 0.33333334
    %v218 = vmul.f32 %v129, %v184
    %v219 = vmul.f32 %v186, %v189
    %v220 = vadd.f32 %v218, %v219
    %v221 = vmul.f32 %v220, 0.33333334
    %v222 = vpack.c.bf16 %v102, %v102
    %v223 = vpack.c.bf16 %v193, %v193
    %v224 = vpack.c.bf16 %v197, %v197
    %v225 = vpack.c.bf16 %v201, %v201
    %v226 = vpack.c.bf16 %v205, %v205
    %v227 = vpack.c.bf16 %v209, %v209
    %v228 = vpack.c.bf16 %v213, %v213
    %v229 = vpack.c.bf16 %v217, %v217
    %v230 = vpack.c.bf16 %v221, %v221
    %v231 = vld [vmem:[#allocation5] sm:$0xf]
    %v232 = vld [vmem:[#allocation5 + $0x4] sm:$0xf]
    %v233 = vld [vmem:[#allocation5 + $0x8] sm:$0xf]
    %v234 = vld [vmem:[#allocation5 + $0xc] sm:$0xf]
    %v235 = vld [vmem:[#allocation5 + $0x10] sm:$0xf]
    %v236 = vld [vmem:[#allocation5 + $0x14] sm:$0xf]
    %v237 = vld [vmem:[#allocation5 + $0x18] sm:$0xf]
    %v238 = vld [vmem:[#allocation5 + $0x1c] sm:$0xf]
    %v239 = vld [vmem:[#allocation5 + $0x20] sm:$0xf]
    %v240 = vld [vmem:[#allocation5 + $0x24] sm:$0xf]
    %v241 = vld [vmem:[#allocation5 + $0x28] sm:$0xf]
    %v242 = vld [vmem:[#allocation5 + $0x2c] sm:$0xf]
    %v243 = vld [vmem:[#allocation5 + $0x30] sm:$0xf]
    %v244 = vld [vmem:[#allocation5 + $0x34] sm:$0xf]
    %v245 = vld [vmem:[#allocation5 + $0x38] sm:$0xf]
    %v246 = vld [vmem:[#allocation5 + $0x3c] sm:$0xf]
    %v247 = vld [vmem:[#allocation5 + $0x40] sm:$0xf]
    %v248 = vld [vmem:[#allocation5 + $0x44] sm:$0xf]
    %v249 = vld [vmem:[#allocation5 + $0x48] sm:$0xf]
    %v250 = vld [vmem:[#allocation5 + $0x4c] sm:$0xf]
    %v251 = vld [vmem:[#allocation5 + $0x50] sm:$0xf]
    %v252 = vld [vmem:[#allocation5 + $0x54] sm:$0xf]
    %v253 = vld [vmem:[#allocation5 + $0x58] sm:$0xf]
    %v254 = vld [vmem:[#allocation5 + $0x5c] sm:$0xf]
    %v255 = vld [vmem:[#allocation5 + $0x60] sm:$0xf]
    %v256 = vld [vmem:[#allocation5 + $0x64] sm:$0xf]
    %v257 = vld [vmem:[#allocation5 + $0x68] sm:$0xf]
    %v258 = vld [vmem:[#allocation5 + $0x6c] sm:$0xf]
    %v259 = vld [vmem:[#allocation5 + $0x70] sm:$0xf]
    %v260 = vld [vmem:[#allocation5 + $0x74] sm:$0xf]
    %v261 = vld [vmem:[#allocation5 + $0x78] sm:$0xf]
    %v262 = vld [vmem:[#allocation5 + $0x7c] sm:$0xf]
    %v263 = vld [vmem:[#allocation5 + $0x80] sm:$0xf]
    %v264 = vld [vmem:[#allocation5 + $0x84] sm:$0xf]
    %v265 = vld [vmem:[#allocation5 + $0x88] sm:$0xf]
    %v266 = vld [vmem:[#allocation5 + $0x8c] sm:$0xf]
    %v267 = vld [vmem:[#allocation5 + $0x90] sm:$0xf]
    %v268 = vld [vmem:[#allocation5 + $0x94] sm:$0xf]
    %v269 = vld [vmem:[#allocation5 + $0x98] sm:$0xf]
    %v270 = vld [vmem:[#allocation5 + $0x9c] sm:$0xf]
    %v271 = vld [vmem:[#allocation5 + $0xa0] sm:$0xf]
    %v272 = vld [vmem:[#allocation5 + $0xa4] sm:$0xf]
    %v273 = vld [vmem:[#allocation5 + $0xa8] sm:$0xf]
    %v274 = vld [vmem:[#allocation5 + $0xac] sm:$0xf]
    %v275 = vld [vmem:[#allocation5 + $0xb0] sm:$0xf]
    %v276 = vld [vmem:[#allocation5 + $0xb4] sm:$0xf]
    %v277 = vld [vmem:[#allocation5 + $0xb8] sm:$0xf]
    %v278 = vld [vmem:[#allocation5 + $0xbc] sm:$0xf]
    %v279 = vld [vmem:[#allocation5 + $0xc0] sm:$0xf]
    %v280 = vld [vmem:[#allocation5 + $0xc4] sm:$0xf]
    %v281 = vld [vmem:[#allocation5 + $0xc8] sm:$0xf]
    %v282 = vld [vmem:[#allocation5 + $0xcc] sm:$0xf]
    %v283 = vld [vmem:[#allocation5 + $0xd0] sm:$0xf]
    %v284 = vld [vmem:[#allocation5 + $0xd4] sm:$0xf]
    %v285 = vld [vmem:[#allocation5 + $0xd8] sm:$0xf]
    %v286 = vld [vmem:[#allocation5 + $0xdc] sm:$0xf]
    %v287 = vld [vmem:[#allocation5 + $0xe0] sm:$0xf]
    %v288 = vld [vmem:[#allocation5 + $0xe4] sm:$0xf]
    %v289 = vld [vmem:[#allocation5 + $0xe8] sm:$0xf]
    %v290 = vld [vmem:[#allocation5 + $0xec] sm:$0xf]
    %v291 = vld [vmem:[#allocation5 + $0xf0] sm:$0xf]
    %v292 = vld [vmem:[#allocation5 + $0xf4] sm:$0xf]
    %v293 = vld [vmem:[#allocation5 + $0xf8] sm:$0xf]
    %v294 = vld [vmem:[#allocation5 + $0xfc] sm:$0xf]
    %v295 = vld [vmem:[#allocation5 + $0x100] sm:$0xf]
    %v296 = vld [vmem:[#allocation5 + $0x104] sm:$0xf]
    %v297 = vld [vmem:[#allocation5 + $0x108] sm:$0xf]
    %v298 = vld [vmem:[#allocation5 + $0x10c] sm:$0xf]
    %v299 = vld [vmem:[#allocation5 + $0x110] sm:$0xf]
    %v300 = vld [vmem:[#allocation5 + $0x114] sm:$0xf]
    %v301 = vld [vmem:[#allocation5 + $0x118] sm:$0xf]
    %v302 = vld [vmem:[#allocation5 + $0x11c] sm:$0xf]
    %v303 = vld [vmem:[#allocation5 + $0x120] sm:$0xf]
    %v304 = vld [vmem:[#allocation5 + $0x124] sm:$0xf]
    %v305 = vld [vmem:[#allocation5 + $0x128] sm:$0xf]
    %v306 = vld [vmem:[#allocation5 + $0x12c] sm:$0xf]
    %v307 = vld [vmem:[#allocation5 + $0x130] sm:$0xf]
    %v308 = vld [vmem:[#allocation5 + $0x134] sm:$0xf]
    %v309 = vld [vmem:[#allocation5 + $0x138] sm:$0xf]
    %v310 = vld [vmem:[#allocation5 + $0x13c] sm:$0xf]
    %v311 = vld [vmem:[#allocation5 + $0x140] sm:$0xf]
    %v312 = vld [vmem:[#allocation5 + $0x144] sm:$0xf]
    %v313 = vld [vmem:[#allocation5 + $0x148] sm:$0xf]
    %v314 = vld [vmem:[#allocation5 + $0x14c] sm:$0xf]
    %v315 = vld [vmem:[#allocation5 + $0x150] sm:$0xf]
    %v316 = vld [vmem:[#allocation5 + $0x154] sm:$0xf]
    %v317 = vld [vmem:[#allocation5 + $0x158] sm:$0xf]
    %v318 = vld [vmem:[#allocation5 + $0x15c] sm:$0xf]
    %v319 = vld [vmem:[#allocation5 + $0x160] sm:$0xf]
    %v320 = vld [vmem:[#allocation5 + $0x164] sm:$0xf]
    %v321 = vld [vmem:[#allocation5 + $0x168] sm:$0xf]
    %v322 = vld [vmem:[#allocation5 + $0x16c] sm:$0xf]
    %v323 = vld [vmem:[#allocation5 + $0x170] sm:$0xf]
    %v324 = vld [vmem:[#allocation5 + $0x174] sm:$0xf]
    %v325 = vld [vmem:[#allocation5 + $0x178] sm:$0xf]
    %v326 = vld [vmem:[#allocation5 + $0x17c] sm:$0xf]
    %v327 = vld [vmem:[#allocation5 + $0x180] sm:$0xf]
    %v328 = vld [vmem:[#allocation5 + $0x184] sm:$0xf]
    %v329 = vld [vmem:[#allocation5 + $0x188] sm:$0xf]
    %v330 = vld [vmem:[#allocation5 + $0x18c] sm:$0xf]
    %v331 = vld [vmem:[#allocation5 + $0x190] sm:$0xf]
    %v332 = vld [vmem:[#allocation5 + $0x194] sm:$0xf]
    %v333 = vld [vmem:[#allocation5 + $0x198] sm:$0xf]
    %v334 = vld [vmem:[#allocation5 + $0x19c] sm:$0xf]
    %v335 = vld [vmem:[#allocation5 + $0x1a0] sm:$0xf]
    %v336 = vld [vmem:[#allocation5 + $0x1a4] sm:$0xf]
    %v337 = vld [vmem:[#allocation5 + $0x1a8] sm:$0xf]
    %v338 = vld [vmem:[#allocation5 + $0x1ac] sm:$0xf]
    %v339 = vld [vmem:[#allocation5 + $0x1b0] sm:$0xf]
    %v340 = vld [vmem:[#allocation5 + $0x1b4] sm:$0xf]
    %v341 = vld [vmem:[#allocation5 + $0x1b8] sm:$0xf]
    %v342 = vld [vmem:[#allocation5 + $0x1bc] sm:$0xf]
    %v343 = vld [vmem:[#allocation5 + $0x1c0] sm:$0xf]
    %v344 = vld [vmem:[#allocation5 + $0x1c4] sm:$0xf]
    %v345 = vld [vmem:[#allocation5 + $0x1c8] sm:$0xf]
    %v346 = vld [vmem:[#allocation5 + $0x1cc] sm:$0xf]
    %v347 = vld [vmem:[#allocation5 + $0x1d0] sm:$0xf]
    %v348 = vld [vmem:[#allocation5 + $0x1d4] sm:$0xf]
    %v349 = vld [vmem:[#allocation5 + $0x1d8] sm:$0xf]
    %v350 = vld [vmem:[#allocation5 + $0x1dc] sm:$0xf]
    %v351 = vld [vmem:[#allocation5 + $0x1e0] sm:$0xf]
    %v352 = vld [vmem:[#allocation5 + $0x1e4] sm:$0xf]
    %v353 = vld [vmem:[#allocation5 + $0x1e8] sm:$0xf]
    %v354 = vld [vmem:[#allocation5 + $0x1ec] sm:$0xf]
    %v355 = vld [vmem:[#allocation5 + $0x1f0] sm:$0xf]
    %v356 = vld [vmem:[#allocation5 + $0x1f4] sm:$0xf]
    %v357 = vld [vmem:[#allocation5 + $0x1f8] sm:$0xf]
    %v358 = vld [vmem:[#allocation5 + $0x1fc] sm:$0xf]
    %v359 = vld [vmem:[#allocation5 + $0x200] sm:$0xf]
    %v360 = vld [vmem:[#allocation5 + $0x204] sm:$0xf]
    %v361 = vld [vmem:[#allocation5 + $0x208] sm:$0xf]
    %v362 = vld [vmem:[#allocation5 + $0x20c] sm:$0xf]
    %v363 = vld [vmem:[#allocation5 + $0x210] sm:$0xf]
    %v364 = vld [vmem:[#allocation5 + $0x214] sm:$0xf]
    %v365 = vld [vmem:[#allocation5 + $0x218] sm:$0xf]
    %v366 = vld [vmem:[#allocation5 + $0x21c] sm:$0xf]
    %v367 = vld [vmem:[#allocation5 + $0x220] sm:$0xf]
    %v368 = vld [vmem:[#allocation5 + $0x224] sm:$0xf]
    %v369 = vld [vmem:[#allocation5 + $0x228] sm:$0xf]
    %v370 = vld [vmem:[#allocation5 + $0x22c] sm:$0xf]
    %v371 = vld [vmem:[#allocation5 + $0x230] sm:$0xf]
    %v372 = vld [vmem:[#allocation5 + $0x234] sm:$0xf]
    %v373 = vld [vmem:[#allocation5 + $0x238] sm:$0xf]
    %v374 = vld [vmem:[#allocation5 + $0x23c] sm:$0xf]
    %v519 = vunpack.c.l.b16 %v231
    %v520 = vunpack.c.l.b16 %v232
    %v521 = vunpack.c.l.b16 %v233
    %v522 = vunpack.c.l.b16 %v234
    %v523 = vunpack.c.l.b16 %v235
    %v524 = vunpack.c.l.b16 %v236
    %v525 = vunpack.c.l.b16 %v237
    %v526 = vunpack.c.l.b16 %v238
    %v527 = vunpack.c.l.b16 %v239
    %v528 = vunpack.c.l.b16 %v240
    %v529 = vunpack.c.l.b16 %v241
    %v530 = vunpack.c.l.b16 %v242
    %v531 = vunpack.c.l.b16 %v243
    %v532 = vunpack.c.l.b16 %v244
    %v533 = vunpack.c.l.b16 %v245
    %v534 = vunpack.c.l.b16 %v246
    %v535 = vunpack.c.l.b16 %v247
    %v536 = vunpack.c.l.b16 %v248
    %v537 = vunpack.c.l.b16 %v249
    %v538 = vunpack.c.l.b16 %v250
    %v539 = vunpack.c.l.b16 %v251
    %v540 = vunpack.c.l.b16 %v252
    %v541 = vunpack.c.l.b16 %v253
    %v542 = vunpack.c.l.b16 %v254
    %v543 = vunpack.c.l.b16 %v255
    %v544 = vunpack.c.l.b16 %v256
    %v545 = vunpack.c.l.b16 %v257
    %v546 = vunpack.c.l.b16 %v258
    %v547 = vunpack.c.l.b16 %v259
    %v548 = vunpack.c.l.b16 %v260
    %v549 = vunpack.c.l.b16 %v261
    %v550 = vunpack.c.l.b16 %v262
    %v551 = vunpack.c.l.b16 %v263
    %v552 = vunpack.c.l.b16 %v264
    %v553 = vunpack.c.l.b16 %v265
    %v554 = vunpack.c.l.b16 %v266
    %v555 = vunpack.c.l.b16 %v267
    %v556 = vunpack.c.l.b16 %v268
    %v557 = vunpack.c.l.b16 %v269
    %v558 = vunpack.c.l.b16 %v270
    %v559 = vunpack.c.l.b16 %v271
    %v560 = vunpack.c.l.b16 %v272
    %v561 = vunpack.c.l.b16 %v273
    %v562 = vunpack.c.l.b16 %v274
    %v563 = vunpack.c.l.b16 %v275
    %v564 = vunpack.c.l.b16 %v276
    %v565 = vunpack.c.l.b16 %v277
    %v566 = vunpack.c.l.b16 %v278
    %v567 = vunpack.c.l.b16 %v279
    %v568 = vunpack.c.l.b16 %v280
    %v569 = vunpack.c.l.b16 %v281
    %v570 = vunpack.c.l.b16 %v282
    %v571 = vunpack.c.l.b16 %v283
    %v572 = vunpack.c.l.b16 %v284
    %v573 = vunpack.c.l.b16 %v285
    %v574 = vunpack.c.l.b16 %v286
    %v575 = vunpack.c.l.b16 %v287
    %v576 = vunpack.c.l.b16 %v288
    %v577 = vunpack.c.l.b16 %v289
    %v578 = vunpack.c.l.b16 %v290
    %v579 = vunpack.c.l.b16 %v291
    %v580 = vunpack.c.l.b16 %v292
    %v581 = vunpack.c.l.b16 %v293
    %v582 = vunpack.c.l.b16 %v294
    %v583 = vunpack.c.l.b16 %v295
    %v584 = vunpack.c.l.b16 %v296
    %v585 = vunpack.c.l.b16 %v297
    %v586 = vunpack.c.l.b16 %v298
    %v587 = vunpack.c.l.b16 %v299
    %v588 = vunpack.c.l.b16 %v300
    %v589 = vunpack.c.l.b16 %v301
    %v590 = vunpack.c.l.b16 %v302
    %v591 = vunpack.c.l.b16 %v303
    %v592 = vunpack.c.l.b16 %v304
    %v593 = vunpack.c.l.b16 %v305
    %v594 = vunpack.c.l.b16 %v306
    %v595 = vunpack.c.l.b16 %v307
    %v596 = vunpack.c.l.b16 %v308
    %v597 = vunpack.c.l.b16 %v309
    %v598 = vunpack.c.l.b16 %v310
    %v599 = vunpack.c.l.b16 %v311
    %v600 = vunpack.c.l.b16 %v312
    %v601 = vunpack.c.l.b16 %v313
    %v602 = vunpack.c.l.b16 %v314
    %v603 = vunpack.c.l.b16 %v315
    %v604 = vunpack.c.l.b16 %v316
    %v605 = vunpack.c.l.b16 %v317
    %v606 = vunpack.c.l.b16 %v318
    %v607 = vunpack.c.l.b16 %v319
    %v608 = vunpack.c.l.b16 %v320
    %v609 = vunpack.c.l.b16 %v321
    %v610 = vunpack.c.l.b16 %v322
    %v611 = vunpack.c.l.b16 %v323
    %v612 = vunpack.c.l.b16 %v324
    %v613 = vunpack.c.l.b16 %v325
    %v614 = vunpack.c.l.b16 %v326
    %v615 = vunpack.c.l.b16 %v327
    %v616 = vunpack.c.l.b16 %v328
    %v617 = vunpack.c.l.b16 %v329
    %v618 = vunpack.c.l.b16 %v330
    %v619 = vunpack.c.l.b16 %v331
    %v620 = vunpack.c.l.b16 %v332
    %v621 = vunpack.c.l.b16 %v333
    %v622 = vunpack.c.l.b16 %v334
    %v623 = vunpack.c.l.b16 %v335
    %v624 = vunpack.c.l.b16 %v336
    %v625 = vunpack.c.l.b16 %v337
    %v626 = vunpack.c.l.b16 %v338
    %v627 = vunpack.c.l.b16 %v339
    %v628 = vunpack.c.l.b16 %v340
    %v629 = vunpack.c.l.b16 %v341
    %v630 = vunpack.c.l.b16 %v342
    %v631 = vunpack.c.l.b16 %v343
    %v632 = vunpack.c.l.b16 %v344
    %v633 = vunpack.c.l.b16 %v345
    %v634 = vunpack.c.l.b16 %v346
    %v635 = vunpack.c.l.b16 %v347
    %v636 = vunpack.c.l.b16 %v348
    %v637 = vunpack.c.l.b16 %v349
    %v638 = vunpack.c.l.b16 %v350
    %v639 = vunpack.c.l.b16 %v351
    %v640 = vunpack.c.l.b16 %v352
    %v641 = vunpack.c.l.b16 %v353
    %v642 = vunpack.c.l.b16 %v354
    %v643 = vunpack.c.l.b16 %v355
    %v644 = vunpack.c.l.b16 %v356
    %v645 = vunpack.c.l.b16 %v357
    %v646 = vunpack.c.l.b16 %v358
    %v647 = vunpack.c.l.b16 %v359
    %v648 = vunpack.c.l.b16 %v360
    %v649 = vunpack.c.l.b16 %v361
    %v650 = vunpack.c.l.b16 %v362
    %v651 = vunpack.c.l.b16 %v363
    %v652 = vunpack.c.l.b16 %v364
    %v653 = vunpack.c.l.b16 %v365
    %v654 = vunpack.c.l.b16 %v366
    %v655 = vunpack.c.l.b16 %v367
    %v656 = vunpack.c.l.b16 %v368
    %v657 = vunpack.c.l.b16 %v369
    %v658 = vunpack.c.l.b16 %v370
    %v659 = vunpack.c.l.b16 %v371
    %v660 = vunpack.c.l.b16 %v372
    %v661 = vunpack.c.l.b16 %v373
    %v662 = vunpack.c.l.b16 %v374
    %v663 = vpack.c.b16 %v520, %v519
    %v664 = vpack.c.b16 %v522, %v521
    %v665 = vpack.c.b16 %v524, %v523
    %v666 = vpack.c.b16 %v526, %v525
    %v667 = vpack.c.b16 %v528, %v527
    %v668 = vpack.c.b16 %v530, %v529
    %v669 = vpack.c.b16 %v532, %v531
    %v670 = vpack.c.b16 %v534, %v533
    %v671 = vpack.c.b16 %v536, %v535
    %v672 = vpack.c.b16 %v538, %v537
    %v673 = vpack.c.b16 %v540, %v539
    %v674 = vpack.c.b16 %v542, %v541
    %v675 = vpack.c.b16 %v544, %v543
    %v676 = vpack.c.b16 %v546, %v545
    %v677 = vpack.c.b16 %v548, %v547
    %v678 = vpack.c.b16 %v550, %v549
    %v679 = vpack.c.b16 %v552, %v551
    %v680 = vpack.c.b16 %v554, %v553
    %v681 = vpack.c.b16 %v556, %v555
    %v682 = vpack.c.b16 %v558, %v557
    %v683 = vpack.c.b16 %v560, %v559
    %v684 = vpack.c.b16 %v562, %v561
    %v685 = vpack.c.b16 %v564, %v563
    %v686 = vpack.c.b16 %v566, %v565
    %v687 = vpack.c.b16 %v568, %v567
    %v688 = vpack.c.b16 %v570, %v569
    %v689 = vpack.c.b16 %v572, %v571
    %v690 = vpack.c.b16 %v574, %v573
    %v691 = vpack.c.b16 %v576, %v575
    %v692 = vpack.c.b16 %v578, %v577
    %v693 = vpack.c.b16 %v580, %v579
    %v694 = vpack.c.b16 %v582, %v581
    %v695 = vpack.c.b16 %v584, %v583
    %v696 = vpack.c.b16 %v586, %v585
    %v697 = vpack.c.b16 %v588, %v587
    %v698 = vpack.c.b16 %v590, %v589
    %v699 = vpack.c.b16 %v592, %v591
    %v700 = vpack.c.b16 %v594, %v593
    %v701 = vpack.c.b16 %v596, %v595
    %v702 = vpack.c.b16 %v598, %v597
    %v703 = vpack.c.b16 %v600, %v599
    %v704 = vpack.c.b16 %v602, %v601
    %v705 = vpack.c.b16 %v604, %v603
    %v706 = vpack.c.b16 %v606, %v605
    %v707 = vpack.c.b16 %v608, %v607
    %v708 = vpack.c.b16 %v610, %v609
    %v709 = vpack.c.b16 %v612, %v611
    %v710 = vpack.c.b16 %v614, %v613
    %v711 = vpack.c.b16 %v616, %v615
    %v712 = vpack.c.b16 %v618, %v617
    %v713 = vpack.c.b16 %v620, %v619
    %v714 = vpack.c.b16 %v622, %v621
    %v715 = vpack.c.b16 %v624, %v623
    %v716 = vpack.c.b16 %v626, %v625
    %v717 = vpack.c.b16 %v628, %v627
    %v718 = vpack.c.b16 %v630, %v629
    %v719 = vpack.c.b16 %v632, %v631
    %v720 = vpack.c.b16 %v634, %v633
    %v721 = vpack.c.b16 %v636, %v635
    %v722 = vpack.c.b16 %v638, %v637
    %v723 = vpack.c.b16 %v640, %v639
    %v724 = vpack.c.b16 %v642, %v641
    %v725 = vpack.c.b16 %v644, %v643
    %v726 = vpack.c.b16 %v646, %v645
    %v727 = vpack.c.b16 %v648, %v647
    %v728 = vpack.c.b16 %v650, %v649
    %v729 = vpack.c.b16 %v652, %v651
    %v730 = vpack.c.b16 %v654, %v653
    %v731 = vpack.c.b16 %v656, %v655
    %v732 = vpack.c.b16 %v658, %v657
    %v733 = vpack.c.b16 %v660, %v659
    %v734 = vpack.c.b16 %v662, %v661
    %807 = vmatpush.bf16.msra.mxu0 %v670
    %808 = vmatpush.bf16.msra.mxu0 %v669
    %809 = vmatpush.bf16.msra.mxu0 %v668
    %810 = vmatpush.bf16.msra.mxu0 %v667
    %811 = vmatpush.bf16.msra.mxu0 %v666
    %812 = vmatpush.bf16.msra.mxu0 %v665
    %813 = vmatpush.bf16.msra.mxu0 %v664
    %814 = vmatpush.bf16.msra.mxu0 %v663
    %815 = vmatmul.bf16.gmra.mxu0 %v222
    %v816 = vpop.f32.mrf.mxu0
    %v817 = vadd.f32 0.0, %v816
    %v818 = vpop.f32.mrf.mxu0
    %819 = vdwg.mxu0
    %820 = vmatpush.bf16.msra.mxu0 %v678
    %821 = vmatpush.bf16.msra.mxu0 %v677
    %822 = vmatpush.bf16.msra.mxu0 %v676
    %823 = vmatpush.bf16.msra.mxu0 %v675
    %824 = vmatpush.bf16.msra.mxu0 %v674
    %825 = vmatpush.bf16.msra.mxu0 %v673
    %826 = vmatpush.bf16.msra.mxu0 %v672
    %827 = vmatpush.bf16.msra.mxu0 %v671
    %828 = vmatmul.bf16.gmra.mxu0 %v223
    %v829 = vpop.f32.mrf.mxu0
    %v830 = vadd.f32 %v817, %v829
    %v831 = vpop.f32.mrf.mxu0
    %832 = vdwg.mxu0
    %833 = vmatpush.bf16.msra.mxu0 %v686
    %834 = vmatpush.bf16.msra.mxu0 %v685
    %835 = vmatpush.bf16.msra.mxu0 %v684
    %836 = vmatpush.bf16.msra.mxu0 %v683
    %837 = vmatpush.bf16.msra.mxu0 %v682
    %838 = vmatpush.bf16.msra.mxu0 %v681
    %839 = vmatpush.bf16.msra.mxu0 %v680
    %840 = vmatpush.bf16.msra.mxu0 %v679
    %841 = vmatmul.bf16.gmra.mxu0 %v224
    %v842 = vpop.f32.mrf.mxu0
    %v843 = vadd.f32 %v830, %v842
    %v844 = vpop.f32.mrf.mxu0
    %845 = vdwg.mxu0
    %846 = vmatpush.bf16.msra.mxu0 %v694
    %847 = vmatpush.bf16.msra.mxu0 %v693
    %848 = vmatpush.bf16.msra.mxu0 %v692
    %849 = vmatpush.bf16.msra.mxu0 %v691
    %850 = vmatpush.bf16.msra.mxu0 %v690
    %851 = vmatpush.bf16.msra.mxu0 %v689
    %852 = vmatpush.bf16.msra.mxu0 %v688
    %853 = vmatpush.bf16.msra.mxu0 %v687
    %854 = vmatmul.bf16.gmra.mxu0 %v225
    %v855 = vpop.f32.mrf.mxu0
    %v856 = vadd.f32 %v843, %v855
    %v857 = vpop.f32.mrf.mxu0
    %858 = vdwg.mxu0
    %859 = vmatpush.bf16.msra.mxu0 %v702
    %860 = vmatpush.bf16.msra.mxu0 %v701
    %861 = vmatpush.bf16.msra.mxu0 %v700
    %862 = vmatpush.bf16.msra.mxu0 %v699
    %863 = vmatpush.bf16.msra.mxu0 %v698
    %864 = vmatpush.bf16.msra.mxu0 %v697
    %865 = vmatpush.bf16.msra.mxu0 %v696
    %866 = vmatpush.bf16.msra.mxu0 %v695
    %867 = vmatmul.bf16.gmra.mxu0 %v226
    %v868 = vpop.f32.mrf.mxu0
    %v869 = vadd.f32 %v856, %v868
    %v870 = vpop.f32.mrf.mxu0
    %871 = vdwg.mxu0
    %872 = vmatpush.bf16.msra.mxu0 %v710
    %873 = vmatpush.bf16.msra.mxu0 %v709
    %874 = vmatpush.bf16.msra.mxu0 %v708
    %875 = vmatpush.bf16.msra.mxu0 %v707
    %876 = vmatpush.bf16.msra.mxu0 %v706
    %877 = vmatpush.bf16.msra.mxu0 %v705
    %878 = vmatpush.bf16.msra.mxu0 %v704
    %879 = vmatpush.bf16.msra.mxu0 %v703
    %880 = vmatmul.bf16.gmra.mxu0 %v227
    %v881 = vpop.f32.mrf.mxu0
    %v882 = vadd.f32 %v869, %v881
    %v883 = vpop.f32.mrf.mxu0
    %884 = vdwg.mxu0
    %885 = vmatpush.bf16.msra.mxu0 %v718
    %886 = vmatpush.bf16.msra.mxu0 %v717
    %887 = vmatpush.bf16.msra.mxu0 %v716
    %888 = vmatpush.bf16.msra.mxu0 %v715
    %889 = vmatpush.bf16.msra.mxu0 %v714
    %890 = vmatpush.bf16.msra.mxu0 %v713
    %891 = vmatpush.bf16.msra.mxu0 %v712
    %892 = vmatpush.bf16.msra.mxu0 %v711
    %893 = vmatmul.bf16.gmra.mxu0 %v228
    %v894 = vpop.f32.mrf.mxu0
    %v895 = vadd.f32 %v882, %v894
    %v896 = vpop.f32.mrf.mxu0
    %897 = vdwg.mxu0
    %898 = vmatpush.bf16.msra.mxu0 %v726
    %899 = vmatpush.bf16.msra.mxu0 %v725
    %900 = vmatpush.bf16.msra.mxu0 %v724
    %901 = vmatpush.bf16.msra.mxu0 %v723
    %902 = vmatpush.bf16.msra.mxu0 %v722
    %903 = vmatpush.bf16.msra.mxu0 %v721
    %904 = vmatpush.bf16.msra.mxu0 %v720
    %905 = vmatpush.bf16.msra.mxu0 %v719
    %906 = vmatmul.bf16.gmra.mxu0 %v229
    %v907 = vpop.f32.mrf.mxu0
    %v908 = vadd.f32 %v895, %v907
    %v909 = vpop.f32.mrf.mxu0
    %910 = vdwg.mxu0
    %911 = vmatpush.bf16.msra.mxu0 %v734
    %912 = vmatpush.bf16.msra.mxu0 %v733
    %913 = vmatpush.bf16.msra.mxu0 %v732
    %914 = vmatpush.bf16.msra.mxu0 %v731
    %915 = vmatpush.bf16.msra.mxu0 %v730
    %916 = vmatpush.bf16.msra.mxu0 %v729
    %917 = vmatpush.bf16.msra.mxu0 %v728
    %918 = vmatpush.bf16.msra.mxu0 %v727
    %919 = vmatmul.bf16.gmra.mxu0 %v230
    %v920 = vpop.f32.mrf.mxu0
    %v921 = vadd.f32 %v908, %v920
    %v922 = vpop.f32.mrf.mxu0
    %923 = vdwg.mxu0
    %v924 = vmul.f32 %v921, 0.5
    %v925 = vtanh.pop %v924
    %v926 = vmul.f32 %v925, 0.5
    %v927 = vadd.f32 %v926, 0.5
    %v928 = vmul.f32 %v921, %v927
    %v929 = vsub.f32 %v921, -2.2
    %v930 = vmul.f32 %v929, 2.5
    %v931 = vsub.f32 %v930, 1.0
    %v932 = vand.u32 2147483647, %v931
    %v933 = vsub.f32 1.0, %v932
    %v934 = vmax.f32 %v933, 0.0
    %v935 = vsub.f32 %v930, 2.0
    %v936 = vand.u32 2147483647, %v935
    %v937 = vsub.f32 1.0, %v936
    %v938 = vmax.f32 %v937, 0.0
    %v939 = vsub.f32 %v930, 3.0
    %v940 = vand.u32 2147483647, %v939
    %v941 = vsub.f32 1.0, %v940
    %v942 = vmax.f32 %v941, 0.0
    %v943 = vsub.f32 %v930, 4.0
    %v944 = vand.u32 2147483647, %v943
    %v945 = vsub.f32 1.0, %v944
    %v946 = vmax.f32 %v945, 0.0
    %v947 = vsub.f32 %v930, 5.0
    %v948 = vand.u32 2147483647, %v947
    %v949 = vsub.f32 1.0, %v948
    %v950 = vmax.f32 %v949, 0.0
    %v951 = vsub.f32 %v930, 6.0
    %v952 = vand.u32 2147483647, %v951
    %v953 = vsub.f32 1.0, %v952
    %v954 = vmax.f32 %v953, 0.0
    %v955 = vsub.f32 %v930, 7.0
    %v956 = vand.u32 2147483647, %v955
    %v957 = vsub.f32 1.0, %v956
    %v958 = vmax.f32 %v957, 0.0
    %v959 = vsub.f32 %v930, 8.0
    %v960 = vand.u32 2147483647, %v959
    %v961 = vsub.f32 1.0, %v960
    %v962 = vmax.f32 %v961, 0.0
    %v963 = vsub.f32 %v930, 9.0
    %v964 = vand.u32 2147483647, %v963
    %v965 = vsub.f32 1.0, %v964
    %v966 = vmax.f32 %v965, 0.0
    %v967 = vsub.f32 %v930, 10.0
    %v968 = vand.u32 2147483647, %v967
    %v969 = vsub.f32 1.0, %v968
    %v970 = vmax.f32 %v969, 0.0
    %v971 = vmul.f32 %v930, %v934
    %v972 = vsub.f32 3.0, %v930
    %v973 = vmul.f32 %v972, %v938
    %v974 = vadd.f32 %v971, %v973
    %v975 = vmul.f32 %v974, 0.5
    %v976 = vmul.f32 %v931, %v938
    %v977 = vsub.f32 4.0, %v930
    %v978 = vmul.f32 %v977, %v942
    %v979 = vadd.f32 %v976, %v978
    %v980 = vmul.f32 %v979, 0.5
    %v981 = vmul.f32 %v935, %v942
    %v982 = vsub.f32 5.0, %v930
    %v983 = vmul.f32 %v982, %v946
    %v984 = vadd.f32 %v981, %v983
    %v985 = vmul.f32 %v984, 0.5
    %v986 = vmul.f32 %v939, %v946
    %v987 = vsub.f32 6.0, %v930
    %v988 = vmul.f32 %v987, %v950
    %v989 = vadd.f32 %v986, %v988
    %v990 = vmul.f32 %v989, 0.5
    %v991 = vmul.f32 %v943, %v950
    %v992 = vsub.f32 7.0, %v930
    %v993 = vmul.f32 %v992, %v954
    %v994 = vadd.f32 %v991, %v993
    %v995 = vmul.f32 %v994, 0.5
    %v996 = vmul.f32 %v947, %v954
    %v997 = vsub.f32 8.0, %v930
    %v998 = vmul.f32 %v997, %v958
    %v999 = vadd.f32 %v996, %v998
    %v1000 = vmul.f32 %v999, 0.5
    %v1001 = vmul.f32 %v951, %v958
    %v1002 = vsub.f32 9.0, %v930
    %v1003 = vmul.f32 %v1002, %v962
    %v1004 = vadd.f32 %v1001, %v1003
    %v1005 = vmul.f32 %v1004, 0.5
    %v1006 = vmul.f32 %v955, %v962
    %v1007 = vsub.f32 10.0, %v930
    %v1008 = vmul.f32 %v1007, %v966
    %v1009 = vadd.f32 %v1006, %v1008
    %v1010 = vmul.f32 %v1009, 0.5
    %v1011 = vmul.f32 %v959, %v966
    %v1012 = vsub.f32 11.0, %v930
    %v1013 = vmul.f32 %v1012, %v970
    %v1014 = vadd.f32 %v1011, %v1013
    %v1015 = vmul.f32 %v1014, 0.5
    %v1016 = vmul.f32 %v930, %v975
    %v1017 = vmul.f32 %v977, %v980
    %v1018 = vadd.f32 %v1016, %v1017
    %v1019 = vmul.f32 %v1018, 0.33333334
    %v1020 = vmul.f32 %v931, %v980
    %v1021 = vmul.f32 %v982, %v985
    %v1022 = vadd.f32 %v1020, %v1021
    %v1023 = vmul.f32 %v1022, 0.33333334
    %v1024 = vmul.f32 %v935, %v985
    %v1025 = vmul.f32 %v987, %v990
    %v1026 = vadd.f32 %v1024, %v1025
    %v1027 = vmul.f32 %v1026, 0.33333334
    %v1028 = vmul.f32 %v939, %v990
    %v1029 = vmul.f32 %v992, %v995
    %v1030 = vadd.f32 %v1028, %v1029
    %v1031 = vmul.f32 %v1030, 0.33333334
    %v1032 = vmul.f32 %v943, %v995
    %v1033 = vmul.f32 %v997, %v1000
    %v1034 = vadd.f32 %v1032, %v1033
    %v1035 = vmul.f32 %v1034, 0.33333334
    %v1036 = vmul.f32 %v947, %v1000
    %v1037 = vmul.f32 %v1002, %v1005
    %v1038 = vadd.f32 %v1036, %v1037
    %v1039 = vmul.f32 %v1038, 0.33333334
    %v1040 = vmul.f32 %v951, %v1005
    %v1041 = vmul.f32 %v1007, %v1010
    %v1042 = vadd.f32 %v1040, %v1041
    %v1043 = vmul.f32 %v1042, 0.33333334
    %v1044 = vmul.f32 %v955, %v1010
    %v1045 = vmul.f32 %v1012, %v1015
    %v1046 = vadd.f32 %v1044, %v1045
    %v1047 = vmul.f32 %v1046, 0.33333334
    %v1048 = vpack.c.bf16 %v928, %v928
    %v1049 = vpack.c.bf16 %v1019, %v1019
    %v1050 = vpack.c.bf16 %v1023, %v1023
    %v1051 = vpack.c.bf16 %v1027, %v1027
    %v1052 = vpack.c.bf16 %v1031, %v1031
    %v1053 = vpack.c.bf16 %v1035, %v1035
    %v1054 = vpack.c.bf16 %v1039, %v1039
    %v1055 = vpack.c.bf16 %v1043, %v1043
    %v1056 = vpack.c.bf16 %v1047, %v1047
    %v1057 = vld [vmem:[#allocation7] sm:$0xf]
    %v1058 = vld [vmem:[#allocation7 + $0x4] sm:$0xf]
    %v1059 = vld [vmem:[#allocation7 + $0x8] sm:$0xf]
    %v1060 = vld [vmem:[#allocation7 + $0xc] sm:$0xf]
    %v1061 = vld [vmem:[#allocation7 + $0x10] sm:$0xf]
    %v1062 = vld [vmem:[#allocation7 + $0x14] sm:$0xf]
    %v1063 = vld [vmem:[#allocation7 + $0x18] sm:$0xf]
    %v1064 = vld [vmem:[#allocation7 + $0x1c] sm:$0xf]
    %v1065 = vld [vmem:[#allocation7 + $0x20] sm:$0xf]
    %v1066 = vld [vmem:[#allocation7 + $0x24] sm:$0xf]
    %v1067 = vld [vmem:[#allocation7 + $0x28] sm:$0xf]
    %v1068 = vld [vmem:[#allocation7 + $0x2c] sm:$0xf]
    %v1069 = vld [vmem:[#allocation7 + $0x30] sm:$0xf]
    %v1070 = vld [vmem:[#allocation7 + $0x34] sm:$0xf]
    %v1071 = vld [vmem:[#allocation7 + $0x38] sm:$0xf]
    %v1072 = vld [vmem:[#allocation7 + $0x3c] sm:$0xf]
    %v1073 = vld [vmem:[#allocation7 + $0x40] sm:$0xf]
    %v1074 = vld [vmem:[#allocation7 + $0x44] sm:$0xf]
    %v1075 = vld [vmem:[#allocation7 + $0x48] sm:$0xf]
    %v1076 = vld [vmem:[#allocation7 + $0x4c] sm:$0xf]
    %v1077 = vld [vmem:[#allocation7 + $0x50] sm:$0xf]
    %v1078 = vld [vmem:[#allocation7 + $0x54] sm:$0xf]
    %v1079 = vld [vmem:[#allocation7 + $0x58] sm:$0xf]
    %v1080 = vld [vmem:[#allocation7 + $0x5c] sm:$0xf]
    %v1081 = vld [vmem:[#allocation7 + $0x60] sm:$0xf]
    %v1082 = vld [vmem:[#allocation7 + $0x64] sm:$0xf]
    %v1083 = vld [vmem:[#allocation7 + $0x68] sm:$0xf]
    %v1084 = vld [vmem:[#allocation7 + $0x6c] sm:$0xf]
    %v1085 = vld [vmem:[#allocation7 + $0x70] sm:$0xf]
    %v1086 = vld [vmem:[#allocation7 + $0x74] sm:$0xf]
    %v1087 = vld [vmem:[#allocation7 + $0x78] sm:$0xf]
    %v1088 = vld [vmem:[#allocation7 + $0x7c] sm:$0xf]
    %v1089 = vld [vmem:[#allocation7 + $0x80] sm:$0xf]
    %v1090 = vld [vmem:[#allocation7 + $0x84] sm:$0xf]
    %v1091 = vld [vmem:[#allocation7 + $0x88] sm:$0xf]
    %v1092 = vld [vmem:[#allocation7 + $0x8c] sm:$0xf]
    %v1093 = vld [vmem:[#allocation7 + $0x90] sm:$0xf]
    %v1094 = vld [vmem:[#allocation7 + $0x94] sm:$0xf]
    %v1095 = vld [vmem:[#allocation7 + $0x98] sm:$0xf]
    %v1096 = vld [vmem:[#allocation7 + $0x9c] sm:$0xf]
    %v1097 = vld [vmem:[#allocation7 + $0xa0] sm:$0xf]
    %v1098 = vld [vmem:[#allocation7 + $0xa4] sm:$0xf]
    %v1099 = vld [vmem:[#allocation7 + $0xa8] sm:$0xf]
    %v1100 = vld [vmem:[#allocation7 + $0xac] sm:$0xf]
    %v1101 = vld [vmem:[#allocation7 + $0xb0] sm:$0xf]
    %v1102 = vld [vmem:[#allocation7 + $0xb4] sm:$0xf]
    %v1103 = vld [vmem:[#allocation7 + $0xb8] sm:$0xf]
    %v1104 = vld [vmem:[#allocation7 + $0xbc] sm:$0xf]
    %v1105 = vld [vmem:[#allocation7 + $0xc0] sm:$0xf]
    %v1106 = vld [vmem:[#allocation7 + $0xc4] sm:$0xf]
    %v1107 = vld [vmem:[#allocation7 + $0xc8] sm:$0xf]
    %v1108 = vld [vmem:[#allocation7 + $0xcc] sm:$0xf]
    %v1109 = vld [vmem:[#allocation7 + $0xd0] sm:$0xf]
    %v1110 = vld [vmem:[#allocation7 + $0xd4] sm:$0xf]
    %v1111 = vld [vmem:[#allocation7 + $0xd8] sm:$0xf]
    %v1112 = vld [vmem:[#allocation7 + $0xdc] sm:$0xf]
    %v1113 = vld [vmem:[#allocation7 + $0xe0] sm:$0xf]
    %v1114 = vld [vmem:[#allocation7 + $0xe4] sm:$0xf]
    %v1115 = vld [vmem:[#allocation7 + $0xe8] sm:$0xf]
    %v1116 = vld [vmem:[#allocation7 + $0xec] sm:$0xf]
    %v1117 = vld [vmem:[#allocation7 + $0xf0] sm:$0xf]
    %v1118 = vld [vmem:[#allocation7 + $0xf4] sm:$0xf]
    %v1119 = vld [vmem:[#allocation7 + $0xf8] sm:$0xf]
    %v1120 = vld [vmem:[#allocation7 + $0xfc] sm:$0xf]
    %v1121 = vld [vmem:[#allocation7 + $0x100] sm:$0xf]
    %v1122 = vld [vmem:[#allocation7 + $0x104] sm:$0xf]
    %v1123 = vld [vmem:[#allocation7 + $0x108] sm:$0xf]
    %v1124 = vld [vmem:[#allocation7 + $0x10c] sm:$0xf]
    %v1125 = vld [vmem:[#allocation7 + $0x110] sm:$0xf]
    %v1126 = vld [vmem:[#allocation7 + $0x114] sm:$0xf]
    %v1127 = vld [vmem:[#allocation7 + $0x118] sm:$0xf]
    %v1128 = vld [vmem:[#allocation7 + $0x11c] sm:$0xf]
    %v1129 = vld [vmem:[#allocation7 + $0x120] sm:$0xf]
    %v1130 = vld [vmem:[#allocation7 + $0x124] sm:$0xf]
    %v1131 = vld [vmem:[#allocation7 + $0x128] sm:$0xf]
    %v1132 = vld [vmem:[#allocation7 + $0x12c] sm:$0xf]
    %v1133 = vld [vmem:[#allocation7 + $0x130] sm:$0xf]
    %v1134 = vld [vmem:[#allocation7 + $0x134] sm:$0xf]
    %v1135 = vld [vmem:[#allocation7 + $0x138] sm:$0xf]
    %v1136 = vld [vmem:[#allocation7 + $0x13c] sm:$0xf]
    %v1137 = vld [vmem:[#allocation7 + $0x140] sm:$0xf]
    %v1138 = vld [vmem:[#allocation7 + $0x144] sm:$0xf]
    %v1139 = vld [vmem:[#allocation7 + $0x148] sm:$0xf]
    %v1140 = vld [vmem:[#allocation7 + $0x14c] sm:$0xf]
    %v1141 = vld [vmem:[#allocation7 + $0x150] sm:$0xf]
    %v1142 = vld [vmem:[#allocation7 + $0x154] sm:$0xf]
    %v1143 = vld [vmem:[#allocation7 + $0x158] sm:$0xf]
    %v1144 = vld [vmem:[#allocation7 + $0x15c] sm:$0xf]
    %v1145 = vld [vmem:[#allocation7 + $0x160] sm:$0xf]
    %v1146 = vld [vmem:[#allocation7 + $0x164] sm:$0xf]
    %v1147 = vld [vmem:[#allocation7 + $0x168] sm:$0xf]
    %v1148 = vld [vmem:[#allocation7 + $0x16c] sm:$0xf]
    %v1149 = vld [vmem:[#allocation7 + $0x170] sm:$0xf]
    %v1150 = vld [vmem:[#allocation7 + $0x174] sm:$0xf]
    %v1151 = vld [vmem:[#allocation7 + $0x178] sm:$0xf]
    %v1152 = vld [vmem:[#allocation7 + $0x17c] sm:$0xf]
    %v1153 = vld [vmem:[#allocation7 + $0x180] sm:$0xf]
    %v1154 = vld [vmem:[#allocation7 + $0x184] sm:$0xf]
    %v1155 = vld [vmem:[#allocation7 + $0x188] sm:$0xf]
    %v1156 = vld [vmem:[#allocation7 + $0x18c] sm:$0xf]
    %v1157 = vld [vmem:[#allocation7 + $0x190] sm:$0xf]
    %v1158 = vld [vmem:[#allocation7 + $0x194] sm:$0xf]
    %v1159 = vld [vmem:[#allocation7 + $0x198] sm:$0xf]
    %v1160 = vld [vmem:[#allocation7 + $0x19c] sm:$0xf]
    %v1161 = vld [vmem:[#allocation7 + $0x1a0] sm:$0xf]
    %v1162 = vld [vmem:[#allocation7 + $0x1a4] sm:$0xf]
    %v1163 = vld [vmem:[#allocation7 + $0x1a8] sm:$0xf]
    %v1164 = vld [vmem:[#allocation7 + $0x1ac] sm:$0xf]
    %v1165 = vld [vmem:[#allocation7 + $0x1b0] sm:$0xf]
    %v1166 = vld [vmem:[#allocation7 + $0x1b4] sm:$0xf]
    %v1167 = vld [vmem:[#allocation7 + $0x1b8] sm:$0xf]
    %v1168 = vld [vmem:[#allocation7 + $0x1bc] sm:$0xf]
    %v1169 = vld [vmem:[#allocation7 + $0x1c0] sm:$0xf]
    %v1170 = vld [vmem:[#allocation7 + $0x1c4] sm:$0xf]
    %v1171 = vld [vmem:[#allocation7 + $0x1c8] sm:$0xf]
    %v1172 = vld [vmem:[#allocation7 + $0x1cc] sm:$0xf]
    %v1173 = vld [vmem:[#allocation7 + $0x1d0] sm:$0xf]
    %v1174 = vld [vmem:[#allocation7 + $0x1d4] sm:$0xf]
    %v1175 = vld [vmem:[#allocation7 + $0x1d8] sm:$0xf]
    %v1176 = vld [vmem:[#allocation7 + $0x1dc] sm:$0xf]
    %v1177 = vld [vmem:[#allocation7 + $0x1e0] sm:$0xf]
    %v1178 = vld [vmem:[#allocation7 + $0x1e4] sm:$0xf]
    %v1179 = vld [vmem:[#allocation7 + $0x1e8] sm:$0xf]
    %v1180 = vld [vmem:[#allocation7 + $0x1ec] sm:$0xf]
    %v1181 = vld [vmem:[#allocation7 + $0x1f0] sm:$0xf]
    %v1182 = vld [vmem:[#allocation7 + $0x1f4] sm:$0xf]
    %v1183 = vld [vmem:[#allocation7 + $0x1f8] sm:$0xf]
    %v1184 = vld [vmem:[#allocation7 + $0x1fc] sm:$0xf]
    %v1185 = vld [vmem:[#allocation7 + $0x200] sm:$0xf]
    %v1186 = vld [vmem:[#allocation7 + $0x204] sm:$0xf]
    %v1187 = vld [vmem:[#allocation7 + $0x208] sm:$0xf]
    %v1188 = vld [vmem:[#allocation7 + $0x20c] sm:$0xf]
    %v1189 = vld [vmem:[#allocation7 + $0x210] sm:$0xf]
    %v1190 = vld [vmem:[#allocation7 + $0x214] sm:$0xf]
    %v1191 = vld [vmem:[#allocation7 + $0x218] sm:$0xf]
    %v1192 = vld [vmem:[#allocation7 + $0x21c] sm:$0xf]
    %v1193 = vld [vmem:[#allocation7 + $0x220] sm:$0xf]
    %v1194 = vld [vmem:[#allocation7 + $0x224] sm:$0xf]
    %v1195 = vld [vmem:[#allocation7 + $0x228] sm:$0xf]
    %v1196 = vld [vmem:[#allocation7 + $0x22c] sm:$0xf]
    %v1197 = vld [vmem:[#allocation7 + $0x230] sm:$0xf]
    %v1198 = vld [vmem:[#allocation7 + $0x234] sm:$0xf]
    %v1199 = vld [vmem:[#allocation7 + $0x238] sm:$0xf]
    %v1200 = vld [vmem:[#allocation7 + $0x23c] sm:$0xf]
    %v1345 = vunpack.c.l.b16 %v1057
    %v1346 = vunpack.c.l.b16 %v1058
    %v1347 = vunpack.c.l.b16 %v1059
    %v1348 = vunpack.c.l.b16 %v1060
    %v1349 = vunpack.c.l.b16 %v1061
    %v1350 = vunpack.c.l.b16 %v1062
    %v1351 = vunpack.c.l.b16 %v1063
    %v1352 = vunpack.c.l.b16 %v1064
    %v1353 = vunpack.c.l.b16 %v1065
    %v1354 = vunpack.c.l.b16 %v1066
    %v1355 = vunpack.c.l.b16 %v1067
    %v1356 = vunpack.c.l.b16 %v1068
    %v1357 = vunpack.c.l.b16 %v1069
    %v1358 = vunpack.c.l.b16 %v1070
    %v1359 = vunpack.c.l.b16 %v1071
    %v1360 = vunpack.c.l.b16 %v1072
    %v1361 = vunpack.c.l.b16 %v1073
    %v1362 = vunpack.c.l.b16 %v1074
    %v1363 = vunpack.c.l.b16 %v1075
    %v1364 = vunpack.c.l.b16 %v1076
    %v1365 = vunpack.c.l.b16 %v1077
    %v1366 = vunpack.c.l.b16 %v1078
    %v1367 = vunpack.c.l.b16 %v1079
    %v1368 = vunpack.c.l.b16 %v1080
    %v1369 = vunpack.c.l.b16 %v1081
    %v1370 = vunpack.c.l.b16 %v1082
    %v1371 = vunpack.c.l.b16 %v1083
    %v1372 = vunpack.c.l.b16 %v1084
    %v1373 = vunpack.c.l.b16 %v1085
    %v1374 = vunpack.c.l.b16 %v1086
    %v1375 = vunpack.c.l.b16 %v1087
    %v1376 = vunpack.c.l.b16 %v1088
    %v1377 = vunpack.c.l.b16 %v1089
    %v1378 = vunpack.c.l.b16 %v1090
    %v1379 = vunpack.c.l.b16 %v1091
    %v1380 = vunpack.c.l.b16 %v1092
    %v1381 = vunpack.c.l.b16 %v1093
    %v1382 = vunpack.c.l.b16 %v1094
    %v1383 = vunpack.c.l.b16 %v1095
    %v1384 = vunpack.c.l.b16 %v1096
    %v1385 = vunpack.c.l.b16 %v1097
    %v1386 = vunpack.c.l.b16 %v1098
    %v1387 = vunpack.c.l.b16 %v1099
    %v1388 = vunpack.c.l.b16 %v1100
    %v1389 = vunpack.c.l.b16 %v1101
    %v1390 = vunpack.c.l.b16 %v1102
    %v1391 = vunpack.c.l.b16 %v1103
    %v1392 = vunpack.c.l.b16 %v1104
    %v1393 = vunpack.c.l.b16 %v1105
    %v1394 = vunpack.c.l.b16 %v1106
    %v1395 = vunpack.c.l.b16 %v1107
    %v1396 = vunpack.c.l.b16 %v1108
    %v1397 = vunpack.c.l.b16 %v1109
    %v1398 = vunpack.c.l.b16 %v1110
    %v1399 = vunpack.c.l.b16 %v1111
    %v1400 = vunpack.c.l.b16 %v1112
    %v1401 = vunpack.c.l.b16 %v1113
    %v1402 = vunpack.c.l.b16 %v1114
    %v1403 = vunpack.c.l.b16 %v1115
    %v1404 = vunpack.c.l.b16 %v1116
    %v1405 = vunpack.c.l.b16 %v1117
    %v1406 = vunpack.c.l.b16 %v1118
    %v1407 = vunpack.c.l.b16 %v1119
    %v1408 = vunpack.c.l.b16 %v1120
    %v1409 = vunpack.c.l.b16 %v1121
    %v1410 = vunpack.c.l.b16 %v1122
    %v1411 = vunpack.c.l.b16 %v1123
    %v1412 = vunpack.c.l.b16 %v1124
    %v1413 = vunpack.c.l.b16 %v1125
    %v1414 = vunpack.c.l.b16 %v1126
    %v1415 = vunpack.c.l.b16 %v1127
    %v1416 = vunpack.c.l.b16 %v1128
    %v1417 = vunpack.c.l.b16 %v1129
    %v1418 = vunpack.c.l.b16 %v1130
    %v1419 = vunpack.c.l.b16 %v1131
    %v1420 = vunpack.c.l.b16 %v1132
    %v1421 = vunpack.c.l.b16 %v1133
    %v1422 = vunpack.c.l.b16 %v1134
    %v1423 = vunpack.c.l.b16 %v1135
    %v1424 = vunpack.c.l.b16 %v1136
    %v1425 = vunpack.c.l.b16 %v1137
    %v1426 = vunpack.c.l.b16 %v1138
    %v1427 = vunpack.c.l.b16 %v1139
    %v1428 = vunpack.c.l.b16 %v1140
    %v1429 = vunpack.c.l.b16 %v1141
    %v1430 = vunpack.c.l.b16 %v1142
    %v1431 = vunpack.c.l.b16 %v1143
    %v1432 = vunpack.c.l.b16 %v1144
    %v1433 = vunpack.c.l.b16 %v1145
    %v1434 = vunpack.c.l.b16 %v1146
    %v1435 = vunpack.c.l.b16 %v1147
    %v1436 = vunpack.c.l.b16 %v1148
    %v1437 = vunpack.c.l.b16 %v1149
    %v1438 = vunpack.c.l.b16 %v1150
    %v1439 = vunpack.c.l.b16 %v1151
    %v1440 = vunpack.c.l.b16 %v1152
    %v1441 = vunpack.c.l.b16 %v1153
    %v1442 = vunpack.c.l.b16 %v1154
    %v1443 = vunpack.c.l.b16 %v1155
    %v1444 = vunpack.c.l.b16 %v1156
    %v1445 = vunpack.c.l.b16 %v1157
    %v1446 = vunpack.c.l.b16 %v1158
    %v1447 = vunpack.c.l.b16 %v1159
    %v1448 = vunpack.c.l.b16 %v1160
    %v1449 = vunpack.c.l.b16 %v1161
    %v1450 = vunpack.c.l.b16 %v1162
    %v1451 = vunpack.c.l.b16 %v1163
    %v1452 = vunpack.c.l.b16 %v1164
    %v1453 = vunpack.c.l.b16 %v1165
    %v1454 = vunpack.c.l.b16 %v1166
    %v1455 = vunpack.c.l.b16 %v1167
    %v1456 = vunpack.c.l.b16 %v1168
    %v1457 = vunpack.c.l.b16 %v1169
    %v1458 = vunpack.c.l.b16 %v1170
    %v1459 = vunpack.c.l.b16 %v1171
    %v1460 = vunpack.c.l.b16 %v1172
    %v1461 = vunpack.c.l.b16 %v1173
    %v1462 = vunpack.c.l.b16 %v1174
    %v1463 = vunpack.c.l.b16 %v1175
    %v1464 = vunpack.c.l.b16 %v1176
    %v1465 = vunpack.c.l.b16 %v1177
    %v1466 = vunpack.c.l.b16 %v1178
    %v1467 = vunpack.c.l.b16 %v1179
    %v1468 = vunpack.c.l.b16 %v1180
    %v1469 = vunpack.c.l.b16 %v1181
    %v1470 = vunpack.c.l.b16 %v1182
    %v1471 = vunpack.c.l.b16 %v1183
    %v1472 = vunpack.c.l.b16 %v1184
    %v1473 = vunpack.c.l.b16 %v1185
    %v1474 = vunpack.c.l.b16 %v1186
    %v1475 = vunpack.c.l.b16 %v1187
    %v1476 = vunpack.c.l.b16 %v1188
    %v1477 = vunpack.c.l.b16 %v1189
    %v1478 = vunpack.c.l.b16 %v1190
    %v1479 = vunpack.c.l.b16 %v1191
    %v1480 = vunpack.c.l.b16 %v1192
    %v1481 = vunpack.c.l.b16 %v1193
    %v1482 = vunpack.c.l.b16 %v1194
    %v1483 = vunpack.c.l.b16 %v1195
    %v1484 = vunpack.c.l.b16 %v1196
    %v1485 = vunpack.c.l.b16 %v1197
    %v1486 = vunpack.c.l.b16 %v1198
    %v1487 = vunpack.c.l.b16 %v1199
    %v1488 = vunpack.c.l.b16 %v1200
    %v1489 = vpack.c.b16 %v1346, %v1345
    %v1490 = vpack.c.b16 %v1348, %v1347
    %v1491 = vpack.c.b16 %v1350, %v1349
    %v1492 = vpack.c.b16 %v1352, %v1351
    %v1493 = vpack.c.b16 %v1354, %v1353
    %v1494 = vpack.c.b16 %v1356, %v1355
    %v1495 = vpack.c.b16 %v1358, %v1357
    %v1496 = vpack.c.b16 %v1360, %v1359
    %v1497 = vpack.c.b16 %v1362, %v1361
    %v1498 = vpack.c.b16 %v1364, %v1363
    %v1499 = vpack.c.b16 %v1366, %v1365
    %v1500 = vpack.c.b16 %v1368, %v1367
    %v1501 = vpack.c.b16 %v1370, %v1369
    %v1502 = vpack.c.b16 %v1372, %v1371
    %v1503 = vpack.c.b16 %v1374, %v1373
    %v1504 = vpack.c.b16 %v1376, %v1375
    %v1505 = vpack.c.b16 %v1378, %v1377
    %v1506 = vpack.c.b16 %v1380, %v1379
    %v1507 = vpack.c.b16 %v1382, %v1381
    %v1508 = vpack.c.b16 %v1384, %v1383
    %v1509 = vpack.c.b16 %v1386, %v1385
    %v1510 = vpack.c.b16 %v1388, %v1387
    %v1511 = vpack.c.b16 %v1390, %v1389
    %v1512 = vpack.c.b16 %v1392, %v1391
    %v1513 = vpack.c.b16 %v1394, %v1393
    %v1514 = vpack.c.b16 %v1396, %v1395
    %v1515 = vpack.c.b16 %v1398, %v1397
    %v1516 = vpack.c.b16 %v1400, %v1399
    %v1517 = vpack.c.b16 %v1402, %v1401
    %v1518 = vpack.c.b16 %v1404, %v1403
    %v1519 = vpack.c.b16 %v1406, %v1405
    %v1520 = vpack.c.b16 %v1408, %v1407
    %v1521 = vpack.c.b16 %v1410, %v1409
    %v1522 = vpack.c.b16 %v1412, %v1411
    %v1523 = vpack.c.b16 %v1414, %v1413
    %v1524 = vpack.c.b16 %v1416, %v1415
    %v1525 = vpack.c.b16 %v1418, %v1417
    %v1526 = vpack.c.b16 %v1420, %v1419
    %v1527 = vpack.c.b16 %v1422, %v1421
    %v1528 = vpack.c.b16 %v1424, %v1423
    %v1529 = vpack.c.b16 %v1426, %v1425
    %v1530 = vpack.c.b16 %v1428, %v1427
    %v1531 = vpack.c.b16 %v1430, %v1429
    %v1532 = vpack.c.b16 %v1432, %v1431
    %v1533 = vpack.c.b16 %v1434, %v1433
    %v1534 = vpack.c.b16 %v1436, %v1435
    %v1535 = vpack.c.b16 %v1438, %v1437
    %v1536 = vpack.c.b16 %v1440, %v1439
    %v1537 = vpack.c.b16 %v1442, %v1441
    %v1538 = vpack.c.b16 %v1444, %v1443
    %v1539 = vpack.c.b16 %v1446, %v1445
    %v1540 = vpack.c.b16 %v1448, %v1447
    %v1541 = vpack.c.b16 %v1450, %v1449
    %v1542 = vpack.c.b16 %v1452, %v1451
    %v1543 = vpack.c.b16 %v1454, %v1453
    %v1544 = vpack.c.b16 %v1456, %v1455
    %v1545 = vpack.c.b16 %v1458, %v1457
    %v1546 = vpack.c.b16 %v1460, %v1459
    %v1547 = vpack.c.b16 %v1462, %v1461
    %v1548 = vpack.c.b16 %v1464, %v1463
    %v1549 = vpack.c.b16 %v1466, %v1465
    %v1550 = vpack.c.b16 %v1468, %v1467
    %v1551 = vpack.c.b16 %v1470, %v1469
    %v1552 = vpack.c.b16 %v1472, %v1471
    %v1553 = vpack.c.b16 %v1474, %v1473
    %v1554 = vpack.c.b16 %v1476, %v1475
    %v1555 = vpack.c.b16 %v1478, %v1477
    %v1556 = vpack.c.b16 %v1480, %v1479
    %v1557 = vpack.c.b16 %v1482, %v1481
    %v1558 = vpack.c.b16 %v1484, %v1483
    %v1559 = vpack.c.b16 %v1486, %v1485
    %v1560 = vpack.c.b16 %v1488, %v1487
    %1633 = vmatpush.bf16.msra.mxu0 %v1496
    %1634 = vmatpush.bf16.msra.mxu0 %v1495
    %1635 = vmatpush.bf16.msra.mxu0 %v1494
    %1636 = vmatpush.bf16.msra.mxu0 %v1493
    %1637 = vmatpush.bf16.msra.mxu0 %v1492
    %1638 = vmatpush.bf16.msra.mxu0 %v1491
    %1639 = vmatpush.bf16.msra.mxu0 %v1490
    %1640 = vmatpush.bf16.msra.mxu0 %v1489
    %1641 = vmatmul.bf16.gmra.mxu0 %v1048
    %v1642 = vpop.f32.mrf.mxu0
    %v1643 = vadd.f32 0.0, %v1642
    %v1644 = vpop.f32.mrf.mxu0
    %1645 = vdwg.mxu0
    %1646 = vmatpush.bf16.msra.mxu0 %v1504
    %1647 = vmatpush.bf16.msra.mxu0 %v1503
    %1648 = vmatpush.bf16.msra.mxu0 %v1502
    %1649 = vmatpush.bf16.msra.mxu0 %v1501
    %1650 = vmatpush.bf16.msra.mxu0 %v1500
    %1651 = vmatpush.bf16.msra.mxu0 %v1499
    %1652 = vmatpush.bf16.msra.mxu0 %v1498
    %1653 = vmatpush.bf16.msra.mxu0 %v1497
    %1654 = vmatmul.bf16.gmra.mxu0 %v1049
    %v1655 = vpop.f32.mrf.mxu0
    %v1656 = vadd.f32 %v1643, %v1655
    %v1657 = vpop.f32.mrf.mxu0
    %1658 = vdwg.mxu0
    %1659 = vmatpush.bf16.msra.mxu0 %v1512
    %1660 = vmatpush.bf16.msra.mxu0 %v1511
    %1661 = vmatpush.bf16.msra.mxu0 %v1510
    %1662 = vmatpush.bf16.msra.mxu0 %v1509
    %1663 = vmatpush.bf16.msra.mxu0 %v1508
    %1664 = vmatpush.bf16.msra.mxu0 %v1507
    %1665 = vmatpush.bf16.msra.mxu0 %v1506
    %1666 = vmatpush.bf16.msra.mxu0 %v1505
    %1667 = vmatmul.bf16.gmra.mxu0 %v1050
    %v1668 = vpop.f32.mrf.mxu0
    %v1669 = vadd.f32 %v1656, %v1668
    %v1670 = vpop.f32.mrf.mxu0
    %1671 = vdwg.mxu0
    %1672 = vmatpush.bf16.msra.mxu0 %v1520
    %1673 = vmatpush.bf16.msra.mxu0 %v1519
    %1674 = vmatpush.bf16.msra.mxu0 %v1518
    %1675 = vmatpush.bf16.msra.mxu0 %v1517
    %1676 = vmatpush.bf16.msra.mxu0 %v1516
    %1677 = vmatpush.bf16.msra.mxu0 %v1515
    %1678 = vmatpush.bf16.msra.mxu0 %v1514
    %1679 = vmatpush.bf16.msra.mxu0 %v1513
    %1680 = vmatmul.bf16.gmra.mxu0 %v1051
    %v1681 = vpop.f32.mrf.mxu0
    %v1682 = vadd.f32 %v1669, %v1681
    %v1683 = vpop.f32.mrf.mxu0
    %1684 = vdwg.mxu0
    %1685 = vmatpush.bf16.msra.mxu0 %v1528
    %1686 = vmatpush.bf16.msra.mxu0 %v1527
    %1687 = vmatpush.bf16.msra.mxu0 %v1526
    %1688 = vmatpush.bf16.msra.mxu0 %v1525
    %1689 = vmatpush.bf16.msra.mxu0 %v1524
    %1690 = vmatpush.bf16.msra.mxu0 %v1523
    %1691 = vmatpush.bf16.msra.mxu0 %v1522
    %1692 = vmatpush.bf16.msra.mxu0 %v1521
    %1693 = vmatmul.bf16.gmra.mxu0 %v1052
    %v1694 = vpop.f32.mrf.mxu0
    %v1695 = vadd.f32 %v1682, %v1694
    %v1696 = vpop.f32.mrf.mxu0
    %1697 = vdwg.mxu0
    %1698 = vmatpush.bf16.msra.mxu0 %v1536
    %1699 = vmatpush.bf16.msra.mxu0 %v1535
    %1700 = vmatpush.bf16.msra.mxu0 %v1534
    %1701 = vmatpush.bf16.msra.mxu0 %v1533
    %1702 = vmatpush.bf16.msra.mxu0 %v1532
    %1703 = vmatpush.bf16.msra.mxu0 %v1531
    %1704 = vmatpush.bf16.msra.mxu0 %v1530
    %1705 = vmatpush.bf16.msra.mxu0 %v1529
    %1706 = vmatmul.bf16.gmra.mxu0 %v1053
    %v1707 = vpop.f32.mrf.mxu0
    %v1708 = vadd.f32 %v1695, %v1707
    %v1709 = vpop.f32.mrf.mxu0
    %1710 = vdwg.mxu0
    %1711 = vmatpush.bf16.msra.mxu0 %v1544
    %1712 = vmatpush.bf16.msra.mxu0 %v1543
    %1713 = vmatpush.bf16.msra.mxu0 %v1542
    %1714 = vmatpush.bf16.msra.mxu0 %v1541
    %1715 = vmatpush.bf16.msra.mxu0 %v1540
    %1716 = vmatpush.bf16.msra.mxu0 %v1539
    %1717 = vmatpush.bf16.msra.mxu0 %v1538
    %1718 = vmatpush.bf16.msra.mxu0 %v1537
    %1719 = vmatmul.bf16.gmra.mxu0 %v1054
    %v1720 = vpop.f32.mrf.mxu0
    %v1721 = vadd.f32 %v1708, %v1720
    %v1722 = vpop.f32.mrf.mxu0
    %1723 = vdwg.mxu0
    %1724 = vmatpush.bf16.msra.mxu0 %v1552
    %1725 = vmatpush.bf16.msra.mxu0 %v1551
    %1726 = vmatpush.bf16.msra.mxu0 %v1550
    %1727 = vmatpush.bf16.msra.mxu0 %v1549
    %1728 = vmatpush.bf16.msra.mxu0 %v1548
    %1729 = vmatpush.bf16.msra.mxu0 %v1547
    %1730 = vmatpush.bf16.msra.mxu0 %v1546
    %1731 = vmatpush.bf16.msra.mxu0 %v1545
    %1732 = vmatmul.bf16.gmra.mxu0 %v1055
    %v1733 = vpop.f32.mrf.mxu0
    %v1734 = vadd.f32 %v1721, %v1733
    %v1735 = vpop.f32.mrf.mxu0
    %1736 = vdwg.mxu0
    %1737 = vmatpush.bf16.msra.mxu0 %v1560
    %1738 = vmatpush.bf16.msra.mxu0 %v1559
    %1739 = vmatpush.bf16.msra.mxu0 %v1558
    %1740 = vmatpush.bf16.msra.mxu0 %v1557
    %1741 = vmatpush.bf16.msra.mxu0 %v1556
    %1742 = vmatpush.bf16.msra.mxu0 %v1555
    %1743 = vmatpush.bf16.msra.mxu0 %v1554
    %1744 = vmatpush.bf16.msra.mxu0 %v1553
    %1745 = vmatmul.bf16.gmra.mxu0 %v1056
    %v1746 = vpop.f32.mrf.mxu0
    %v1747 = vadd.f32 %v1734, %v1746
    %v1748 = vpop.f32.mrf.mxu0
    %1749 = vdwg.mxu0
    %v1750 = vmul.f32 %v1747, 0.5
    %v1751 = vtanh.pop %v1750
    %v1752 = vmul.f32 %v1751, 0.5
    %v1753 = vadd.f32 %v1752, 0.5
    %v1754 = vmul.f32 %v1747, %v1753
    %v1755 = vsub.f32 %v1747, -2.2
    %v1756 = vmul.f32 %v1755, 2.5
    %v1757 = vsub.f32 %v1756, 1.0
    %v1758 = vand.u32 2147483647, %v1757
    %v1759 = vsub.f32 1.0, %v1758
    %v1760 = vmax.f32 %v1759, 0.0
    %v1761 = vsub.f32 %v1756, 2.0
    %v1762 = vand.u32 2147483647, %v1761
    %v1763 = vsub.f32 1.0, %v1762
    %v1764 = vmax.f32 %v1763, 0.0
    %v1765 = vsub.f32 %v1756, 3.0
    %v1766 = vand.u32 2147483647, %v1765
    %v1767 = vsub.f32 1.0, %v1766
    %v1768 = vmax.f32 %v1767, 0.0
    %v1769 = vsub.f32 %v1756, 4.0
    %v1770 = vand.u32 2147483647, %v1769
    %v1771 = vsub.f32 1.0, %v1770
    %v1772 = vmax.f32 %v1771, 0.0
    %v1773 = vsub.f32 %v1756, 5.0
    %v1774 = vand.u32 2147483647, %v1773
    %v1775 = vsub.f32 1.0, %v1774
    %v1776 = vmax.f32 %v1775, 0.0
    %v1777 = vsub.f32 %v1756, 6.0
    %v1778 = vand.u32 2147483647, %v1777
    %v1779 = vsub.f32 1.0, %v1778
    %v1780 = vmax.f32 %v1779, 0.0
    %v1781 = vsub.f32 %v1756, 7.0
    %v1782 = vand.u32 2147483647, %v1781
    %v1783 = vsub.f32 1.0, %v1782
    %v1784 = vmax.f32 %v1783, 0.0
    %v1785 = vsub.f32 %v1756, 8.0
    %v1786 = vand.u32 2147483647, %v1785
    %v1787 = vsub.f32 1.0, %v1786
    %v1788 = vmax.f32 %v1787, 0.0
    %v1789 = vsub.f32 %v1756, 9.0
    %v1790 = vand.u32 2147483647, %v1789
    %v1791 = vsub.f32 1.0, %v1790
    %v1792 = vmax.f32 %v1791, 0.0
    %v1793 = vsub.f32 %v1756, 10.0
    %v1794 = vand.u32 2147483647, %v1793
    %v1795 = vsub.f32 1.0, %v1794
    %v1796 = vmax.f32 %v1795, 0.0
    %v1797 = vmul.f32 %v1756, %v1760
    %v1798 = vsub.f32 3.0, %v1756
    %v1799 = vmul.f32 %v1798, %v1764
    %v1800 = vadd.f32 %v1797, %v1799
    %v1801 = vmul.f32 %v1800, 0.5
    %v1802 = vmul.f32 %v1757, %v1764
    %v1803 = vsub.f32 4.0, %v1756
    %v1804 = vmul.f32 %v1803, %v1768
    %v1805 = vadd.f32 %v1802, %v1804
    %v1806 = vmul.f32 %v1805, 0.5
    %v1807 = vmul.f32 %v1761, %v1768
    %v1808 = vsub.f32 5.0, %v1756
    %v1809 = vmul.f32 %v1808, %v1772
    %v1810 = vadd.f32 %v1807, %v1809
    %v1811 = vmul.f32 %v1810, 0.5
    %v1812 = vmul.f32 %v1765, %v1772
    %v1813 = vsub.f32 6.0, %v1756
    %v1814 = vmul.f32 %v1813, %v1776
    %v1815 = vadd.f32 %v1812, %v1814
    %v1816 = vmul.f32 %v1815, 0.5
    %v1817 = vmul.f32 %v1769, %v1776
    %v1818 = vsub.f32 7.0, %v1756
    %v1819 = vmul.f32 %v1818, %v1780
    %v1820 = vadd.f32 %v1817, %v1819
    %v1821 = vmul.f32 %v1820, 0.5
    %v1822 = vmul.f32 %v1773, %v1780
    %v1823 = vsub.f32 8.0, %v1756
    %v1824 = vmul.f32 %v1823, %v1784
    %v1825 = vadd.f32 %v1822, %v1824
    %v1826 = vmul.f32 %v1825, 0.5
    %v1827 = vmul.f32 %v1777, %v1784
    %v1828 = vsub.f32 9.0, %v1756
    %v1829 = vmul.f32 %v1828, %v1788
    %v1830 = vadd.f32 %v1827, %v1829
    %v1831 = vmul.f32 %v1830, 0.5
    %v1832 = vmul.f32 %v1781, %v1788
    %v1833 = vsub.f32 10.0, %v1756
    %v1834 = vmul.f32 %v1833, %v1792
    %v1835 = vadd.f32 %v1832, %v1834
    %v1836 = vmul.f32 %v1835, 0.5
    %v1837 = vmul.f32 %v1785, %v1792
    %v1838 = vsub.f32 11.0, %v1756
    %v1839 = vmul.f32 %v1838, %v1796
    %v1840 = vadd.f32 %v1837, %v1839
    %v1841 = vmul.f32 %v1840, 0.5
    %v1842 = vmul.f32 %v1756, %v1801
    %v1843 = vmul.f32 %v1803, %v1806
    %v1844 = vadd.f32 %v1842, %v1843
    %v1845 = vmul.f32 %v1844, 0.33333334
    %v1846 = vmul.f32 %v1757, %v1806
    %v1847 = vmul.f32 %v1808, %v1811
    %v1848 = vadd.f32 %v1846, %v1847
    %v1849 = vmul.f32 %v1848, 0.33333334
    %v1850 = vmul.f32 %v1761, %v1811
    %v1851 = vmul.f32 %v1813, %v1816
    %v1852 = vadd.f32 %v1850, %v1851
    %v1853 = vmul.f32 %v1852, 0.33333334
    %v1854 = vmul.f32 %v1765, %v1816
    %v1855 = vmul.f32 %v1818, %v1821
    %v1856 = vadd.f32 %v1854, %v1855
    %v1857 = vmul.f32 %v1856, 0.33333334
    %v1858 = vmul.f32 %v1769, %v1821
    %v1859 = vmul.f32 %v1823, %v1826
    %v1860 = vadd.f32 %v1858, %v1859
    %v1861 = vmul.f32 %v1860, 0.33333334
    %v1862 = vmul.f32 %v1773, %v1826
    %v1863 = vmul.f32 %v1828, %v1831
    %v1864 = vadd.f32 %v1862, %v1863
    %v1865 = vmul.f32 %v1864, 0.33333334
    %v1866 = vmul.f32 %v1777, %v1831
    %v1867 = vmul.f32 %v1833, %v1836
    %v1868 = vadd.f32 %v1866, %v1867
    %v1869 = vmul.f32 %v1868, 0.33333334
    %v1870 = vmul.f32 %v1781, %v1836
    %v1871 = vmul.f32 %v1838, %v1841
    %v1872 = vadd.f32 %v1870, %v1871
    %v1873 = vmul.f32 %v1872, 0.33333334
    %v1874 = vpack.c.bf16 %v1754, %v1754
    %v1875 = vpack.c.bf16 %v1845, %v1845
    %v1876 = vpack.c.bf16 %v1849, %v1849
    %v1877 = vpack.c.bf16 %v1853, %v1853
    %v1878 = vpack.c.bf16 %v1857, %v1857
    %v1879 = vpack.c.bf16 %v1861, %v1861
    %v1880 = vpack.c.bf16 %v1865, %v1865
    %v1881 = vpack.c.bf16 %v1869, %v1869
    %v1882 = vpack.c.bf16 %v1873, %v1873
    %v1883 = vld [vmem:[#allocation8] sm:$0xf]
    %v1884 = vld [vmem:[#allocation8 + $0x4] sm:$0xf]
    %v1885 = vld [vmem:[#allocation8 + $0x8] sm:$0xf]
    %v1886 = vld [vmem:[#allocation8 + $0xc] sm:$0xf]
    %v1887 = vld [vmem:[#allocation8 + $0x10] sm:$0xf]
    %v1888 = vld [vmem:[#allocation8 + $0x14] sm:$0xf]
    %v1889 = vld [vmem:[#allocation8 + $0x18] sm:$0xf]
    %v1890 = vld [vmem:[#allocation8 + $0x1c] sm:$0xf]
    %v1891 = vld [vmem:[#allocation8 + $0x20] sm:$0xf]
    %v1892 = vld [vmem:[#allocation8 + $0x24] sm:$0xf]
    %v1893 = vld [vmem:[#allocation8 + $0x28] sm:$0xf]
    %v1894 = vld [vmem:[#allocation8 + $0x2c] sm:$0xf]
    %v1895 = vld [vmem:[#allocation8 + $0x30] sm:$0xf]
    %v1896 = vld [vmem:[#allocation8 + $0x34] sm:$0xf]
    %v1897 = vld [vmem:[#allocation8 + $0x38] sm:$0xf]
    %v1898 = vld [vmem:[#allocation8 + $0x3c] sm:$0xf]
    %v1899 = vld [vmem:[#allocation8 + $0x40] sm:$0xf]
    %v1900 = vld [vmem:[#allocation8 + $0x44] sm:$0xf]
    %v1901 = vld [vmem:[#allocation8 + $0x48] sm:$0xf]
    %v1902 = vld [vmem:[#allocation8 + $0x4c] sm:$0xf]
    %v1903 = vld [vmem:[#allocation8 + $0x50] sm:$0xf]
    %v1904 = vld [vmem:[#allocation8 + $0x54] sm:$0xf]
    %v1905 = vld [vmem:[#allocation8 + $0x58] sm:$0xf]
    %v1906 = vld [vmem:[#allocation8 + $0x5c] sm:$0xf]
    %v1907 = vld [vmem:[#allocation8 + $0x60] sm:$0xf]
    %v1908 = vld [vmem:[#allocation8 + $0x64] sm:$0xf]
    %v1909 = vld [vmem:[#allocation8 + $0x68] sm:$0xf]
    %v1910 = vld [vmem:[#allocation8 + $0x6c] sm:$0xf]
    %v1911 = vld [vmem:[#allocation8 + $0x70] sm:$0xf]
    %v1912 = vld [vmem:[#allocation8 + $0x74] sm:$0xf]
    %v1913 = vld [vmem:[#allocation8 + $0x78] sm:$0xf]
    %v1914 = vld [vmem:[#allocation8 + $0x7c] sm:$0xf]
    %v1915 = vld [vmem:[#allocation8 + $0x80] sm:$0xf]
    %v1916 = vld [vmem:[#allocation8 + $0x84] sm:$0xf]
    %v1917 = vld [vmem:[#allocation8 + $0x88] sm:$0xf]
    %v1918 = vld [vmem:[#allocation8 + $0x8c] sm:$0xf]
    %v1919 = vld [vmem:[#allocation8 + $0x90] sm:$0xf]
    %v1920 = vld [vmem:[#allocation8 + $0x94] sm:$0xf]
    %v1921 = vld [vmem:[#allocation8 + $0x98] sm:$0xf]
    %v1922 = vld [vmem:[#allocation8 + $0x9c] sm:$0xf]
    %v1923 = vld [vmem:[#allocation8 + $0xa0] sm:$0xf]
    %v1924 = vld [vmem:[#allocation8 + $0xa4] sm:$0xf]
    %v1925 = vld [vmem:[#allocation8 + $0xa8] sm:$0xf]
    %v1926 = vld [vmem:[#allocation8 + $0xac] sm:$0xf]
    %v1927 = vld [vmem:[#allocation8 + $0xb0] sm:$0xf]
    %v1928 = vld [vmem:[#allocation8 + $0xb4] sm:$0xf]
    %v1929 = vld [vmem:[#allocation8 + $0xb8] sm:$0xf]
    %v1930 = vld [vmem:[#allocation8 + $0xbc] sm:$0xf]
    %v1931 = vld [vmem:[#allocation8 + $0xc0] sm:$0xf]
    %v1932 = vld [vmem:[#allocation8 + $0xc4] sm:$0xf]
    %v1933 = vld [vmem:[#allocation8 + $0xc8] sm:$0xf]
    %v1934 = vld [vmem:[#allocation8 + $0xcc] sm:$0xf]
    %v1935 = vld [vmem:[#allocation8 + $0xd0] sm:$0xf]
    %v1936 = vld [vmem:[#allocation8 + $0xd4] sm:$0xf]
    %v1937 = vld [vmem:[#allocation8 + $0xd8] sm:$0xf]
    %v1938 = vld [vmem:[#allocation8 + $0xdc] sm:$0xf]
    %v1939 = vld [vmem:[#allocation8 + $0xe0] sm:$0xf]
    %v1940 = vld [vmem:[#allocation8 + $0xe4] sm:$0xf]
    %v1941 = vld [vmem:[#allocation8 + $0xe8] sm:$0xf]
    %v1942 = vld [vmem:[#allocation8 + $0xec] sm:$0xf]
    %v1943 = vld [vmem:[#allocation8 + $0xf0] sm:$0xf]
    %v1944 = vld [vmem:[#allocation8 + $0xf4] sm:$0xf]
    %v1945 = vld [vmem:[#allocation8 + $0xf8] sm:$0xf]
    %v1946 = vld [vmem:[#allocation8 + $0xfc] sm:$0xf]
    %v1947 = vld [vmem:[#allocation8 + $0x100] sm:$0xf]
    %v1948 = vld [vmem:[#allocation8 + $0x104] sm:$0xf]
    %v1949 = vld [vmem:[#allocation8 + $0x108] sm:$0xf]
    %v1950 = vld [vmem:[#allocation8 + $0x10c] sm:$0xf]
    %v1951 = vld [vmem:[#allocation8 + $0x110] sm:$0xf]
    %v1952 = vld [vmem:[#allocation8 + $0x114] sm:$0xf]
    %v1953 = vld [vmem:[#allocation8 + $0x118] sm:$0xf]
    %v1954 = vld [vmem:[#allocation8 + $0x11c] sm:$0xf]
    %v1955 = vld [vmem:[#allocation8 + $0x120] sm:$0xf]
    %v1956 = vld [vmem:[#allocation8 + $0x124] sm:$0xf]
    %v1957 = vld [vmem:[#allocation8 + $0x128] sm:$0xf]
    %v1958 = vld [vmem:[#allocation8 + $0x12c] sm:$0xf]
    %v1959 = vld [vmem:[#allocation8 + $0x130] sm:$0xf]
    %v1960 = vld [vmem:[#allocation8 + $0x134] sm:$0xf]
    %v1961 = vld [vmem:[#allocation8 + $0x138] sm:$0xf]
    %v1962 = vld [vmem:[#allocation8 + $0x13c] sm:$0xf]
    %v1963 = vld [vmem:[#allocation8 + $0x140] sm:$0xf]
    %v1964 = vld [vmem:[#allocation8 + $0x144] sm:$0xf]
    %v1965 = vld [vmem:[#allocation8 + $0x148] sm:$0xf]
    %v1966 = vld [vmem:[#allocation8 + $0x14c] sm:$0xf]
    %v1967 = vld [vmem:[#allocation8 + $0x150] sm:$0xf]
    %v1968 = vld [vmem:[#allocation8 + $0x154] sm:$0xf]
    %v1969 = vld [vmem:[#allocation8 + $0x158] sm:$0xf]
    %v1970 = vld [vmem:[#allocation8 + $0x15c] sm:$0xf]
    %v1971 = vld [vmem:[#allocation8 + $0x160] sm:$0xf]
    %v1972 = vld [vmem:[#allocation8 + $0x164] sm:$0xf]
    %v1973 = vld [vmem:[#allocation8 + $0x168] sm:$0xf]
    %v1974 = vld [vmem:[#allocation8 + $0x16c] sm:$0xf]
    %v1975 = vld [vmem:[#allocation8 + $0x170] sm:$0xf]
    %v1976 = vld [vmem:[#allocation8 + $0x174] sm:$0xf]
    %v1977 = vld [vmem:[#allocation8 + $0x178] sm:$0xf]
    %v1978 = vld [vmem:[#allocation8 + $0x17c] sm:$0xf]
    %v1979 = vld [vmem:[#allocation8 + $0x180] sm:$0xf]
    %v1980 = vld [vmem:[#allocation8 + $0x184] sm:$0xf]
    %v1981 = vld [vmem:[#allocation8 + $0x188] sm:$0xf]
    %v1982 = vld [vmem:[#allocation8 + $0x18c] sm:$0xf]
    %v1983 = vld [vmem:[#allocation8 + $0x190] sm:$0xf]
    %v1984 = vld [vmem:[#allocation8 + $0x194] sm:$0xf]
    %v1985 = vld [vmem:[#allocation8 + $0x198] sm:$0xf]
    %v1986 = vld [vmem:[#allocation8 + $0x19c] sm:$0xf]
    %v1987 = vld [vmem:[#allocation8 + $0x1a0] sm:$0xf]
    %v1988 = vld [vmem:[#allocation8 + $0x1a4] sm:$0xf]
    %v1989 = vld [vmem:[#allocation8 + $0x1a8] sm:$0xf]
    %v1990 = vld [vmem:[#allocation8 + $0x1ac] sm:$0xf]
    %v1991 = vld [vmem:[#allocation8 + $0x1b0] sm:$0xf]
    %v1992 = vld [vmem:[#allocation8 + $0x1b4] sm:$0xf]
    %v1993 = vld [vmem:[#allocation8 + $0x1b8] sm:$0xf]
    %v1994 = vld [vmem:[#allocation8 + $0x1bc] sm:$0xf]
    %v1995 = vld [vmem:[#allocation8 + $0x1c0] sm:$0xf]
    %v1996 = vld [vmem:[#allocation8 + $0x1c4] sm:$0xf]
    %v1997 = vld [vmem:[#allocation8 + $0x1c8] sm:$0xf]
    %v1998 = vld [vmem:[#allocation8 + $0x1cc] sm:$0xf]
    %v1999 = vld [vmem:[#allocation8 + $0x1d0] sm:$0xf]
    %v2000 = vld [vmem:[#allocation8 + $0x1d4] sm:$0xf]
    %v2001 = vld [vmem:[#allocation8 + $0x1d8] sm:$0xf]
    %v2002 = vld [vmem:[#allocation8 + $0x1dc] sm:$0xf]
    %v2003 = vld [vmem:[#allocation8 + $0x1e0] sm:$0xf]
    %v2004 = vld [vmem:[#allocation8 + $0x1e4] sm:$0xf]
    %v2005 = vld [vmem:[#allocation8 + $0x1e8] sm:$0xf]
    %v2006 = vld [vmem:[#allocation8 + $0x1ec] sm:$0xf]
    %v2007 = vld [vmem:[#allocation8 + $0x1f0] sm:$0xf]
    %v2008 = vld [vmem:[#allocation8 + $0x1f4] sm:$0xf]
    %v2009 = vld [vmem:[#allocation8 + $0x1f8] sm:$0xf]
    %v2010 = vld [vmem:[#allocation8 + $0x1fc] sm:$0xf]
    %v2011 = vld [vmem:[#allocation8 + $0x200] sm:$0xf]
    %v2012 = vld [vmem:[#allocation8 + $0x204] sm:$0xf]
    %v2013 = vld [vmem:[#allocation8 + $0x208] sm:$0xf]
    %v2014 = vld [vmem:[#allocation8 + $0x20c] sm:$0xf]
    %v2015 = vld [vmem:[#allocation8 + $0x210] sm:$0xf]
    %v2016 = vld [vmem:[#allocation8 + $0x214] sm:$0xf]
    %v2017 = vld [vmem:[#allocation8 + $0x218] sm:$0xf]
    %v2018 = vld [vmem:[#allocation8 + $0x21c] sm:$0xf]
    %v2019 = vld [vmem:[#allocation8 + $0x220] sm:$0xf]
    %v2020 = vld [vmem:[#allocation8 + $0x224] sm:$0xf]
    %v2021 = vld [vmem:[#allocation8 + $0x228] sm:$0xf]
    %v2022 = vld [vmem:[#allocation8 + $0x22c] sm:$0xf]
    %v2023 = vld [vmem:[#allocation8 + $0x230] sm:$0xf]
    %v2024 = vld [vmem:[#allocation8 + $0x234] sm:$0xf]
    %v2025 = vld [vmem:[#allocation8 + $0x238] sm:$0xf]
    %v2026 = vld [vmem:[#allocation8 + $0x23c] sm:$0xf]
    %v2171 = vunpack.c.l.b16 %v1883
    %v2172 = vunpack.c.l.b16 %v1884
    %v2173 = vunpack.c.l.b16 %v1885
    %v2174 = vunpack.c.l.b16 %v1886
    %v2175 = vunpack.c.l.b16 %v1887
    %v2176 = vunpack.c.l.b16 %v1888
    %v2177 = vunpack.c.l.b16 %v1889
    %v2178 = vunpack.c.l.b16 %v1890
    %v2179 = vunpack.c.l.b16 %v1891
    %v2180 = vunpack.c.l.b16 %v1892
    %v2181 = vunpack.c.l.b16 %v1893
    %v2182 = vunpack.c.l.b16 %v1894
    %v2183 = vunpack.c.l.b16 %v1895
    %v2184 = vunpack.c.l.b16 %v1896
    %v2185 = vunpack.c.l.b16 %v1897
    %v2186 = vunpack.c.l.b16 %v1898
    %v2187 = vunpack.c.l.b16 %v1899
    %v2188 = vunpack.c.l.b16 %v1900
    %v2189 = vunpack.c.l.b16 %v1901
    %v2190 = vunpack.c.l.b16 %v1902
    %v2191 = vunpack.c.l.b16 %v1903
    %v2192 = vunpack.c.l.b16 %v1904
    %v2193 = vunpack.c.l.b16 %v1905
    %v2194 = vunpack.c.l.b16 %v1906
    %v2195 = vunpack.c.l.b16 %v1907
    %v2196 = vunpack.c.l.b16 %v1908
    %v2197 = vunpack.c.l.b16 %v1909
    %v2198 = vunpack.c.l.b16 %v1910
    %v2199 = vunpack.c.l.b16 %v1911
    %v2200 = vunpack.c.l.b16 %v1912
    %v2201 = vunpack.c.l.b16 %v1913
    %v2202 = vunpack.c.l.b16 %v1914
    %v2203 = vunpack.c.l.b16 %v1915
    %v2204 = vunpack.c.l.b16 %v1916
    %v2205 = vunpack.c.l.b16 %v1917
    %v2206 = vunpack.c.l.b16 %v1918
    %v2207 = vunpack.c.l.b16 %v1919
    %v2208 = vunpack.c.l.b16 %v1920
    %v2209 = vunpack.c.l.b16 %v1921
    %v2210 = vunpack.c.l.b16 %v1922
    %v2211 = vunpack.c.l.b16 %v1923
    %v2212 = vunpack.c.l.b16 %v1924
    %v2213 = vunpack.c.l.b16 %v1925
    %v2214 = vunpack.c.l.b16 %v1926
    %v2215 = vunpack.c.l.b16 %v1927
    %v2216 = vunpack.c.l.b16 %v1928
    %v2217 = vunpack.c.l.b16 %v1929
    %v2218 = vunpack.c.l.b16 %v1930
    %v2219 = vunpack.c.l.b16 %v1931
    %v2220 = vunpack.c.l.b16 %v1932
    %v2221 = vunpack.c.l.b16 %v1933
    %v2222 = vunpack.c.l.b16 %v1934
    %v2223 = vunpack.c.l.b16 %v1935
    %v2224 = vunpack.c.l.b16 %v1936
    %v2225 = vunpack.c.l.b16 %v1937
    %v2226 = vunpack.c.l.b16 %v1938
    %v2227 = vunpack.c.l.b16 %v1939
    %v2228 = vunpack.c.l.b16 %v1940
    %v2229 = vunpack.c.l.b16 %v1941
    %v2230 = vunpack.c.l.b16 %v1942
    %v2231 = vunpack.c.l.b16 %v1943
    %v2232 = vunpack.c.l.b16 %v1944
    %v2233 = vunpack.c.l.b16 %v1945
    %v2234 = vunpack.c.l.b16 %v1946
    %v2235 = vunpack.c.l.b16 %v1947
    %v2236 = vunpack.c.l.b16 %v1948
    %v2237 = vunpack.c.l.b16 %v1949
    %v2238 = vunpack.c.l.b16 %v1950
    %v2239 = vunpack.c.l.b16 %v1951
    %v2240 = vunpack.c.l.b16 %v1952
    %v2241 = vunpack.c.l.b16 %v1953
    %v2242 = vunpack.c.l.b16 %v1954
    %v2243 = vunpack.c.l.b16 %v1955
    %v2244 = vunpack.c.l.b16 %v1956
    %v2245 = vunpack.c.l.b16 %v1957
    %v2246 = vunpack.c.l.b16 %v1958
    %v2247 = vunpack.c.l.b16 %v1959
    %v2248 = vunpack.c.l.b16 %v1960
    %v2249 = vunpack.c.l.b16 %v1961
    %v2250 = vunpack.c.l.b16 %v1962
    %v2251 = vunpack.c.l.b16 %v1963
    %v2252 = vunpack.c.l.b16 %v1964
    %v2253 = vunpack.c.l.b16 %v1965
    %v2254 = vunpack.c.l.b16 %v1966
    %v2255 = vunpack.c.l.b16 %v1967
    %v2256 = vunpack.c.l.b16 %v1968
    %v2257 = vunpack.c.l.b16 %v1969
    %v2258 = vunpack.c.l.b16 %v1970
    %v2259 = vunpack.c.l.b16 %v1971
    %v2260 = vunpack.c.l.b16 %v1972
    %v2261 = vunpack.c.l.b16 %v1973
    %v2262 = vunpack.c.l.b16 %v1974
    %v2263 = vunpack.c.l.b16 %v1975
    %v2264 = vunpack.c.l.b16 %v1976
    %v2265 = vunpack.c.l.b16 %v1977
    %v2266 = vunpack.c.l.b16 %v1978
    %v2267 = vunpack.c.l.b16 %v1979
    %v2268 = vunpack.c.l.b16 %v1980
    %v2269 = vunpack.c.l.b16 %v1981
    %v2270 = vunpack.c.l.b16 %v1982
    %v2271 = vunpack.c.l.b16 %v1983
    %v2272 = vunpack.c.l.b16 %v1984
    %v2273 = vunpack.c.l.b16 %v1985
    %v2274 = vunpack.c.l.b16 %v1986
    %v2275 = vunpack.c.l.b16 %v1987
    %v2276 = vunpack.c.l.b16 %v1988
    %v2277 = vunpack.c.l.b16 %v1989
    %v2278 = vunpack.c.l.b16 %v1990
    %v2279 = vunpack.c.l.b16 %v1991
    %v2280 = vunpack.c.l.b16 %v1992
    %v2281 = vunpack.c.l.b16 %v1993
    %v2282 = vunpack.c.l.b16 %v1994
    %v2283 = vunpack.c.l.b16 %v1995
    %v2284 = vunpack.c.l.b16 %v1996
    %v2285 = vunpack.c.l.b16 %v1997
    %v2286 = vunpack.c.l.b16 %v1998
    %v2287 = vunpack.c.l.b16 %v1999
    %v2288 = vunpack.c.l.b16 %v2000
    %v2289 = vunpack.c.l.b16 %v2001
    %v2290 = vunpack.c.l.b16 %v2002
    %v2291 = vunpack.c.l.b16 %v2003
    %v2292 = vunpack.c.l.b16 %v2004
    %v2293 = vunpack.c.l.b16 %v2005
    %v2294 = vunpack.c.l.b16 %v2006
    %v2295 = vunpack.c.l.b16 %v2007
    %v2296 = vunpack.c.l.b16 %v2008
    %v2297 = vunpack.c.l.b16 %v2009
    %v2298 = vunpack.c.l.b16 %v2010
    %v2299 = vunpack.c.l.b16 %v2011
    %v2300 = vunpack.c.l.b16 %v2012
    %v2301 = vunpack.c.l.b16 %v2013
    %v2302 = vunpack.c.l.b16 %v2014
    %v2303 = vunpack.c.l.b16 %v2015
    %v2304 = vunpack.c.l.b16 %v2016
    %v2305 = vunpack.c.l.b16 %v2017
    %v2306 = vunpack.c.l.b16 %v2018
    %v2307 = vunpack.c.l.b16 %v2019
    %v2308 = vunpack.c.l.b16 %v2020
    %v2309 = vunpack.c.l.b16 %v2021
    %v2310 = vunpack.c.l.b16 %v2022
    %v2311 = vunpack.c.l.b16 %v2023
    %v2312 = vunpack.c.l.b16 %v2024
    %v2313 = vunpack.c.l.b16 %v2025
    %v2314 = vunpack.c.l.b16 %v2026
    %v2315 = vpack.c.b16 %v2172, %v2171
    %v2316 = vpack.c.b16 %v2174, %v2173
    %v2317 = vpack.c.b16 %v2176, %v2175
    %v2318 = vpack.c.b16 %v2178, %v2177
    %v2319 = vpack.c.b16 %v2180, %v2179
    %v2320 = vpack.c.b16 %v2182, %v2181
    %v2321 = vpack.c.b16 %v2184, %v2183
    %v2322 = vpack.c.b16 %v2186, %v2185
    %v2323 = vpack.c.b16 %v2188, %v2187
    %v2324 = vpack.c.b16 %v2190, %v2189
    %v2325 = vpack.c.b16 %v2192, %v2191
    %v2326 = vpack.c.b16 %v2194, %v2193
    %v2327 = vpack.c.b16 %v2196, %v2195
    %v2328 = vpack.c.b16 %v2198, %v2197
    %v2329 = vpack.c.b16 %v2200, %v2199
    %v2330 = vpack.c.b16 %v2202, %v2201
    %v2331 = vpack.c.b16 %v2204, %v2203
    %v2332 = vpack.c.b16 %v2206, %v2205
    %v2333 = vpack.c.b16 %v2208, %v2207
    %v2334 = vpack.c.b16 %v2210, %v2209
    %v2335 = vpack.c.b16 %v2212, %v2211
    %v2336 = vpack.c.b16 %v2214, %v2213
    %v2337 = vpack.c.b16 %v2216, %v2215
    %v2338 = vpack.c.b16 %v2218, %v2217
    %v2339 = vpack.c.b16 %v2220, %v2219
    %v2340 = vpack.c.b16 %v2222, %v2221
    %v2341 = vpack.c.b16 %v2224, %v2223
    %v2342 = vpack.c.b16 %v2226, %v2225
    %v2343 = vpack.c.b16 %v2228, %v2227
    %v2344 = vpack.c.b16 %v2230, %v2229
    %v2345 = vpack.c.b16 %v2232, %v2231
    %v2346 = vpack.c.b16 %v2234, %v2233
    %v2347 = vpack.c.b16 %v2236, %v2235
    %v2348 = vpack.c.b16 %v2238, %v2237
    %v2349 = vpack.c.b16 %v2240, %v2239
    %v2350 = vpack.c.b16 %v2242, %v2241
    %v2351 = vpack.c.b16 %v2244, %v2243
    %v2352 = vpack.c.b16 %v2246, %v2245
    %v2353 = vpack.c.b16 %v2248, %v2247
    %v2354 = vpack.c.b16 %v2250, %v2249
    %v2355 = vpack.c.b16 %v2252, %v2251
    %v2356 = vpack.c.b16 %v2254, %v2253
    %v2357 = vpack.c.b16 %v2256, %v2255
    %v2358 = vpack.c.b16 %v2258, %v2257
    %v2359 = vpack.c.b16 %v2260, %v2259
    %v2360 = vpack.c.b16 %v2262, %v2261
    %v2361 = vpack.c.b16 %v2264, %v2263
    %v2362 = vpack.c.b16 %v2266, %v2265
    %v2363 = vpack.c.b16 %v2268, %v2267
    %v2364 = vpack.c.b16 %v2270, %v2269
    %v2365 = vpack.c.b16 %v2272, %v2271
    %v2366 = vpack.c.b16 %v2274, %v2273
    %v2367 = vpack.c.b16 %v2276, %v2275
    %v2368 = vpack.c.b16 %v2278, %v2277
    %v2369 = vpack.c.b16 %v2280, %v2279
    %v2370 = vpack.c.b16 %v2282, %v2281
    %v2371 = vpack.c.b16 %v2284, %v2283
    %v2372 = vpack.c.b16 %v2286, %v2285
    %v2373 = vpack.c.b16 %v2288, %v2287
    %v2374 = vpack.c.b16 %v2290, %v2289
    %v2375 = vpack.c.b16 %v2292, %v2291
    %v2376 = vpack.c.b16 %v2294, %v2293
    %v2377 = vpack.c.b16 %v2296, %v2295
    %v2378 = vpack.c.b16 %v2298, %v2297
    %v2379 = vpack.c.b16 %v2300, %v2299
    %v2380 = vpack.c.b16 %v2302, %v2301
    %v2381 = vpack.c.b16 %v2304, %v2303
    %v2382 = vpack.c.b16 %v2306, %v2305
    %v2383 = vpack.c.b16 %v2308, %v2307
    %v2384 = vpack.c.b16 %v2310, %v2309
    %v2385 = vpack.c.b16 %v2312, %v2311
    %v2386 = vpack.c.b16 %v2314, %v2313
    %2459 = vmatpush.bf16.msra.mxu0 %v2322
    %2460 = vmatpush.bf16.msra.mxu0 %v2321
    %2461 = vmatpush.bf16.msra.mxu0 %v2320
    %2462 = vmatpush.bf16.msra.mxu0 %v2319
    %2463 = vmatpush.bf16.msra.mxu0 %v2318
    %2464 = vmatpush.bf16.msra.mxu0 %v2317
    %2465 = vmatpush.bf16.msra.mxu0 %v2316
    %2466 = vmatpush.bf16.msra.mxu0 %v2315
    %2467 = vmatmul.bf16.gmra.mxu0 %v1874
    %v2468 = vpop.f32.mrf.mxu0
    %v2469 = vadd.f32 0.0, %v2468
    %v2470 = vpop.f32.mrf.mxu0
    %2471 = vdwg.mxu0
    %2472 = vmatpush.bf16.msra.mxu0 %v2330
    %2473 = vmatpush.bf16.msra.mxu0 %v2329
    %2474 = vmatpush.bf16.msra.mxu0 %v2328
    %2475 = vmatpush.bf16.msra.mxu0 %v2327
    %2476 = vmatpush.bf16.msra.mxu0 %v2326
    %2477 = vmatpush.bf16.msra.mxu0 %v2325
    %2478 = vmatpush.bf16.msra.mxu0 %v2324
    %2479 = vmatpush.bf16.msra.mxu0 %v2323
    %2480 = vmatmul.bf16.gmra.mxu0 %v1875
    %v2481 = vpop.f32.mrf.mxu0
    %v2482 = vadd.f32 %v2469, %v2481
    %v2483 = vpop.f32.mrf.mxu0
    %2484 = vdwg.mxu0
    %2485 = vmatpush.bf16.msra.mxu0 %v2338
    %2486 = vmatpush.bf16.msra.mxu0 %v2337
    %2487 = vmatpush.bf16.msra.mxu0 %v2336
    %2488 = vmatpush.bf16.msra.mxu0 %v2335
    %2489 = vmatpush.bf16.msra.mxu0 %v2334
    %2490 = vmatpush.bf16.msra.mxu0 %v2333
    %2491 = vmatpush.bf16.msra.mxu0 %v2332
    %2492 = vmatpush.bf16.msra.mxu0 %v2331
    %2493 = vmatmul.bf16.gmra.mxu0 %v1876
    %v2494 = vpop.f32.mrf.mxu0
    %v2495 = vadd.f32 %v2482, %v2494
    %v2496 = vpop.f32.mrf.mxu0
    %2497 = vdwg.mxu0
    %2498 = vmatpush.bf16.msra.mxu0 %v2346
    %2499 = vmatpush.bf16.msra.mxu0 %v2345
    %2500 = vmatpush.bf16.msra.mxu0 %v2344
    %2501 = vmatpush.bf16.msra.mxu0 %v2343
    %2502 = vmatpush.bf16.msra.mxu0 %v2342
    %2503 = vmatpush.bf16.msra.mxu0 %v2341
    %2504 = vmatpush.bf16.msra.mxu0 %v2340
    %2505 = vmatpush.bf16.msra.mxu0 %v2339
    %2506 = vmatmul.bf16.gmra.mxu0 %v1877
    %v2507 = vpop.f32.mrf.mxu0
    %v2508 = vadd.f32 %v2495, %v2507
    %v2509 = vpop.f32.mrf.mxu0
    %2510 = vdwg.mxu0
    %2511 = vmatpush.bf16.msra.mxu0 %v2354
    %2512 = vmatpush.bf16.msra.mxu0 %v2353
    %2513 = vmatpush.bf16.msra.mxu0 %v2352
    %2514 = vmatpush.bf16.msra.mxu0 %v2351
    %2515 = vmatpush.bf16.msra.mxu0 %v2350
    %2516 = vmatpush.bf16.msra.mxu0 %v2349
    %2517 = vmatpush.bf16.msra.mxu0 %v2348
    %2518 = vmatpush.bf16.msra.mxu0 %v2347
    %2519 = vmatmul.bf16.gmra.mxu0 %v1878
    %v2520 = vpop.f32.mrf.mxu0
    %v2521 = vadd.f32 %v2508, %v2520
    %v2522 = vpop.f32.mrf.mxu0
    %2523 = vdwg.mxu0
    %2524 = vmatpush.bf16.msra.mxu0 %v2362
    %2525 = vmatpush.bf16.msra.mxu0 %v2361
    %2526 = vmatpush.bf16.msra.mxu0 %v2360
    %2527 = vmatpush.bf16.msra.mxu0 %v2359
    %2528 = vmatpush.bf16.msra.mxu0 %v2358
    %2529 = vmatpush.bf16.msra.mxu0 %v2357
    %2530 = vmatpush.bf16.msra.mxu0 %v2356
    %2531 = vmatpush.bf16.msra.mxu0 %v2355
    %2532 = vmatmul.bf16.gmra.mxu0 %v1879
    %v2533 = vpop.f32.mrf.mxu0
    %v2534 = vadd.f32 %v2521, %v2533
    %v2535 = vpop.f32.mrf.mxu0
    %2536 = vdwg.mxu0
    %2537 = vmatpush.bf16.msra.mxu0 %v2370
    %2538 = vmatpush.bf16.msra.mxu0 %v2369
    %2539 = vmatpush.bf16.msra.mxu0 %v2368
    %2540 = vmatpush.bf16.msra.mxu0 %v2367
    %2541 = vmatpush.bf16.msra.mxu0 %v2366
    %2542 = vmatpush.bf16.msra.mxu0 %v2365
    %2543 = vmatpush.bf16.msra.mxu0 %v2364
    %2544 = vmatpush.bf16.msra.mxu0 %v2363
    %2545 = vmatmul.bf16.gmra.mxu0 %v1880
    %v2546 = vpop.f32.mrf.mxu0
    %v2547 = vadd.f32 %v2534, %v2546
    %v2548 = vpop.f32.mrf.mxu0
    %2549 = vdwg.mxu0
    %2550 = vmatpush.bf16.msra.mxu0 %v2378
    %2551 = vmatpush.bf16.msra.mxu0 %v2377
    %2552 = vmatpush.bf16.msra.mxu0 %v2376
    %2553 = vmatpush.bf16.msra.mxu0 %v2375
    %2554 = vmatpush.bf16.msra.mxu0 %v2374
    %2555 = vmatpush.bf16.msra.mxu0 %v2373
    %2556 = vmatpush.bf16.msra.mxu0 %v2372
    %2557 = vmatpush.bf16.msra.mxu0 %v2371
    %2558 = vmatmul.bf16.gmra.mxu0 %v1881
    %v2559 = vpop.f32.mrf.mxu0
    %v2560 = vadd.f32 %v2547, %v2559
    %v2561 = vpop.f32.mrf.mxu0
    %2562 = vdwg.mxu0
    %2563 = vmatpush.bf16.msra.mxu0 %v2386
    %2564 = vmatpush.bf16.msra.mxu0 %v2385
    %2565 = vmatpush.bf16.msra.mxu0 %v2384
    %2566 = vmatpush.bf16.msra.mxu0 %v2383
    %2567 = vmatpush.bf16.msra.mxu0 %v2382
    %2568 = vmatpush.bf16.msra.mxu0 %v2381
    %2569 = vmatpush.bf16.msra.mxu0 %v2380
    %2570 = vmatpush.bf16.msra.mxu0 %v2379
    %2571 = vmatmul.bf16.gmra.mxu0 %v1882
    %v2572 = vpop.f32.mrf.mxu0
    %v2573 = vadd.f32 %v2560, %v2572
    %v2574 = vpop.f32.mrf.mxu0
    %2575 = vdwg.mxu0
    %v2576 = vmul.f32 %v2573, 0.5
    %v2577 = vtanh.pop %v2576
    %v2578 = vmul.f32 %v2577, 0.5
    %v2579 = vadd.f32 %v2578, 0.5
    %v2580 = vmul.f32 %v2573, %v2579
    %v2581 = vsub.f32 %v2573, -2.2
    %v2582 = vmul.f32 %v2581, 2.5
    %v2583 = vsub.f32 %v2582, 1.0
    %v2584 = vand.u32 2147483647, %v2583
    %v2585 = vsub.f32 1.0, %v2584
    %v2586 = vmax.f32 %v2585, 0.0
    %v2587 = vsub.f32 %v2582, 2.0
    %v2588 = vand.u32 2147483647, %v2587
    %v2589 = vsub.f32 1.0, %v2588
    %v2590 = vmax.f32 %v2589, 0.0
    %v2591 = vsub.f32 %v2582, 3.0
    %v2592 = vand.u32 2147483647, %v2591
    %v2593 = vsub.f32 1.0, %v2592
    %v2594 = vmax.f32 %v2593, 0.0
    %v2595 = vsub.f32 %v2582, 4.0
    %v2596 = vand.u32 2147483647, %v2595
    %v2597 = vsub.f32 1.0, %v2596
    %v2598 = vmax.f32 %v2597, 0.0
    %v2599 = vsub.f32 %v2582, 5.0
    %v2600 = vand.u32 2147483647, %v2599
    %v2601 = vsub.f32 1.0, %v2600
    %v2602 = vmax.f32 %v2601, 0.0
    %v2603 = vsub.f32 %v2582, 6.0
    %v2604 = vand.u32 2147483647, %v2603
    %v2605 = vsub.f32 1.0, %v2604
    %v2606 = vmax.f32 %v2605, 0.0
    %v2607 = vsub.f32 %v2582, 7.0
    %v2608 = vand.u32 2147483647, %v2607
    %v2609 = vsub.f32 1.0, %v2608
    %v2610 = vmax.f32 %v2609, 0.0
    %v2611 = vsub.f32 %v2582, 8.0
    %v2612 = vand.u32 2147483647, %v2611
    %v2613 = vsub.f32 1.0, %v2612
    %v2614 = vmax.f32 %v2613, 0.0
    %v2615 = vsub.f32 %v2582, 9.0
    %v2616 = vand.u32 2147483647, %v2615
    %v2617 = vsub.f32 1.0, %v2616
    %v2618 = vmax.f32 %v2617, 0.0
    %v2619 = vsub.f32 %v2582, 10.0
    %v2620 = vand.u32 2147483647, %v2619
    %v2621 = vsub.f32 1.0, %v2620
    %v2622 = vmax.f32 %v2621, 0.0
    %v2623 = vmul.f32 %v2582, %v2586
    %v2624 = vsub.f32 3.0, %v2582
    %v2625 = vmul.f32 %v2624, %v2590
    %v2626 = vadd.f32 %v2623, %v2625
    %v2627 = vmul.f32 %v2626, 0.5
    %v2628 = vmul.f32 %v2583, %v2590
    %v2629 = vsub.f32 4.0, %v2582
    %v2630 = vmul.f32 %v2629, %v2594
    %v2631 = vadd.f32 %v2628, %v2630
    %v2632 = vmul.f32 %v2631, 0.5
    %v2633 = vmul.f32 %v2587, %v2594
    %v2634 = vsub.f32 5.0, %v2582
    %v2635 = vmul.f32 %v2634, %v2598
    %v2636 = vadd.f32 %v2633, %v2635
    %v2637 = vmul.f32 %v2636, 0.5
    %v2638 = vmul.f32 %v2591, %v2598
    %v2639 = vsub.f32 6.0, %v2582
    %v2640 = vmul.f32 %v2639, %v2602
    %v2641 = vadd.f32 %v2638, %v2640
    %v2642 = vmul.f32 %v2641, 0.5
    %v2643 = vmul.f32 %v2595, %v2602
    %v2644 = vsub.f32 7.0, %v2582
    %v2645 = vmul.f32 %v2644, %v2606
    %v2646 = vadd.f32 %v2643, %v2645
    %v2647 = vmul.f32 %v2646, 0.5
    %v2648 = vmul.f32 %v2599, %v2606
    %v2649 = vsub.f32 8.0, %v2582
    %v2650 = vmul.f32 %v2649, %v2610
    %v2651 = vadd.f32 %v2648, %v2650
    %v2652 = vmul.f32 %v2651, 0.5
    %v2653 = vmul.f32 %v2603, %v2610
    %v2654 = vsub.f32 9.0, %v2582
    %v2655 = vmul.f32 %v2654, %v2614
    %v2656 = vadd.f32 %v2653, %v2655
    %v2657 = vmul.f32 %v2656, 0.5
    %v2658 = vmul.f32 %v2607, %v2614
    %v2659 = vsub.f32 10.0, %v2582
    %v2660 = vmul.f32 %v2659, %v2618
    %v2661 = vadd.f32 %v2658, %v2660
    %v2662 = vmul.f32 %v2661, 0.5
    %v2663 = vmul.f32 %v2611, %v2618
    %v2664 = vsub.f32 11.0, %v2582
    %v2665 = vmul.f32 %v2664, %v2622
    %v2666 = vadd.f32 %v2663, %v2665
    %v2667 = vmul.f32 %v2666, 0.5
    %v2668 = vmul.f32 %v2582, %v2627
    %v2669 = vmul.f32 %v2629, %v2632
    %v2670 = vadd.f32 %v2668, %v2669
    %v2671 = vmul.f32 %v2670, 0.33333334
    %v2672 = vmul.f32 %v2583, %v2632
    %v2673 = vmul.f32 %v2634, %v2637
    %v2674 = vadd.f32 %v2672, %v2673
    %v2675 = vmul.f32 %v2674, 0.33333334
    %v2676 = vmul.f32 %v2587, %v2637
    %v2677 = vmul.f32 %v2639, %v2642
    %v2678 = vadd.f32 %v2676, %v2677
    %v2679 = vmul.f32 %v2678, 0.33333334
    %v2680 = vmul.f32 %v2591, %v2642
    %v2681 = vmul.f32 %v2644, %v2647
    %v2682 = vadd.f32 %v2680, %v2681
    %v2683 = vmul.f32 %v2682, 0.33333334
    %v2684 = vmul.f32 %v2595, %v2647
    %v2685 = vmul.f32 %v2649, %v2652
    %v2686 = vadd.f32 %v2684, %v2685
    %v2687 = vmul.f32 %v2686, 0.33333334
    %v2688 = vmul.f32 %v2599, %v2652
    %v2689 = vmul.f32 %v2654, %v2657
    %v2690 = vadd.f32 %v2688, %v2689
    %v2691 = vmul.f32 %v2690, 0.33333334
    %v2692 = vmul.f32 %v2603, %v2657
    %v2693 = vmul.f32 %v2659, %v2662
    %v2694 = vadd.f32 %v2692, %v2693
    %v2695 = vmul.f32 %v2694, 0.33333334
    %v2696 = vmul.f32 %v2607, %v2662
    %v2697 = vmul.f32 %v2664, %v2667
    %v2698 = vadd.f32 %v2696, %v2697
    %v2699 = vmul.f32 %v2698, 0.33333334
    %v2700 = vpack.c.bf16 %v2580, %v2580
    %v2701 = vpack.c.bf16 %v2671, %v2671
    %v2702 = vpack.c.bf16 %v2675, %v2675
    %v2703 = vpack.c.bf16 %v2679, %v2679
    %v2704 = vpack.c.bf16 %v2683, %v2683
    %v2705 = vpack.c.bf16 %v2687, %v2687
    %v2706 = vpack.c.bf16 %v2691, %v2691
    %v2707 = vpack.c.bf16 %v2695, %v2695
    %v2708 = vpack.c.bf16 %v2699, %v2699
    %v2709 = vld [vmem:[#allocation10] sm:$0xf]
    %v2710 = vld [vmem:[#allocation10 + $0x4] sm:$0xf]
    %v2711 = vld [vmem:[#allocation10 + $0x8] sm:$0xf]
    %v2712 = vld [vmem:[#allocation10 + $0xc] sm:$0xf]
    %v2713 = vld [vmem:[#allocation10 + $0x10] sm:$0xf]
    %v2714 = vld [vmem:[#allocation10 + $0x14] sm:$0xf]
    %v2715 = vld [vmem:[#allocation10 + $0x18] sm:$0xf]
    %v2716 = vld [vmem:[#allocation10 + $0x1c] sm:$0xf]
    %v2717 = vld [vmem:[#allocation10 + $0x20] sm:$0xf]
    %v2718 = vld [vmem:[#allocation10 + $0x24] sm:$0xf]
    %v2719 = vld [vmem:[#allocation10 + $0x28] sm:$0xf]
    %v2720 = vld [vmem:[#allocation10 + $0x2c] sm:$0xf]
    %v2721 = vld [vmem:[#allocation10 + $0x30] sm:$0xf]
    %v2722 = vld [vmem:[#allocation10 + $0x34] sm:$0xf]
    %v2723 = vld [vmem:[#allocation10 + $0x38] sm:$0xf]
    %v2724 = vld [vmem:[#allocation10 + $0x3c] sm:$0xf]
    %v2725 = vld [vmem:[#allocation10 + $0x40] sm:$0xf]
    %v2726 = vld [vmem:[#allocation10 + $0x44] sm:$0xf]
    %v2727 = vld [vmem:[#allocation10 + $0x48] sm:$0xf]
    %v2728 = vld [vmem:[#allocation10 + $0x4c] sm:$0xf]
    %v2729 = vld [vmem:[#allocation10 + $0x50] sm:$0xf]
    %v2730 = vld [vmem:[#allocation10 + $0x54] sm:$0xf]
    %v2731 = vld [vmem:[#allocation10 + $0x58] sm:$0xf]
    %v2732 = vld [vmem:[#allocation10 + $0x5c] sm:$0xf]
    %v2733 = vld [vmem:[#allocation10 + $0x60] sm:$0xf]
    %v2734 = vld [vmem:[#allocation10 + $0x64] sm:$0xf]
    %v2735 = vld [vmem:[#allocation10 + $0x68] sm:$0xf]
    %v2736 = vld [vmem:[#allocation10 + $0x6c] sm:$0xf]
    %v2737 = vld [vmem:[#allocation10 + $0x70] sm:$0xf]
    %v2738 = vld [vmem:[#allocation10 + $0x74] sm:$0xf]
    %v2739 = vld [vmem:[#allocation10 + $0x78] sm:$0xf]
    %v2740 = vld [vmem:[#allocation10 + $0x7c] sm:$0xf]
    %v2741 = vld [vmem:[#allocation10 + $0x80] sm:$0xf]
    %v2742 = vld [vmem:[#allocation10 + $0x84] sm:$0xf]
    %v2743 = vld [vmem:[#allocation10 + $0x88] sm:$0xf]
    %v2744 = vld [vmem:[#allocation10 + $0x8c] sm:$0xf]
    %v2745 = vld [vmem:[#allocation10 + $0x90] sm:$0xf]
    %v2746 = vld [vmem:[#allocation10 + $0x94] sm:$0xf]
    %v2747 = vld [vmem:[#allocation10 + $0x98] sm:$0xf]
    %v2748 = vld [vmem:[#allocation10 + $0x9c] sm:$0xf]
    %v2749 = vld [vmem:[#allocation10 + $0xa0] sm:$0xf]
    %v2750 = vld [vmem:[#allocation10 + $0xa4] sm:$0xf]
    %v2751 = vld [vmem:[#allocation10 + $0xa8] sm:$0xf]
    %v2752 = vld [vmem:[#allocation10 + $0xac] sm:$0xf]
    %v2753 = vld [vmem:[#allocation10 + $0xb0] sm:$0xf]
    %v2754 = vld [vmem:[#allocation10 + $0xb4] sm:$0xf]
    %v2755 = vld [vmem:[#allocation10 + $0xb8] sm:$0xf]
    %v2756 = vld [vmem:[#allocation10 + $0xbc] sm:$0xf]
    %v2757 = vld [vmem:[#allocation10 + $0xc0] sm:$0xf]
    %v2758 = vld [vmem:[#allocation10 + $0xc4] sm:$0xf]
    %v2759 = vld [vmem:[#allocation10 + $0xc8] sm:$0xf]
    %v2760 = vld [vmem:[#allocation10 + $0xcc] sm:$0xf]
    %v2761 = vld [vmem:[#allocation10 + $0xd0] sm:$0xf]
    %v2762 = vld [vmem:[#allocation10 + $0xd4] sm:$0xf]
    %v2763 = vld [vmem:[#allocation10 + $0xd8] sm:$0xf]
    %v2764 = vld [vmem:[#allocation10 + $0xdc] sm:$0xf]
    %v2765 = vld [vmem:[#allocation10 + $0xe0] sm:$0xf]
    %v2766 = vld [vmem:[#allocation10 + $0xe4] sm:$0xf]
    %v2767 = vld [vmem:[#allocation10 + $0xe8] sm:$0xf]
    %v2768 = vld [vmem:[#allocation10 + $0xec] sm:$0xf]
    %v2769 = vld [vmem:[#allocation10 + $0xf0] sm:$0xf]
    %v2770 = vld [vmem:[#allocation10 + $0xf4] sm:$0xf]
    %v2771 = vld [vmem:[#allocation10 + $0xf8] sm:$0xf]
    %v2772 = vld [vmem:[#allocation10 + $0xfc] sm:$0xf]
    %v2773 = vld [vmem:[#allocation10 + $0x100] sm:$0xf]
    %v2774 = vld [vmem:[#allocation10 + $0x104] sm:$0xf]
    %v2775 = vld [vmem:[#allocation10 + $0x108] sm:$0xf]
    %v2776 = vld [vmem:[#allocation10 + $0x10c] sm:$0xf]
    %v2777 = vld [vmem:[#allocation10 + $0x110] sm:$0xf]
    %v2778 = vld [vmem:[#allocation10 + $0x114] sm:$0xf]
    %v2779 = vld [vmem:[#allocation10 + $0x118] sm:$0xf]
    %v2780 = vld [vmem:[#allocation10 + $0x11c] sm:$0xf]
    %v2781 = vld [vmem:[#allocation10 + $0x120] sm:$0xf]
    %v2782 = vld [vmem:[#allocation10 + $0x124] sm:$0xf]
    %v2783 = vld [vmem:[#allocation10 + $0x128] sm:$0xf]
    %v2784 = vld [vmem:[#allocation10 + $0x12c] sm:$0xf]
    %v2785 = vld [vmem:[#allocation10 + $0x130] sm:$0xf]
    %v2786 = vld [vmem:[#allocation10 + $0x134] sm:$0xf]
    %v2787 = vld [vmem:[#allocation10 + $0x138] sm:$0xf]
    %v2788 = vld [vmem:[#allocation10 + $0x13c] sm:$0xf]
    %v2789 = vld [vmem:[#allocation10 + $0x140] sm:$0xf]
    %v2790 = vld [vmem:[#allocation10 + $0x144] sm:$0xf]
    %v2791 = vld [vmem:[#allocation10 + $0x148] sm:$0xf]
    %v2792 = vld [vmem:[#allocation10 + $0x14c] sm:$0xf]
    %v2793 = vld [vmem:[#allocation10 + $0x150] sm:$0xf]
    %v2794 = vld [vmem:[#allocation10 + $0x154] sm:$0xf]
    %v2795 = vld [vmem:[#allocation10 + $0x158] sm:$0xf]
    %v2796 = vld [vmem:[#allocation10 + $0x15c] sm:$0xf]
    %v2797 = vld [vmem:[#allocation10 + $0x160] sm:$0xf]
    %v2798 = vld [vmem:[#allocation10 + $0x164] sm:$0xf]
    %v2799 = vld [vmem:[#allocation10 + $0x168] sm:$0xf]
    %v2800 = vld [vmem:[#allocation10 + $0x16c] sm:$0xf]
    %v2801 = vld [vmem:[#allocation10 + $0x170] sm:$0xf]
    %v2802 = vld [vmem:[#allocation10 + $0x174] sm:$0xf]
    %v2803 = vld [vmem:[#allocation10 + $0x178] sm:$0xf]
    %v2804 = vld [vmem:[#allocation10 + $0x17c] sm:$0xf]
    %v2805 = vld [vmem:[#allocation10 + $0x180] sm:$0xf]
    %v2806 = vld [vmem:[#allocation10 + $0x184] sm:$0xf]
    %v2807 = vld [vmem:[#allocation10 + $0x188] sm:$0xf]
    %v2808 = vld [vmem:[#allocation10 + $0x18c] sm:$0xf]
    %v2809 = vld [vmem:[#allocation10 + $0x190] sm:$0xf]
    %v2810 = vld [vmem:[#allocation10 + $0x194] sm:$0xf]
    %v2811 = vld [vmem:[#allocation10 + $0x198] sm:$0xf]
    %v2812 = vld [vmem:[#allocation10 + $0x19c] sm:$0xf]
    %v2813 = vld [vmem:[#allocation10 + $0x1a0] sm:$0xf]
    %v2814 = vld [vmem:[#allocation10 + $0x1a4] sm:$0xf]
    %v2815 = vld [vmem:[#allocation10 + $0x1a8] sm:$0xf]
    %v2816 = vld [vmem:[#allocation10 + $0x1ac] sm:$0xf]
    %v2817 = vld [vmem:[#allocation10 + $0x1b0] sm:$0xf]
    %v2818 = vld [vmem:[#allocation10 + $0x1b4] sm:$0xf]
    %v2819 = vld [vmem:[#allocation10 + $0x1b8] sm:$0xf]
    %v2820 = vld [vmem:[#allocation10 + $0x1bc] sm:$0xf]
    %v2821 = vld [vmem:[#allocation10 + $0x1c0] sm:$0xf]
    %v2822 = vld [vmem:[#allocation10 + $0x1c4] sm:$0xf]
    %v2823 = vld [vmem:[#allocation10 + $0x1c8] sm:$0xf]
    %v2824 = vld [vmem:[#allocation10 + $0x1cc] sm:$0xf]
    %v2825 = vld [vmem:[#allocation10 + $0x1d0] sm:$0xf]
    %v2826 = vld [vmem:[#allocation10 + $0x1d4] sm:$0xf]
    %v2827 = vld [vmem:[#allocation10 + $0x1d8] sm:$0xf]
    %v2828 = vld [vmem:[#allocation10 + $0x1dc] sm:$0xf]
    %v2829 = vld [vmem:[#allocation10 + $0x1e0] sm:$0xf]
    %v2830 = vld [vmem:[#allocation10 + $0x1e4] sm:$0xf]
    %v2831 = vld [vmem:[#allocation10 + $0x1e8] sm:$0xf]
    %v2832 = vld [vmem:[#allocation10 + $0x1ec] sm:$0xf]
    %v2833 = vld [vmem:[#allocation10 + $0x1f0] sm:$0xf]
    %v2834 = vld [vmem:[#allocation10 + $0x1f4] sm:$0xf]
    %v2835 = vld [vmem:[#allocation10 + $0x1f8] sm:$0xf]
    %v2836 = vld [vmem:[#allocation10 + $0x1fc] sm:$0xf]
    %v2837 = vld [vmem:[#allocation10 + $0x200] sm:$0xf]
    %v2838 = vld [vmem:[#allocation10 + $0x204] sm:$0xf]
    %v2839 = vld [vmem:[#allocation10 + $0x208] sm:$0xf]
    %v2840 = vld [vmem:[#allocation10 + $0x20c] sm:$0xf]
    %v2841 = vld [vmem:[#allocation10 + $0x210] sm:$0xf]
    %v2842 = vld [vmem:[#allocation10 + $0x214] sm:$0xf]
    %v2843 = vld [vmem:[#allocation10 + $0x218] sm:$0xf]
    %v2844 = vld [vmem:[#allocation10 + $0x21c] sm:$0xf]
    %v2845 = vld [vmem:[#allocation10 + $0x220] sm:$0xf]
    %v2846 = vld [vmem:[#allocation10 + $0x224] sm:$0xf]
    %v2847 = vld [vmem:[#allocation10 + $0x228] sm:$0xf]
    %v2848 = vld [vmem:[#allocation10 + $0x22c] sm:$0xf]
    %v2849 = vld [vmem:[#allocation10 + $0x230] sm:$0xf]
    %v2850 = vld [vmem:[#allocation10 + $0x234] sm:$0xf]
    %v2851 = vld [vmem:[#allocation10 + $0x238] sm:$0xf]
    %v2852 = vld [vmem:[#allocation10 + $0x23c] sm:$0xf]
    %v2997 = vunpack.c.l.b16 %v2709
    %v2998 = vunpack.c.l.b16 %v2710
    %v2999 = vunpack.c.l.b16 %v2711
    %v3000 = vunpack.c.l.b16 %v2712
    %v3001 = vunpack.c.l.b16 %v2713
    %v3002 = vunpack.c.l.b16 %v2714
    %v3003 = vunpack.c.l.b16 %v2715
    %v3004 = vunpack.c.l.b16 %v2716
    %v3005 = vunpack.c.l.b16 %v2717
    %v3006 = vunpack.c.l.b16 %v2718
    %v3007 = vunpack.c.l.b16 %v2719
    %v3008 = vunpack.c.l.b16 %v2720
    %v3009 = vunpack.c.l.b16 %v2721
    %v3010 = vunpack.c.l.b16 %v2722
    %v3011 = vunpack.c.l.b16 %v2723
    %v3012 = vunpack.c.l.b16 %v2724
    %v3013 = vunpack.c.l.b16 %v2725
    %v3014 = vunpack.c.l.b16 %v2726
    %v3015 = vunpack.c.l.b16 %v2727
    %v3016 = vunpack.c.l.b16 %v2728
    %v3017 = vunpack.c.l.b16 %v2729
    %v3018 = vunpack.c.l.b16 %v2730
    %v3019 = vunpack.c.l.b16 %v2731
    %v3020 = vunpack.c.l.b16 %v2732
    %v3021 = vunpack.c.l.b16 %v2733
    %v3022 = vunpack.c.l.b16 %v2734
    %v3023 = vunpack.c.l.b16 %v2735
    %v3024 = vunpack.c.l.b16 %v2736
    %v3025 = vunpack.c.l.b16 %v2737
    %v3026 = vunpack.c.l.b16 %v2738
    %v3027 = vunpack.c.l.b16 %v2739
    %v3028 = vunpack.c.l.b16 %v2740
    %v3029 = vunpack.c.l.b16 %v2741
    %v3030 = vunpack.c.l.b16 %v2742
    %v3031 = vunpack.c.l.b16 %v2743
    %v3032 = vunpack.c.l.b16 %v2744
    %v3033 = vunpack.c.l.b16 %v2745
    %v3034 = vunpack.c.l.b16 %v2746
    %v3035 = vunpack.c.l.b16 %v2747
    %v3036 = vunpack.c.l.b16 %v2748
    %v3037 = vunpack.c.l.b16 %v2749
    %v3038 = vunpack.c.l.b16 %v2750
    %v3039 = vunpack.c.l.b16 %v2751
    %v3040 = vunpack.c.l.b16 %v2752
    %v3041 = vunpack.c.l.b16 %v2753
    %v3042 = vunpack.c.l.b16 %v2754
    %v3043 = vunpack.c.l.b16 %v2755
    %v3044 = vunpack.c.l.b16 %v2756
    %v3045 = vunpack.c.l.b16 %v2757
    %v3046 = vunpack.c.l.b16 %v2758
    %v3047 = vunpack.c.l.b16 %v2759
    %v3048 = vunpack.c.l.b16 %v2760
    %v3049 = vunpack.c.l.b16 %v2761
    %v3050 = vunpack.c.l.b16 %v2762
    %v3051 = vunpack.c.l.b16 %v2763
    %v3052 = vunpack.c.l.b16 %v2764
    %v3053 = vunpack.c.l.b16 %v2765
    %v3054 = vunpack.c.l.b16 %v2766
    %v3055 = vunpack.c.l.b16 %v2767
    %v3056 = vunpack.c.l.b16 %v2768
    %v3057 = vunpack.c.l.b16 %v2769
    %v3058 = vunpack.c.l.b16 %v2770
    %v3059 = vunpack.c.l.b16 %v2771
    %v3060 = vunpack.c.l.b16 %v2772
    %v3061 = vunpack.c.l.b16 %v2773
    %v3062 = vunpack.c.l.b16 %v2774
    %v3063 = vunpack.c.l.b16 %v2775
    %v3064 = vunpack.c.l.b16 %v2776
    %v3065 = vunpack.c.l.b16 %v2777
    %v3066 = vunpack.c.l.b16 %v2778
    %v3067 = vunpack.c.l.b16 %v2779
    %v3068 = vunpack.c.l.b16 %v2780
    %v3069 = vunpack.c.l.b16 %v2781
    %v3070 = vunpack.c.l.b16 %v2782
    %v3071 = vunpack.c.l.b16 %v2783
    %v3072 = vunpack.c.l.b16 %v2784
    %v3073 = vunpack.c.l.b16 %v2785
    %v3074 = vunpack.c.l.b16 %v2786
    %v3075 = vunpack.c.l.b16 %v2787
    %v3076 = vunpack.c.l.b16 %v2788
    %v3077 = vunpack.c.l.b16 %v2789
    %v3078 = vunpack.c.l.b16 %v2790
    %v3079 = vunpack.c.l.b16 %v2791
    %v3080 = vunpack.c.l.b16 %v2792
    %v3081 = vunpack.c.l.b16 %v2793
    %v3082 = vunpack.c.l.b16 %v2794
    %v3083 = vunpack.c.l.b16 %v2795
    %v3084 = vunpack.c.l.b16 %v2796
    %v3085 = vunpack.c.l.b16 %v2797
    %v3086 = vunpack.c.l.b16 %v2798
    %v3087 = vunpack.c.l.b16 %v2799
    %v3088 = vunpack.c.l.b16 %v2800
    %v3089 = vunpack.c.l.b16 %v2801
    %v3090 = vunpack.c.l.b16 %v2802
    %v3091 = vunpack.c.l.b16 %v2803
    %v3092 = vunpack.c.l.b16 %v2804
    %v3093 = vunpack.c.l.b16 %v2805
    %v3094 = vunpack.c.l.b16 %v2806
    %v3095 = vunpack.c.l.b16 %v2807
    %v3096 = vunpack.c.l.b16 %v2808
    %v3097 = vunpack.c.l.b16 %v2809
    %v3098 = vunpack.c.l.b16 %v2810
    %v3099 = vunpack.c.l.b16 %v2811
    %v3100 = vunpack.c.l.b16 %v2812
    %v3101 = vunpack.c.l.b16 %v2813
    %v3102 = vunpack.c.l.b16 %v2814
    %v3103 = vunpack.c.l.b16 %v2815
    %v3104 = vunpack.c.l.b16 %v2816
    %v3105 = vunpack.c.l.b16 %v2817
    %v3106 = vunpack.c.l.b16 %v2818
    %v3107 = vunpack.c.l.b16 %v2819
    %v3108 = vunpack.c.l.b16 %v2820
    %v3109 = vunpack.c.l.b16 %v2821
    %v3110 = vunpack.c.l.b16 %v2822
    %v3111 = vunpack.c.l.b16 %v2823
    %v3112 = vunpack.c.l.b16 %v2824
    %v3113 = vunpack.c.l.b16 %v2825
    %v3114 = vunpack.c.l.b16 %v2826
    %v3115 = vunpack.c.l.b16 %v2827
    %v3116 = vunpack.c.l.b16 %v2828
    %v3117 = vunpack.c.l.b16 %v2829
    %v3118 = vunpack.c.l.b16 %v2830
    %v3119 = vunpack.c.l.b16 %v2831
    %v3120 = vunpack.c.l.b16 %v2832
    %v3121 = vunpack.c.l.b16 %v2833
    %v3122 = vunpack.c.l.b16 %v2834
    %v3123 = vunpack.c.l.b16 %v2835
    %v3124 = vunpack.c.l.b16 %v2836
    %v3125 = vunpack.c.l.b16 %v2837
    %v3126 = vunpack.c.l.b16 %v2838
    %v3127 = vunpack.c.l.b16 %v2839
    %v3128 = vunpack.c.l.b16 %v2840
    %v3129 = vunpack.c.l.b16 %v2841
    %v3130 = vunpack.c.l.b16 %v2842
    %v3131 = vunpack.c.l.b16 %v2843
    %v3132 = vunpack.c.l.b16 %v2844
    %v3133 = vunpack.c.l.b16 %v2845
    %v3134 = vunpack.c.l.b16 %v2846
    %v3135 = vunpack.c.l.b16 %v2847
    %v3136 = vunpack.c.l.b16 %v2848
    %v3137 = vunpack.c.l.b16 %v2849
    %v3138 = vunpack.c.l.b16 %v2850
    %v3139 = vunpack.c.l.b16 %v2851
    %v3140 = vunpack.c.l.b16 %v2852
    %v3141 = vpack.c.b16 %v2998, %v2997
    %v3142 = vpack.c.b16 %v3000, %v2999
    %v3143 = vpack.c.b16 %v3002, %v3001
    %v3144 = vpack.c.b16 %v3004, %v3003
    %v3145 = vpack.c.b16 %v3006, %v3005
    %v3146 = vpack.c.b16 %v3008, %v3007
    %v3147 = vpack.c.b16 %v3010, %v3009
    %v3148 = vpack.c.b16 %v3012, %v3011
    %v3149 = vpack.c.b16 %v3014, %v3013
    %v3150 = vpack.c.b16 %v3016, %v3015
    %v3151 = vpack.c.b16 %v3018, %v3017
    %v3152 = vpack.c.b16 %v3020, %v3019
    %v3153 = vpack.c.b16 %v3022, %v3021
    %v3154 = vpack.c.b16 %v3024, %v3023
    %v3155 = vpack.c.b16 %v3026, %v3025
    %v3156 = vpack.c.b16 %v3028, %v3027
    %v3157 = vpack.c.b16 %v3030, %v3029
    %v3158 = vpack.c.b16 %v3032, %v3031
    %v3159 = vpack.c.b16 %v3034, %v3033
    %v3160 = vpack.c.b16 %v3036, %v3035
    %v3161 = vpack.c.b16 %v3038, %v3037
    %v3162 = vpack.c.b16 %v3040, %v3039
    %v3163 = vpack.c.b16 %v3042, %v3041
    %v3164 = vpack.c.b16 %v3044, %v3043
    %v3165 = vpack.c.b16 %v3046, %v3045
    %v3166 = vpack.c.b16 %v3048, %v3047
    %v3167 = vpack.c.b16 %v3050, %v3049
    %v3168 = vpack.c.b16 %v3052, %v3051
    %v3169 = vpack.c.b16 %v3054, %v3053
    %v3170 = vpack.c.b16 %v3056, %v3055
    %v3171 = vpack.c.b16 %v3058, %v3057
    %v3172 = vpack.c.b16 %v3060, %v3059
    %v3173 = vpack.c.b16 %v3062, %v3061
    %v3174 = vpack.c.b16 %v3064, %v3063
    %v3175 = vpack.c.b16 %v3066, %v3065
    %v3176 = vpack.c.b16 %v3068, %v3067
    %v3177 = vpack.c.b16 %v3070, %v3069
    %v3178 = vpack.c.b16 %v3072, %v3071
    %v3179 = vpack.c.b16 %v3074, %v3073
    %v3180 = vpack.c.b16 %v3076, %v3075
    %v3181 = vpack.c.b16 %v3078, %v3077
    %v3182 = vpack.c.b16 %v3080, %v3079
    %v3183 = vpack.c.b16 %v3082, %v3081
    %v3184 = vpack.c.b16 %v3084, %v3083
    %v3185 = vpack.c.b16 %v3086, %v3085
    %v3186 = vpack.c.b16 %v3088, %v3087
    %v3187 = vpack.c.b16 %v3090, %v3089
    %v3188 = vpack.c.b16 %v3092, %v3091
    %v3189 = vpack.c.b16 %v3094, %v3093
    %v3190 = vpack.c.b16 %v3096, %v3095
    %v3191 = vpack.c.b16 %v3098, %v3097
    %v3192 = vpack.c.b16 %v3100, %v3099
    %v3193 = vpack.c.b16 %v3102, %v3101
    %v3194 = vpack.c.b16 %v3104, %v3103
    %v3195 = vpack.c.b16 %v3106, %v3105
    %v3196 = vpack.c.b16 %v3108, %v3107
    %v3197 = vpack.c.b16 %v3110, %v3109
    %v3198 = vpack.c.b16 %v3112, %v3111
    %v3199 = vpack.c.b16 %v3114, %v3113
    %v3200 = vpack.c.b16 %v3116, %v3115
    %v3201 = vpack.c.b16 %v3118, %v3117
    %v3202 = vpack.c.b16 %v3120, %v3119
    %v3203 = vpack.c.b16 %v3122, %v3121
    %v3204 = vpack.c.b16 %v3124, %v3123
    %v3205 = vpack.c.b16 %v3126, %v3125
    %v3206 = vpack.c.b16 %v3128, %v3127
    %v3207 = vpack.c.b16 %v3130, %v3129
    %v3208 = vpack.c.b16 %v3132, %v3131
    %v3209 = vpack.c.b16 %v3134, %v3133
    %v3210 = vpack.c.b16 %v3136, %v3135
    %v3211 = vpack.c.b16 %v3138, %v3137
    %v3212 = vpack.c.b16 %v3140, %v3139
    %3285 = vmatpush.bf16.msra.mxu0 %v3148
    %3286 = vmatpush.bf16.msra.mxu0 %v3147
    %3287 = vmatpush.bf16.msra.mxu0 %v3146
    %3288 = vmatpush.bf16.msra.mxu0 %v3145
    %3289 = vmatpush.bf16.msra.mxu0 %v3144
    %3290 = vmatpush.bf16.msra.mxu0 %v3143
    %3291 = vmatpush.bf16.msra.mxu0 %v3142
    %3292 = vmatpush.bf16.msra.mxu0 %v3141
    %3293 = vmatmul.bf16.gmra.mxu0 %v2700
    %v3294 = vpop.f32.mrf.mxu0
    %v3295 = vadd.f32 0.0, %v3294
    %v3296 = vpop.f32.mrf.mxu0
    %3297 = vdwg.mxu0
    %3298 = vmatpush.bf16.msra.mxu0 %v3156
    %3299 = vmatpush.bf16.msra.mxu0 %v3155
    %3300 = vmatpush.bf16.msra.mxu0 %v3154
    %3301 = vmatpush.bf16.msra.mxu0 %v3153
    %3302 = vmatpush.bf16.msra.mxu0 %v3152
    %3303 = vmatpush.bf16.msra.mxu0 %v3151
    %3304 = vmatpush.bf16.msra.mxu0 %v3150
    %3305 = vmatpush.bf16.msra.mxu0 %v3149
    %3306 = vmatmul.bf16.gmra.mxu0 %v2701
    %v3307 = vpop.f32.mrf.mxu0
    %v3308 = vadd.f32 %v3295, %v3307
    %v3309 = vpop.f32.mrf.mxu0
    %3310 = vdwg.mxu0
    %3311 = vmatpush.bf16.msra.mxu0 %v3164
    %3312 = vmatpush.bf16.msra.mxu0 %v3163
    %3313 = vmatpush.bf16.msra.mxu0 %v3162
    %3314 = vmatpush.bf16.msra.mxu0 %v3161
    %3315 = vmatpush.bf16.msra.mxu0 %v3160
    %3316 = vmatpush.bf16.msra.mxu0 %v3159
    %3317 = vmatpush.bf16.msra.mxu0 %v3158
    %3318 = vmatpush.bf16.msra.mxu0 %v3157
    %3319 = vmatmul.bf16.gmra.mxu0 %v2702
    %v3320 = vpop.f32.mrf.mxu0
    %v3321 = vadd.f32 %v3308, %v3320
    %v3322 = vpop.f32.mrf.mxu0
    %3323 = vdwg.mxu0
    %3324 = vmatpush.bf16.msra.mxu0 %v3172
    %3325 = vmatpush.bf16.msra.mxu0 %v3171
    %3326 = vmatpush.bf16.msra.mxu0 %v3170
    %3327 = vmatpush.bf16.msra.mxu0 %v3169
    %3328 = vmatpush.bf16.msra.mxu0 %v3168
    %3329 = vmatpush.bf16.msra.mxu0 %v3167
    %3330 = vmatpush.bf16.msra.mxu0 %v3166
    %3331 = vmatpush.bf16.msra.mxu0 %v3165
    %3332 = vmatmul.bf16.gmra.mxu0 %v2703
    %v3333 = vpop.f32.mrf.mxu0
    %v3334 = vadd.f32 %v3321, %v3333
    %v3335 = vpop.f32.mrf.mxu0
    %3336 = vdwg.mxu0
    %3337 = vmatpush.bf16.msra.mxu0 %v3180
    %3338 = vmatpush.bf16.msra.mxu0 %v3179
    %3339 = vmatpush.bf16.msra.mxu0 %v3178
    %3340 = vmatpush.bf16.msra.mxu0 %v3177
    %3341 = vmatpush.bf16.msra.mxu0 %v3176
    %3342 = vmatpush.bf16.msra.mxu0 %v3175
    %3343 = vmatpush.bf16.msra.mxu0 %v3174
    %3344 = vmatpush.bf16.msra.mxu0 %v3173
    %3345 = vmatmul.bf16.gmra.mxu0 %v2704
    %v3346 = vpop.f32.mrf.mxu0
    %v3347 = vadd.f32 %v3334, %v3346
    %v3348 = vpop.f32.mrf.mxu0
    %3349 = vdwg.mxu0
    %3350 = vmatpush.bf16.msra.mxu0 %v3188
    %3351 = vmatpush.bf16.msra.mxu0 %v3187
    %3352 = vmatpush.bf16.msra.mxu0 %v3186
    %3353 = vmatpush.bf16.msra.mxu0 %v3185
    %3354 = vmatpush.bf16.msra.mxu0 %v3184
    %3355 = vmatpush.bf16.msra.mxu0 %v3183
    %3356 = vmatpush.bf16.msra.mxu0 %v3182
    %3357 = vmatpush.bf16.msra.mxu0 %v3181
    %3358 = vmatmul.bf16.gmra.mxu0 %v2705
    %v3359 = vpop.f32.mrf.mxu0
    %v3360 = vadd.f32 %v3347, %v3359
    %v3361 = vpop.f32.mrf.mxu0
    %3362 = vdwg.mxu0
    %3363 = vmatpush.bf16.msra.mxu0 %v3196
    %3364 = vmatpush.bf16.msra.mxu0 %v3195
    %3365 = vmatpush.bf16.msra.mxu0 %v3194
    %3366 = vmatpush.bf16.msra.mxu0 %v3193
    %3367 = vmatpush.bf16.msra.mxu0 %v3192
    %3368 = vmatpush.bf16.msra.mxu0 %v3191
    %3369 = vmatpush.bf16.msra.mxu0 %v3190
    %3370 = vmatpush.bf16.msra.mxu0 %v3189
    %3371 = vmatmul.bf16.gmra.mxu0 %v2706
    %v3372 = vpop.f32.mrf.mxu0
    %v3373 = vadd.f32 %v3360, %v3372
    %v3374 = vpop.f32.mrf.mxu0
    %3375 = vdwg.mxu0
    %3376 = vmatpush.bf16.msra.mxu0 %v3204
    %3377 = vmatpush.bf16.msra.mxu0 %v3203
    %3378 = vmatpush.bf16.msra.mxu0 %v3202
    %3379 = vmatpush.bf16.msra.mxu0 %v3201
    %3380 = vmatpush.bf16.msra.mxu0 %v3200
    %3381 = vmatpush.bf16.msra.mxu0 %v3199
    %3382 = vmatpush.bf16.msra.mxu0 %v3198
    %3383 = vmatpush.bf16.msra.mxu0 %v3197
    %3384 = vmatmul.bf16.gmra.mxu0 %v2707
    %v3385 = vpop.f32.mrf.mxu0
    %v3386 = vadd.f32 %v3373, %v3385
    %v3387 = vpop.f32.mrf.mxu0
    %3388 = vdwg.mxu0
    %3389 = vmatpush.bf16.msra.mxu0 %v3212
    %3390 = vmatpush.bf16.msra.mxu0 %v3211
    %3391 = vmatpush.bf16.msra.mxu0 %v3210
    %3392 = vmatpush.bf16.msra.mxu0 %v3209
    %3393 = vmatpush.bf16.msra.mxu0 %v3208
    %3394 = vmatpush.bf16.msra.mxu0 %v3207
    %3395 = vmatpush.bf16.msra.mxu0 %v3206
    %3396 = vmatpush.bf16.msra.mxu0 %v3205
    %3397 = vmatmul.bf16.gmra.mxu0 %v2708
    %v3398 = vpop.f32.mrf.mxu0
    %v3399 = vadd.f32 %v3386, %v3398
    %v3400 = vpop.f32.mrf.mxu0
    %3401 = vdwg.mxu0
    %3402 = vst [vmem:[#allocation11] sm:$0xff] %v3399
    // Predicated region
    $region42: #{tpu_custom_call.1} parent=1 // pred_check
      _
    $region43: #{tpu_custom_call.1} parent=1 // pred_check_branch
      %3404 = sbr.rel (0) target = $region45
    $region44: #{tpu_custom_call.1} parent=1 // pred_region
      %3406 = vsyncadd [#allocation4], 0
      %s3408 = sshll.u32 [#allocation11], 4
      %s3409 = int_to_ptr.vmem [resolvable:$true] %s3408
      %s3410 = sshll.u32 %s5, 4
      %s3411 = int_to_ptr.hbm [resolvable:$true] %s3410
      %3413 = dma.vmem_to_hbm [thread:$0]  %s3409, 128, %s3411, [#allocation4]
    $region45: #{tpu_custom_call.1} parent=1 // pred_fallthru
      _
    // Predicated region
    $region46: #{tpu_custom_call.1} parent=1 // pred_check
      _
    $region47: #{tpu_custom_call.1} parent=1 // pred_check_branch
      %3415 = sbr.rel (0) target = $region49
    $region48: #{tpu_custom_call.1} parent=1 // pred_region
      %3417 = dma.done [#allocation4], 128
    $region49: #{tpu_custom_call.1} parent=1 // pred_fallthru
      _
    %3418 = vsyncpa [#allocation3], 1
    %3419 = vsyncpa [#allocation6], 1
    %3420 = vsyncpa [#allocation9], 1
    %3421 = vsyncpa [#allocation4], 1

// kernel: tpu_custom_call.1
$region0: #{tpu_custom_call.1}
  #allocation0 [shape = 'u32[]', space=smem, size = 0x4, offset = 0x4, fixed_abs, tag = 'smem constant byte address 0x4 - core index']
  #allocation1 [shape = 'u32[72,128]{1,0:T(1,128)}', space=vmem, size = 0x9000, scoped, tag = 'internal scratch']
  %s0 = inlined_call_operand.hbm [shape: f32[8,128], index: 0, kind: input, shape index: {}]
  %s1 = inlined_call_operand.hbm [shape: bf16[1152,128], index: 1, kind: input, shape index: {}]
  %s2 = inlined_call_operand.hbm [shape: bf16[1152,128], index: 2, kind: input, shape index: {}]
  %s3 = inlined_call_operand.hbm [shape: bf16[1152,128], index: 3, kind: input, shape index: {}]
  %s4 = inlined_call_operand.hbm [shape: bf16[1152,128], index: 4, kind: input, shape index: {}]
  %s5 = inlined_call_operand.hbm [shape: f32[8,128], index: 5, kind: output, shape index: {}]
  %s6 = sld [smem:[#allocation0]]
  $region50: #{tpu_custom_call.1} parent=0
    _
  %s8 = ssub.s32 1, %s6
  %s9 = scalar_select 0, %s8, %s6
  $region1: #{tpu_custom_call.1} parent=0
    #allocation2 [shape = 'u8[4096]{0}', space=vmem, size = 0x1000, scoped, tag = 'input window, operand 0, single buffered']
    #allocation3 [shape = 's32[1]{0}', space=sflag, size = 0x4, scoped, tag = 'scoped memory for tpu_custom_call.1']
    #allocation4 [shape = 's32[1]{0}', space=sflag, size = 0x4, scoped, tag = 'scoped memory for tpu_custom_call.1']
    #allocation5 [shape = 'u8[294912]{0}', space=vmem, size = 0x48000, scoped, tag = 'input window, operand 1, single buffered']
    #allocation6 [shape = 's32[1]{0}', space=sflag, size = 0x4, scoped, tag = 'scoped memory for tpu_custom_call.1']
    #allocation7 [shape = 'u8[294912]{0}', space=vmem, size = 0x48000, scoped, tag = 'input window, operand 2, single buffered']
    #allocation8 [shape = 'u8[294912]{0}', space=vmem, size = 0x48000, scoped, tag = 'input window, operand 3, single buffered']
    #allocation9 [shape = 's32[1]{0}', space=sflag, size = 0x4, scoped, tag = 'scoped memory for tpu_custom_call.1']
    #allocation10 [shape = 'u8[294912]{0}', space=vmem, size = 0x48000, scoped, tag = 'input window, operand 4, single buffered']
    #allocation11 [shape = 'u8[4096]{0}', space=vmem, size = 0x1000, scoped, tag = 'output window, operand 0, single buffered']
    %10 = vsyncpa [#allocation3], 0
    %11 = vsyncpa [#allocation6], 0
    %12 = vsyncpa [#allocation9], 0
    %13 = vsyncpa [#allocation4], 0
    // Predicated region
    $region2: #{tpu_custom_call.1} parent=1 // pred_check
      _
    $region3: #{tpu_custom_call.1} parent=1 // pred_check_branch
      %15 = sbr.rel (0) target = $region5
    $region4: #{tpu_custom_call.1} parent=1 // pred_region
      %17 = vsyncadd [#allocation3], 0
      %s19 = sshll.u32 %s0, 4
      %s20 = int_to_ptr.hbm [resolvable:$true] %s19
      %s21 = sshll.u32 [#allocation2], 4
      %s22 = int_to_ptr.vmem [resolvable:$true] %s21
      %24 = dma.hbm_to_vmem [thread:$0]  %s20, 128, %s22, [#allocation3]
    $region5: #{tpu_custom_call.1} parent=1 // pred_fallthru
      _
    // Predicated region
    $region6: #{tpu_custom_call.1} parent=1 // pred_check
      _
    $region7: #{tpu_custom_call.1} parent=1 // pred_check_branch
      %26 = sbr.rel (0) target = $region9
    $region8: #{tpu_custom_call.1} parent=1 // pred_region
      %28 = vsyncadd [#allocation6], 0
      %s29 = sshll.u32 %s1, 4
      %s30 = int_to_ptr.hbm [resolvable:$true] %s29
      %s31 = sshll.u32 [#allocation5], 4
      %s32 = int_to_ptr.vmem [resolvable:$true] %s31
      %37 = dma.hbm_to_vmem [thread:$0]  %s30, 9216, %s32, [#allocation6], 64, 64, 4
    $region9: #{tpu_custom_call.1} parent=1 // pred_fallthru
      _
    // Predicated region
    $region10: #{tpu_custom_call.1} parent=1 // pred_check
      _
    $region11: #{tpu_custom_call.1} parent=1 // pred_check_branch
      %39 = sbr.rel (0) target = $region13
    $region12: #{tpu_custom_call.1} parent=1 // pred_region
      %41 = vsyncadd [#allocation6], 0
      %s42 = sshll.u32 %s2, 4
      %s43 = int_to_ptr.hbm [resolvable:$true] %s42
      %s44 = sshll.u32 [#allocation7], 4
      %s45 = int_to_ptr.vmem [resolvable:$true] %s44
      %50 = dma.hbm_to_vmem [thread:$0]  %s43, 9216, %s45, [#allocation6], 64, 64, 4
    $region13: #{tpu_custom_call.1} parent=1 // pred_fallthru
      _
    // Predicated region
    $region14: #{tpu_custom_call.1} parent=1 // pred_check
      _
    $region15: #{tpu_custom_call.1} parent=1 // pred_check_branch
      %52 = sbr.rel (0) target = $region17
    $region16: #{tpu_custom_call.1} parent=1 // pred_region
      %54 = vsyncadd [#allocation9], 0
      %s55 = sshll.u32 %s3, 4
      %s56 = int_to_ptr.hbm [resolvable:$true] %s55
      %s57 = sshll.u32 [#allocation8], 4
      %s58 = int_to_ptr.vmem [resolvable:$true] %s57
      %63 = dma.hbm_to_vmem [thread:$0]  %s56, 9216, %s58, [#allocation9], 64, 64, 4
    $region17: #{tpu_custom_call.1} parent=1 // pred_fallthru
      _
    // Predicated region
    $region18: #{tpu_custom_call.1} parent=1 // pred_check
      _
    $region19: #{tpu_custom_call.1} parent=1 // pred_check_branch
      %65 = sbr.rel (0) target = $region21
    $region20: #{tpu_custom_call.1} parent=1 // pred_region
      %67 = vsyncadd [#allocation9], 0
      %s68 = sshll.u32 %s4, 4
      %s69 = int_to_ptr.hbm [resolvable:$true] %s68
      %s70 = sshll.u32 [#allocation10], 4
      %s71 = int_to_ptr.vmem [resolvable:$true] %s70
      %76 = dma.hbm_to_vmem [thread:$0]  %s69, 9216, %s71, [#allocation9], 64, 64, 4
    $region21: #{tpu_custom_call.1} parent=1 // pred_fallthru
      _
    // Predicated region
    $region22: #{tpu_custom_call.1} parent=1 // pred_check
      _
    $region23: #{tpu_custom_call.1} parent=1 // pred_check_branch
      %78 = sbr.rel (0) target = $region25
    $region24: #{tpu_custom_call.1} parent=1 // pred_region
      %80 = dma.done [#allocation3], 128
    $region25: #{tpu_custom_call.1} parent=1 // pred_fallthru
      _
    // Predicated region
    $region26: #{tpu_custom_call.1} parent=1 // pred_check
      _
    $region27: #{tpu_custom_call.1} parent=1 // pred_check_branch
      %82 = sbr.rel (0) target = $region29
    $region28: #{tpu_custom_call.1} parent=1 // pred_region
      %84 = dma.done [#allocation6], 9216
    $region29: #{tpu_custom_call.1} parent=1 // pred_fallthru
      _
    // Predicated region
    $region30: #{tpu_custom_call.1} parent=1 // pred_check
      _
    $region31: #{tpu_custom_call.1} parent=1 // pred_check_branch
      %86 = sbr.rel (0) target = $region33
    $region32: #{tpu_custom_call.1} parent=1 // pred_region
      %88 = dma.done [#allocation6], 9216
    $region33: #{tpu_custom_call.1} parent=1 // pred_fallthru
      _
    // Predicated region
    $region34: #{tpu_custom_call.1} parent=1 // pred_check
      _
    $region35: #{tpu_custom_call.1} parent=1 // pred_check_branch
      %90 = sbr.rel (0) target = $region37
    $region36: #{tpu_custom_call.1} parent=1 // pred_region
      %92 = dma.done [#allocation9], 9216
    $region37: #{tpu_custom_call.1} parent=1 // pred_fallthru
      _
    // Predicated region
    $region38: #{tpu_custom_call.1} parent=1 // pred_check
      _
    $region39: #{tpu_custom_call.1} parent=1 // pred_check_branch
      %94 = sbr.rel (0) target = $region41
    $region40: #{tpu_custom_call.1} parent=1 // pred_region
      %96 = dma.done [#allocation9], 9216
    $region41: #{tpu_custom_call.1} parent=1 // pred_fallthru
      _
    %v97 = vld [vmem:[#allocation2] sm:$0xff]
    %v98 = vmul.f32 %v97, 0.5
    %v99 = vtanh.pop %v98
    %v100 = vmul.f32 %v99, 0.5
    %v101 = vadd.f32 %v100, 0.5
    %v102 = vmul.f32 %v97, %v101
    %v103 = vsub.f32 %v97, -2.2
    %v104 = vmul.f32 %v103, 2.5
    %v105 = vsub.f32 %v104, 1.0
    %v106 = vand.u32 2147483647, %v105
    %v107 = vsub.f32 1.0, %v106
    %v108 = vmax.f32 %v107, 0.0
    %v109 = vsub.f32 %v104, 2.0
    %v110 = vand.u32 2147483647, %v109
    %v111 = vsub.f32 1.0, %v110
    %v112 = vmax.f32 %v111, 0.0
    %v113 = vsub.f32 %v104, 3.0
    %v114 = vand.u32 2147483647, %v113
    %v115 = vsub.f32 1.0, %v114
    %v116 = vmax.f32 %v115, 0.0
    %v117 = vsub.f32 %v104, 4.0
    %v118 = vand.u32 2147483647, %v117
    %v119 = vsub.f32 1.0, %v118
    %v120 = vmax.f32 %v119, 0.0
    %v121 = vsub.f32 %v104, 5.0
    %v122 = vand.u32 2147483647, %v121
    %v123 = vsub.f32 1.0, %v122
    %v124 = vmax.f32 %v123, 0.0
    %v125 = vsub.f32 %v104, 6.0
    %v126 = vand.u32 2147483647, %v125
    %v127 = vsub.f32 1.0, %v126
    %v128 = vmax.f32 %v127, 0.0
    %v129 = vsub.f32 %v104, 7.0
    %v130 = vand.u32 2147483647, %v129
    %v131 = vsub.f32 1.0, %v130
    %v132 = vmax.f32 %v131, 0.0
    %v133 = vsub.f32 %v104, 8.0
    %v134 = vand.u32 2147483647, %v133
    %v135 = vsub.f32 1.0, %v134
    %v136 = vmax.f32 %v135, 0.0
    %v137 = vsub.f32 %v104, 9.0
    %v138 = vand.u32 2147483647, %v137
    %v139 = vsub.f32 1.0, %v138
    %v140 = vmax.f32 %v139, 0.0
    %v141 = vsub.f32 %v104, 10.0
    %v142 = vand.u32 2147483647, %v141
    %v143 = vsub.f32 1.0, %v142
    %v144 = vmax.f32 %v143, 0.0
    %v145 = vmul.f32 %v104, %v108
    %v146 = vsub.f32 3.0, %v104
    %v147 = vmul.f32 %v146, %v112
    %v148 = vadd.f32 %v145, %v147
    %v149 = vmul.f32 %v148, 0.5
    %v150 = vmul.f32 %v105, %v112
    %v151 = vsub.f32 4.0, %v104
    %v152 = vmul.f32 %v151, %v116
    %v153 = vadd.f32 %v150, %v152
    %v154 = vmul.f32 %v153, 0.5
    %v155 = vmul.f32 %v109, %v116
    %v156 = vsub.f32 5.0, %v104
    %v157 = vmul.f32 %v156, %v120
    %v158 = vadd.f32 %v155, %v157
    %v159 = vmul.f32 %v158, 0.5
    %v160 = vmul.f32 %v113, %v120
    %v161 = vsub.f32 6.0, %v104
    %v162 = vmul.f32 %v161, %v124
    %v163 = vadd.f32 %v160, %v162
    %v164 = vmul.f32 %v163, 0.5
    %v165 = vmul.f32 %v117, %v124
    %v166 = vsub.f32 7.0, %v104
    %v167 = vmul.f32 %v166, %v128
    %v168 = vadd.f32 %v165, %v167
    %v169 = vmul.f32 %v168, 0.5
    %v170 = vmul.f32 %v121, %v128
    %v171 = vsub.f32 8.0, %v104
    %v172 = vmul.f32 %v171, %v132
    %v173 = vadd.f32 %v170, %v172
    %v174 = vmul.f32 %v173, 0.5
    %v175 = vmul.f32 %v125, %v132
    %v176 = vsub.f32 9.0, %v104
    %v177 = vmul.f32 %v176, %v136
    %v178 = vadd.f32 %v175, %v177
    %v179 = vmul.f32 %v178, 0.5
    %v180 = vmul.f32 %v129, %v136
    %v181 = vsub.f32 10.0, %v104
    %v182 = vmul.f32 %v181, %v140
    %v183 = vadd.f32 %v180, %v182
    %v184 = vmul.f32 %v183, 0.5
    %v185 = vmul.f32 %v133, %v140
    %v186 = vsub.f32 11.0, %v104
    %v187 = vmul.f32 %v186, %v144
    %v188 = vadd.f32 %v185, %v187
    %v189 = vmul.f32 %v188, 0.5
    %v190 = vmul.f32 %v104, %v149
    %v191 = vmul.f32 %v151, %v154
    %v192 = vadd.f32 %v190, %v191
    %v193 = vmul.f32 %v192, 0.33333334
    %v194 = vmul.f32 %v105, %v154
    %v195 = vmul.f32 %v156, %v159
    %v196 = vadd.f32 %v194, %v195
    %v197 = vmul.f32 %v196, 0.33333334
    %v198 = vmul.f32 %v109, %v159
    %v199 = vmul.f32 %v161, %v164
    %v200 = vadd.f32 %v198, %v199
    %v201 = vmul.f32 %v200, 0.33333334
    %v202 = vmul.f32 %v113, %v164
    %v203 = vmul.f32 %v166, %v169
    %v204 = vadd.f32 %v202, %v203
    %v205 = vmul.f32 %v204, 0.33333334
    %v206 = vmul.f32 %v117, %v169
    %v207 = vmul.f32 %v171, %v174
    %v208 = vadd.f32 %v206, %v207
    %v209 = vmul.f32 %v208, 0.33333334
    %v210 = vmul.f32 %v121, %v174
    %v211 = vmul.f32 %v176, %v179
    %v212 = vadd.f32 %v210, %v211
    %v213 = vmul.f32 %v212, 0.33333334
    %v214 = vmul.f32 %v125, %v179
    %v215 = vmul.f32 %v181, %v184
    %v216 = vadd.f32 %v214, %v215
    %v217 = vmul.f32 %v216, 0.33333334
    %v218 = vmul.f32 %v129, %v184
    %v219 = vmul.f32 %v186, %v189
    %v220 = vadd.f32 %v218, %v219
    %v221 = vmul.f32 %v220, 0.33333334
    %v222 = vpack.c.bf16 %v102, %v102
    %v223 = vpack.c.bf16 %v193, %v193
    %v224 = vpack.c.bf16 %v197, %v197
    %v225 = vpack.c.bf16 %v201, %v201
    %v226 = vpack.c.bf16 %v205, %v205
    %v227 = vpack.c.bf16 %v209, %v209
    %v228 = vpack.c.bf16 %v213, %v213
    %v229 = vpack.c.bf16 %v217, %v217
    %v230 = vpack.c.bf16 %v221, %v221
    %v231 = vld [vmem:[#allocation5] sm:$0xf]
    %v232 = vld [vmem:[#allocation5 + $0x4] sm:$0xf]
    %v233 = vld [vmem:[#allocation5 + $0x8] sm:$0xf]
    %v234 = vld [vmem:[#allocation5 + $0xc] sm:$0xf]
    %v235 = vld [vmem:[#allocation5 + $0x10] sm:$0xf]
    %v236 = vld [vmem:[#allocation5 + $0x14] sm:$0xf]
    %v237 = vld [vmem:[#allocation5 + $0x18] sm:$0xf]
    %v238 = vld [vmem:[#allocation5 + $0x1c] sm:$0xf]
    %v239 = vld [vmem:[#allocation5 + $0x20] sm:$0xf]
    %v240 = vld [vmem:[#allocation5 + $0x24] sm:$0xf]
    %v241 = vld [vmem:[#allocation5 + $0x28] sm:$0xf]
    %v242 = vld [vmem:[#allocation5 + $0x2c] sm:$0xf]
    %v243 = vld [vmem:[#allocation5 + $0x30] sm:$0xf]
    %v244 = vld [vmem:[#allocation5 + $0x34] sm:$0xf]
    %v245 = vld [vmem:[#allocation5 + $0x38] sm:$0xf]
    %v246 = vld [vmem:[#allocation5 + $0x3c] sm:$0xf]
    %v247 = vld [vmem:[#allocation5 + $0x40] sm:$0xf]
    %v248 = vld [vmem:[#allocation5 + $0x44] sm:$0xf]
    %v249 = vld [vmem:[#allocation5 + $0x48] sm:$0xf]
    %v250 = vld [vmem:[#allocation5 + $0x4c] sm:$0xf]
    %v251 = vld [vmem:[#allocation5 + $0x50] sm:$0xf]
    %v252 = vld [vmem:[#allocation5 + $0x54] sm:$0xf]
    %v253 = vld [vmem:[#allocation5 + $0x58] sm:$0xf]
    %v254 = vld [vmem:[#allocation5 + $0x5c] sm:$0xf]
    %v255 = vld [vmem:[#allocation5 + $0x60] sm:$0xf]
    %v256 = vld [vmem:[#allocation5 + $0x64] sm:$0xf]
    %v257 = vld [vmem:[#allocation5 + $0x68] sm:$0xf]
    %v258 = vld [vmem:[#allocation5 + $0x6c] sm:$0xf]
    %v259 = vld [vmem:[#allocation5 + $0x70] sm:$0xf]
    %v260 = vld [vmem:[#allocation5 + $0x74] sm:$0xf]
    %v261 = vld [vmem:[#allocation5 + $0x78] sm:$0xf]
    %v262 = vld [vmem:[#allocation5 + $0x7c] sm:$0xf]
    %v263 = vld [vmem:[#allocation5 + $0x80] sm:$0xf]
    %v264 = vld [vmem:[#allocation5 + $0x84] sm:$0xf]
    %v265 = vld [vmem:[#allocation5 + $0x88] sm:$0xf]
    %v266 = vld [vmem:[#allocation5 + $0x8c] sm:$0xf]
    %v267 = vld [vmem:[#allocation5 + $0x90] sm:$0xf]
    %v268 = vld [vmem:[#allocation5 + $0x94] sm:$0xf]
    %v269 = vld [vmem:[#allocation5 + $0x98] sm:$0xf]
    %v270 = vld [vmem:[#allocation5 + $0x9c] sm:$0xf]
    %v271 = vld [vmem:[#allocation5 + $0xa0] sm:$0xf]
    %v272 = vld [vmem:[#allocation5 + $0xa4] sm:$0xf]
    %v273 = vld [vmem:[#allocation5 + $0xa8] sm:$0xf]
    %v274 = vld [vmem:[#allocation5 + $0xac] sm:$0xf]
    %v275 = vld [vmem:[#allocation5 + $0xb0] sm:$0xf]
    %v276 = vld [vmem:[#allocation5 + $0xb4] sm:$0xf]
    %v277 = vld [vmem:[#allocation5 + $0xb8] sm:$0xf]
    %v278 = vld [vmem:[#allocation5 + $0xbc] sm:$0xf]
    %v279 = vld [vmem:[#allocation5 + $0xc0] sm:$0xf]
    %v280 = vld [vmem:[#allocation5 + $0xc4] sm:$0xf]
    %v281 = vld [vmem:[#allocation5 + $0xc8] sm:$0xf]
    %v282 = vld [vmem:[#allocation5 + $0xcc] sm:$0xf]
    %v283 = vld [vmem:[#allocation5 + $0xd0] sm:$0xf]
    %v284 = vld [vmem:[#allocation5 + $0xd4] sm:$0xf]
    %v285 = vld [vmem:[#allocation5 + $0xd8] sm:$0xf]
    %v286 = vld [vmem:[#allocation5 + $0xdc] sm:$0xf]
    %v287 = vld [vmem:[#allocation5 + $0xe0] sm:$0xf]
    %v288 = vld [vmem:[#allocation5 + $0xe4] sm:$0xf]
    %v289 = vld [vmem:[#allocation5 + $0xe8] sm:$0xf]
    %v290 = vld [vmem:[#allocation5 + $0xec] sm:$0xf]
    %v291 = vld [vmem:[#allocation5 + $0xf0] sm:$0xf]
    %v292 = vld [vmem:[#allocation5 + $0xf4] sm:$0xf]
    %v293 = vld [vmem:[#allocation5 + $0xf8] sm:$0xf]
    %v294 = vld [vmem:[#allocation5 + $0xfc] sm:$0xf]
    %v295 = vld [vmem:[#allocation5 + $0x100] sm:$0xf]
    %v296 = vld [vmem:[#allocation5 + $0x104] sm:$0xf]
    %v297 = vld [vmem:[#allocation5 + $0x108] sm:$0xf]
    %v298 = vld [vmem:[#allocation5 + $0x10c] sm:$0xf]
    %v299 = vld [vmem:[#allocation5 + $0x110] sm:$0xf]
    %v300 = vld [vmem:[#allocation5 + $0x114] sm:$0xf]
    %v301 = vld [vmem:[#allocation5 + $0x118] sm:$0xf]
    %v302 = vld [vmem:[#allocation5 + $0x11c] sm:$0xf]
    %v303 = vld [vmem:[#allocation5 + $0x120] sm:$0xf]
    %v304 = vld [vmem:[#allocation5 + $0x124] sm:$0xf]
    %v305 = vld [vmem:[#allocation5 + $0x128] sm:$0xf]
    %v306 = vld [vmem:[#allocation5 + $0x12c] sm:$0xf]
    %v307 = vld [vmem:[#allocation5 + $0x130] sm:$0xf]
    %v308 = vld [vmem:[#allocation5 + $0x134] sm:$0xf]
    %v309 = vld [vmem:[#allocation5 + $0x138] sm:$0xf]
    %v310 = vld [vmem:[#allocation5 + $0x13c] sm:$0xf]
    %v311 = vld [vmem:[#allocation5 + $0x140] sm:$0xf]
    %v312 = vld [vmem:[#allocation5 + $0x144] sm:$0xf]
    %v313 = vld [vmem:[#allocation5 + $0x148] sm:$0xf]
    %v314 = vld [vmem:[#allocation5 + $0x14c] sm:$0xf]
    %v315 = vld [vmem:[#allocation5 + $0x150] sm:$0xf]
    %v316 = vld [vmem:[#allocation5 + $0x154] sm:$0xf]
    %v317 = vld [vmem:[#allocation5 + $0x158] sm:$0xf]
    %v318 = vld [vmem:[#allocation5 + $0x15c] sm:$0xf]
    %v319 = vld [vmem:[#allocation5 + $0x160] sm:$0xf]
    %v320 = vld [vmem:[#allocation5 + $0x164] sm:$0xf]
    %v321 = vld [vmem:[#allocation5 + $0x168] sm:$0xf]
    %v322 = vld [vmem:[#allocation5 + $0x16c] sm:$0xf]
    %v323 = vld [vmem:[#allocation5 + $0x170] sm:$0xf]
    %v324 = vld [vmem:[#allocation5 + $0x174] sm:$0xf]
    %v325 = vld [vmem:[#allocation5 + $0x178] sm:$0xf]
    %v326 = vld [vmem:[#allocation5 + $0x17c] sm:$0xf]
    %v327 = vld [vmem:[#allocation5 + $0x180] sm:$0xf]
    %v328 = vld [vmem:[#allocation5 + $0x184] sm:$0xf]
    %v329 = vld [vmem:[#allocation5 + $0x188] sm:$0xf]
    %v330 = vld [vmem:[#allocation5 + $0x18c] sm:$0xf]
    %v331 = vld [vmem:[#allocation5 + $0x190] sm:$0xf]
    %v332 = vld [vmem:[#allocation5 + $0x194] sm:$0xf]
    %v333 = vld [vmem:[#allocation5 + $0x198] sm:$0xf]
    %v334 = vld [vmem:[#allocation5 + $0x19c] sm:$0xf]
    %v335 = vld [vmem:[#allocation5 + $0x1a0] sm:$0xf]
    %v336 = vld [vmem:[#allocation5 + $0x1a4] sm:$0xf]
    %v337 = vld [vmem:[#allocation5 + $0x1a8] sm:$0xf]
    %v338 = vld [vmem:[#allocation5 + $0x1ac] sm:$0xf]
    %v339 = vld [vmem:[#allocation5 + $0x1b0] sm:$0xf]
    %v340 = vld [vmem:[#allocation5 + $0x1b4] sm:$0xf]
    %v341 = vld [vmem:[#allocation5 + $0x1b8] sm:$0xf]
    %v342 = vld [vmem:[#allocation5 + $0x1bc] sm:$0xf]
    %v343 = vld [vmem:[#allocation5 + $0x1c0] sm:$0xf]
    %v344 = vld [vmem:[#allocation5 + $0x1c4] sm:$0xf]
    %v345 = vld [vmem:[#allocation5 + $0x1c8] sm:$0xf]
    %v346 = vld [vmem:[#allocation5 + $0x1cc] sm:$0xf]
    %v347 = vld [vmem:[#allocation5 + $0x1d0] sm:$0xf]
    %v348 = vld [vmem:[#allocation5 + $0x1d4] sm:$0xf]
    %v349 = vld [vmem:[#allocation5 + $0x1d8] sm:$0xf]
    %v350 = vld [vmem:[#allocation5 + $0x1dc] sm:$0xf]
    %v351 = vld [vmem:[#allocation5 + $0x1e0] sm:$0xf]
    %v352 = vld [vmem:[#allocation5 + $0x1e4] sm:$0xf]
    %v353 = vld [vmem:[#allocation5 + $0x1e8] sm:$0xf]
    %v354 = vld [vmem:[#allocation5 + $0x1ec] sm:$0xf]
    %v355 = vld [vmem:[#allocation5 + $0x1f0] sm:$0xf]
    %v356 = vld [vmem:[#allocation5 + $0x1f4] sm:$0xf]
    %v357 = vld [vmem:[#allocation5 + $0x1f8] sm:$0xf]
    %v358 = vld [vmem:[#allocation5 + $0x1fc] sm:$0xf]
    %v359 = vld [vmem:[#allocation5 + $0x200] sm:$0xf]
    %v360 = vld [vmem:[#allocation5 + $0x204] sm:$0xf]
    %v361 = vld [vmem:[#allocation5 + $0x208] sm:$0xf]
    %v362 = vld [vmem:[#allocation5 + $0x20c] sm:$0xf]
    %v363 = vld [vmem:[#allocation5 + $0x210] sm:$0xf]
    %v364 = vld [vmem:[#allocation5 + $0x214] sm:$0xf]
    %v365 = vld [vmem:[#allocation5 + $0x218] sm:$0xf]
    %v366 = vld [vmem:[#allocation5 + $0x21c] sm:$0xf]
    %v367 = vld [vmem:[#allocation5 + $0x220] sm:$0xf]
    %v368 = vld [vmem:[#allocation5 + $0x224] sm:$0xf]
    %v369 = vld [vmem:[#allocation5 + $0x228] sm:$0xf]
    %v370 = vld [vmem:[#allocation5 + $0x22c] sm:$0xf]
    %v371 = vld [vmem:[#allocation5 + $0x230] sm:$0xf]
    %v372 = vld [vmem:[#allocation5 + $0x234] sm:$0xf]
    %v373 = vld [vmem:[#allocation5 + $0x238] sm:$0xf]
    %v374 = vld [vmem:[#allocation5 + $0x23c] sm:$0xf]
    %v519 = vunpack.c.l.b16 %v231
    %v520 = vunpack.c.l.b16 %v232
    %v521 = vunpack.c.l.b16 %v233
    %v522 = vunpack.c.l.b16 %v234
    %v523 = vunpack.c.l.b16 %v235
    %v524 = vunpack.c.l.b16 %v236
    %v525 = vunpack.c.l.b16 %v237
    %v526 = vunpack.c.l.b16 %v238
    %v527 = vunpack.c.l.b16 %v239
    %v528 = vunpack.c.l.b16 %v240
    %v529 = vunpack.c.l.b16 %v241
    %v530 = vunpack.c.l.b16 %v242
    %v531 = vunpack.c.l.b16 %v243
    %v532 = vunpack.c.l.b16 %v244
    %v533 = vunpack.c.l.b16 %v245
    %v534 = vunpack.c.l.b16 %v246
    %v535 = vunpack.c.l.b16 %v247
    %v536 = vunpack.c.l.b16 %v248
    %v537 = vunpack.c.l.b16 %v249
    %v538 = vunpack.c.l.b16 %v250
    %v539 = vunpack.c.l.b16 %v251
    %v540 = vunpack.c.l.b16 %v252
    %v541 = vunpack.c.l.b16 %v253
    %v542 = vunpack.c.l.b16 %v254
    %v543 = vunpack.c.l.b16 %v255
    %v544 = vunpack.c.l.b16 %v256
    %v545 = vunpack.c.l.b16 %v257
    %v546 = vunpack.c.l.b16 %v258
    %v547 = vunpack.c.l.b16 %v259
    %v548 = vunpack.c.l.b16 %v260
    %v549 = vunpack.c.l.b16 %v261
    %v550 = vunpack.c.l.b16 %v262
    %v551 = vunpack.c.l.b16 %v263
    %v552 = vunpack.c.l.b16 %v264
    %v553 = vunpack.c.l.b16 %v265
    %v554 = vunpack.c.l.b16 %v266
    %v555 = vunpack.c.l.b16 %v267
    %v556 = vunpack.c.l.b16 %v268
    %v557 = vunpack.c.l.b16 %v269
    %v558 = vunpack.c.l.b16 %v270
    %v559 = vunpack.c.l.b16 %v271
    %v560 = vunpack.c.l.b16 %v272
    %v561 = vunpack.c.l.b16 %v273
    %v562 = vunpack.c.l.b16 %v274
    %v563 = vunpack.c.l.b16 %v275
    %v564 = vunpack.c.l.b16 %v276
    %v565 = vunpack.c.l.b16 %v277
    %v566 = vunpack.c.l.b16 %v278
    %v567 = vunpack.c.l.b16 %v279
    %v568 = vunpack.c.l.b16 %v280
    %v569 = vunpack.c.l.b16 %v281
    %v570 = vunpack.c.l.b16 %v282
    %v571 = vunpack.c.l.b16 %v283
    %v572 = vunpack.c.l.b16 %v284
    %v573 = vunpack.c.l.b16 %v285
    %v574 = vunpack.c.l.b16 %v286
    %v575 = vunpack.c.l.b16 %v287
    %v576 = vunpack.c.l.b16 %v288
    %v577 = vunpack.c.l.b16 %v289
    %v578 = vunpack.c.l.b16 %v290
    %v579 = vunpack.c.l.b16 %v291
    %v580 = vunpack.c.l.b16 %v292
    %v581 = vunpack.c.l.b16 %v293
    %v582 = vunpack.c.l.b16 %v294
    %v583 = vunpack.c.l.b16 %v295
    %v584 = vunpack.c.l.b16 %v296
    %v585 = vunpack.c.l.b16 %v297
    %v586 = vunpack.c.l.b16 %v298
    %v587 = vunpack.c.l.b16 %v299
    %v588 = vunpack.c.l.b16 %v300
    %v589 = vunpack.c.l.b16 %v301
    %v590 = vunpack.c.l.b16 %v302
    %v591 = vunpack.c.l.b16 %v303
    %v592 = vunpack.c.l.b16 %v304
    %v593 = vunpack.c.l.b16 %v305
    %v594 = vunpack.c.l.b16 %v306
    %v595 = vunpack.c.l.b16 %v307
    %v596 = vunpack.c.l.b16 %v308
    %v597 = vunpack.c.l.b16 %v309
    %v598 = vunpack.c.l.b16 %v310
    %v599 = vunpack.c.l.b16 %v311
    %v600 = vunpack.c.l.b16 %v312
    %v601 = vunpack.c.l.b16 %v313
    %v602 = vunpack.c.l.b16 %v314
    %v603 = vunpack.c.l.b16 %v315
    %v604 = vunpack.c.l.b16 %v316
    %v605 = vunpack.c.l.b16 %v317
    %v606 = vunpack.c.l.b16 %v318
    %v607 = vunpack.c.l.b16 %v319
    %v608 = vunpack.c.l.b16 %v320
    %v609 = vunpack.c.l.b16 %v321
    %v610 = vunpack.c.l.b16 %v322
    %v611 = vunpack.c.l.b16 %v323
    %v612 = vunpack.c.l.b16 %v324
    %v613 = vunpack.c.l.b16 %v325
    %v614 = vunpack.c.l.b16 %v326
    %v615 = vunpack.c.l.b16 %v327
    %v616 = vunpack.c.l.b16 %v328
    %v617 = vunpack.c.l.b16 %v329
    %v618 = vunpack.c.l.b16 %v330
    %v619 = vunpack.c.l.b16 %v331
    %v620 = vunpack.c.l.b16 %v332
    %v621 = vunpack.c.l.b16 %v333
    %v622 = vunpack.c.l.b16 %v334
    %v623 = vunpack.c.l.b16 %v335
    %v624 = vunpack.c.l.b16 %v336
    %v625 = vunpack.c.l.b16 %v337
    %v626 = vunpack.c.l.b16 %v338
    %v627 = vunpack.c.l.b16 %v339
    %v628 = vunpack.c.l.b16 %v340
    %v629 = vunpack.c.l.b16 %v341
    %v630 = vunpack.c.l.b16 %v342
    %v631 = vunpack.c.l.b16 %v343
    %v632 = vunpack.c.l.b16 %v344
    %v633 = vunpack.c.l.b16 %v345
    %v634 = vunpack.c.l.b16 %v346
    %v635 = vunpack.c.l.b16 %v347
    %v636 = vunpack.c.l.b16 %v348
    %v637 = vunpack.c.l.b16 %v349
    %v638 = vunpack.c.l.b16 %v350
    %v639 = vunpack.c.l.b16 %v351
    %v640 = vunpack.c.l.b16 %v352
    %v641 = vunpack.c.l.b16 %v353
    %v642 = vunpack.c.l.b16 %v354
    %v643 = vunpack.c.l.b16 %v355
    %v644 = vunpack.c.l.b16 %v356
    %v645 = vunpack.c.l.b16 %v357
    %v646 = vunpack.c.l.b16 %v358
    %v647 = vunpack.c.l.b16 %v359
    %v648 = vunpack.c.l.b16 %v360
    %v649 = vunpack.c.l.b16 %v361
    %v650 = vunpack.c.l.b16 %v362
    %v651 = vunpack.c.l.b16 %v363
    %v652 = vunpack.c.l.b16 %v364
    %v653 = vunpack.c.l.b16 %v365
    %v654 = vunpack.c.l.b16 %v366
    %v655 = vunpack.c.l.b16 %v367
    %v656 = vunpack.c.l.b16 %v368
    %v657 = vunpack.c.l.b16 %v369
    %v658 = vunpack.c.l.b16 %v370
    %v659 = vunpack.c.l.b16 %v371
    %v660 = vunpack.c.l.b16 %v372
    %v661 = vunpack.c.l.b16 %v373
    %v662 = vunpack.c.l.b16 %v374
    %v663 = vpack.c.b16 %v520, %v519
    %v664 = vpack.c.b16 %v522, %v521
    %v665 = vpack.c.b16 %v524, %v523
    %v666 = vpack.c.b16 %v526, %v525
    %v667 = vpack.c.b16 %v528, %v527
    %v668 = vpack.c.b16 %v530, %v529
    %v669 = vpack.c.b16 %v532, %v531
    %v670 = vpack.c.b16 %v534, %v533
    %v671 = vpack.c.b16 %v536, %v535
    %v672 = vpack.c.b16 %v538, %v537
    %v673 = vpack.c.b16 %v540, %v539
    %v674 = vpack.c.b16 %v542, %v541
    %v675 = vpack.c.b16 %v544, %v543
    %v676 = vpack.c.b16 %v546, %v545
    %v677 = vpack.c.b16 %v548, %v547
    %v678 = vpack.c.b16 %v550, %v549
    %v679 = vpack.c.b16 %v552, %v551
    %v680 = vpack.c.b16 %v554, %v553
    %v681 = vpack.c.b16 %v556, %v555
    %v682 = vpack.c.b16 %v558, %v557
    %v683 = vpack.c.b16 %v560, %v559
    %v684 = vpack.c.b16 %v562, %v561
    %v685 = vpack.c.b16 %v564, %v563
    %v686 = vpack.c.b16 %v566, %v565
    %v687 = vpack.c.b16 %v568, %v567
    %v688 = vpack.c.b16 %v570, %v569
    %v689 = vpack.c.b16 %v572, %v571
    %v690 = vpack.c.b16 %v574, %v573
    %v691 = vpack.c.b16 %v576, %v575
    %v692 = vpack.c.b16 %v578, %v577
    %v693 = vpack.c.b16 %v580, %v579
    %v694 = vpack.c.b16 %v582, %v581
    %v695 = vpack.c.b16 %v584, %v583
    %v696 = vpack.c.b16 %v586, %v585
    %v697 = vpack.c.b16 %v588, %v587
    %v698 = vpack.c.b16 %v590, %v589
    %v699 = vpack.c.b16 %v592, %v591
    %v700 = vpack.c.b16 %v594, %v593
    %v701 = vpack.c.b16 %v596, %v595
    %v702 = vpack.c.b16 %v598, %v597
    %v703 = vpack.c.b16 %v600, %v599
    %v704 = vpack.c.b16 %v602, %v601
    %v705 = vpack.c.b16 %v604, %v603
    %v706 = vpack.c.b16 %v606, %v605
    %v707 = vpack.c.b16 %v608, %v607
    %v708 = vpack.c.b16 %v610, %v609
    %v709 = vpack.c.b16 %v612, %v611
    %v710 = vpack.c.b16 %v614, %v613
    %v711 = vpack.c.b16 %v616, %v615
    %v712 = vpack.c.b16 %v618, %v617
    %v713 = vpack.c.b16 %v620, %v619
    %v714 = vpack.c.b16 %v622, %v621
    %v715 = vpack.c.b16 %v624, %v623
    %v716 = vpack.c.b16 %v626, %v625
    %v717 = vpack.c.b16 %v628, %v627
    %v718 = vpack.c.b16 %v630, %v629
    %v719 = vpack.c.b16 %v632, %v631
    %v720 = vpack.c.b16 %v634, %v633
    %v721 = vpack.c.b16 %v636, %v635
    %v722 = vpack.c.b16 %v638, %v637
    %v723 = vpack.c.b16 %v640, %v639
    %v724 = vpack.c.b16 %v642, %v641
    %v725 = vpack.c.b16 %v644, %v643
    %v726 = vpack.c.b16 %v646, %v645
    %v727 = vpack.c.b16 %v648, %v647
    %v728 = vpack.c.b16 %v650, %v649
    %v729 = vpack.c.b16 %v652, %v651
    %v730 = vpack.c.b16 %v654, %v653
    %v731 = vpack.c.b16 %v656, %v655
    %v732 = vpack.c.b16 %v658, %v657
    %v733 = vpack.c.b16 %v660, %v659
    %v734 = vpack.c.b16 %v662, %v661
    %807 = vmatpush.bf16.msra.mxu0 %v670
    %808 = vmatpush.bf16.msra.mxu0 %v669
    %809 = vmatpush.bf16.msra.mxu0 %v668
    %810 = vmatpush.bf16.msra.mxu0 %v667
    %811 = vmatpush.bf16.msra.mxu0 %v666
    %812 = vmatpush.bf16.msra.mxu0 %v665
    %813 = vmatpush.bf16.msra.mxu0 %v664
    %814 = vmatpush.bf16.msra.mxu0 %v663
    %815 = vmatmul.bf16.gmra.mxu0 %v222
    %v816 = vpop.f32.mrf.mxu0
    %v817 = vadd.f32 0.0, %v816
    %v818 = vpop.f32.mrf.mxu0
    %819 = vdwg.mxu0
    %820 = vmatpush.bf16.msra.mxu0 %v678
    %821 = vmatpush.bf16.msra.mxu0 %v677
    %822 = vmatpush.bf16.msra.mxu0 %v676
    %823 = vmatpush.bf16.msra.mxu0 %v675
    %824 = vmatpush.bf16.msra.mxu0 %v674
    %825 = vmatpush.bf16.msra.mxu0 %v673
    %826 = vmatpush.bf16.msra.mxu0 %v672
    %827 = vmatpush.bf16.msra.mxu0 %v671
    %828 = vmatmul.bf16.gmra.mxu0 %v223
    %v829 = vpop.f32.mrf.mxu0
    %v830 = vadd.f32 %v817, %v829
    %v831 = vpop.f32.mrf.mxu0
    %832 = vdwg.mxu0
    %833 = vmatpush.bf16.msra.mxu0 %v686
    %834 = vmatpush.bf16.msra.mxu0 %v685
    %835 = vmatpush.bf16.msra.mxu0 %v684
    %836 = vmatpush.bf16.msra.mxu0 %v683
    %837 = vmatpush.bf16.msra.mxu0 %v682
    %838 = vmatpush.bf16.msra.mxu0 %v681
    %839 = vmatpush.bf16.msra.mxu0 %v680
    %840 = vmatpush.bf16.msra.mxu0 %v679
    %841 = vmatmul.bf16.gmra.mxu0 %v224
    %v842 = vpop.f32.mrf.mxu0
    %v843 = vadd.f32 %v830, %v842
    %v844 = vpop.f32.mrf.mxu0
    %845 = vdwg.mxu0
    %846 = vmatpush.bf16.msra.mxu0 %v694
    %847 = vmatpush.bf16.msra.mxu0 %v693
    %848 = vmatpush.bf16.msra.mxu0 %v692
    %849 = vmatpush.bf16.msra.mxu0 %v691
    %850 = vmatpush.bf16.msra.mxu0 %v690
    %851 = vmatpush.bf16.msra.mxu0 %v689
    %852 = vmatpush.bf16.msra.mxu0 %v688
    %853 = vmatpush.bf16.msra.mxu0 %v687
    %854 = vmatmul.bf16.gmra.mxu0 %v225
    %v855 = vpop.f32.mrf.mxu0
    %v856 = vadd.f32 %v843, %v855
    %v857 = vpop.f32.mrf.mxu0
    %858 = vdwg.mxu0
    %859 = vmatpush.bf16.msra.mxu0 %v702
    %860 = vmatpush.bf16.msra.mxu0 %v701
    %861 = vmatpush.bf16.msra.mxu0 %v700
    %862 = vmatpush.bf16.msra.mxu0 %v699
    %863 = vmatpush.bf16.msra.mxu0 %v698
    %864 = vmatpush.bf16.msra.mxu0 %v697
    %865 = vmatpush.bf16.msra.mxu0 %v696
    %866 = vmatpush.bf16.msra.mxu0 %v695
    %867 = vmatmul.bf16.gmra.mxu0 %v226
    %v868 = vpop.f32.mrf.mxu0
    %v869 = vadd.f32 %v856, %v868
    %v870 = vpop.f32.mrf.mxu0
    %871 = vdwg.mxu0
    %872 = vmatpush.bf16.msra.mxu0 %v710
    %873 = vmatpush.bf16.msra.mxu0 %v709
    %874 = vmatpush.bf16.msra.mxu0 %v708
    %875 = vmatpush.bf16.msra.mxu0 %v707
    %876 = vmatpush.bf16.msra.mxu0 %v706
    %877 = vmatpush.bf16.msra.mxu0 %v705
    %878 = vmatpush.bf16.msra.mxu0 %v704
    %879 = vmatpush.bf16.msra.mxu0 %v703
    %880 = vmatmul.bf16.gmra.mxu0 %v227
    %v881 = vpop.f32.mrf.mxu0
    %v882 = vadd.f32 %v869, %v881
    %v883 = vpop.f32.mrf.mxu0
    %884 = vdwg.mxu0
    %885 = vmatpush.bf16.msra.mxu0 %v718
    %886 = vmatpush.bf16.msra.mxu0 %v717
    %887 = vmatpush.bf16.msra.mxu0 %v716
    %888 = vmatpush.bf16.msra.mxu0 %v715
    %889 = vmatpush.bf16.msra.mxu0 %v714
    %890 = vmatpush.bf16.msra.mxu0 %v713
    %891 = vmatpush.bf16.msra.mxu0 %v712
    %892 = vmatpush.bf16.msra.mxu0 %v711
    %893 = vmatmul.bf16.gmra.mxu0 %v228
    %v894 = vpop.f32.mrf.mxu0
    %v895 = vadd.f32 %v882, %v894
    %v896 = vpop.f32.mrf.mxu0
    %897 = vdwg.mxu0
    %898 = vmatpush.bf16.msra.mxu0 %v726
    %899 = vmatpush.bf16.msra.mxu0 %v725
    %900 = vmatpush.bf16.msra.mxu0 %v724
    %901 = vmatpush.bf16.msra.mxu0 %v723
    %902 = vmatpush.bf16.msra.mxu0 %v722
    %903 = vmatpush.bf16.msra.mxu0 %v721
    %904 = vmatpush.bf16.msra.mxu0 %v720
    %905 = vmatpush.bf16.msra.mxu0 %v719
    %906 = vmatmul.bf16.gmra.mxu0 %v229
    %v907 = vpop.f32.mrf.mxu0
    %v908 = vadd.f32 %v895, %v907
    %v909 = vpop.f32.mrf.mxu0
    %910 = vdwg.mxu0
    %911 = vmatpush.bf16.msra.mxu0 %v734
    %912 = vmatpush.bf16.msra.mxu0 %v733
    %913 = vmatpush.bf16.msra.mxu0 %v732
    %914 = vmatpush.bf16.msra.mxu0 %v731
    %915 = vmatpush.bf16.msra.mxu0 %v730
    %916 = vmatpush.bf16.msra.mxu0 %v729
    %917 = vmatpush.bf16.msra.mxu0 %v728
    %918 = vmatpush.bf16.msra.mxu0 %v727
    %919 = vmatmul.bf16.gmra.mxu0 %v230
    %v920 = vpop.f32.mrf.mxu0
    %v921 = vadd.f32 %v908, %v920
    %v922 = vpop.f32.mrf.mxu0
    %923 = vdwg.mxu0
    %v924 = vmul.f32 %v921, 0.5
    %v925 = vtanh.pop %v924
    %v926 = vmul.f32 %v925, 0.5
    %v927 = vadd.f32 %v926, 0.5
    %v928 = vmul.f32 %v921, %v927
    %v929 = vsub.f32 %v921, -2.2
    %v930 = vmul.f32 %v929, 2.5
    %v931 = vsub.f32 %v930, 1.0
    %v932 = vand.u32 2147483647, %v931
    %v933 = vsub.f32 1.0, %v932
    %v934 = vmax.f32 %v933, 0.0
    %v935 = vsub.f32 %v930, 2.0
    %v936 = vand.u32 2147483647, %v935
    %v937 = vsub.f32 1.0, %v936
    %v938 = vmax.f32 %v937, 0.0
    %v939 = vsub.f32 %v930, 3.0
    %v940 = vand.u32 2147483647, %v939
    %v941 = vsub.f32 1.0, %v940
    %v942 = vmax.f32 %v941, 0.0
    %v943 = vsub.f32 %v930, 4.0
    %v944 = vand.u32 2147483647, %v943
    %v945 = vsub.f32 1.0, %v944
    %v946 = vmax.f32 %v945, 0.0
    %v947 = vsub.f32 %v930, 5.0
    %v948 = vand.u32 2147483647, %v947
    %v949 = vsub.f32 1.0, %v948
    %v950 = vmax.f32 %v949, 0.0
    %v951 = vsub.f32 %v930, 6.0
    %v952 = vand.u32 2147483647, %v951
    %v953 = vsub.f32 1.0, %v952
    %v954 = vmax.f32 %v953, 0.0
    %v955 = vsub.f32 %v930, 7.0
    %v956 = vand.u32 2147483647, %v955
    %v957 = vsub.f32 1.0, %v956
    %v958 = vmax.f32 %v957, 0.0
    %v959 = vsub.f32 %v930, 8.0
    %v960 = vand.u32 2147483647, %v959
    %v961 = vsub.f32 1.0, %v960
    %v962 = vmax.f32 %v961, 0.0
    %v963 = vsub.f32 %v930, 9.0
    %v964 = vand.u32 2147483647, %v963
    %v965 = vsub.f32 1.0, %v964
    %v966 = vmax.f32 %v965, 0.0
    %v967 = vsub.f32 %v930, 10.0
    %v968 = vand.u32 2147483647, %v967
    %v969 = vsub.f32 1.0, %v968
    %v970 = vmax.f32 %v969, 0.0
    %v971 = vmul.f32 %v930, %v934
    %v972 = vsub.f32 3.0, %v930
    %v973 = vmul.f32 %v972, %v938
    %v974 = vadd.f32 %v971, %v973
    %v975 = vmul.f32 %v974, 0.5
    %v976 = vmul.f32 %v931, %v938
    %v977 = vsub.f32 4.0, %v930
    %v978 = vmul.f32 %v977, %v942
    %v979 = vadd.f32 %v976, %v978
    %v980 = vmul.f32 %v979, 0.5
    %v981 = vmul.f32 %v935, %v942
    %v982 = vsub.f32 5.0, %v930
    %v983 = vmul.f32 %v982, %v946
    %v984 = vadd.f32 %v981, %v983
    %v985 = vmul.f32 %v984, 0.5
    %v986 = vmul.f32 %v939, %v946
    %v987 = vsub.f32 6.0, %v930
    %v988 = vmul.f32 %v987, %v950
    %v989 = vadd.f32 %v986, %v988
    %v990 = vmul.f32 %v989, 0.5
    %v991 = vmul.f32 %v943, %v950
    %v992 = vsub.f32 7.0, %v930
    %v993 = vmul.f32 %v992, %v954
    %v994 = vadd.f32 %v991, %v993
    %v995 = vmul.f32 %v994, 0.5
    %v996 = vmul.f32 %v947, %v954
    %v997 = vsub.f32 8.0, %v930
    %v998 = vmul.f32 %v997, %v958
    %v999 = vadd.f32 %v996, %v998
    %v1000 = vmul.f32 %v999, 0.5
    %v1001 = vmul.f32 %v951, %v958
    %v1002 = vsub.f32 9.0, %v930
    %v1003 = vmul.f32 %v1002, %v962
    %v1004 = vadd.f32 %v1001, %v1003
    %v1005 = vmul.f32 %v1004, 0.5
    %v1006 = vmul.f32 %v955, %v962
    %v1007 = vsub.f32 10.0, %v930
    %v1008 = vmul.f32 %v1007, %v966
    %v1009 = vadd.f32 %v1006, %v1008
    %v1010 = vmul.f32 %v1009, 0.5
    %v1011 = vmul.f32 %v959, %v966
    %v1012 = vsub.f32 11.0, %v930
    %v1013 = vmul.f32 %v1012, %v970
    %v1014 = vadd.f32 %v1011, %v1013
    %v1015 = vmul.f32 %v1014, 0.5
    %v1016 = vmul.f32 %v930, %v975
    %v1017 = vmul.f32 %v977, %v980
    %v1018 = vadd.f32 %v1016, %v1017
    %v1019 = vmul.f32 %v1018, 0.33333334
    %v1020 = vmul.f32 %v931, %v980
    %v1021 = vmul.f32 %v982, %v985
    %v1022 = vadd.f32 %v1020, %v1021
    %v1023 = vmul.f32 %v1022, 0.33333334
    %v1024 = vmul.f32 %v935, %v985
    %v1025 = vmul.f32 %v987, %v990
    %v1026 = vadd.f32 %v1024, %v1025
    %v1027 = vmul.f32 %v1026, 0.33333334
    %v1028 = vmul.f32 %v939, %v990
    %v1029 = vmul.f32 %v992, %v995
    %v1030 = vadd.f32 %v1028, %v1029
    %v1031 = vmul.f32 %v1030, 0.33333334
    %v1032 = vmul.f32 %v943, %v995
    %v1033 = vmul.f32 %v997, %v1000
    %v1034 = vadd.f32 %v1032, %v1033
    %v1035 = vmul.f32 %v1034, 0.33333334
    %v1036 = vmul.f32 %v947, %v1000
    %v1037 = vmul.f32 %v1002, %v1005
    %v1038 = vadd.f32 %v1036, %v1037
    %v1039 = vmul.f32 %v1038, 0.33333334
    %v1040 = vmul.f32 %v951, %v1005
    %v1041 = vmul.f32 %v1007, %v1010
    %v1042 = vadd.f32 %v1040, %v1041
    %v1043 = vmul.f32 %v1042, 0.33333334
    %v1044 = vmul.f32 %v955, %v1010
    %v1045 = vmul.f32 %v1012, %v1015
    %v1046 = vadd.f32 %v1044, %v1045
    %v1047 = vmul.f32 %v1046, 0.33333334
    %v1048 = vpack.c.bf16 %v928, %v928
    %v1049 = vpack.c.bf16 %v1019, %v1019
    %v1050 = vpack.c.bf16 %v1023, %v1023
    %v1051 = vpack.c.bf16 %v1027, %v1027
    %v1052 = vpack.c.bf16 %v1031, %v1031
    %v1053 = vpack.c.bf16 %v1035, %v1035
    %v1054 = vpack.c.bf16 %v1039, %v1039
    %v1055 = vpack.c.bf16 %v1043, %v1043
    %v1056 = vpack.c.bf16 %v1047, %v1047
    %v1057 = vld [vmem:[#allocation7] sm:$0xf]
    %v1058 = vld [vmem:[#allocation7 + $0x4] sm:$0xf]
    %v1059 = vld [vmem:[#allocation7 + $0x8] sm:$0xf]
    %v1060 = vld [vmem:[#allocation7 + $0xc] sm:$0xf]
    %v1061 = vld [vmem:[#allocation7 + $0x10] sm:$0xf]
    %v1062 = vld [vmem:[#allocation7 + $0x14] sm:$0xf]
    %v1063 = vld [vmem:[#allocation7 + $0x18] sm:$0xf]
    %v1064 = vld [vmem:[#allocation7 + $0x1c] sm:$0xf]
    %v1065 = vld [vmem:[#allocation7 + $0x20] sm:$0xf]
    %v1066 = vld [vmem:[#allocation7 + $0x24] sm:$0xf]
    %v1067 = vld [vmem:[#allocation7 + $0x28] sm:$0xf]
    %v1068 = vld [vmem:[#allocation7 + $0x2c] sm:$0xf]
    %v1069 = vld [vmem:[#allocation7 + $0x30] sm:$0xf]
    %v1070 = vld [vmem:[#allocation7 + $0x34] sm:$0xf]
    %v1071 = vld [vmem:[#allocation7 + $0x38] sm:$0xf]
    %v1072 = vld [vmem:[#allocation7 + $0x3c] sm:$0xf]
    %v1073 = vld [vmem:[#allocation7 + $0x40] sm:$0xf]
    %v1074 = vld [vmem:[#allocation7 + $0x44] sm:$0xf]
    %v1075 = vld [vmem:[#allocation7 + $0x48] sm:$0xf]
    %v1076 = vld [vmem:[#allocation7 + $0x4c] sm:$0xf]
    %v1077 = vld [vmem:[#allocation7 + $0x50] sm:$0xf]
    %v1078 = vld [vmem:[#allocation7 + $0x54] sm:$0xf]
    %v1079 = vld [vmem:[#allocation7 + $0x58] sm:$0xf]
    %v1080 = vld [vmem:[#allocation7 + $0x5c] sm:$0xf]
    %v1081 = vld [vmem:[#allocation7 + $0x60] sm:$0xf]
    %v1082 = vld [vmem:[#allocation7 + $0x64] sm:$0xf]
    %v1083 = vld [vmem:[#allocation7 + $0x68] sm:$0xf]
    %v1084 = vld [vmem:[#allocation7 + $0x6c] sm:$0xf]
    %v1085 = vld [vmem:[#allocation7 + $0x70] sm:$0xf]
    %v1086 = vld [vmem:[#allocation7 + $0x74] sm:$0xf]
    %v1087 = vld [vmem:[#allocation7 + $0x78] sm:$0xf]
    %v1088 = vld [vmem:[#allocation7 + $0x7c] sm:$0xf]
    %v1089 = vld [vmem:[#allocation7 + $0x80] sm:$0xf]
    %v1090 = vld [vmem:[#allocation7 + $0x84] sm:$0xf]
    %v1091 = vld [vmem:[#allocation7 + $0x88] sm:$0xf]
    %v1092 = vld [vmem:[#allocation7 + $0x8c] sm:$0xf]
    %v1093 = vld [vmem:[#allocation7 + $0x90] sm:$0xf]
    %v1094 = vld [vmem:[#allocation7 + $0x94] sm:$0xf]
    %v1095 = vld [vmem:[#allocation7 + $0x98] sm:$0xf]
    %v1096 = vld [vmem:[#allocation7 + $0x9c] sm:$0xf]
    %v1097 = vld [vmem:[#allocation7 + $0xa0] sm:$0xf]
    %v1098 = vld [vmem:[#allocation7 + $0xa4] sm:$0xf]
    %v1099 = vld [vmem:[#allocation7 + $0xa8] sm:$0xf]
    %v1100 = vld [vmem:[#allocation7 + $0xac] sm:$0xf]
    %v1101 = vld [vmem:[#allocation7 + $0xb0] sm:$0xf]
    %v1102 = vld [vmem:[#allocation7 + $0xb4] sm:$0xf]
    %v1103 = vld [vmem:[#allocation7 + $0xb8] sm:$0xf]
    %v1104 = vld [vmem:[#allocation7 + $0xbc] sm:$0xf]
    %v1105 = vld [vmem:[#allocation7 + $0xc0] sm:$0xf]
    %v1106 = vld [vmem:[#allocation7 + $0xc4] sm:$0xf]
    %v1107 = vld [vmem:[#allocation7 + $0xc8] sm:$0xf]
    %v1108 = vld [vmem:[#allocation7 + $0xcc] sm:$0xf]
    %v1109 = vld [vmem:[#allocation7 + $0xd0] sm:$0xf]
    %v1110 = vld [vmem:[#allocation7 + $0xd4] sm:$0xf]
    %v1111 = vld [vmem:[#allocation7 + $0xd8] sm:$0xf]
    %v1112 = vld [vmem:[#allocation7 + $0xdc] sm:$0xf]
    %v1113 = vld [vmem:[#allocation7 + $0xe0] sm:$0xf]
    %v1114 = vld [vmem:[#allocation7 + $0xe4] sm:$0xf]
    %v1115 = vld [vmem:[#allocation7 + $0xe8] sm:$0xf]
    %v1116 = vld [vmem:[#allocation7 + $0xec] sm:$0xf]
    %v1117 = vld [vmem:[#allocation7 + $0xf0] sm:$0xf]
    %v1118 = vld [vmem:[#allocation7 + $0xf4] sm:$0xf]
    %v1119 = vld [vmem:[#allocation7 + $0xf8] sm:$0xf]
    %v1120 = vld [vmem:[#allocation7 + $0xfc] sm:$0xf]
    %v1121 = vld [vmem:[#allocation7 + $0x100] sm:$0xf]
    %v1122 = vld [vmem:[#allocation7 + $0x104] sm:$0xf]
    %v1123 = vld [vmem:[#allocation7 + $0x108] sm:$0xf]
    %v1124 = vld [vmem:[#allocation7 + $0x10c] sm:$0xf]
    %v1125 = vld [vmem:[#allocation7 + $0x110] sm:$0xf]
    %v1126 = vld [vmem:[#allocation7 + $0x114] sm:$0xf]
    %v1127 = vld [vmem:[#allocation7 + $0x118] sm:$0xf]
    %v1128 = vld [vmem:[#allocation7 + $0x11c] sm:$0xf]
    %v1129 = vld [vmem:[#allocation7 + $0x120] sm:$0xf]
    %v1130 = vld [vmem:[#allocation7 + $0x124] sm:$0xf]
    %v1131 = vld [vmem:[#allocation7 + $0x128] sm:$0xf]
    %v1132 = vld [vmem:[#allocation7 + $0x12c] sm:$0xf]
    %v1133 = vld [vmem:[#allocation7 + $0x130] sm:$0xf]
    %v1134 = vld [vmem:[#allocation7 + $0x134] sm:$0xf]
    %v1135 = vld [vmem:[#allocation7 + $0x138] sm:$0xf]
    %v1136 = vld [vmem:[#allocation7 + $0x13c] sm:$0xf]
    %v1137 = vld [vmem:[#allocation7 + $0x140] sm:$0xf]
    %v1138 = vld [vmem:[#allocation7 + $0x144] sm:$0xf]
    %v1139 = vld [vmem:[#allocation7 + $0x148] sm:$0xf]
    %v1140 = vld [vmem:[#allocation7 + $0x14c] sm:$0xf]
    %v1141 = vld [vmem:[#allocation7 + $0x150] sm:$0xf]
    %v1142 = vld [vmem:[#allocation7 + $0x154] sm:$0xf]
    %v1143 = vld [vmem:[#allocation7 + $0x158] sm:$0xf]
    %v1144 = vld [vmem:[#allocation7 + $0x15c] sm:$0xf]
    %v1145 = vld [vmem:[#allocation7 + $0x160] sm:$0xf]
    %v1146 = vld [vmem:[#allocation7 + $0x164] sm:$0xf]
    %v1147 = vld [vmem:[#allocation7 + $0x168] sm:$0xf]
    %v1148 = vld [vmem:[#allocation7 + $0x16c] sm:$0xf]
    %v1149 = vld [vmem:[#allocation7 + $0x170] sm:$0xf]
    %v1150 = vld [vmem:[#allocation7 + $0x174] sm:$0xf]
    %v1151 = vld [vmem:[#allocation7 + $0x178] sm:$0xf]
    %v1152 = vld [vmem:[#allocation7 + $0x17c] sm:$0xf]
    %v1153 = vld [vmem:[#allocation7 + $0x180] sm:$0xf]
    %v1154 = vld [vmem:[#allocation7 + $0x184] sm:$0xf]
    %v1155 = vld [vmem:[#allocation7 + $0x188] sm:$0xf]
    %v1156 = vld [vmem:[#allocation7 + $0x18c] sm:$0xf]
    %v1157 = vld [vmem:[#allocation7 + $0x190] sm:$0xf]
    %v1158 = vld [vmem:[#allocation7 + $0x194] sm:$0xf]
    %v1159 = vld [vmem:[#allocation7 + $0x198] sm:$0xf]
    %v1160 = vld [vmem:[#allocation7 + $0x19c] sm:$0xf]
    %v1161 = vld [vmem:[#allocation7 + $0x1a0] sm:$0xf]
    %v1162 = vld [vmem:[#allocation7 + $0x1a4] sm:$0xf]
    %v1163 = vld [vmem:[#allocation7 + $0x1a8] sm:$0xf]
    %v1164 = vld [vmem:[#allocation7 + $0x1ac] sm:$0xf]
    %v1165 = vld [vmem:[#allocation7 + $0x1b0] sm:$0xf]
    %v1166 = vld [vmem:[#allocation7 + $0x1b4] sm:$0xf]
    %v1167 = vld [vmem:[#allocation7 + $0x1b8] sm:$0xf]
    %v1168 = vld [vmem:[#allocation7 + $0x1bc] sm:$0xf]
    %v1169 = vld [vmem:[#allocation7 + $0x1c0] sm:$0xf]
    %v1170 = vld [vmem:[#allocation7 + $0x1c4] sm:$0xf]
    %v1171 = vld [vmem:[#allocation7 + $0x1c8] sm:$0xf]
    %v1172 = vld [vmem:[#allocation7 + $0x1cc] sm:$0xf]
    %v1173 = vld [vmem:[#allocation7 + $0x1d0] sm:$0xf]
    %v1174 = vld [vmem:[#allocation7 + $0x1d4] sm:$0xf]
    %v1175 = vld [vmem:[#allocation7 + $0x1d8] sm:$0xf]
    %v1176 = vld [vmem:[#allocation7 + $0x1dc] sm:$0xf]
    %v1177 = vld [vmem:[#allocation7 + $0x1e0] sm:$0xf]
    %v1178 = vld [vmem:[#allocation7 + $0x1e4] sm:$0xf]
    %v1179 = vld [vmem:[#allocation7 + $0x1e8] sm:$0xf]
    %v1180 = vld [vmem:[#allocation7 + $0x1ec] sm:$0xf]
    %v1181 = vld [vmem:[#allocation7 + $0x1f0] sm:$0xf]
    %v1182 = vld [vmem:[#allocation7 + $0x1f4] sm:$0xf]
    %v1183 = vld [vmem:[#allocation7 + $0x1f8] sm:$0xf]
    %v1184 = vld [vmem:[#allocation7 + $0x1fc] sm:$0xf]
    %v1185 = vld [vmem:[#allocation7 + $0x200] sm:$0xf]
    %v1186 = vld [vmem:[#allocation7 + $0x204] sm:$0xf]
    %v1187 = vld [vmem:[#allocation7 + $0x208] sm:$0xf]
    %v1188 = vld [vmem:[#allocation7 + $0x20c] sm:$0xf]
    %v1189 = vld [vmem:[#allocation7 + $0x210] sm:$0xf]
    %v1190 = vld [vmem:[#allocation7 + $0x214] sm:$0xf]
    %v1191 = vld [vmem:[#allocation7 + $0x218] sm:$0xf]
    %v1192 = vld [vmem:[#allocation7 + $0x21c] sm:$0xf]
    %v1193 = vld [vmem:[#allocation7 + $0x220] sm:$0xf]
    %v1194 = vld [vmem:[#allocation7 + $0x224] sm:$0xf]
    %v1195 = vld [vmem:[#allocation7 + $0x228] sm:$0xf]
    %v1196 = vld [vmem:[#allocation7 + $0x22c] sm:$0xf]
    %v1197 = vld [vmem:[#allocation7 + $0x230] sm:$0xf]
    %v1198 = vld [vmem:[#allocation7 + $0x234] sm:$0xf]
    %v1199 = vld [vmem:[#allocation7 + $0x238] sm:$0xf]
    %v1200 = vld [vmem:[#allocation7 + $0x23c] sm:$0xf]
    %v1345 = vunpack.c.l.b16 %v1057
    %v1346 = vunpack.c.l.b16 %v1058
    %v1347 = vunpack.c.l.b16 %v1059
    %v1348 = vunpack.c.l.b16 %v1060
    %v1349 = vunpack.c.l.b16 %v1061
    %v1350 = vunpack.c.l.b16 %v1062
    %v1351 = vunpack.c.l.b16 %v1063
    %v1352 = vunpack.c.l.b16 %v1064
    %v1353 = vunpack.c.l.b16 %v1065
    %v1354 = vunpack.c.l.b16 %v1066
    %v1355 = vunpack.c.l.b16 %v1067
    %v1356 = vunpack.c.l.b16 %v1068
    %v1357 = vunpack.c.l.b16 %v1069
    %v1358 = vunpack.c.l.b16 %v1070
    %v1359 = vunpack.c.l.b16 %v1071
    %v1360 = vunpack.c.l.b16 %v1072
    %v1361 = vunpack.c.l.b16 %v1073
    %v1362 = vunpack.c.l.b16 %v1074
    %v1363 = vunpack.c.l.b16 %v1075
    %v1364 = vunpack.c.l.b16 %v1076
    %v1365 = vunpack.c.l.b16 %v1077
    %v1366 = vunpack.c.l.b16 %v1078
    %v1367 = vunpack.c.l.b16 %v1079
    %v1368 = vunpack.c.l.b16 %v1080
    %v1369 = vunpack.c.l.b16 %v1081
    %v1370 = vunpack.c.l.b16 %v1082
    %v1371 = vunpack.c.l.b16 %v1083
    %v1372 = vunpack.c.l.b16 %v1084
    %v1373 = vunpack.c.l.b16 %v1085
    %v1374 = vunpack.c.l.b16 %v1086
    %v1375 = vunpack.c.l.b16 %v1087
    %v1376 = vunpack.c.l.b16 %v1088
    %v1377 = vunpack.c.l.b16 %v1089
    %v1378 = vunpack.c.l.b16 %v1090
    %v1379 = vunpack.c.l.b16 %v1091
    %v1380 = vunpack.c.l.b16 %v1092
    %v1381 = vunpack.c.l.b16 %v1093
    %v1382 = vunpack.c.l.b16 %v1094
    %v1383 = vunpack.c.l.b16 %v1095
    %v1384 = vunpack.c.l.b16 %v1096
    %v1385 = vunpack.c.l.b16 %v1097
    %v1386 = vunpack.c.l.b16 %v1098
    %v1387 = vunpack.c.l.b16 %v1099
    %v1388 = vunpack.c.l.b16 %v1100
    %v1389 = vunpack.c.l.b16 %v1101
    %v1390 = vunpack.c.l.b16 %v1102
    %v1391 = vunpack.c.l.b16 %v1103
    %v1392 = vunpack.c.l.b16 %v1104
    %v1393 = vunpack.c.l.b16 %v1105
    %v1394 = vunpack.c.l.b16 %v1106
    %v1395 = vunpack.c.l.b16 %v1107
    %v1396 = vunpack.c.l.b16 %v1108
    %v1397 = vunpack.c.l.b16 %v1109
    %v1398 = vunpack.c.l.b16 %v1110
    %v1399 = vunpack.c.l.b16 %v1111
    %v1400 = vunpack.c.l.b16 %v1112
    %v1401 = vunpack.c.l.b16 %v1113
    %v1402 = vunpack.c.l.b16 %v1114
    %v1403 = vunpack.c.l.b16 %v1115
    %v1404 = vunpack.c.l.b16 %v1116
    %v1405 = vunpack.c.l.b16 %v1117
    %v1406 = vunpack.c.l.b16 %v1118
    %v1407 = vunpack.c.l.b16 %v1119
    %v1408 = vunpack.c.l.b16 %v1120
    %v1409 = vunpack.c.l.b16 %v1121
    %v1410 = vunpack.c.l.b16 %v1122
    %v1411 = vunpack.c.l.b16 %v1123
    %v1412 = vunpack.c.l.b16 %v1124
    %v1413 = vunpack.c.l.b16 %v1125
    %v1414 = vunpack.c.l.b16 %v1126
    %v1415 = vunpack.c.l.b16 %v1127
    %v1416 = vunpack.c.l.b16 %v1128
    %v1417 = vunpack.c.l.b16 %v1129
    %v1418 = vunpack.c.l.b16 %v1130
    %v1419 = vunpack.c.l.b16 %v1131
    %v1420 = vunpack.c.l.b16 %v1132
    %v1421 = vunpack.c.l.b16 %v1133
    %v1422 = vunpack.c.l.b16 %v1134
    %v1423 = vunpack.c.l.b16 %v1135
    %v1424 = vunpack.c.l.b16 %v1136
    %v1425 = vunpack.c.l.b16 %v1137
    %v1426 = vunpack.c.l.b16 %v1138
    %v1427 = vunpack.c.l.b16 %v1139
    %v1428 = vunpack.c.l.b16 %v1140
    %v1429 = vunpack.c.l.b16 %v1141
    %v1430 = vunpack.c.l.b16 %v1142
    %v1431 = vunpack.c.l.b16 %v1143
    %v1432 = vunpack.c.l.b16 %v1144
    %v1433 = vunpack.c.l.b16 %v1145
    %v1434 = vunpack.c.l.b16 %v1146
    %v1435 = vunpack.c.l.b16 %v1147
    %v1436 = vunpack.c.l.b16 %v1148
    %v1437 = vunpack.c.l.b16 %v1149
    %v1438 = vunpack.c.l.b16 %v1150
    %v1439 = vunpack.c.l.b16 %v1151
    %v1440 = vunpack.c.l.b16 %v1152
    %v1441 = vunpack.c.l.b16 %v1153
    %v1442 = vunpack.c.l.b16 %v1154
    %v1443 = vunpack.c.l.b16 %v1155
    %v1444 = vunpack.c.l.b16 %v1156
    %v1445 = vunpack.c.l.b16 %v1157
    %v1446 = vunpack.c.l.b16 %v1158
    %v1447 = vunpack.c.l.b16 %v1159
    %v1448 = vunpack.c.l.b16 %v1160
    %v1449 = vunpack.c.l.b16 %v1161
    %v1450 = vunpack.c.l.b16 %v1162
    %v1451 = vunpack.c.l.b16 %v1163
    %v1452 = vunpack.c.l.b16 %v1164
    %v1453 = vunpack.c.l.b16 %v1165
    %v1454 = vunpack.c.l.b16 %v1166
    %v1455 = vunpack.c.l.b16 %v1167
    %v1456 = vunpack.c.l.b16 %v1168
    %v1457 = vunpack.c.l.b16 %v1169
    %v1458 = vunpack.c.l.b16 %v1170
    %v1459 = vunpack.c.l.b16 %v1171
    %v1460 = vunpack.c.l.b16 %v1172
    %v1461 = vunpack.c.l.b16 %v1173
    %v1462 = vunpack.c.l.b16 %v1174
    %v1463 = vunpack.c.l.b16 %v1175
    %v1464 = vunpack.c.l.b16 %v1176
    %v1465 = vunpack.c.l.b16 %v1177
    %v1466 = vunpack.c.l.b16 %v1178
    %v1467 = vunpack.c.l.b16 %v1179
    %v1468 = vunpack.c.l.b16 %v1180
    %v1469 = vunpack.c.l.b16 %v1181
    %v1470 = vunpack.c.l.b16 %v1182
    %v1471 = vunpack.c.l.b16 %v1183
    %v1472 = vunpack.c.l.b16 %v1184
    %v1473 = vunpack.c.l.b16 %v1185
    %v1474 = vunpack.c.l.b16 %v1186
    %v1475 = vunpack.c.l.b16 %v1187
    %v1476 = vunpack.c.l.b16 %v1188
    %v1477 = vunpack.c.l.b16 %v1189
    %v1478 = vunpack.c.l.b16 %v1190
    %v1479 = vunpack.c.l.b16 %v1191
    %v1480 = vunpack.c.l.b16 %v1192
    %v1481 = vunpack.c.l.b16 %v1193
    %v1482 = vunpack.c.l.b16 %v1194
    %v1483 = vunpack.c.l.b16 %v1195
    %v1484 = vunpack.c.l.b16 %v1196
    %v1485 = vunpack.c.l.b16 %v1197
    %v1486 = vunpack.c.l.b16 %v1198
    %v1487 = vunpack.c.l.b16 %v1199
    %v1488 = vunpack.c.l.b16 %v1200
    %v1489 = vpack.c.b16 %v1346, %v1345
    %v1490 = vpack.c.b16 %v1348, %v1347
    %v1491 = vpack.c.b16 %v1350, %v1349
    %v1492 = vpack.c.b16 %v1352, %v1351
    %v1493 = vpack.c.b16 %v1354, %v1353
    %v1494 = vpack.c.b16 %v1356, %v1355
    %v1495 = vpack.c.b16 %v1358, %v1357
    %v1496 = vpack.c.b16 %v1360, %v1359
    %v1497 = vpack.c.b16 %v1362, %v1361
    %v1498 = vpack.c.b16 %v1364, %v1363
    %v1499 = vpack.c.b16 %v1366, %v1365
    %v1500 = vpack.c.b16 %v1368, %v1367
    %v1501 = vpack.c.b16 %v1370, %v1369
    %v1502 = vpack.c.b16 %v1372, %v1371
    %v1503 = vpack.c.b16 %v1374, %v1373
    %v1504 = vpack.c.b16 %v1376, %v1375
    %v1505 = vpack.c.b16 %v1378, %v1377
    %v1506 = vpack.c.b16 %v1380, %v1379
    %v1507 = vpack.c.b16 %v1382, %v1381
    %v1508 = vpack.c.b16 %v1384, %v1383
    %v1509 = vpack.c.b16 %v1386, %v1385
    %v1510 = vpack.c.b16 %v1388, %v1387
    %v1511 = vpack.c.b16 %v1390, %v1389
    %v1512 = vpack.c.b16 %v1392, %v1391
    %v1513 = vpack.c.b16 %v1394, %v1393
    %v1514 = vpack.c.b16 %v1396, %v1395
    %v1515 = vpack.c.b16 %v1398, %v1397
    %v1516 = vpack.c.b16 %v1400, %v1399
    %v1517 = vpack.c.b16 %v1402, %v1401
    %v1518 = vpack.c.b16 %v1404, %v1403
    %v1519 = vpack.c.b16 %v1406, %v1405
    %v1520 = vpack.c.b16 %v1408, %v1407
    %v1521 = vpack.c.b16 %v1410, %v1409
    %v1522 = vpack.c.b16 %v1412, %v1411
    %v1523 = vpack.c.b16 %v1414, %v1413
    %v1524 = vpack.c.b16 %v1416, %v1415
    %v1525 = vpack.c.b16 %v1418, %v1417
    %v1526 = vpack.c.b16 %v1420, %v1419
    %v1527 = vpack.c.b16 %v1422, %v1421
    %v1528 = vpack.c.b16 %v1424, %v1423
    %v1529 = vpack.c.b16 %v1426, %v1425
    %v1530 = vpack.c.b16 %v1428, %v1427
    %v1531 = vpack.c.b16 %v1430, %v1429
    %v1532 = vpack.c.b16 %v1432, %v1431
    %v1533 = vpack.c.b16 %v1434, %v1433
    %v1534 = vpack.c.b16 %v1436, %v1435
    %v1535 = vpack.c.b16 %v1438, %v1437
    %v1536 = vpack.c.b16 %v1440, %v1439
    %v1537 = vpack.c.b16 %v1442, %v1441
    %v1538 = vpack.c.b16 %v1444, %v1443
    %v1539 = vpack.c.b16 %v1446, %v1445
    %v1540 = vpack.c.b16 %v1448, %v1447
    %v1541 = vpack.c.b16 %v1450, %v1449
    %v1542 = vpack.c.b16 %v1452, %v1451
    %v1543 = vpack.c.b16 %v1454, %v1453
    %v1544 = vpack.c.b16 %v1456, %v1455
    %v1545 = vpack.c.b16 %v1458, %v1457
    %v1546 = vpack.c.b16 %v1460, %v1459
    %v1547 = vpack.c.b16 %v1462, %v1461
    %v1548 = vpack.c.b16 %v1464, %v1463
    %v1549 = vpack.c.b16 %v1466, %v1465
    %v1550 = vpack.c.b16 %v1468, %v1467
    %v1551 = vpack.c.b16 %v1470, %v1469
    %v1552 = vpack.c.b16 %v1472, %v1471
    %v1553 = vpack.c.b16 %v1474, %v1473
    %v1554 = vpack.c.b16 %v1476, %v1475
    %v1555 = vpack.c.b16 %v1478, %v1477
    %v1556 = vpack.c.b16 %v1480, %v1479
    %v1557 = vpack.c.b16 %v1482, %v1481
    %v1558 = vpack.c.b16 %v1484, %v1483
    %v1559 = vpack.c.b16 %v1486, %v1485
    %v1560 = vpack.c.b16 %v1488, %v1487
    %1633 = vmatpush.bf16.msra.mxu0 %v1496
    %1634 = vmatpush.bf16.msra.mxu0 %v1495
    %1635 = vmatpush.bf16.msra.mxu0 %v1494
    %1636 = vmatpush.bf16.msra.mxu0 %v1493
    %1637 = vmatpush.bf16.msra.mxu0 %v1492
    %1638 = vmatpush.bf16.msra.mxu0 %v1491
    %1639 = vmatpush.bf16.msra.mxu0 %v1490
    %1640 = vmatpush.bf16.msra.mxu0 %v1489
    %1641 = vmatmul.bf16.gmra.mxu0 %v1048
    %v1642 = vpop.f32.mrf.mxu0
    %v1643 = vadd.f32 0.0, %v1642
    %v1644 = vpop.f32.mrf.mxu0
    %1645 = vdwg.mxu0
    %1646 = vmatpush.bf16.msra.mxu0 %v1504
    %1647 = vmatpush.bf16.msra.mxu0 %v1503
    %1648 = vmatpush.bf16.msra.mxu0 %v1502
    %1649 = vmatpush.bf16.msra.mxu0 %v1501
    %1650 = vmatpush.bf16.msra.mxu0 %v1500
    %1651 = vmatpush.bf16.msra.mxu0 %v1499
    %1652 = vmatpush.bf16.msra.mxu0 %v1498
    %1653 = vmatpush.bf16.msra.mxu0 %v1497
    %1654 = vmatmul.bf16.gmra.mxu0 %v1049
    %v1655 = vpop.f32.mrf.mxu0
    %v1656 = vadd.f32 %v1643, %v1655
    %v1657 = vpop.f32.mrf.mxu0
    %1658 = vdwg.mxu0
    %1659 = vmatpush.bf16.msra.mxu0 %v1512
    %1660 = vmatpush.bf16.msra.mxu0 %v1511
    %1661 = vmatpush.bf16.msra.mxu0 %v1510
    %1662 = vmatpush.bf16.msra.mxu0 %v1509
    %1663 = vmatpush.bf16.msra.mxu0 %v1508
    %1664 = vmatpush.bf16.msra.mxu0 %v1507
    %1665 = vmatpush.bf16.msra.mxu0 %v1506
    %1666 = vmatpush.bf16.msra.mxu0 %v1505
    %1667 = vmatmul.bf16.gmra.mxu0 %v1050
    %v1668 = vpop.f32.mrf.mxu0
    %v1669 = vadd.f32 %v1656, %v1668
    %v1670 = vpop.f32.mrf.mxu0
    %1671 = vdwg.mxu0
    %1672 = vmatpush.bf16.msra.mxu0 %v1520
    %1673 = vmatpush.bf16.msra.mxu0 %v1519
    %1674 = vmatpush.bf16.msra.mxu0 %v1518
    %1675 = vmatpush.bf16.msra.mxu0 %v1517
    %1676 = vmatpush.bf16.msra.mxu0 %v1516
    %1677 = vmatpush.bf16.msra.mxu0 %v1515
    %1678 = vmatpush.bf16.msra.mxu0 %v1514
    %1679 = vmatpush.bf16.msra.mxu0 %v1513
    %1680 = vmatmul.bf16.gmra.mxu0 %v1051
    %v1681 = vpop.f32.mrf.mxu0
    %v1682 = vadd.f32 %v1669, %v1681
    %v1683 = vpop.f32.mrf.mxu0
    %1684 = vdwg.mxu0
    %1685 = vmatpush.bf16.msra.mxu0 %v1528
    %1686 = vmatpush.bf16.msra.mxu0 %v1527
    %1687 = vmatpush.bf16.msra.mxu0 %v1526
    %1688 = vmatpush.bf16.msra.mxu0 %v1525
    %1689 = vmatpush.bf16.msra.mxu0 %v1524
    %1690 = vmatpush.bf16.msra.mxu0 %v1523
    %1691 = vmatpush.bf16.msra.mxu0 %v1522
    %1692 = vmatpush.bf16.msra.mxu0 %v1521
    %1693 = vmatmul.bf16.gmra.mxu0 %v1052
    %v1694 = vpop.f32.mrf.mxu0
    %v1695 = vadd.f32 %v1682, %v1694
    %v1696 = vpop.f32.mrf.mxu0
    %1697 = vdwg.mxu0
    %1698 = vmatpush.bf16.msra.mxu0 %v1536
    %1699 = vmatpush.bf16.msra.mxu0 %v1535
    %1700 = vmatpush.bf16.msra.mxu0 %v1534
    %1701 = vmatpush.bf16.msra.mxu0 %v1533
    %1702 = vmatpush.bf16.msra.mxu0 %v1532
    %1703 = vmatpush.bf16.msra.mxu0 %v1531
    %1704 = vmatpush.bf16.msra.mxu0 %v1530
    %1705 = vmatpush.bf16.msra.mxu0 %v1529
    %1706 = vmatmul.bf16.gmra.mxu0 %v1053
    %v1707 = vpop.f32.mrf.mxu0
    %v1708 = vadd.f32 %v1695, %v1707
    %v1709 = vpop.f32.mrf.mxu0
    %1710 = vdwg.mxu0
    %1711 = vmatpush.bf16.msra.mxu0 %v1544
    %1712 = vmatpush.bf16.msra.mxu0 %v1543
    %1713 = vmatpush.bf16.msra.mxu0 %v1542
    %1714 = vmatpush.bf16.msra.mxu0 %v1541
    %1715 = vmatpush.bf16.msra.mxu0 %v1540
    %1716 = vmatpush.bf16.msra.mxu0 %v1539
    %1717 = vmatpush.bf16.msra.mxu0 %v1538
    %1718 = vmatpush.bf16.msra.mxu0 %v1537
    %1719 = vmatmul.bf16.gmra.mxu0 %v1054
    %v1720 = vpop.f32.mrf.mxu0
    %v1721 = vadd.f32 %v1708, %v1720
    %v1722 = vpop.f32.mrf.mxu0
    %1723 = vdwg.mxu0
    %1724 = vmatpush.bf16.msra.mxu0 %v1552
    %1725 = vmatpush.bf16.msra.mxu0 %v1551
    %1726 = vmatpush.bf16.msra.mxu0 %v1550
    %1727 = vmatpush.bf16.msra.mxu0 %v1549
    %1728 = vmatpush.bf16.msra.mxu0 %v1548
    %1729 = vmatpush.bf16.msra.mxu0 %v1547
    %1730 = vmatpush.bf16.msra.mxu0 %v1546
    %1731 = vmatpush.bf16.msra.mxu0 %v1545
    %1732 = vmatmul.bf16.gmra.mxu0 %v1055
    %v1733 = vpop.f32.mrf.mxu0
    %v1734 = vadd.f32 %v1721, %v1733
    %v1735 = vpop.f32.mrf.mxu0
    %1736 = vdwg.mxu0
    %1737 = vmatpush.bf16.msra.mxu0 %v1560
    %1738 = vmatpush.bf16.msra.mxu0 %v1559
    %1739 = vmatpush.bf16.msra.mxu0 %v1558
    %1740 = vmatpush.bf16.msra.mxu0 %v1557
    %1741 = vmatpush.bf16.msra.mxu0 %v1556
    %1742 = vmatpush.bf16.msra.mxu0 %v1555
    %1743 = vmatpush.bf16.msra.mxu0 %v1554
    %1744 = vmatpush.bf16.msra.mxu0 %v1553
    %1745 = vmatmul.bf16.gmra.mxu0 %v1056
    %v1746 = vpop.f32.mrf.mxu0
    %v1747 = vadd.f32 %v1734, %v1746
    %v1748 = vpop.f32.mrf.mxu0
    %1749 = vdwg.mxu0
    %v1750 = vmul.f32 %v1747, 0.5
    %v1751 = vtanh.pop %v1750
    %v1752 = vmul.f32 %v1751, 0.5
    %v1753 = vadd.f32 %v1752, 0.5
    %v1754 = vmul.f32 %v1747, %v1753
    %v1755 = vsub.f32 %v1747, -2.2
    %v1756 = vmul.f32 %v1755, 2.5
    %v1757 = vsub.f32 %v1756, 1.0
    %v1758 = vand.u32 2147483647, %v1757
    %v1759 = vsub.f32 1.0, %v1758
    %v1760 = vmax.f32 %v1759, 0.0
    %v1761 = vsub.f32 %v1756, 2.0
    %v1762 = vand.u32 2147483647, %v1761
    %v1763 = vsub.f32 1.0, %v1762
    %v1764 = vmax.f32 %v1763, 0.0
    %v1765 = vsub.f32 %v1756, 3.0
    %v1766 = vand.u32 2147483647, %v1765
    %v1767 = vsub.f32 1.0, %v1766
    %v1768 = vmax.f32 %v1767, 0.0
    %v1769 = vsub.f32 %v1756, 4.0
    %v1770 = vand.u32 2147483647, %v1769
    %v1771 = vsub.f32 1.0, %v1770
    %v1772 = vmax.f32 %v1771, 0.0
    %v1773 = vsub.f32 %v1756, 5.0
    %v1774 = vand.u32 2147483647, %v1773
    %v1775 = vsub.f32 1.0, %v1774
    %v1776 = vmax.f32 %v1775, 0.0
    %v1777 = vsub.f32 %v1756, 6.0
    %v1778 = vand.u32 2147483647, %v1777
    %v1779 = vsub.f32 1.0, %v1778
    %v1780 = vmax.f32 %v1779, 0.0
    %v1781 = vsub.f32 %v1756, 7.0
    %v1782 = vand.u32 2147483647, %v1781
    %v1783 = vsub.f32 1.0, %v1782
    %v1784 = vmax.f32 %v1783, 0.0
    %v1785 = vsub.f32 %v1756, 8.0
    %v1786 = vand.u32 2147483647, %v1785
    %v1787 = vsub.f32 1.0, %v1786
    %v1788 = vmax.f32 %v1787, 0.0
    %v1789 = vsub.f32 %v1756, 9.0
    %v1790 = vand.u32 2147483647, %v1789
    %v1791 = vsub.f32 1.0, %v1790
    %v1792 = vmax.f32 %v1791, 0.0
    %v1793 = vsub.f32 %v1756, 10.0
    %v1794 = vand.u32 2147483647, %v1793
    %v1795 = vsub.f32 1.0, %v1794
    %v1796 = vmax.f32 %v1795, 0.0
    %v1797 = vmul.f32 %v1756, %v1760
    %v1798 = vsub.f32 3.0, %v1756
    %v1799 = vmul.f32 %v1798, %v1764
    %v1800 = vadd.f32 %v1797, %v1799
    %v1801 = vmul.f32 %v1800, 0.5
    %v1802 = vmul.f32 %v1757, %v1764
    %v1803 = vsub.f32 4.0, %v1756
    %v1804 = vmul.f32 %v1803, %v1768
    %v1805 = vadd.f32 %v1802, %v1804
    %v1806 = vmul.f32 %v1805, 0.5
    %v1807 = vmul.f32 %v1761, %v1768
    %v1808 = vsub.f32 5.0, %v1756
    %v1809 = vmul.f32 %v1808, %v1772
    %v1810 = vadd.f32 %v1807, %v1809
    %v1811 = vmul.f32 %v1810, 0.5
    %v1812 = vmul.f32 %v1765, %v1772
    %v1813 = vsub.f32 6.0, %v1756
    %v1814 = vmul.f32 %v1813, %v1776
    %v1815 = vadd.f32 %v1812, %v1814
    %v1816 = vmul.f32 %v1815, 0.5
    %v1817 = vmul.f32 %v1769, %v1776
    %v1818 = vsub.f32 7.0, %v1756
    %v1819 = vmul.f32 %v1818, %v1780
    %v1820 = vadd.f32 %v1817, %v1819
    %v1821 = vmul.f32 %v1820, 0.5
    %v1822 = vmul.f32 %v1773, %v1780
    %v1823 = vsub.f32 8.0, %v1756
    %v1824 = vmul.f32 %v1823, %v1784
    %v1825 = vadd.f32 %v1822, %v1824
    %v1826 = vmul.f32 %v1825, 0.5
    %v1827 = vmul.f32 %v1777, %v1784
    %v1828 = vsub.f32 9.0, %v1756
    %v1829 = vmul.f32 %v1828, %v1788
    %v1830 = vadd.f32 %v1827, %v1829
    %v1831 = vmul.f32 %v1830, 0.5
    %v1832 = vmul.f32 %v1781, %v1788
    %v1833 = vsub.f32 10.0, %v1756
    %v1834 = vmul.f32 %v1833, %v1792
    %v1835 = vadd.f32 %v1832, %v1834
    %v1836 = vmul.f32 %v1835, 0.5
    %v1837 = vmul.f32 %v1785, %v1792
    %v1838 = vsub.f32 11.0, %v1756
    %v1839 = vmul.f32 %v1838, %v1796
    %v1840 = vadd.f32 %v1837, %v1839
    %v1841 = vmul.f32 %v1840, 0.5
    %v1842 = vmul.f32 %v1756, %v1801
    %v1843 = vmul.f32 %v1803, %v1806
    %v1844 = vadd.f32 %v1842, %v1843
    %v1845 = vmul.f32 %v1844, 0.33333334
    %v1846 = vmul.f32 %v1757, %v1806
    %v1847 = vmul.f32 %v1808, %v1811
    %v1848 = vadd.f32 %v1846, %v1847
    %v1849 = vmul.f32 %v1848, 0.33333334
    %v1850 = vmul.f32 %v1761, %v1811
    %v1851 = vmul.f32 %v1813, %v1816
    %v1852 = vadd.f32 %v1850, %v1851
    %v1853 = vmul.f32 %v1852, 0.33333334
    %v1854 = vmul.f32 %v1765, %v1816
    %v1855 = vmul.f32 %v1818, %v1821
    %v1856 = vadd.f32 %v1854, %v1855
    %v1857 = vmul.f32 %v1856, 0.33333334
    %v1858 = vmul.f32 %v1769, %v1821
    %v1859 = vmul.f32 %v1823, %v1826
    %v1860 = vadd.f32 %v1858, %v1859
    %v1861 = vmul.f32 %v1860, 0.33333334
    %v1862 = vmul.f32 %v1773, %v1826
    %v1863 = vmul.f32 %v1828, %v1831
    %v1864 = vadd.f32 %v1862, %v1863
    %v1865 = vmul.f32 %v1864, 0.33333334
    %v1866 = vmul.f32 %v1777, %v1831
    %v1867 = vmul.f32 %v1833, %v1836
    %v1868 = vadd.f32 %v1866, %v1867
    %v1869 = vmul.f32 %v1868, 0.33333334
    %v1870 = vmul.f32 %v1781, %v1836
    %v1871 = vmul.f32 %v1838, %v1841
    %v1872 = vadd.f32 %v1870, %v1871
    %v1873 = vmul.f32 %v1872, 0.33333334
    %v1874 = vpack.c.bf16 %v1754, %v1754
    %v1875 = vpack.c.bf16 %v1845, %v1845
    %v1876 = vpack.c.bf16 %v1849, %v1849
    %v1877 = vpack.c.bf16 %v1853, %v1853
    %v1878 = vpack.c.bf16 %v1857, %v1857
    %v1879 = vpack.c.bf16 %v1861, %v1861
    %v1880 = vpack.c.bf16 %v1865, %v1865
    %v1881 = vpack.c.bf16 %v1869, %v1869
    %v1882 = vpack.c.bf16 %v1873, %v1873
    %v1883 = vld [vmem:[#allocation8] sm:$0xf]
    %v1884 = vld [vmem:[#allocation8 + $0x4] sm:$0xf]
    %v1885 = vld [vmem:[#allocation8 + $0x8] sm:$0xf]
    %v1886 = vld [vmem:[#allocation8 + $0xc] sm:$0xf]
    %v1887 = vld [vmem:[#allocation8 + $0x10] sm:$0xf]
    %v1888 = vld [vmem:[#allocation8 + $0x14] sm:$0xf]
    %v1889 = vld [vmem:[#allocation8 + $0x18] sm:$0xf]
    %v1890 = vld [vmem:[#allocation8 + $0x1c] sm:$0xf]
    %v1891 = vld [vmem:[#allocation8 + $0x20] sm:$0xf]
    %v1892 = vld [vmem:[#allocation8 + $0x24] sm:$0xf]
    %v1893 = vld [vmem:[#allocation8 + $0x28] sm:$0xf]
    %v1894 = vld [vmem:[#allocation8 + $0x2c] sm:$0xf]
    %v1895 = vld [vmem:[#allocation8 + $0x30] sm:$0xf]
    %v1896 = vld [vmem:[#allocation8 + $0x34] sm:$0xf]
    %v1897 = vld [vmem:[#allocation8 + $0x38] sm:$0xf]
    %v1898 = vld [vmem:[#allocation8 + $0x3c] sm:$0xf]
    %v1899 = vld [vmem:[#allocation8 + $0x40] sm:$0xf]
    %v1900 = vld [vmem:[#allocation8 + $0x44] sm:$0xf]
    %v1901 = vld [vmem:[#allocation8 + $0x48] sm:$0xf]
    %v1902 = vld [vmem:[#allocation8 + $0x4c] sm:$0xf]
    %v1903 = vld [vmem:[#allocation8 + $0x50] sm:$0xf]
    %v1904 = vld [vmem:[#allocation8 + $0x54] sm:$0xf]
    %v1905 = vld [vmem:[#allocation8 + $0x58] sm:$0xf]
    %v1906 = vld [vmem:[#allocation8 + $0x5c] sm:$0xf]
    %v1907 = vld [vmem:[#allocation8 + $0x60] sm:$0xf]
    %v1908 = vld [vmem:[#allocation8 + $0x64] sm:$0xf]
    %v1909 = vld [vmem:[#allocation8 + $0x68] sm:$0xf]
    %v1910 = vld [vmem:[#allocation8 + $0x6c] sm:$0xf]
    %v1911 = vld [vmem:[#allocation8 + $0x70] sm:$0xf]
    %v1912 = vld [vmem:[#allocation8 + $0x74] sm:$0xf]
    %v1913 = vld [vmem:[#allocation8 + $0x78] sm:$0xf]
    %v1914 = vld [vmem:[#allocation8 + $0x7c] sm:$0xf]
    %v1915 = vld [vmem:[#allocation8 + $0x80] sm:$0xf]
    %v1916 = vld [vmem:[#allocation8 + $0x84] sm:$0xf]
    %v1917 = vld [vmem:[#allocation8 + $0x88] sm:$0xf]
    %v1918 = vld [vmem:[#allocation8 + $0x8c] sm:$0xf]
    %v1919 = vld [vmem:[#allocation8 + $0x90] sm:$0xf]
    %v1920 = vld [vmem:[#allocation8 + $0x94] sm:$0xf]
    %v1921 = vld [vmem:[#allocation8 + $0x98] sm:$0xf]
    %v1922 = vld [vmem:[#allocation8 + $0x9c] sm:$0xf]
    %v1923 = vld [vmem:[#allocation8 + $0xa0] sm:$0xf]
    %v1924 = vld [vmem:[#allocation8 + $0xa4] sm:$0xf]
    %v1925 = vld [vmem:[#allocation8 + $0xa8] sm:$0xf]
    %v1926 = vld [vmem:[#allocation8 + $0xac] sm:$0xf]
    %v1927 = vld [vmem:[#allocation8 + $0xb0] sm:$0xf]
    %v1928 = vld [vmem:[#allocation8 + $0xb4] sm:$0xf]
    %v1929 = vld [vmem:[#allocation8 + $0xb8] sm:$0xf]
    %v1930 = vld [vmem:[#allocation8 + $0xbc] sm:$0xf]
    %v1931 = vld [vmem:[#allocation8 + $0xc0] sm:$0xf]
    %v1932 = vld [vmem:[#allocation8 + $0xc4] sm:$0xf]
    %v1933 = vld [vmem:[#allocation8 + $0xc8] sm:$0xf]
    %v1934 = vld [vmem:[#allocation8 + $0xcc] sm:$0xf]
    %v1935 = vld [vmem:[#allocation8 + $0xd0] sm:$0xf]
    %v1936 = vld [vmem:[#allocation8 + $0xd4] sm:$0xf]
    %v1937 = vld [vmem:[#allocation8 + $0xd8] sm:$0xf]
    %v1938 = vld [vmem:[#allocation8 + $0xdc] sm:$0xf]
    %v1939 = vld [vmem:[#allocation8 + $0xe0] sm:$0xf]
    %v1940 = vld [vmem:[#allocation8 + $0xe4] sm:$0xf]
    %v1941 = vld [vmem:[#allocation8 + $0xe8] sm:$0xf]
    %v1942 = vld [vmem:[#allocation8 + $0xec] sm:$0xf]
    %v1943 = vld [vmem:[#allocation8 + $0xf0] sm:$0xf]
    %v1944 = vld [vmem:[#allocation8 + $0xf4] sm:$0xf]
    %v1945 = vld [vmem:[#allocation8 + $0xf8] sm:$0xf]
    %v1946 = vld [vmem:[#allocation8 + $0xfc] sm:$0xf]
    %v1947 = vld [vmem:[#allocation8 + $0x100] sm:$0xf]
    %v1948 = vld [vmem:[#allocation8 + $0x104] sm:$0xf]
    %v1949 = vld [vmem:[#allocation8 + $0x108] sm:$0xf]
    %v1950 = vld [vmem:[#allocation8 + $0x10c] sm:$0xf]
    %v1951 = vld [vmem:[#allocation8 + $0x110] sm:$0xf]
    %v1952 = vld [vmem:[#allocation8 + $0x114] sm:$0xf]
    %v1953 = vld [vmem:[#allocation8 + $0x118] sm:$0xf]
    %v1954 = vld [vmem:[#allocation8 + $0x11c] sm:$0xf]
    %v1955 = vld [vmem:[#allocation8 + $0x120] sm:$0xf]
    %v1956 = vld [vmem:[#allocation8 + $0x124] sm:$0xf]
    %v1957 = vld [vmem:[#allocation8 + $0x128] sm:$0xf]
    %v1958 = vld [vmem:[#allocation8 + $0x12c] sm:$0xf]
    %v1959 = vld [vmem:[#allocation8 + $0x130] sm:$0xf]
    %v1960 = vld [vmem:[#allocation8 + $0x134] sm:$0xf]
    %v1961 = vld [vmem:[#allocation8 + $0x138] sm:$0xf]
    %v1962 = vld [vmem:[#allocation8 + $0x13c] sm:$0xf]
    %v1963 = vld [vmem:[#allocation8 + $0x140] sm:$0xf]
    %v1964 = vld [vmem:[#allocation8 + $0x144] sm:$0xf]
    %v1965 = vld [vmem:[#allocation8 + $0x148] sm:$0xf]
    %v1966 = vld [vmem:[#allocation8 + $0x14c] sm:$0xf]
    %v1967 = vld [vmem:[#allocation8 + $0x150] sm:$0xf]
    %v1968 = vld [vmem:[#allocation8 + $0x154] sm:$0xf]
    %v1969 = vld [vmem:[#allocation8 + $0x158] sm:$0xf]
    %v1970 = vld [vmem:[#allocation8 + $0x15c] sm:$0xf]
    %v1971 = vld [vmem:[#allocation8 + $0x160] sm:$0xf]
    %v1972 = vld [vmem:[#allocation8 + $0x164] sm:$0xf]
    %v1973 = vld [vmem:[#allocation8 + $0x168] sm:$0xf]
    %v1974 = vld [vmem:[#allocation8 + $0x16c] sm:$0xf]
    %v1975 = vld [vmem:[#allocation8 + $0x170] sm:$0xf]
    %v1976 = vld [vmem:[#allocation8 + $0x174] sm:$0xf]
    %v1977 = vld [vmem:[#allocation8 + $0x178] sm:$0xf]
    %v1978 = vld [vmem:[#allocation8 + $0x17c] sm:$0xf]
    %v1979 = vld [vmem:[#allocation8 + $0x180] sm:$0xf]
    %v1980 = vld [vmem:[#allocation8 + $0x184] sm:$0xf]
    %v1981 = vld [vmem:[#allocation8 + $0x188] sm:$0xf]
    %v1982 = vld [vmem:[#allocation8 + $0x18c] sm:$0xf]
    %v1983 = vld [vmem:[#allocation8 + $0x190] sm:$0xf]
    %v1984 = vld [vmem:[#allocation8 + $0x194] sm:$0xf]
    %v1985 = vld [vmem:[#allocation8 + $0x198] sm:$0xf]
    %v1986 = vld [vmem:[#allocation8 + $0x19c] sm:$0xf]
    %v1987 = vld [vmem:[#allocation8 + $0x1a0] sm:$0xf]
    %v1988 = vld [vmem:[#allocation8 + $0x1a4] sm:$0xf]
    %v1989 = vld [vmem:[#allocation8 + $0x1a8] sm:$0xf]
    %v1990 = vld [vmem:[#allocation8 + $0x1ac] sm:$0xf]
    %v1991 = vld [vmem:[#allocation8 + $0x1b0] sm:$0xf]
    %v1992 = vld [vmem:[#allocation8 + $0x1b4] sm:$0xf]
    %v1993 = vld [vmem:[#allocation8 + $0x1b8] sm:$0xf]
    %v1994 = vld [vmem:[#allocation8 + $0x1bc] sm:$0xf]
    %v1995 = vld [vmem:[#allocation8 + $0x1c0] sm:$0xf]
    %v1996 = vld [vmem:[#allocation8 + $0x1c4] sm:$0xf]
    %v1997 = vld [vmem:[#allocation8 + $0x1c8] sm:$0xf]
    %v1998 = vld [vmem:[#allocation8 + $0x1cc] sm:$0xf]
    %v1999 = vld [vmem:[#allocation8 + $0x1d0] sm:$0xf]
    %v2000 = vld [vmem:[#allocation8 + $0x1d4] sm:$0xf]
    %v2001 = vld [vmem:[#allocation8 + $0x1d8] sm:$0xf]
    %v2002 = vld [vmem:[#allocation8 + $0x1dc] sm:$0xf]
    %v2003 = vld [vmem:[#allocation8 + $0x1e0] sm:$0xf]
    %v2004 = vld [vmem:[#allocation8 + $0x1e4] sm:$0xf]
    %v2005 = vld [vmem:[#allocation8 + $0x1e8] sm:$0xf]
    %v2006 = vld [vmem:[#allocation8 + $0x1ec] sm:$0xf]
    %v2007 = vld [vmem:[#allocation8 + $0x1f0] sm:$0xf]
    %v2008 = vld [vmem:[#allocation8 + $0x1f4] sm:$0xf]
    %v2009 = vld [vmem:[#allocation8 + $0x1f8] sm:$0xf]
    %v2010 = vld [vmem:[#allocation8 + $0x1fc] sm:$0xf]
    %v2011 = vld [vmem:[#allocation8 + $0x200] sm:$0xf]
    %v2012 = vld [vmem:[#allocation8 + $0x204] sm:$0xf]
    %v2013 = vld [vmem:[#allocation8 + $0x208] sm:$0xf]
    %v2014 = vld [vmem:[#allocation8 + $0x20c] sm:$0xf]
    %v2015 = vld [vmem:[#allocation8 + $0x210] sm:$0xf]
    %v2016 = vld [vmem:[#allocation8 + $0x214] sm:$0xf]
    %v2017 = vld [vmem:[#allocation8 + $0x218] sm:$0xf]
    %v2018 = vld [vmem:[#allocation8 + $0x21c] sm:$0xf]
    %v2019 = vld [vmem:[#allocation8 + $0x220] sm:$0xf]
    %v2020 = vld [vmem:[#allocation8 + $0x224] sm:$0xf]
    %v2021 = vld [vmem:[#allocation8 + $0x228] sm:$0xf]
    %v2022 = vld [vmem:[#allocation8 + $0x22c] sm:$0xf]
    %v2023 = vld [vmem:[#allocation8 + $0x230] sm:$0xf]
    %v2024 = vld [vmem:[#allocation8 + $0x234] sm:$0xf]
    %v2025 = vld [vmem:[#allocation8 + $0x238] sm:$0xf]
    %v2026 = vld [vmem:[#allocation8 + $0x23c] sm:$0xf]
    %v2171 = vunpack.c.l.b16 %v1883
    %v2172 = vunpack.c.l.b16 %v1884
    %v2173 = vunpack.c.l.b16 %v1885
    %v2174 = vunpack.c.l.b16 %v1886
    %v2175 = vunpack.c.l.b16 %v1887
    %v2176 = vunpack.c.l.b16 %v1888
    %v2177 = vunpack.c.l.b16 %v1889
    %v2178 = vunpack.c.l.b16 %v1890
    %v2179 = vunpack.c.l.b16 %v1891
    %v2180 = vunpack.c.l.b16 %v1892
    %v2181 = vunpack.c.l.b16 %v1893
    %v2182 = vunpack.c.l.b16 %v1894
    %v2183 = vunpack.c.l.b16 %v1895
    %v2184 = vunpack.c.l.b16 %v1896
    %v2185 = vunpack.c.l.b16 %v1897
    %v2186 = vunpack.c.l.b16 %v1898
    %v2187 = vunpack.c.l.b16 %v1899
    %v2188 = vunpack.c.l.b16 %v1900
    %v2189 = vunpack.c.l.b16 %v1901
    %v2190 = vunpack.c.l.b16 %v1902
    %v2191 = vunpack.c.l.b16 %v1903
    %v2192 = vunpack.c.l.b16 %v1904
    %v2193 = vunpack.c.l.b16 %v1905
    %v2194 = vunpack.c.l.b16 %v1906
    %v2195 = vunpack.c.l.b16 %v1907
    %v2196 = vunpack.c.l.b16 %v1908
    %v2197 = vunpack.c.l.b16 %v1909
    %v2198 = vunpack.c.l.b16 %v1910
    %v2199 = vunpack.c.l.b16 %v1911
    %v2200 = vunpack.c.l.b16 %v1912
    %v2201 = vunpack.c.l.b16 %v1913
    %v2202 = vunpack.c.l.b16 %v1914
    %v2203 = vunpack.c.l.b16 %v1915
    %v2204 = vunpack.c.l.b16 %v1916
    %v2205 = vunpack.c.l.b16 %v1917
    %v2206 = vunpack.c.l.b16 %v1918
    %v2207 = vunpack.c.l.b16 %v1919
    %v2208 = vunpack.c.l.b16 %v1920
    %v2209 = vunpack.c.l.b16 %v1921
    %v2210 = vunpack.c.l.b16 %v1922
    %v2211 = vunpack.c.l.b16 %v1923
    %v2212 = vunpack.c.l.b16 %v1924
    %v2213 = vunpack.c.l.b16 %v1925
    %v2214 = vunpack.c.l.b16 %v1926
    %v2215 = vunpack.c.l.b16 %v1927
    %v2216 = vunpack.c.l.b16 %v1928
    %v2217 = vunpack.c.l.b16 %v1929
    %v2218 = vunpack.c.l.b16 %v1930
    %v2219 = vunpack.c.l.b16 %v1931
    %v2220 = vunpack.c.l.b16 %v1932
    %v2221 = vunpack.c.l.b16 %v1933
    %v2222 = vunpack.c.l.b16 %v1934
    %v2223 = vunpack.c.l.b16 %v1935
    %v2224 = vunpack.c.l.b16 %v1936
    %v2225 = vunpack.c.l.b16 %v1937
    %v2226 = vunpack.c.l.b16 %v1938
    %v2227 = vunpack.c.l.b16 %v1939
    %v2228 = vunpack.c.l.b16 %v1940
    %v2229 = vunpack.c.l.b16 %v1941
    %v2230 = vunpack.c.l.b16 %v1942
    %v2231 = vunpack.c.l.b16 %v1943
    %v2232 = vunpack.c.l.b16 %v1944
    %v2233 = vunpack.c.l.b16 %v1945
    %v2234 = vunpack.c.l.b16 %v1946
    %v2235 = vunpack.c.l.b16 %v1947
    %v2236 = vunpack.c.l.b16 %v1948
    %v2237 = vunpack.c.l.b16 %v1949
    %v2238 = vunpack.c.l.b16 %v1950
    %v2239 = vunpack.c.l.b16 %v1951
    %v2240 = vunpack.c.l.b16 %v1952
    %v2241 = vunpack.c.l.b16 %v1953
    %v2242 = vunpack.c.l.b16 %v1954
    %v2243 = vunpack.c.l.b16 %v1955
    %v2244 = vunpack.c.l.b16 %v1956
    %v2245 = vunpack.c.l.b16 %v1957
    %v2246 = vunpack.c.l.b16 %v1958
    %v2247 = vunpack.c.l.b16 %v1959
    %v2248 = vunpack.c.l.b16 %v1960
    %v2249 = vunpack.c.l.b16 %v1961
    %v2250 = vunpack.c.l.b16 %v1962
    %v2251 = vunpack.c.l.b16 %v1963
    %v2252 = vunpack.c.l.b16 %v1964
    %v2253 = vunpack.c.l.b16 %v1965
    %v2254 = vunpack.c.l.b16 %v1966
    %v2255 = vunpack.c.l.b16 %v1967
    %v2256 = vunpack.c.l.b16 %v1968
    %v2257 = vunpack.c.l.b16 %v1969
    %v2258 = vunpack.c.l.b16 %v1970
    %v2259 = vunpack.c.l.b16 %v1971
    %v2260 = vunpack.c.l.b16 %v1972
    %v2261 = vunpack.c.l.b16 %v1973
    %v2262 = vunpack.c.l.b16 %v1974
    %v2263 = vunpack.c.l.b16 %v1975
    %v2264 = vunpack.c.l.b16 %v1976
    %v2265 = vunpack.c.l.b16 %v1977
    %v2266 = vunpack.c.l.b16 %v1978
    %v2267 = vunpack.c.l.b16 %v1979
    %v2268 = vunpack.c.l.b16 %v1980
    %v2269 = vunpack.c.l.b16 %v1981
    %v2270 = vunpack.c.l.b16 %v1982
    %v2271 = vunpack.c.l.b16 %v1983
    %v2272 = vunpack.c.l.b16 %v1984
    %v2273 = vunpack.c.l.b16 %v1985
    %v2274 = vunpack.c.l.b16 %v1986
    %v2275 = vunpack.c.l.b16 %v1987
    %v2276 = vunpack.c.l.b16 %v1988
    %v2277 = vunpack.c.l.b16 %v1989
    %v2278 = vunpack.c.l.b16 %v1990
    %v2279 = vunpack.c.l.b16 %v1991
    %v2280 = vunpack.c.l.b16 %v1992
    %v2281 = vunpack.c.l.b16 %v1993
    %v2282 = vunpack.c.l.b16 %v1994
    %v2283 = vunpack.c.l.b16 %v1995
    %v2284 = vunpack.c.l.b16 %v1996
    %v2285 = vunpack.c.l.b16 %v1997
    %v2286 = vunpack.c.l.b16 %v1998
    %v2287 = vunpack.c.l.b16 %v1999
    %v2288 = vunpack.c.l.b16 %v2000
    %v2289 = vunpack.c.l.b16 %v2001
    %v2290 = vunpack.c.l.b16 %v2002
    %v2291 = vunpack.c.l.b16 %v2003
    %v2292 = vunpack.c.l.b16 %v2004
    %v2293 = vunpack.c.l.b16 %v2005
    %v2294 = vunpack.c.l.b16 %v2006
    %v2295 = vunpack.c.l.b16 %v2007
    %v2296 = vunpack.c.l.b16 %v2008
    %v2297 = vunpack.c.l.b16 %v2009
    %v2298 = vunpack.c.l.b16 %v2010
    %v2299 = vunpack.c.l.b16 %v2011
    %v2300 = vunpack.c.l.b16 %v2012
    %v2301 = vunpack.c.l.b16 %v2013
    %v2302 = vunpack.c.l.b16 %v2014
    %v2303 = vunpack.c.l.b16 %v2015
    %v2304 = vunpack.c.l.b16 %v2016
    %v2305 = vunpack.c.l.b16 %v2017
    %v2306 = vunpack.c.l.b16 %v2018
    %v2307 = vunpack.c.l.b16 %v2019
    %v2308 = vunpack.c.l.b16 %v2020
    %v2309 = vunpack.c.l.b16 %v2021
    %v2310 = vunpack.c.l.b16 %v2022
    %v2311 = vunpack.c.l.b16 %v2023
    %v2312 = vunpack.c.l.b16 %v2024
    %v2313 = vunpack.c.l.b16 %v2025
    %v2314 = vunpack.c.l.b16 %v2026
    %v2315 = vpack.c.b16 %v2172, %v2171
    %v2316 = vpack.c.b16 %v2174, %v2173
    %v2317 = vpack.c.b16 %v2176, %v2175
    %v2318 = vpack.c.b16 %v2178, %v2177
    %v2319 = vpack.c.b16 %v2180, %v2179
    %v2320 = vpack.c.b16 %v2182, %v2181
    %v2321 = vpack.c.b16 %v2184, %v2183
    %v2322 = vpack.c.b16 %v2186, %v2185
    %v2323 = vpack.c.b16 %v2188, %v2187
    %v2324 = vpack.c.b16 %v2190, %v2189
    %v2325 = vpack.c.b16 %v2192, %v2191
    %v2326 = vpack.c.b16 %v2194, %v2193
    %v2327 = vpack.c.b16 %v2196, %v2195
    %v2328 = vpack.c.b16 %v2198, %v2197
    %v2329 = vpack.c.b16 %v2200, %v2199
    %v2330 = vpack.c.b16 %v2202, %v2201
    %v2331 = vpack.c.b16 %v2204, %v2203
    %v2332 = vpack.c.b16 %v2206, %v2205
    %v2333 = vpack.c.b16 %v2208, %v2207
    %v2334 = vpack.c.b16 %v2210, %v2209
    %v2335 = vpack.c.b16 %v2212, %v2211
    %v2336 = vpack.c.b16 %v2214, %v2213
    %v2337 = vpack.c.b16 %v2216, %v2215
    %v2338 = vpack.c.b16 %v2218, %v2217
    %v2339 = vpack.c.b16 %v2220, %v2219
    %v2340 = vpack.c.b16 %v2222, %v2221
    %v2341 = vpack.c.b16 %v2224, %v2223
    %v2342 = vpack.c.b16 %v2226, %v2225
    %v2343 = vpack.c.b16 %v2228, %v2227
    %v2344 = vpack.c.b16 %v2230, %v2229
    %v2345 = vpack.c.b16 %v2232, %v2231
    %v2346 = vpack.c.b16 %v2234, %v2233
    %v2347 = vpack.c.b16 %v2236, %v2235
    %v2348 = vpack.c.b16 %v2238, %v2237
    %v2349 = vpack.c.b16 %v2240, %v2239
    %v2350 = vpack.c.b16 %v2242, %v2241
    %v2351 = vpack.c.b16 %v2244, %v2243
    %v2352 = vpack.c.b16 %v2246, %v2245
    %v2353 = vpack.c.b16 %v2248, %v2247
    %v2354 = vpack.c.b16 %v2250, %v2249
    %v2355 = vpack.c.b16 %v2252, %v2251
    %v2356 = vpack.c.b16 %v2254, %v2253
    %v2357 = vpack.c.b16 %v2256, %v2255
    %v2358 = vpack.c.b16 %v2258, %v2257
    %v2359 = vpack.c.b16 %v2260, %v2259
    %v2360 = vpack.c.b16 %v2262, %v2261
    %v2361 = vpack.c.b16 %v2264, %v2263
    %v2362 = vpack.c.b16 %v2266, %v2265
    %v2363 = vpack.c.b16 %v2268, %v2267
    %v2364 = vpack.c.b16 %v2270, %v2269
    %v2365 = vpack.c.b16 %v2272, %v2271
    %v2366 = vpack.c.b16 %v2274, %v2273
    %v2367 = vpack.c.b16 %v2276, %v2275
    %v2368 = vpack.c.b16 %v2278, %v2277
    %v2369 = vpack.c.b16 %v2280, %v2279
    %v2370 = vpack.c.b16 %v2282, %v2281
    %v2371 = vpack.c.b16 %v2284, %v2283
    %v2372 = vpack.c.b16 %v2286, %v2285
    %v2373 = vpack.c.b16 %v2288, %v2287
    %v2374 = vpack.c.b16 %v2290, %v2289
    %v2375 = vpack.c.b16 %v2292, %v2291
    %v2376 = vpack.c.b16 %v2294, %v2293
    %v2377 = vpack.c.b16 %v2296, %v2295
    %v2378 = vpack.c.b16 %v2298, %v2297
    %v2379 = vpack.c.b16 %v2300, %v2299
    %v2380 = vpack.c.b16 %v2302, %v2301
    %v2381 = vpack.c.b16 %v2304, %v2303
    %v2382 = vpack.c.b16 %v2306, %v2305
    %v2383 = vpack.c.b16 %v2308, %v2307
    %v2384 = vpack.c.b16 %v2310, %v2309
    %v2385 = vpack.c.b16 %v2312, %v2311
    %v2386 = vpack.c.b16 %v2314, %v2313
    %2459 = vmatpush.bf16.msra.mxu0 %v2322
    %2460 = vmatpush.bf16.msra.mxu0 %v2321
    %2461 = vmatpush.bf16.msra.mxu0 %v2320
    %2462 = vmatpush.bf16.msra.mxu0 %v2319
    %2463 = vmatpush.bf16.msra.mxu0 %v2318
    %2464 = vmatpush.bf16.msra.mxu0 %v2317
    %2465 = vmatpush.bf16.msra.mxu0 %v2316
    %2466 = vmatpush.bf16.msra.mxu0 %v2315
    %2467 = vmatmul.bf16.gmra.mxu0 %v1874
    %v2468 = vpop.f32.mrf.mxu0
    %v2469 = vadd.f32 0.0, %v2468
    %v2470 = vpop.f32.mrf.mxu0
    %2471 = vdwg.mxu0
    %2472 = vmatpush.bf16.msra.mxu0 %v2330
    %2473 = vmatpush.bf16.msra.mxu0 %v2329
    %2474 = vmatpush.bf16.msra.mxu0 %v2328
    %2475 = vmatpush.bf16.msra.mxu0 %v2327
    %2476 = vmatpush.bf16.msra.mxu0 %v2326
    %2477 = vmatpush.bf16.msra.mxu0 %v2325
    %2478 = vmatpush.bf16.msra.mxu0 %v2324
    %2479 = vmatpush.bf16.msra.mxu0 %v2323
    %2480 = vmatmul.bf16.gmra.mxu0 %v1875
    %v2481 = vpop.f32.mrf.mxu0
    %v2482 = vadd.f32 %v2469, %v2481
    %v2483 = vpop.f32.mrf.mxu0
    %2484 = vdwg.mxu0
    %2485 = vmatpush.bf16.msra.mxu0 %v2338
    %2486 = vmatpush.bf16.msra.mxu0 %v2337
    %2487 = vmatpush.bf16.msra.mxu0 %v2336
    %2488 = vmatpush.bf16.msra.mxu0 %v2335
    %2489 = vmatpush.bf16.msra.mxu0 %v2334
    %2490 = vmatpush.bf16.msra.mxu0 %v2333
    %2491 = vmatpush.bf16.msra.mxu0 %v2332
    %2492 = vmatpush.bf16.msra.mxu0 %v2331
    %2493 = vmatmul.bf16.gmra.mxu0 %v1876
    %v2494 = vpop.f32.mrf.mxu0
    %v2495 = vadd.f32 %v2482, %v2494
    %v2496 = vpop.f32.mrf.mxu0
    %2497 = vdwg.mxu0
    %2498 = vmatpush.bf16.msra.mxu0 %v2346
    %2499 = vmatpush.bf16.msra.mxu0 %v2345
    %2500 = vmatpush.bf16.msra.mxu0 %v2344
    %2501 = vmatpush.bf16.msra.mxu0 %v2343
    %2502 = vmatpush.bf16.msra.mxu0 %v2342
    %2503 = vmatpush.bf16.msra.mxu0 %v2341
    %2504 = vmatpush.bf16.msra.mxu0 %v2340
    %2505 = vmatpush.bf16.msra.mxu0 %v2339
    %2506 = vmatmul.bf16.gmra.mxu0 %v1877
    %v2507 = vpop.f32.mrf.mxu0
    %v2508 = vadd.f32 %v2495, %v2507
    %v2509 = vpop.f32.mrf.mxu0
    %2510 = vdwg.mxu0
    %2511 = vmatpush.bf16.msra.mxu0 %v2354
    %2512 = vmatpush.bf16.msra.mxu0 %v2353
    %2513 = vmatpush.bf16.msra.mxu0 %v2352
    %2514 = vmatpush.bf16.msra.mxu0 %v2351
    %2515 = vmatpush.bf16.msra.mxu0 %v2350
    %2516 = vmatpush.bf16.msra.mxu0 %v2349
    %2517 = vmatpush.bf16.msra.mxu0 %v2348
    %2518 = vmatpush.bf16.msra.mxu0 %v2347
    %2519 = vmatmul.bf16.gmra.mxu0 %v1878
    %v2520 = vpop.f32.mrf.mxu0
    %v2521 = vadd.f32 %v2508, %v2520
    %v2522 = vpop.f32.mrf.mxu0
    %2523 = vdwg.mxu0
    %2524 = vmatpush.bf16.msra.mxu0 %v2362
    %2525 = vmatpush.bf16.msra.mxu0 %v2361
    %2526 = vmatpush.bf16.msra.mxu0 %v2360
    %2527 = vmatpush.bf16.msra.mxu0 %v2359
    %2528 = vmatpush.bf16.msra.mxu0 %v2358
    %2529 = vmatpush.bf16.msra.mxu0 %v2357
    %2530 = vmatpush.bf16.msra.mxu0 %v2356
    %2531 = vmatpush.bf16.msra.mxu0 %v2355
    %2532 = vmatmul.bf16.gmra.mxu0 %v1879
    %v2533 = vpop.f32.mrf.mxu0
    %v2534 = vadd.f32 %v2521, %v2533
    %v2535 = vpop.f32.mrf.mxu0
    %2536 = vdwg.mxu0
    %2537 = vmatpush.bf16.msra.mxu0 %v2370
    %2538 = vmatpush.bf16.msra.mxu0 %v2369
    %2539 = vmatpush.bf16.msra.mxu0 %v2368
    %2540 = vmatpush.bf16.msra.mxu0 %v2367
    %2541 = vmatpush.bf16.msra.mxu0 %v2366
    %2542 = vmatpush.bf16.msra.mxu0 %v2365
    %2543 = vmatpush.bf16.msra.mxu0 %v2364
    %2544 = vmatpush.bf16.msra.mxu0 %v2363
    %2545 = vmatmul.bf16.gmra.mxu0 %v1880
    %v2546 = vpop.f32.mrf.mxu0
    %v2547 = vadd.f32 %v2534, %v2546
    %v2548 = vpop.f32.mrf.mxu0
    %2549 = vdwg.mxu0
    %2550 = vmatpush.bf16.msra.mxu0 %v2378
    %2551 = vmatpush.bf16.msra.mxu0 %v2377
    %2552 = vmatpush.bf16.msra.mxu0 %v2376
    %2553 = vmatpush.bf16.msra.mxu0 %v2375
    %2554 = vmatpush.bf16.msra.mxu0 %v2374
    %2555 = vmatpush.bf16.msra.mxu0 %v2373
    %2556 = vmatpush.bf16.msra.mxu0 %v2372
    %2557 = vmatpush.bf16.msra.mxu0 %v2371
    %2558 = vmatmul.bf16.gmra.mxu0 %v1881
    %v2559 = vpop.f32.mrf.mxu0
    %v2560 = vadd.f32 %v2547, %v2559
    %v2561 = vpop.f32.mrf.mxu0
    %2562 = vdwg.mxu0
    %2563 = vmatpush.bf16.msra.mxu0 %v2386
    %2564 = vmatpush.bf16.msra.mxu0 %v2385
    %2565 = vmatpush.bf16.msra.mxu0 %v2384
    %2566 = vmatpush.bf16.msra.mxu0 %v2383
    %2567 = vmatpush.bf16.msra.mxu0 %v2382
    %2568 = vmatpush.bf16.msra.mxu0 %v2381
    %2569 = vmatpush.bf16.msra.mxu0 %v2380
    %2570 = vmatpush.bf16.msra.mxu0 %v2379
    %2571 = vmatmul.bf16.gmra.mxu0 %v1882
    %v2572 = vpop.f32.mrf.mxu0
    %v2573 = vadd.f32 %v2560, %v2572
    %v2574 = vpop.f32.mrf.mxu0
    %2575 = vdwg.mxu0
    %v2576 = vmul.f32 %v2573, 0.5
    %v2577 = vtanh.pop %v2576
    %v2578 = vmul.f32 %v2577, 0.5
    %v2579 = vadd.f32 %v2578, 0.5
    %v2580 = vmul.f32 %v2573, %v2579
    %v2581 = vsub.f32 %v2573, -2.2
    %v2582 = vmul.f32 %v2581, 2.5
    %v2583 = vsub.f32 %v2582, 1.0
    %v2584 = vand.u32 2147483647, %v2583
    %v2585 = vsub.f32 1.0, %v2584
    %v2586 = vmax.f32 %v2585, 0.0
    %v2587 = vsub.f32 %v2582, 2.0
    %v2588 = vand.u32 2147483647, %v2587
    %v2589 = vsub.f32 1.0, %v2588
    %v2590 = vmax.f32 %v2589, 0.0
    %v2591 = vsub.f32 %v2582, 3.0
    %v2592 = vand.u32 2147483647, %v2591
    %v2593 = vsub.f32 1.0, %v2592
    %v2594 = vmax.f32 %v2593, 0.0
    %v2595 = vsub.f32 %v2582, 4.0
    %v2596 = vand.u32 2147483647, %v2595
    %v2597 = vsub.f32 1.0, %v2596
    %v2598 = vmax.f32 %v2597, 0.0
    %v2599 = vsub.f32 %v2582, 5.0
    %v2600 = vand.u32 2147483647, %v2599
    %v2601 = vsub.f32 1.0, %v2600
    %v2602 = vmax.f32 %v2601, 0.0
    %v2603 = vsub.f32 %v2582, 6.0
    %v2604 = vand.u32 2147483647, %v2603
    %v2605 = vsub.f32 1.0, %v2604
    %v2606 = vmax.f32 %v2605, 0.0
    %v2607 = vsub.f32 %v2582, 7.0
    %v2608 = vand.u32 2147483647, %v2607
    %v2609 = vsub.f32 1.0, %v2608
    %v2610 = vmax.f32 %v2609, 0.0
    %v2611 = vsub.f32 %v2582, 8.0
    %v2612 = vand.u32 2147483647, %v2611
    %v2613 = vsub.f32 1.0, %v2612
    %v2614 = vmax.f32 %v2613, 0.0
    %v2615 = vsub.f32 %v2582, 9.0
    %v2616 = vand.u32 2147483647, %v2615
    %v2617 = vsub.f32 1.0, %v2616
    %v2618 = vmax.f32 %v2617, 0.0
    %v2619 = vsub.f32 %v2582, 10.0
    %v2620 = vand.u32 2147483647, %v2619
    %v2621 = vsub.f32 1.0, %v2620
    %v2622 = vmax.f32 %v2621, 0.0
    %v2623 = vmul.f32 %v2582, %v2586
    %v2624 = vsub.f32 3.0, %v2582
    %v2625 = vmul.f32 %v2624, %v2590
    %v2626 = vadd.f32 %v2623, %v2625
    %v2627 = vmul.f32 %v2626, 0.5
    %v2628 = vmul.f32 %v2583, %v2590
    %v2629 = vsub.f32 4.0, %v2582
    %v2630 = vmul.f32 %v2629, %v2594
    %v2631 = vadd.f32 %v2628, %v2630
    %v2632 = vmul.f32 %v2631, 0.5
    %v2633 = vmul.f32 %v2587, %v2594
    %v2634 = vsub.f32 5.0, %v2582
    %v2635 = vmul.f32 %v2634, %v2598
    %v2636 = vadd.f32 %v2633, %v2635
    %v2637 = vmul.f32 %v2636, 0.5
    %v2638 = vmul.f32 %v2591, %v2598
    %v2639 = vsub.f32 6.0, %v2582
    %v2640 = vmul.f32 %v2639, %v2602
    %v2641 = vadd.f32 %v2638, %v2640
    %v2642 = vmul.f32 %v2641, 0.5
    %v2643 = vmul.f32 %v2595, %v2602
    %v2644 = vsub.f32 7.0, %v2582
    %v2645 = vmul.f32 %v2644, %v2606
    %v2646 = vadd.f32 %v2643, %v2645
    %v2647 = vmul.f32 %v2646, 0.5
    %v2648 = vmul.f32 %v2599, %v2606
    %v2649 = vsub.f32 8.0, %v2582
    %v2650 = vmul.f32 %v2649, %v2610
    %v2651 = vadd.f32 %v2648, %v2650
    %v2652 = vmul.f32 %v2651, 0.5
    %v2653 = vmul.f32 %v2603, %v2610
    %v2654 = vsub.f32 9.0, %v2582
    %v2655 = vmul.f32 %v2654, %v2614
    %v2656 = vadd.f32 %v2653, %v2655
    %v2657 = vmul.f32 %v2656, 0.5
    %v2658 = vmul.f32 %v2607, %v2614
    %v2659 = vsub.f32 10.0, %v2582
    %v2660 = vmul.f32 %v2659, %v2618
    %v2661 = vadd.f32 %v2658, %v2660
    %v2662 = vmul.f32 %v2661, 0.5
    %v2663 = vmul.f32 %v2611, %v2618
    %v2664 = vsub.f32 11.0, %v2582
    %v2665 = vmul.f32 %v2664, %v2622
    %v2666 = vadd.f32 %v2663, %v2665
    %v2667 = vmul.f32 %v2666, 0.5
    %v2668 = vmul.f32 %v2582, %v2627
    %v2669 = vmul.f32 %v2629, %v2632
    %v2670 = vadd.f32 %v2668, %v2669
    %v2671 = vmul.f32 %v2670, 0.33333334
    %v2672 = vmul.f32 %v2583, %v2632
    %v2673 = vmul.f32 %v2634, %v2637
    %v2674 = vadd.f32 %v2672, %v2673
    %v2675 = vmul.f32 %v2674, 0.33333334
    %v2676 = vmul.f32 %v2587, %v2637
    %v2677 = vmul.f32 %v2639, %v2642
    %v2678 = vadd.f32 %v2676, %v2677
    %v2679 = vmul.f32 %v2678, 0.33333334
    %v2680 = vmul.f32 %v2591, %v2642
    %v2681 = vmul.f32 %v2644, %v2647
    %v2682 = vadd.f32 %v2680, %v2681
    %v2683 = vmul.f32 %v2682, 0.33333334
    %v2684 = vmul.f32 %v2595, %v2647
    %v2685 = vmul.f32 %v2649, %v2652
    %v2686 = vadd.f32 %v2684, %v2685
    %v2687 = vmul.f32 %v2686, 0.33333334
    %v2688 = vmul.f32 %v2599, %v2652
    %v2689 = vmul.f32 %v2654, %v2657
    %v2690 = vadd.f32 %v2688, %v2689
    %v2691 = vmul.f32 %v2690, 0.33333334
    %v2692 = vmul.f32 %v2603, %v2657
    %v2693 = vmul.f32 %v2659, %v2662
    %v2694 = vadd.f32 %v2692, %v2693
    %v2695 = vmul.f32 %v2694, 0.33333334
    %v2696 = vmul.f32 %v2607, %v2662
    %v2697 = vmul.f32 %v2664, %v2667
    %v2698 = vadd.f32 %v2696, %v2697
    %v2699 = vmul.f32 %v2698, 0.33333334
    %v2700 = vpack.c.bf16 %v2580, %v2580
    %v2701 = vpack.c.bf16 %v2671, %v2671
    %v2702 = vpack.c.bf16 %v2675, %v2675
    %v2703 = vpack.c.bf16 %v2679, %v2679
    %v2704 = vpack.c.bf16 %v2683, %v2683
    %v2705 = vpack.c.bf16 %v2687, %v2687
    %v2706 = vpack.c.bf16 %v2691, %v2691
    %v2707 = vpack.c.bf16 %v2695, %v2695
    %v2708 = vpack.c.bf16 %v2699, %v2699
    %v2709 = vld [vmem:[#allocation10] sm:$0xf]
    %v2710 = vld [vmem:[#allocation10 + $0x4] sm:$0xf]
    %v2711 = vld [vmem:[#allocation10 + $0x8] sm:$0xf]
    %v2712 = vld [vmem:[#allocation10 + $0xc] sm:$0xf]
    %v2713 = vld [vmem:[#allocation10 + $0x10] sm:$0xf]
    %v2714 = vld [vmem:[#allocation10 + $0x14] sm:$0xf]
    %v2715 = vld [vmem:[#allocation10 + $0x18] sm:$0xf]
    %v2716 = vld [vmem:[#allocation10 + $0x1c] sm:$0xf]
    %v2717 = vld [vmem:[#allocation10 + $0x20] sm:$0xf]
    %v2718 = vld [vmem:[#allocation10 + $0x24] sm:$0xf]
    %v2719 = vld [vmem:[#allocation10 + $0x28] sm:$0xf]
    %v2720 = vld [vmem:[#allocation10 + $0x2c] sm:$0xf]
    %v2721 = vld [vmem:[#allocation10 + $0x30] sm:$0xf]
    %v2722 = vld [vmem:[#allocation10 + $0x34] sm:$0xf]
    %v2723 = vld [vmem:[#allocation10 + $0x38] sm:$0xf]
    %v2724 = vld [vmem:[#allocation10 + $0x3c] sm:$0xf]
    %v2725 = vld [vmem:[#allocation10 + $0x40] sm:$0xf]
    %v2726 = vld [vmem:[#allocation10 + $0x44] sm:$0xf]
    %v2727 = vld [vmem:[#allocation10 + $0x48] sm:$0xf]
    %v2728 = vld [vmem:[#allocation10 + $0x4c] sm:$0xf]
    %v2729 = vld [vmem:[#allocation10 + $0x50] sm:$0xf]
    %v2730 = vld [vmem:[#allocation10 + $0x54] sm:$0xf]
    %v2731 = vld [vmem:[#allocation10 + $0x58] sm:$0xf]
    %v2732 = vld [vmem:[#allocation10 + $0x5c] sm:$0xf]
    %v2733 = vld [vmem:[#allocation10 + $0x60] sm:$0xf]
    %v2734 = vld [vmem:[#allocation10 + $0x64] sm:$0xf]
    %v2735 = vld [vmem:[#allocation10 + $0x68] sm:$0xf]
    %v2736 = vld [vmem:[#allocation10 + $0x6c] sm:$0xf]
    %v2737 = vld [vmem:[#allocation10 + $0x70] sm:$0xf]
    %v2738 = vld [vmem:[#allocation10 + $0x74] sm:$0xf]
    %v2739 = vld [vmem:[#allocation10 + $0x78] sm:$0xf]
    %v2740 = vld [vmem:[#allocation10 + $0x7c] sm:$0xf]
    %v2741 = vld [vmem:[#allocation10 + $0x80] sm:$0xf]
    %v2742 = vld [vmem:[#allocation10 + $0x84] sm:$0xf]
    %v2743 = vld [vmem:[#allocation10 + $0x88] sm:$0xf]
    %v2744 = vld [vmem:[#allocation10 + $0x8c] sm:$0xf]
    %v2745 = vld [vmem:[#allocation10 + $0x90] sm:$0xf]
    %v2746 = vld [vmem:[#allocation10 + $0x94] sm:$0xf]
    %v2747 = vld [vmem:[#allocation10 + $0x98] sm:$0xf]
    %v2748 = vld [vmem:[#allocation10 + $0x9c] sm:$0xf]
    %v2749 = vld [vmem:[#allocation10 + $0xa0] sm:$0xf]
    %v2750 = vld [vmem:[#allocation10 + $0xa4] sm:$0xf]
    %v2751 = vld [vmem:[#allocation10 + $0xa8] sm:$0xf]
    %v2752 = vld [vmem:[#allocation10 + $0xac] sm:$0xf]
    %v2753 = vld [vmem:[#allocation10 + $0xb0] sm:$0xf]
    %v2754 = vld [vmem:[#allocation10 + $0xb4] sm:$0xf]
    %v2755 = vld [vmem:[#allocation10 + $0xb8] sm:$0xf]
    %v2756 = vld [vmem:[#allocation10 + $0xbc] sm:$0xf]
    %v2757 = vld [vmem:[#allocation10 + $0xc0] sm:$0xf]
    %v2758 = vld [vmem:[#allocation10 + $0xc4] sm:$0xf]
    %v2759 = vld [vmem:[#allocation10 + $0xc8] sm:$0xf]
    %v2760 = vld [vmem:[#allocation10 + $0xcc] sm:$0xf]
    %v2761 = vld [vmem:[#allocation10 + $0xd0] sm:$0xf]
    %v2762 = vld [vmem:[#allocation10 + $0xd4] sm:$0xf]
    %v2763 = vld [vmem:[#allocation10 + $0xd8] sm:$0xf]
    %v2764 = vld [vmem:[#allocation10 + $0xdc] sm:$0xf]
    %v2765 = vld [vmem:[#allocation10 + $0xe0] sm:$0xf]
    %v2766 = vld [vmem:[#allocation10 + $0xe4] sm:$0xf]
    %v2767 = vld [vmem:[#allocation10 + $0xe8] sm:$0xf]
    %v2768 = vld [vmem:[#allocation10 + $0xec] sm:$0xf]
    %v2769 = vld [vmem:[#allocation10 + $0xf0] sm:$0xf]
    %v2770 = vld [vmem:[#allocation10 + $0xf4] sm:$0xf]
    %v2771 = vld [vmem:[#allocation10 + $0xf8] sm:$0xf]
    %v2772 = vld [vmem:[#allocation10 + $0xfc] sm:$0xf]
    %v2773 = vld [vmem:[#allocation10 + $0x100] sm:$0xf]
    %v2774 = vld [vmem:[#allocation10 + $0x104] sm:$0xf]
    %v2775 = vld [vmem:[#allocation10 + $0x108] sm:$0xf]
    %v2776 = vld [vmem:[#allocation10 + $0x10c] sm:$0xf]
    %v2777 = vld [vmem:[#allocation10 + $0x110] sm:$0xf]
    %v2778 = vld [vmem:[#allocation10 + $0x114] sm:$0xf]
    %v2779 = vld [vmem:[#allocation10 + $0x118] sm:$0xf]
    %v2780 = vld [vmem:[#allocation10 + $0x11c] sm:$0xf]
    %v2781 = vld [vmem:[#allocation10 + $0x120] sm:$0xf]
    %v2782 = vld [vmem:[#allocation10 + $0x124] sm:$0xf]
    %v2783 = vld [vmem:[#allocation10 + $0x128] sm:$0xf]
    %v2784 = vld [vmem:[#allocation10 + $0x12c] sm:$0xf]
    %v2785 = vld [vmem:[#allocation10 + $0x130] sm:$0xf]
    %v2786 = vld [vmem:[#allocation10 + $0x134] sm:$0xf]
    %v2787 = vld [vmem:[#allocation10 + $0x138] sm:$0xf]
    %v2788 = vld [vmem:[#allocation10 + $0x13c] sm:$0xf]
    %v2789 = vld [vmem:[#allocation10 + $0x140] sm:$0xf]
    %v2790 = vld [vmem:[#allocation10 + $0x144] sm:$0xf]
    %v2791 = vld [vmem:[#allocation10 + $0x148] sm:$0xf]
    %v2792 = vld [vmem:[#allocation10 + $0x14c] sm:$0xf]
    %v2793 = vld [vmem:[#allocation10 + $0x150] sm:$0xf]
    %v2794 = vld [vmem:[#allocation10 + $0x154] sm:$0xf]
    %v2795 = vld [vmem:[#allocation10 + $0x158] sm:$0xf]
    %v2796 = vld [vmem:[#allocation10 + $0x15c] sm:$0xf]
    %v2797 = vld [vmem:[#allocation10 + $0x160] sm:$0xf]
    %v2798 = vld [vmem:[#allocation10 + $0x164] sm:$0xf]
    %v2799 = vld [vmem:[#allocation10 + $0x168] sm:$0xf]
    %v2800 = vld [vmem:[#allocation10 + $0x16c] sm:$0xf]
    %v2801 = vld [vmem:[#allocation10 + $0x170] sm:$0xf]
    %v2802 = vld [vmem:[#allocation10 + $0x174] sm:$0xf]
    %v2803 = vld [vmem:[#allocation10 + $0x178] sm:$0xf]
    %v2804 = vld [vmem:[#allocation10 + $0x17c] sm:$0xf]
    %v2805 = vld [vmem:[#allocation10 + $0x180] sm:$0xf]
    %v2806 = vld [vmem:[#allocation10 + $0x184] sm:$0xf]
    %v2807 = vld [vmem:[#allocation10 + $0x188] sm:$0xf]
    %v2808 = vld [vmem:[#allocation10 + $0x18c] sm:$0xf]
    %v2809 = vld [vmem:[#allocation10 + $0x190] sm:$0xf]
    %v2810 = vld [vmem:[#allocation10 + $0x194] sm:$0xf]
    %v2811 = vld [vmem:[#allocation10 + $0x198] sm:$0xf]
    %v2812 = vld [vmem:[#allocation10 + $0x19c] sm:$0xf]
    %v2813 = vld [vmem:[#allocation10 + $0x1a0] sm:$0xf]
    %v2814 = vld [vmem:[#allocation10 + $0x1a4] sm:$0xf]
    %v2815 = vld [vmem:[#allocation10 + $0x1a8] sm:$0xf]
    %v2816 = vld [vmem:[#allocation10 + $0x1ac] sm:$0xf]
    %v2817 = vld [vmem:[#allocation10 + $0x1b0] sm:$0xf]
    %v2818 = vld [vmem:[#allocation10 + $0x1b4] sm:$0xf]
    %v2819 = vld [vmem:[#allocation10 + $0x1b8] sm:$0xf]
    %v2820 = vld [vmem:[#allocation10 + $0x1bc] sm:$0xf]
    %v2821 = vld [vmem:[#allocation10 + $0x1c0] sm:$0xf]
    %v2822 = vld [vmem:[#allocation10 + $0x1c4] sm:$0xf]
    %v2823 = vld [vmem:[#allocation10 + $0x1c8] sm:$0xf]
    %v2824 = vld [vmem:[#allocation10 + $0x1cc] sm:$0xf]
    %v2825 = vld [vmem:[#allocation10 + $0x1d0] sm:$0xf]
    %v2826 = vld [vmem:[#allocation10 + $0x1d4] sm:$0xf]
    %v2827 = vld [vmem:[#allocation10 + $0x1d8] sm:$0xf]
    %v2828 = vld [vmem:[#allocation10 + $0x1dc] sm:$0xf]
    %v2829 = vld [vmem:[#allocation10 + $0x1e0] sm:$0xf]
    %v2830 = vld [vmem:[#allocation10 + $0x1e4] sm:$0xf]
    %v2831 = vld [vmem:[#allocation10 + $0x1e8] sm:$0xf]
    %v2832 = vld [vmem:[#allocation10 + $0x1ec] sm:$0xf]
    %v2833 = vld [vmem:[#allocation10 + $0x1f0] sm:$0xf]
    %v2834 = vld [vmem:[#allocation10 + $0x1f4] sm:$0xf]
    %v2835 = vld [vmem:[#allocation10 + $0x1f8] sm:$0xf]
    %v2836 = vld [vmem:[#allocation10 + $0x1fc] sm:$0xf]
    %v2837 = vld [vmem:[#allocation10 + $0x200] sm:$0xf]
    %v2838 = vld [vmem:[#allocation10 + $0x204] sm:$0xf]
    %v2839 = vld [vmem:[#allocation10 + $0x208] sm:$0xf]
    %v2840 = vld [vmem:[#allocation10 + $0x20c] sm:$0xf]
    %v2841 = vld [vmem:[#allocation10 + $0x210] sm:$0xf]
    %v2842 = vld [vmem:[#allocation10 + $0x214] sm:$0xf]
    %v2843 = vld [vmem:[#allocation10 + $0x218] sm:$0xf]
    %v2844 = vld [vmem:[#allocation10 + $0x21c] sm:$0xf]
    %v2845 = vld [vmem:[#allocation10 + $0x220] sm:$0xf]
    %v2846 = vld [vmem:[#allocation10 + $0x224] sm:$0xf]
    %v2847 = vld [vmem:[#allocation10 + $0x228] sm:$0xf]
    %v2848 = vld [vmem:[#allocation10 + $0x22c] sm:$0xf]
    %v2849 = vld [vmem:[#allocation10 + $0x230] sm:$0xf]
    %v2850 = vld [vmem:[#allocation10 + $0x234] sm:$0xf]
    %v2851 = vld [vmem:[#allocation10 + $0x238] sm:$0xf]
    %v2852 = vld [vmem:[#allocation10 + $0x23c] sm:$0xf]
    %v2997 = vunpack.c.l.b16 %v2709
    %v2998 = vunpack.c.l.b16 %v2710
    %v2999 = vunpack.c.l.b16 %v2711
    %v3000 = vunpack.c.l.b16 %v2712
    %v3001 = vunpack.c.l.b16 %v2713
    %v3002 = vunpack.c.l.b16 %v2714
    %v3003 = vunpack.c.l.b16 %v2715
    %v3004 = vunpack.c.l.b16 %v2716
    %v3005 = vunpack.c.l.b16 %v2717
    %v3006 = vunpack.c.l.b16 %v2718
    %v3007 = vunpack.c.l.b16 %v2719
    %v3008 = vunpack.c.l.b16 %v2720
    %v3009 = vunpack.c.l.b16 %v2721
    %v3010 = vunpack.c.l.b16 %v2722
    %v3011 = vunpack.c.l.b16 %v2723
    %v3012 = vunpack.c.l.b16 %v2724
    %v3013 = vunpack.c.l.b16 %v2725
    %v3014 = vunpack.c.l.b16 %v2726
    %v3015 = vunpack.c.l.b16 %v2727
    %v3016 = vunpack.c.l.b16 %v2728
    %v3017 = vunpack.c.l.b16 %v2729
    %v3018 = vunpack.c.l.b16 %v2730
    %v3019 = vunpack.c.l.b16 %v2731
    %v3020 = vunpack.c.l.b16 %v2732
    %v3021 = vunpack.c.l.b16 %v2733
    %v3022 = vunpack.c.l.b16 %v2734
    %v3023 = vunpack.c.l.b16 %v2735
    %v3024 = vunpack.c.l.b16 %v2736
    %v3025 = vunpack.c.l.b16 %v2737
    %v3026 = vunpack.c.l.b16 %v2738
    %v3027 = vunpack.c.l.b16 %v2739
    %v3028 = vunpack.c.l.b16 %v2740
    %v3029 = vunpack.c.l.b16 %v2741
    %v3030 = vunpack.c.l.b16 %v2742
    %v3031 = vunpack.c.l.b16 %v2743
    %v3032 = vunpack.c.l.b16 %v2744
    %v3033 = vunpack.c.l.b16 %v2745
    %v3034 = vunpack.c.l.b16 %v2746
    %v3035 = vunpack.c.l.b16 %v2747
    %v3036 = vunpack.c.l.b16 %v2748
    %v3037 = vunpack.c.l.b16 %v2749
    %v3038 = vunpack.c.l.b16 %v2750
    %v3039 = vunpack.c.l.b16 %v2751
    %v3040 = vunpack.c.l.b16 %v2752
    %v3041 = vunpack.c.l.b16 %v2753
    %v3042 = vunpack.c.l.b16 %v2754
    %v3043 = vunpack.c.l.b16 %v2755
    %v3044 = vunpack.c.l.b16 %v2756
    %v3045 = vunpack.c.l.b16 %v2757
    %v3046 = vunpack.c.l.b16 %v2758
    %v3047 = vunpack.c.l.b16 %v2759
    %v3048 = vunpack.c.l.b16 %v2760
    %v3049 = vunpack.c.l.b16 %v2761
    %v3050 = vunpack.c.l.b16 %v2762
    %v3051 = vunpack.c.l.b16 %v2763
    %v3052 = vunpack.c.l.b16 %v2764
    %v3053 = vunpack.c.l.b16 %v2765
    %v3054 = vunpack.c.l.b16 %v2766
    %v3055 = vunpack.c.l.b16 %v2767
    %v3056 = vunpack.c.l.b16 %v2768
    %v3057 = vunpack.c.l.b16 %v2769
    %v3058 = vunpack.c.l.b16 %v2770
    %v3059 = vunpack.c.l.b16 %v2771
    %v3060 = vunpack.c.l.b16 %v2772
    %v3061 = vunpack.c.l.b16 %v2773
    %v3062 = vunpack.c.l.b16 %v2774
    %v3063 = vunpack.c.l.b16 %v2775
    %v3064 = vunpack.c.l.b16 %v2776
    %v3065 = vunpack.c.l.b16 %v2777
    %v3066 = vunpack.c.l.b16 %v2778
    %v3067 = vunpack.c.l.b16 %v2779
    %v3068 = vunpack.c.l.b16 %v2780
    %v3069 = vunpack.c.l.b16 %v2781
    %v3070 = vunpack.c.l.b16 %v2782
    %v3071 = vunpack.c.l.b16 %v2783
    %v3072 = vunpack.c.l.b16 %v2784
    %v3073 = vunpack.c.l.b16 %v2785
    %v3074 = vunpack.c.l.b16 %v2786
    %v3075 = vunpack.c.l.b16 %v2787
    %v3076 = vunpack.c.l.b16 %v2788
    %v3077 = vunpack.c.l.b16 %v2789
    %v3078 = vunpack.c.l.b16 %v2790
    %v3079 = vunpack.c.l.b16 %v2791
    %v3080 = vunpack.c.l.b16 %v2792
    %v3081 = vunpack.c.l.b16 %v2793
    %v3082 = vunpack.c.l.b16 %v2794
    %v3083 = vunpack.c.l.b16 %v2795
    %v3084 = vunpack.c.l.b16 %v2796
    %v3085 = vunpack.c.l.b16 %v2797
    %v3086 = vunpack.c.l.b16 %v2798
    %v3087 = vunpack.c.l.b16 %v2799
    %v3088 = vunpack.c.l.b16 %v2800
    %v3089 = vunpack.c.l.b16 %v2801
    %v3090 = vunpack.c.l.b16 %v2802
    %v3091 = vunpack.c.l.b16 %v2803
    %v3092 = vunpack.c.l.b16 %v2804
    %v3093 = vunpack.c.l.b16 %v2805
    %v3094 = vunpack.c.l.b16 %v2806
    %v3095 = vunpack.c.l.b16 %v2807
    %v3096 = vunpack.c.l.b16 %v2808
    %v3097 = vunpack.c.l.b16 %v2809
    %v3098 = vunpack.c.l.b16 %v2810
    %v3099 = vunpack.c.l.b16 %v2811
    %v3100 = vunpack.c.l.b16 %v2812
    %v3101 = vunpack.c.l.b16 %v2813
    %v3102 = vunpack.c.l.b16 %v2814
    %v3103 = vunpack.c.l.b16 %v2815
    %v3104 = vunpack.c.l.b16 %v2816
    %v3105 = vunpack.c.l.b16 %v2817
    %v3106 = vunpack.c.l.b16 %v2818
    %v3107 = vunpack.c.l.b16 %v2819
    %v3108 = vunpack.c.l.b16 %v2820
    %v3109 = vunpack.c.l.b16 %v2821
    %v3110 = vunpack.c.l.b16 %v2822
    %v3111 = vunpack.c.l.b16 %v2823
    %v3112 = vunpack.c.l.b16 %v2824
    %v3113 = vunpack.c.l.b16 %v2825
    %v3114 = vunpack.c.l.b16 %v2826
    %v3115 = vunpack.c.l.b16 %v2827
    %v3116 = vunpack.c.l.b16 %v2828
    %v3117 = vunpack.c.l.b16 %v2829
    %v3118 = vunpack.c.l.b16 %v2830
    %v3119 = vunpack.c.l.b16 %v2831
    %v3120 = vunpack.c.l.b16 %v2832
    %v3121 = vunpack.c.l.b16 %v2833
    %v3122 = vunpack.c.l.b16 %v2834
    %v3123 = vunpack.c.l.b16 %v2835
    %v3124 = vunpack.c.l.b16 %v2836
    %v3125 = vunpack.c.l.b16 %v2837
    %v3126 = vunpack.c.l.b16 %v2838
    %v3127 = vunpack.c.l.b16 %v2839
    %v3128 = vunpack.c.l.b16 %v2840
    %v3129 = vunpack.c.l.b16 %v2841
    %v3130 = vunpack.c.l.b16 %v2842
    %v3131 = vunpack.c.l.b16 %v2843
    %v3132 = vunpack.c.l.b16 %v2844
    %v3133 = vunpack.c.l.b16 %v2845
    %v3134 = vunpack.c.l.b16 %v2846
    %v3135 = vunpack.c.l.b16 %v2847
    %v3136 = vunpack.c.l.b16 %v2848
    %v3137 = vunpack.c.l.b16 %v2849
    %v3138 = vunpack.c.l.b16 %v2850
    %v3139 = vunpack.c.l.b16 %v2851
    %v3140 = vunpack.c.l.b16 %v2852
    %v3141 = vpack.c.b16 %v2998, %v2997
    %v3142 = vpack.c.b16 %v3000, %v2999
    %v3143 = vpack.c.b16 %v3002, %v3001
    %v3144 = vpack.c.b16 %v3004, %v3003
    %v3145 = vpack.c.b16 %v3006, %v3005
    %v3146 = vpack.c.b16 %v3008, %v3007
    %v3147 = vpack.c.b16 %v3010, %v3009
    %v3148 = vpack.c.b16 %v3012, %v3011
    %v3149 = vpack.c.b16 %v3014, %v3013
    %v3150 = vpack.c.b16 %v3016, %v3015
    %v3151 = vpack.c.b16 %v3018, %v3017
    %v3152 = vpack.c.b16 %v3020, %v3019
    %v3153 = vpack.c.b16 %v3022, %v3021
    %v3154 = vpack.c.b16 %v3024, %v3023
    %v3155 = vpack.c.b16 %v3026, %v3025
    %v3156 = vpack.c.b16 %v3028, %v3027
    %v3157 = vpack.c.b16 %v3030, %v3029
    %v3158 = vpack.c.b16 %v3032, %v3031
    %v3159 = vpack.c.b16 %v3034, %v3033
    %v3160 = vpack.c.b16 %v3036, %v3035
    %v3161 = vpack.c.b16 %v3038, %v3037
    %v3162 = vpack.c.b16 %v3040, %v3039
    %v3163 = vpack.c.b16 %v3042, %v3041
    %v3164 = vpack.c.b16 %v3044, %v3043
    %v3165 = vpack.c.b16 %v3046, %v3045
    %v3166 = vpack.c.b16 %v3048, %v3047
    %v3167 = vpack.c.b16 %v3050, %v3049
    %v3168 = vpack.c.b16 %v3052, %v3051
    %v3169 = vpack.c.b16 %v3054, %v3053
    %v3170 = vpack.c.b16 %v3056, %v3055
    %v3171 = vpack.c.b16 %v3058, %v3057
    %v3172 = vpack.c.b16 %v3060, %v3059
    %v3173 = vpack.c.b16 %v3062, %v3061
    %v3174 = vpack.c.b16 %v3064, %v3063
    %v3175 = vpack.c.b16 %v3066, %v3065
    %v3176 = vpack.c.b16 %v3068, %v3067
    %v3177 = vpack.c.b16 %v3070, %v3069
    %v3178 = vpack.c.b16 %v3072, %v3071
    %v3179 = vpack.c.b16 %v3074, %v3073
    %v3180 = vpack.c.b16 %v3076, %v3075
    %v3181 = vpack.c.b16 %v3078, %v3077
    %v3182 = vpack.c.b16 %v3080, %v3079
    %v3183 = vpack.c.b16 %v3082, %v3081
    %v3184 = vpack.c.b16 %v3084, %v3083
    %v3185 = vpack.c.b16 %v3086, %v3085
    %v3186 = vpack.c.b16 %v3088, %v3087
    %v3187 = vpack.c.b16 %v3090, %v3089
    %v3188 = vpack.c.b16 %v3092, %v3091
    %v3189 = vpack.c.b16 %v3094, %v3093
    %v3190 = vpack.c.b16 %v3096, %v3095
    %v3191 = vpack.c.b16 %v3098, %v3097
    %v3192 = vpack.c.b16 %v3100, %v3099
    %v3193 = vpack.c.b16 %v3102, %v3101
    %v3194 = vpack.c.b16 %v3104, %v3103
    %v3195 = vpack.c.b16 %v3106, %v3105
    %v3196 = vpack.c.b16 %v3108, %v3107
    %v3197 = vpack.c.b16 %v3110, %v3109
    %v3198 = vpack.c.b16 %v3112, %v3111
    %v3199 = vpack.c.b16 %v3114, %v3113
    %v3200 = vpack.c.b16 %v3116, %v3115
    %v3201 = vpack.c.b16 %v3118, %v3117
    %v3202 = vpack.c.b16 %v3120, %v3119
    %v3203 = vpack.c.b16 %v3122, %v3121
    %v3204 = vpack.c.b16 %v3124, %v3123
    %v3205 = vpack.c.b16 %v3126, %v3125
    %v3206 = vpack.c.b16 %v3128, %v3127
    %v3207 = vpack.c.b16 %v3130, %v3129
    %v3208 = vpack.c.b16 %v3132, %v3131
    %v3209 = vpack.c.b16 %v3134, %v3133
    %v3210 = vpack.c.b16 %v3136, %v3135
    %v3211 = vpack.c.b16 %v3138, %v3137
    %v3212 = vpack.c.b16 %v3140, %v3139
    %3285 = vmatpush.bf16.msra.mxu0 %v3148
    %3286 = vmatpush.bf16.msra.mxu0 %v3147
    %3287 = vmatpush.bf16.msra.mxu0 %v3146
    %3288 = vmatpush.bf16.msra.mxu0 %v3145
    %3289 = vmatpush.bf16.msra.mxu0 %v3144
    %3290 = vmatpush.bf16.msra.mxu0 %v3143
    %3291 = vmatpush.bf16.msra.mxu0 %v3142
    %3292 = vmatpush.bf16.msra.mxu0 %v3141
    %3293 = vmatmul.bf16.gmra.mxu0 %v2700
    %v3294 = vpop.f32.mrf.mxu0
    %v3295 = vadd.f32 0.0, %v3294
    %v3296 = vpop.f32.mrf.mxu0
    %3297 = vdwg.mxu0
    %3298 = vmatpush.bf16.msra.mxu0 %v3156
    %3299 = vmatpush.bf16.msra.mxu0 %v3155
    %3300 = vmatpush.bf16.msra.mxu0 %v3154
    %3301 = vmatpush.bf16.msra.mxu0 %v3153
    %3302 = vmatpush.bf16.msra.mxu0 %v3152
    %3303 = vmatpush.bf16.msra.mxu0 %v3151
    %3304 = vmatpush.bf16.msra.mxu0 %v3150
    %3305 = vmatpush.bf16.msra.mxu0 %v3149
    %3306 = vmatmul.bf16.gmra.mxu0 %v2701
    %v3307 = vpop.f32.mrf.mxu0
    %v3308 = vadd.f32 %v3295, %v3307
    %v3309 = vpop.f32.mrf.mxu0
    %3310 = vdwg.mxu0
    %3311 = vmatpush.bf16.msra.mxu0 %v3164
    %3312 = vmatpush.bf16.msra.mxu0 %v3163
    %3313 = vmatpush.bf16.msra.mxu0 %v3162
    %3314 = vmatpush.bf16.msra.mxu0 %v3161
    %3315 = vmatpush.bf16.msra.mxu0 %v3160
    %3316 = vmatpush.bf16.msra.mxu0 %v3159
    %3317 = vmatpush.bf16.msra.mxu0 %v3158
    %3318 = vmatpush.bf16.msra.mxu0 %v3157
    %3319 = vmatmul.bf16.gmra.mxu0 %v2702
    %v3320 = vpop.f32.mrf.mxu0
    %v3321 = vadd.f32 %v3308, %v3320
    %v3322 = vpop.f32.mrf.mxu0
    %3323 = vdwg.mxu0
    %3324 = vmatpush.bf16.msra.mxu0 %v3172
    %3325 = vmatpush.bf16.msra.mxu0 %v3171
    %3326 = vmatpush.bf16.msra.mxu0 %v3170
    %3327 = vmatpush.bf16.msra.mxu0 %v3169
    %3328 = vmatpush.bf16.msra.mxu0 %v3168
    %3329 = vmatpush.bf16.msra.mxu0 %v3167
    %3330 = vmatpush.bf16.msra.mxu0 %v3166
    %3331 = vmatpush.bf16.msra.mxu0 %v3165
    %3332 = vmatmul.bf16.gmra.mxu0 %v2703
    %v3333 = vpop.f32.mrf.mxu0
    %v3334 = vadd.f32 %v3321, %v3333
    %v3335 = vpop.f32.mrf.mxu0
    %3336 = vdwg.mxu0
    %3337 = vmatpush.bf16.msra.mxu0 %v3180
    %3338 = vmatpush.bf16.msra.mxu0 %v3179
    %3339 = vmatpush.bf16.msra.mxu0 %v3178
    %3340 = vmatpush.bf16.msra.mxu0 %v3177
    %3341 = vmatpush.bf16.msra.mxu0 %v3176
    %3342 = vmatpush.bf16.msra.mxu0 %v3175
    %3343 = vmatpush.bf16.msra.mxu0 %v3174
    %3344 = vmatpush.bf16.msra.mxu0 %v3173
    %3345 = vmatmul.bf16.gmra.mxu0 %v2704
    %v3346 = vpop.f32.mrf.mxu0
    %v3347 = vadd.f32 %v3334, %v3346
    %v3348 = vpop.f32.mrf.mxu0
    %3349 = vdwg.mxu0
    %3350 = vmatpush.bf16.msra.mxu0 %v3188
    %3351 = vmatpush.bf16.msra.mxu0 %v3187
    %3352 = vmatpush.bf16.msra.mxu0 %v3186
    %3353 = vmatpush.bf16.msra.mxu0 %v3185
    %3354 = vmatpush.bf16.msra.mxu0 %v3184
    %3355 = vmatpush.bf16.msra.mxu0 %v3183
    %3356 = vmatpush.bf16.msra.mxu0 %v3182
    %3357 = vmatpush.bf16.msra.mxu0 %v3181
    %3358 = vmatmul.bf16.gmra.mxu0 %v2705
    %v3359 = vpop.f32.mrf.mxu0
    %v3360 = vadd.f32 %v3347, %v3359
    %v3361 = vpop.f32.mrf.mxu0
    %3362 = vdwg.mxu0
    %3363 = vmatpush.bf16.msra.mxu0 %v3196
    %3364 = vmatpush.bf16.msra.mxu0 %v3195
    %3365 = vmatpush.bf16.msra.mxu0 %v3194
    %3366 = vmatpush.bf16.msra.mxu0 %v3193
    %3367 = vmatpush.bf16.msra.mxu0 %v3192
    %3368 = vmatpush.bf16.msra.mxu0 %v3191
    %3369 = vmatpush.bf16.msra.mxu0 %v3190
    %3370 = vmatpush.bf16.msra.mxu0 %v3189
    %3371 = vmatmul.bf16.gmra.mxu0 %v2706
    %v3372 = vpop.f32.mrf.mxu0
    %v3373 = vadd.f32 %v3360, %v3372
    %v3374 = vpop.f32.mrf.mxu0
    %3375 = vdwg.mxu0
    %3376 = vmatpush.bf16.msra.mxu0 %v3204
    %3377 = vmatpush.bf16.msra.mxu0 %v3203
    %3378 = vmatpush.bf16.msra.mxu0 %v3202
    %3379 = vmatpush.bf16.msra.mxu0 %v3201
    %3380 = vmatpush.bf16.msra.mxu0 %v3200
    %3381 = vmatpush.bf16.msra.mxu0 %v3199
    %3382 = vmatpush.bf16.msra.mxu0 %v3198
    %3383 = vmatpush.bf16.msra.mxu0 %v3197
    %3384 = vmatmul.bf16.gmra.mxu0 %v2707
    %v3385 = vpop.f32.mrf.mxu0
    %v3386 = vadd.f32 %v3373, %v3385
    %v3387 = vpop.f32.mrf.mxu0
    %3388 = vdwg.mxu0
    %3389 = vmatpush.bf16.msra.mxu0 %v3212
    %3390 = vmatpush.bf16.msra.mxu0 %v3211
    %3391 = vmatpush.bf16.msra.mxu0 %v3210
    %3392 = vmatpush.bf16.msra.mxu0 %v3209
    %3393 = vmatpush.bf16.msra.mxu0 %v3208
    %3394 = vmatpush.bf16.msra.mxu0 %v3207
    %3395 = vmatpush.bf16.msra.mxu0 %v3206
    %3396 = vmatpush.bf16.msra.mxu0 %v3205
    %3397 = vmatmul.bf16.gmra.mxu0 %v2708
    %v3398 = vpop.f32.mrf.mxu0
    %v3399 = vadd.f32 %v3386, %v3398
    %v3400 = vpop.f32.mrf.mxu0
    %3401 = vdwg.mxu0
    %3402 = vst [vmem:[#allocation11] sm:$0xff] %v3399
    // Predicated region
    $region42: #{tpu_custom_call.1} parent=1 // pred_check
      _
    $region43: #{tpu_custom_call.1} parent=1 // pred_check_branch
      %3404 = sbr.rel (0) target = $region45
    $region44: #{tpu_custom_call.1} parent=1 // pred_region
      %3406 = vsyncadd [#allocation4], 0
      %s3408 = sshll.u32 [#allocation11], 4
      %s3409 = int_to_ptr.vmem [resolvable:$true] %s3408
      %s3410 = sshll.u32 %s5, 4
      %s3411 = int_to_ptr.hbm [resolvable:$true] %s3410
      %3413 = dma.vmem_to_hbm [thread:$0]  %s3409, 128, %s3411, [#allocation4]
    $region45: #{tpu_custom_call.1} parent=1 // pred_fallthru
      _
    // Predicated region
    $region46: #{tpu_custom_call.1} parent=1 // pred_check
      _
    $region47: #{tpu_custom_call.1} parent=1 // pred_check_branch
      %3415 = sbr.rel (0) target = $region49
    $region48: #{tpu_custom_call.1} parent=1 // pred_region
      %3417 = dma.done [#allocation4], 128
    $region49: #{tpu_custom_call.1} parent=1 // pred_fallthru
      _
    %3418 = vsyncpa [#allocation3], 1
    %3419 = vsyncpa [#allocation6], 1
    %3420 = vsyncpa [#allocation9], 1
    %3421 = vsyncpa [#allocation4], 1

</llo_original>
